<compile_context>
chip_gen: v5e
topology: v5e:2x2
jax: 0.10.0
libtpu: 0.0.40
codegen_flags: <defaults>
</compile_context>

<pallas_src>
import functools

import numpy as np
import jax
import jax.numpy as jnp
from jax.experimental import pallas as pl
from jax.experimental.pallas import tpu as pltpu

LN_EPS = 1e-5                      # PyTorch nn.LayerNorm default
_VMEM_LIMIT = 64 * 1024 * 1024     # explicit scoped-VMEM budget (v5e default is only 16 MiB)


def _cparams(*semantics):
    return pltpu.CompilerParams(dimension_semantics=semantics or None,
                                vmem_limit_bytes=_VMEM_LIMIT)


# ---------------------------------------------------------------------------
# Kernels
# ---------------------------------------------------------------------------
def _apply_act(y, act):
    if act == "silu":
        return jax.nn.silu(y)
    if act == "gelu":
        return jax.nn.gelu(y)
    return y


def _matmul_act_kernel(x_ref, w_ref, o_ref, *, act):
    y = jnp.dot(x_ref[...].astype(w_ref.dtype), w_ref[...],
                preferred_element_type=jnp.float32)
    o_ref[...] = _apply_act(y, act).astype(o_ref.dtype)


def _matmul_bias_act_kernel(x_ref, w_ref, b_ref, o_ref, *, act):
    y = (jnp.dot(x_ref[...].astype(w_ref.dtype), w_ref[...],
                 preferred_element_type=jnp.float32) + b_ref[...])
    o_ref[...] = _apply_act(y, act).astype(o_ref.dtype)


def _adaln_matmul_kernel(x_ref, scale_ref, shift_ref, w_ref, o_ref):
    # Fused AdaLayerNorm (no affine) + modulation + projection.
    x = x_ref[0].astype(jnp.float32)                       # (tn, D)
    mu = jnp.mean(x, axis=-1, keepdims=True)
    var = jnp.mean(jnp.square(x - mu), axis=-1, keepdims=True)
    xn = (x - mu) * jax.lax.rsqrt(var + LN_EPS)
    xn = xn * (1.0 + scale_ref[0]) + shift_ref[0]          # (tn, D) f32
    o_ref[0] = jnp.dot(xn.astype(w_ref.dtype), w_ref[...],
                       preferred_element_type=jnp.float32).astype(o_ref.dtype)


def _mha_project(q, k, v, wo, *, n_heads, d_head, scale):
    # Multi-head attention + output projection, all heads of one batch.
    # Per-head (N, M) scores only (VMEM-friendly); softmax scale folded into q;
    # concat of head outputs avoided by accumulating o_h @ wo[h*dh:(h+1)*dh, :].
    n_rows = q.shape[0]
    d_out = wo.shape[1]
    qs = q * scale
    y = jnp.zeros((n_rows, d_out), jnp.float32)
    for h in range(n_heads):
        sl = slice(h * d_head, (h + 1) * d_head)
        s = jax.lax.dot_general(qs[:, sl], k[:, sl], (((1,), (1,)), ((), ())),
                                preferred_element_type=jnp.float32)
        s = s - jnp.max(s, axis=-1, keepdims=True)
        p = jnp.exp(s)
        p = p * pl.reciprocal(jnp.sum(p, axis=-1, keepdims=True), approx=True)
        o_h = jnp.dot(p.astype(v.dtype), v[:, sl], preferred_element_type=jnp.float32)
        y = y + jnp.dot(o_h.astype(wo.dtype), wo[sl, :],
                        preferred_element_type=jnp.float32)
    return y


def _self_attn_kernel(qkv_ref, wo_ref, bo_ref, res_ref, o_ref, *, n_heads, d_head, scale):
    d = n_heads * d_head
    qkv = qkv_ref[0]                                        # (N, 3D)
    wo = wo_ref[...]
    y = _mha_project(qkv[:, :d], qkv[:, d:2 * d], qkv[:, 2 * d:], wo,
                     n_heads=n_heads, d_head=d_head, scale=scale)
    o_ref[0] = (y + bo_ref[...] + res_ref[0]).astype(o_ref.dtype)


def _cross_attn_kernel(q_ref, kv_ref, wo_ref, bo_ref, res_ref, o_ref, *, n_heads, d_head, scale):
    d = n_heads * d_head
    kv = kv_ref[0]                                          # (M, 2D)
    wo = wo_ref[...]
    y = _mha_project(q_ref[0], kv[:, :d], kv[:, d:], wo,
                     n_heads=n_heads, d_head=d_head, scale=scale)
    o_ref[0] = (y + bo_ref[...] + res_ref[0]).astype(o_ref.dtype)


def _ff_fused_kernel(x_ref, scale_ref, shift_ref, w1v_ref, w1g_ref, b1v_ref, b1g_ref,
                     w2_ref, b2_ref, o_ref, xn_scratch, acc_scratch):
    # adaLN -> GEGLU -> linear -> +residual, FF hidden dim as reduction grid axis.
    f = pl.program_id(2)
    nf = pl.num_programs(2)

    @pl.when(f == 0)
    def _():
        x = x_ref[0].astype(jnp.float32)
        mu = jnp.mean(x, axis=-1, keepdims=True)
        var = jnp.mean(jnp.square(x - mu), axis=-1, keepdims=True)
        xn = (x - mu) * jax.lax.rsqrt(var + LN_EPS)
        xn_scratch[...] = xn * (1.0 + scale_ref[0]) + shift_ref[0]
        acc_scratch[...] = jnp.zeros_like(acc_scratch)

    xn = xn_scratch[...].astype(w1v_ref.dtype)
    hv = jnp.dot(xn, w1v_ref[...], preferred_element_type=jnp.float32) + b1v_ref[...]
    hg = jnp.dot(xn, w1g_ref[...], preferred_element_type=jnp.float32) + b1g_ref[...]
    hid = hv * jax.nn.gelu(hg)                              # tanh-approx GELU (see TODO)
    acc_scratch[...] += jnp.dot(hid.astype(w2_ref.dtype), w2_ref[...],
                                preferred_element_type=jnp.float32)

    @pl.when(f == nf - 1)
    def _():
        o_ref[0] = (acc_scratch[...] + b2_ref[...]
                    + x_ref[0].astype(jnp.float32)).astype(o_ref.dtype)


def _ln_matmul_kernel(x_ref, g_ref, b_ref, w_ref, o_ref):
    # Final affine LayerNorm fused with proj_out matmul.
    x = x_ref[...].astype(jnp.float32)
    mu = jnp.mean(x, axis=-1, keepdims=True)
    var = jnp.mean(jnp.square(x - mu), axis=-1, keepdims=True)
    xn = (x - mu) * jax.lax.rsqrt(var + LN_EPS)
    xn = xn * g_ref[...] + b_ref[...]
    o_ref[...] = jnp.dot(xn.astype(w_ref.dtype), w_ref[...],
                         preferred_element_type=jnp.float32).astype(o_ref.dtype)


def _t_embed_kernel(t_ref, freqs_ref, w0c_ref, w0s_ref, b0_ref, w1_ref, b1_ref,
                    cls_ref, o_ref):
    # PositionalEmbedding (cat[cos, sin]) -> silu(linear) -> silu(linear) + class_emb.
    # The concat is avoided by splitting W0 row-wise (exact identity).
    ang = t_ref[...] * freqs_ref[...]                       # (B, half)
    h = (jnp.dot(jnp.cos(ang), w0c_ref[...], preferred_element_type=jnp.float32)
         + jnp.dot(jnp.sin(ang), w0s_ref[...], preferred_element_type=jnp.float32)
         + b0_ref[...])
    h = jax.nn.silu(h)
    h = jax.nn.silu(jnp.dot(h, w1_ref[...], preferred_element_type=jnp.float32)
                    + b1_ref[...])
    o_ref[...] = (h + cls_ref[...]).astype(o_ref.dtype)


# ---------------------------------------------------------------------------
# pallas_call wrappers
# ---------------------------------------------------------------------------
def _row_tile(rows, cap=512):
    """Largest row tile <= cap dividing `rows` (multiple of 8 when tiling)."""
    if rows <= cap:
        return rows
    t = cap - cap % 8
    while t >= 8:
        if rows % t == 0:
            return t
        t -= 8
    return rows


def _ff_tile(f_dim, cap=2048):
    """FF hidden-dim tile: multiple of 128 dividing f_dim, else the full dim."""
    if f_dim <= cap:
        return f_dim
    t = cap - cap % 128
    while t >= 128:
        if f_dim % t == 0:
            return t
        t -= 128
    return f_dim


def _linear(x2d, w, b=None, *, act="none", out_dtype=None):
    rows, k = x2d.shape
    n = w.shape[1]
    out_dtype = x2d.dtype if out_dtype is None else out_dtype
    tm = _row_tile(rows)
    grid = (rows // tm,)
    x_spec = pl.BlockSpec((tm, k), lambda i: (i, 0))
    w_spec = pl.BlockSpec((k, n), lambda i: (0, 0))
    o_spec = pl.BlockSpec((tm, n), lambda i: (i, 0))
    out_shape = jax.ShapeDtypeStruct((rows, n), out_dtype)
    if b is None:
        return pl.pallas_call(
            functools.partial(_matmul_act_kernel, act=act),
            out_shape=out_shape, grid=grid,
            in_specs=[x_spec, w_spec], out_specs=o_spec,
            compiler_params=_cparams("parallel"))(x2d, w)
    b2 = b.reshape(1, n)
    b_spec = pl.BlockSpec((1, n), lambda i: (0, 0))
    return pl.pallas_call(
        functools.partial(_matmul_bias_act_kernel, act=act),
        out_shape=out_shape, grid=grid,
        in_specs=[x_spec, w_spec, b_spec], out_specs=o_spec,
        compiler_params=_cparams("parallel"))(x2d, w, b2)


def _adaln_matmul(x, scale, shift, w, *, out_dtype=None):
    B, N, D = x.shape
    n_out = w.shape[1]
    out_dtype = w.dtype if out_dtype is None else out_dtype
    tn = _row_tile(N, cap=256)
    return pl.pallas_call(
        _adaln_matmul_kernel,
        out_shape=jax.ShapeDtypeStruct((B, N, n_out), out_dtype),
        grid=(B, N // tn),
        in_specs=[pl.BlockSpec((1, tn, D), lambda b, i: (b, i, 0)),
                  pl.BlockSpec((1, 1, D), lambda b, i: (b, 0, 0)),
                  pl.BlockSpec((1, 1, D), lambda b, i: (b, 0, 0)),
                  pl.BlockSpec((D, n_out), lambda b, i: (0, 0))],
        out_specs=pl.BlockSpec((1, tn, n_out), lambda b, i: (b, i, 0)),
        compiler_params=_cparams("parallel", "parallel"),
    )(x, scale, shift, w)


def _self_attention(qkv, wo, bo, res, *, n_heads, d_head):
    B, N, _ = qkv.shape
    D = n_heads * d_head
    return pl.pallas_call(
        functools.partial(_self_attn_kernel, n_heads=n_heads, d_head=d_head,
                          scale=d_head ** -0.5),
        out_shape=jax.ShapeDtypeStruct((B, N, D), res.dtype),
        grid=(B,),
        in_specs=[pl.BlockSpec((1, N, 3 * D), lambda b: (b, 0, 0)),
                  pl.BlockSpec((D, D), lambda b: (0, 0)),
                  pl.BlockSpec((1, D), lambda b: (0, 0)),
                  pl.BlockSpec((1, N, D), lambda b: (b, 0, 0))],
        out_specs=pl.BlockSpec((1, N, D), lambda b: (b, 0, 0)),
        compiler_params=_cparams("parallel"),
    )(qkv, wo, bo.reshape(1, D), res)


def _cross_attention(q, kv, wo, bo, res, *, n_heads, d_head):
    B, N, D = q.shape
    M = kv.shape[1]
    return pl.pallas_call(
        functools.partial(_cross_attn_kernel, n_heads=n_heads, d_head=d_head,
                          scale=d_head ** -0.5),
        out_shape=jax.ShapeDtypeStruct((B, N, D), res.dtype),
        grid=(B,),
        in_specs=[pl.BlockSpec((1, N, D), lambda b: (b, 0, 0)),
                  pl.BlockSpec((1, M, 2 * D), lambda b: (b, 0, 0)),
                  pl.BlockSpec((D, D), lambda b: (0, 0)),
                  pl.BlockSpec((1, D), lambda b: (0, 0)),
                  pl.BlockSpec((1, N, D), lambda b: (b, 0, 0))],
        out_specs=pl.BlockSpec((1, N, D), lambda b: (b, 0, 0)),
        compiler_params=_cparams("parallel"),
    )(q, kv, wo, bo.reshape(1, D), res)


def _ff_fused(x, scale, shift, blk):
    B, N, D = x.shape
    f_dim = blk["ff_w2"].shape[0]
    tn = _row_tile(N, cap=256)
    tf = _ff_tile(f_dim)
    return pl.pallas_call(
        _ff_fused_kernel,
        out_shape=jax.ShapeDtypeStruct((B, N, D), x.dtype),
        grid=(B, N // tn, f_dim // tf),
        in_specs=[pl.BlockSpec((1, tn, D), lambda b, i, f: (b, i, 0)),
                  pl.BlockSpec((1, 1, D), lambda b, i, f: (b, 0, 0)),
                  pl.BlockSpec((1, 1, D), lambda b, i, f: (b, 0, 0)),
                  pl.BlockSpec((D, tf), lambda b, i, f: (0, f)),
                  pl.BlockSpec((D, tf), lambda b, i, f: (0, f)),
                  pl.BlockSpec((1, tf), lambda b, i, f: (0, f)),
                  pl.BlockSpec((1, tf), lambda b, i, f: (0, f)),
                  pl.BlockSpec((tf, D), lambda b, i, f: (f, 0)),
                  pl.BlockSpec((1, D), lambda b, i, f: (0, 0))],
        out_specs=pl.BlockSpec((1, tn, D), lambda b, i, f: (b, i, 0)),
        scratch_shapes=[pltpu.VMEM((tn, D), jnp.float32),
                        pltpu.VMEM((tn, D), jnp.float32)],
        compiler_params=_cparams("parallel", "parallel", "arbitrary"),
    )(x, scale, shift, blk["ff_w1v"], blk["ff_w1g"], blk["ff_b1v"], blk["ff_b1g"],
      blk["ff_w2"], blk["ff_b2"])


def _ln_matmul(x2d, gamma, beta, w):
    rows, d = x2d.shape
    n = w.shape[1]
    tm = _row_tile(rows)
    return pl.pallas_call(
        _ln_matmul_kernel,
        out_shape=jax.ShapeDtypeStruct((rows, n), jnp.float32),
        grid=(rows // tm,),
        in_specs=[pl.BlockSpec((tm, d), lambda i: (i, 0)),
                  pl.BlockSpec((1, d), lambda i: (0, 0)),
                  pl.BlockSpec((1, d), lambda i: (0, 0)),
                  pl.BlockSpec((d, n), lambda i: (0, 0))],
        out_specs=pl.BlockSpec((tm, n), lambda i: (i, 0)),
        compiler_params=_cparams("parallel"),
    )(x2d, gamma, beta, w)


def _t_embed(t, class_emb, pk, *, t_channels, max_positions=10000):
    B = t.shape[0]
    half = t_channels // 2
    freqs = (1.0 / max_positions) ** (np.arange(half, dtype=np.float32) / half)
    freqs = jnp.asarray(freqs).reshape(1, half)
    inner = pk["map1_w"].shape[1]
    return pl.pallas_call(
        _t_embed_kernel,
        out_shape=jax.ShapeDtypeStruct((B, inner), jnp.float32),
        compiler_params=_cparams(),
    )(t.reshape(B, 1), freqs, pk["map0_w_cos"], pk["map0_w_sin"], pk["map0_b"],
      pk["map1_w"], pk["map1_b"], class_emb)


# ---------------------------------------------------------------------------
# Parameter packing (done once, outside the jitted forward)
# ---------------------------------------------------------------------------
def pack_params(params, *, compute_dtype=jnp.bfloat16):
    """Concatenate QKV/KV/conditioning weights, split GEGLU weight, cast heavy
    token-path weights to `compute_dtype` (conditioning path stays f32)."""
    cd = compute_dtype
    half = params["map0_w"].shape[0] // 2
    pk = {
        "map0_w_cos": params["map0_w"][:half],
        "map0_w_sin": params["map0_w"][half:],
        "map0_b": params["map0_b"].reshape(1, -1),
        "map1_w": params["map1_w"],
        "map1_b": params["map1_b"].reshape(1, -1),
        "proj_in_w": params["proj_in_w"].astype(cd),
        "proj_out_w": params["proj_out_w"].astype(cd),
        "norm_g": params["norm_g"].reshape(1, -1),
        "norm_b": params["norm_b"].reshape(1, -1),
    }
    norm_w, norm_b, blocks = [], [], []
    for p in params["blocks"]:
        norm_w += [p["norm1_w"], p["norm2_w"], p["norm3_w"]]
        norm_b += [p["norm1_b"], p["norm2_b"], p["norm3_b"]]
        a1, a2 = p["attn1"], p["attn2"]
        f_dim = p["ff_w2"].shape[0]
        blocks.append({
            "wqkv1": jnp.concatenate([a1["wq"], a1["wk"], a1["wv"]], axis=1).astype(cd),
            "wo1": a1["wo"].astype(cd), "bo1": a1["bo"],
            "wq2": a2["wq"].astype(cd),
            "wkv2": jnp.concatenate([a2["wk"], a2["wv"]], axis=1).astype(cd),
            "wo2": a2["wo"].astype(cd), "bo2": a2["bo"],
            "ff_w1v": p["ff_w1"][:, :f_dim].astype(cd),
            "ff_w1g": p["ff_w1"][:, f_dim:].astype(cd),
            "ff_b1v": p["ff_b1"][:f_dim].reshape(1, -1),
            "ff_b1g": p["ff_b1"][f_dim:].reshape(1, -1),
            "ff_w2": p["ff_w2"].astype(cd),
            "ff_b2": p["ff_b2"].reshape(1, -1),
        })
    pk["norm_w_all"] = jnp.concatenate(norm_w, axis=1)   # (inner, depth*6*inner)
    pk["norm_b_all"] = jnp.concatenate(norm_b, axis=0)
    pk["blocks"] = blocks
    return pk


# ---------------------------------------------------------------------------
# Forward pass composition
# ---------------------------------------------------------------------------
def latent_array_transformer(x, t, cond, class_emb, pk, *, n_heads, d_head, t_channels):
    B, N, _ = x.shape
    M = cond.shape[1]
    D = n_heads * d_head

    t_cond = _t_embed(t, class_emb, pk, t_channels=t_channels)            # (B, D) f32
    # All depth*3 adaLN conditioning linears in one call (t_cond is block-invariant).
    emb_all = _linear(t_cond, pk["norm_w_all"], pk["norm_b_all"])         # (B, depth*6*D)

    h = _linear(x.reshape(B * N, -1), pk["proj_in_w"],
                out_dtype=jnp.float32).reshape(B, N, D)                   # f32 residual stream

    for i, blk in enumerate(pk["blocks"]):
        def ss(j, _i=i):
            o = _i * 6 * D + j * 2 * D
            return (emb_all[:, o:o + D].reshape(B, 1, D),
                    emb_all[:, o + D:o + 2 * D].reshape(B, 1, D))
        s1, sh1 = ss(0)
        s2, sh2 = ss(1)
        s3, sh3 = ss(2)

        # --- self-attention: adaLN fused with concatenated QKV projection ---
        qkv = _adaln_matmul(h, s1, sh1, blk["wqkv1"])                     # (B, N, 3D) cd
        h = _self_attention(qkv, blk["wo1"], blk["bo1"], h,
                            n_heads=n_heads, d_head=d_head)               # fused to_out+res

        # --- cross-attention: adaLN fused with Q projection; fused KV on cond ---
        q2 = _adaln_matmul(h, s2, sh2, blk["wq2"])                        # (B, N, D) cd
        kv2 = _linear(cond.reshape(B * M, -1), blk["wkv2"],
                      out_dtype=blk["wkv2"].dtype).reshape(B, M, 2 * D)
        h = _cross_attention(q2, kv2, blk["wo2"], blk["bo2"], h,
                             n_heads=n_heads, d_head=d_head)

        # --- fused adaLN + GEGLU + linear + residual ---
        h = _ff_fused(h, s3, sh3, blk)

    out = _ln_matmul(h.reshape(B * N, D), pk["norm_g"], pk["norm_b"], pk["proj_out_w"])
    return out.reshape(B, N, -1)


# ---------------------------------------------------------------------------
# Parameters + pure-JAX reference
# ---------------------------------------------------------------------------
def init_params(key, *, in_channels, t_channels, n_heads, d_head, depth,
                context_dim, out_channels=None):
    inner = n_heads * d_head
    kit = iter(jax.random.split(key, 512))

    def lin(fan_in, fan_out, bias=True):
        s = 1.0 / np.sqrt(fan_in)
        w = jax.random.uniform(next(kit), (fan_in, fan_out), jnp.float32, -s, s)
        b = jax.random.uniform(next(kit), (fan_out,), jnp.float32, -s, s) if bias else None
        return w, b

    params = {}
    params["map0_w"], params["map0_b"] = lin(t_channels, inner)
    params["map1_w"], params["map1_b"] = lin(inner, inner)
    params["proj_in_w"], _ = lin(in_channels, inner, bias=False)

    blocks = []
    for _ in range(depth):
        p = {}
        p["norm1_w"], p["norm1_b"] = lin(inner, 2 * inner)
        p["norm2_w"], p["norm2_b"] = lin(inner, 2 * inner)
        p["norm3_w"], p["norm3_b"] = lin(inner, 2 * inner)
        a1 = {}
        a1["wq"], _ = lin(inner, inner, bias=False)
        a1["wk"], _ = lin(inner, inner, bias=False)
        a1["wv"], _ = lin(inner, inner, bias=False)
        a1["wo"], a1["bo"] = lin(inner, inner)
        p["attn1"] = a1
        a2 = {}
        a2["wq"], _ = lin(inner, inner, bias=False)
        a2["wk"], _ = lin(context_dim, inner, bias=False)
        a2["wv"], _ = lin(context_dim, inner, bias=False)
        a2["wo"], a2["bo"] = lin(inner, inner)
        p["attn2"] = a2
        ff_inner = 4 * inner
        p["ff_w1"], p["ff_b1"] = lin(inner, 2 * ff_inner)
        p["ff_w2"], p["ff_b2"] = lin(ff_inner, inner)
        blocks.append(p)
    params["blocks"] = blocks

    params["norm_g"] = 1.0 + 0.1 * jax.random.normal(next(kit), (inner,), jnp.float32)
    params["norm_b"] = 0.1 * jax.random.normal(next(kit), (inner,), jnp.float32)
    out_ch = in_channels if out_channels is None else out_channels
    # NOTE: the PyTorch module zero-inits proj_out (zero_module); random weights are used
    # here so the end-to-end check is non-trivial — the forward math is identical.
    params["proj_out_w"], _ = lin(inner, out_ch, bias=False)
    return params


def _mm(a, b):
    return jnp.matmul(a, b, precision=jax.lax.Precision.HIGHEST)


def _ref_layernorm(x):
    mu = jnp.mean(x, axis=-1, keepdims=True)
    var = jnp.mean(jnp.square(x - mu), axis=-1, keepdims=True)
    return (x - mu) / jnp.sqrt(var + LN_EPS)


def _ref_attention(x, ctx, p, n_heads, d_head):
    B, N, _ = x.shape
    M = ctx.shape[1]
    q, k, v = _mm(x, p["wq"]), _mm(ctx, p["wk"]), _mm(ctx, p["wv"])
    sp = lambda z, L: z.reshape(B, L, n_heads, d_head).transpose(0, 2, 1, 3)
    q, k, v = sp(q, N), sp(k, M), sp(v, M)
    s = jnp.einsum("bhid,bhjd->bhij", q, k,
                   precision=jax.lax.Precision.HIGHEST) * (d_head ** -0.5)
    s = s - jnp.max(s, axis=-1, keepdims=True)
    a = jnp.exp(s)
    a = a / jnp.sum(a, axis=-1, keepdims=True)
    o = jnp.einsum("bhij,bhjd->bhid", a, v, precision=jax.lax.Precision.HIGHEST)
    o = o.transpose(0, 2, 1, 3).reshape(B, N, n_heads * d_head)
    return _mm(o, p["wo"]) + p["bo"]


def reference_forward(x, t, cond, class_emb, params, *, n_heads, d_head, t_channels,
                      max_positions=10000):
    inner = n_heads * d_head
    half = t_channels // 2
    freqs = (1.0 / max_positions) ** (jnp.arange(half, dtype=jnp.float32) / half)
    pe = t[:, None] * freqs[None, :]
    pe = jnp.concatenate([jnp.cos(pe), jnp.sin(pe)], axis=1)
    te = jax.nn.silu(_mm(pe, params["map0_w"]) + params["map0_b"])
    te = jax.nn.silu(_mm(te, params["map1_w"]) + params["map1_b"])
    t_cond = te[:, None, :] + class_emb[:, None, :]

    h = _mm(x, params["proj_in_w"])
    for p in params["blocks"]:
        emb = _mm(t_cond, p["norm1_w"]) + p["norm1_b"]
        scale, shift = emb[..., :inner], emb[..., inner:]
        xn = _ref_layernorm(h) * (1 + scale) + shift
        h = h + _ref_attention(xn, xn, p["attn1"], n_heads, d_head)

        emb = _mm(t_cond, p["norm2_w"]) + p["norm2_b"]
        scale, shift = emb[..., :inner], emb[..., inner:]
        xn = _ref_layernorm(h) * (1 + scale) + shift
        h = h + _ref_attention(xn, cond, p["attn2"], n_heads, d_head)

        emb = _mm(t_cond, p["norm3_w"]) + p["norm3_b"]
        scale, shift = emb[..., :inner], emb[..., inner:]
        xn = _ref_layernorm(h) * (1 + scale) + shift
        y = _mm(xn, p["ff_w1"]) + p["ff_b1"]
        d_ff = p["ff_w2"].shape[0]
        ff = y[..., :d_ff] * jax.nn.gelu(y[..., d_ff:])
        h = h + (_mm(ff, p["ff_w2"]) + p["ff_b2"])

    hn = _ref_layernorm(h) * params["norm_g"] + params["norm_b"]
    return _mm(hn, params["proj_out_w"])


# ---------------------------------------------------------------------------
if __name__ == "__main__":
    B, N, M = 2, 8, 6
    in_channels = 16
    t_channels = 32
    n_heads, d_head = 4, 16
    inner = n_heads * d_head            # 64
    context_dim = 32
    depth = 2

    key = jax.random.PRNGKey(0)
    kp, kx, kt, kc, ke = jax.random.split(key, 5)
    params = init_params(kp, in_channels=in_channels, t_channels=t_channels,
                         n_heads=n_heads, d_head=d_head, depth=depth,
                         context_dim=context_dim)
    x = jax.random.normal(kx, (B, N, in_channels), jnp.float32)
    t = jax.random.uniform(kt, (B,), jnp.float32, 0.0, 10.0)
    cond = jax.random.normal(kc, (B, M, context_dim), jnp.float32)
    class_emb = jax.random.normal(ke, (B, inner), jnp.float32)

    # Weight packing (concat QKV / KV / conditioning linears, split GEGLU, dtype cast)
    # happens once, outside the jitted forward.
    packed_bf16 = pack_params(params, compute_dtype=jnp.bfloat16)   # optimized default
    packed_f32 = pack_params(params, compute_dtype=jnp.float32)     # tight-parity check

    fwd = jax.jit(functools.partial(latent_array_transformer,
                                    n_heads=n_heads, d_head=d_head,
                                    t_channels=t_channels))

    out_bf16 = jax.block_until_ready(fwd(x, t, cond, class_emb, packed_bf16))
    out_f32 = jax.block_until_ready(fwd(x, t, cond, class_emb, packed_f32))

    ref = reference_forward(x, t, cond, class_emb, params,
                            n_heads=n_heads, d_head=d_head, t_channels=t_channels)
    assert out_bf16.shape == (B, N, in_channels)
    assert out_f32.shape == (B, N, in_channels)
    # f32-operand run: tight parity (tolerance allows the EUP approx-reciprocal softmax).
    np.testing.assert_allclose(np.asarray(out_f32), np.asarray(ref), rtol=1e-2, atol=1e-2)
    # bf16 MXU-operand run: looser tolerance, per the bf16 numerics.
    np.testing.assert_allclose(np.asarray(out_bf16), np.asarray(ref), rtol=7.5e-2, atol=7.5e-2)
    print("KERNEL_OK")
</pallas_src>

<mosaic_0001>
module attributes {stable_mosaic.version = 11 : i64} {
  func.func @_t_embed_kernel(%arg0: memref<2x1xf32, #tpu.memory_space<vmem>>, %arg1: memref<1x16xf32, #tpu.memory_space<vmem>>, %arg2: memref<16x64xf32, #tpu.memory_space<vmem>>, %arg3: memref<16x64xf32, #tpu.memory_space<vmem>>, %arg4: memref<1x64xf32, #tpu.memory_space<vmem>>, %arg5: memref<64x64xf32, #tpu.memory_space<vmem>>, %arg6: memref<1x64xf32, #tpu.memory_space<vmem>>, %arg7: memref<2x64xf32, #tpu.memory_space<vmem>>, %arg8: memref<2x64xf32, #tpu.memory_space<vmem>>) attributes {dimension_semantics = [], scalar_prefetch = 0 : i64, scratch_operands = 0 : i64, tpu.core_type = #tpu.core_type<tc>} {
    %c0 = arith.constant 0 : index
    %c0_0 = arith.constant 0 : index
    %0 = vector.load %arg0[%c0, %c0_0] : memref<2x1xf32, #tpu.memory_space<vmem>>, vector<2x1xf32>
    %c0_1 = arith.constant 0 : index
    %c0_2 = arith.constant 0 : index
    %1 = vector.load %arg1[%c0_1, %c0_2] : memref<1x16xf32, #tpu.memory_space<vmem>>, vector<1x16xf32>
    %2 = vector.broadcast %0 : vector<2x1xf32> to vector<2x16xf32>
    %3 = vector.broadcast %1 : vector<1x16xf32> to vector<2x16xf32>
    %4 = arith.mulf %2, %3 : vector<2x16xf32>
    %5 = math.cos %4 : vector<2x16xf32>
    %c0_3 = arith.constant 0 : index
    %c0_4 = arith.constant 0 : index
    %6 = vector.load %arg2[%c0_3, %c0_4] : memref<16x64xf32, #tpu.memory_space<vmem>>, vector<16x64xf32>
    %cst = arith.constant dense<0.000000e+00> : vector<2x64xf32>
    %7 = tpu.matmul %5, %6, %cst {dimension_numbers = #tpu.dot_dimension_numbers<[1], [0], [0], [1], [0, 0, 1, 1], [], []>} : vector<2x16xf32>, vector<16x64xf32>, vector<2x64xf32> -> vector<2x64xf32>
    %8 = math.sin %4 : vector<2x16xf32>
    %c0_5 = arith.constant 0 : index
    %c0_6 = arith.constant 0 : index
    %9 = vector.load %arg3[%c0_5, %c0_6] : memref<16x64xf32, #tpu.memory_space<vmem>>, vector<16x64xf32>
    %cst_7 = arith.constant dense<0.000000e+00> : vector<2x64xf32>
    %10 = tpu.matmul %8, %9, %cst_7 {dimension_numbers = #tpu.dot_dimension_numbers<[1], [0], [0], [1], [0, 0, 1, 1], [], []>} : vector<2x16xf32>, vector<16x64xf32>, vector<2x64xf32> -> vector<2x64xf32>
    %11 = arith.addf %7, %10 : vector<2x64xf32>
    %c0_8 = arith.constant 0 : index
    %c0_9 = arith.constant 0 : index
    %12 = vector.load %arg4[%c0_8, %c0_9] : memref<1x64xf32, #tpu.memory_space<vmem>>, vector<1x64xf32>
    %13 = vector.broadcast %12 : vector<1x64xf32> to vector<2x64xf32>
    %14 = arith.addf %11, %13 : vector<2x64xf32>
    %15 = arith.negf %14 : vector<2x64xf32>
    %16 = math.exp %15 : vector<2x64xf32>
    %cst_10 = arith.constant 1.000000e+00 : f32
    %17 = vector.broadcast %cst_10 : f32 to vector<2x64xf32>
    %18 = arith.addf %17, %16 : vector<2x64xf32>
    %19 = arith.divf %17, %18 : vector<2x64xf32>
    %20 = arith.mulf %14, %19 : vector<2x64xf32>
    %c0_11 = arith.constant 0 : index
    %c0_12 = arith.constant 0 : index
    %21 = vector.load %arg5[%c0_11, %c0_12] : memref<64x64xf32, #tpu.memory_space<vmem>>, vector<64x64xf32>
    %cst_13 = arith.constant dense<0.000000e+00> : vector<2x64xf32>
    %22 = tpu.matmul %20, %21, %cst_13 {dimension_numbers = #tpu.dot_dimension_numbers<[1], [0], [0], [1], [0, 0, 1, 1], [], []>} : vector<2x64xf32>, vector<64x64xf32>, vector<2x64xf32> -> vector<2x64xf32>
    %c0_14 = arith.constant 0 : index
    %c0_15 = arith.constant 0 : index
    %23 = vector.load %arg6[%c0_14, %c0_15] : memref<1x64xf32, #tpu.memory_space<vmem>>, vector<1x64xf32>
    %24 = vector.broadcast %23 : vector<1x64xf32> to vector<2x64xf32>
    %25 = arith.addf %22, %24 : vector<2x64xf32>
    %26 = arith.negf %25 : vector<2x64xf32>
    %27 = math.exp %26 : vector<2x64xf32>
    %cst_16 = arith.constant 1.000000e+00 : f32
    %28 = vector.broadcast %cst_16 : f32 to vector<2x64xf32>
    %29 = arith.addf %28, %27 : vector<2x64xf32>
    %30 = arith.divf %28, %29 : vector<2x64xf32>
    %31 = arith.mulf %25, %30 : vector<2x64xf32>
    %c0_17 = arith.constant 0 : index
    %c0_18 = arith.constant 0 : index
    %32 = vector.load %arg7[%c0_17, %c0_18] : memref<2x64xf32, #tpu.memory_space<vmem>>, vector<2x64xf32>
    %33 = arith.addf %31, %32 : vector<2x64xf32>
    %c0_19 = arith.constant 0 : index
    %c0_20 = arith.constant 0 : index
    %34 = vector.load %arg8[%c0_19, %c0_20] : memref<2x64xf32, #tpu.memory_space<vmem>>, vector<2x64xf32>
    tpu.vector_store %arg8[%c0_19, %c0_20], %33 {strides = array<i32>} : memref<2x64xf32, #tpu.memory_space<vmem>>, vector<2x64xf32>,
    return
  }
}

module attributes {stable_mosaic.version = 11 : i64} {
  func.func @_matmul_bias_act_kernel(%arg0: i32, %arg1: memref<2x64xf32, #tpu.memory_space<vmem>>, %arg2: memref<64x768xf32, #tpu.memory_space<vmem>>, %arg3: memref<1x768xf32, #tpu.memory_space<vmem>>, %arg4: memref<2x768xf32, #tpu.memory_space<vmem>>) attributes {dimension_semantics = [#tpu.dimension_semantics<parallel>], iteration_bounds = array<i64: 1>, scalar_prefetch = 0 : i64, scratch_operands = 0 : i64, tpu.core_type = #tpu.core_type<tc>, window_params = [{transform_indices = @transform_0, window_bounds = array<i64: 2, 64>}, {pipeline_mode = #tpu.pipeline_mode<synchronous>, transform_indices = @transform_1, window_bounds = array<i64: 64, 768>}, {pipeline_mode = #tpu.pipeline_mode<synchronous>, transform_indices = @transform_2, window_bounds = array<i64: 1, 768>}, {transform_indices = @transform_3, window_bounds = array<i64: 2, 768>}]} {
    %c0 = arith.constant 0 : index
    %c0_0 = arith.constant 0 : index
    %0 = vector.load %arg1[%c0, %c0_0] : memref<2x64xf32, #tpu.memory_space<vmem>>, vector<2x64xf32>
    %c0_1 = arith.constant 0 : index
    %c0_2 = arith.constant 0 : index
    %1 = vector.load %arg2[%c0_1, %c0_2] : memref<64x768xf32, #tpu.memory_space<vmem>>, vector<64x768xf32>
    %cst = arith.constant dense<0.000000e+00> : vector<2x768xf32>
    %2 = tpu.matmul %0, %1, %cst {dimension_numbers = #tpu.dot_dimension_numbers<[1], [0], [0], [1], [0, 0, 1, 1], [], []>} : vector<2x64xf32>, vector<64x768xf32>, vector<2x768xf32> -> vector<2x768xf32>
    %c0_3 = arith.constant 0 : index
    %c0_4 = arith.constant 0 : index
    %3 = vector.load %arg3[%c0_3, %c0_4] : memref<1x768xf32, #tpu.memory_space<vmem>>, vector<1x768xf32>
    %4 = vector.broadcast %3 : vector<1x768xf32> to vector<2x768xf32>
    %5 = arith.addf %2, %4 : vector<2x768xf32>
    %c0_5 = arith.constant 0 : index
    %c0_6 = arith.constant 0 : index
    %6 = vector.load %arg4[%c0_5, %c0_6] : memref<2x768xf32, #tpu.memory_space<vmem>>, vector<2x768xf32>
    tpu.vector_store %arg4[%c0_5, %c0_6], %5 {strides = array<i32>} : memref<2x768xf32, #tpu.memory_space<vmem>>, vector<2x768xf32>,
    return
  }
  func.func @transform_0(%arg0: i32) -> (i32, i32) {
    %c0_i32 = arith.constant 0 : i32
    %c0_i32_0 = arith.constant 0 : i32
    return %arg0, %c0_i32 : i32, i32
  }
  func.func @transform_1(%arg0: i32) -> (i32, i32) {
    %c0_i32 = arith.constant 0 : i32
    %c0_i32_0 = arith.constant 0 : i32
    %c0_i32_1 = arith.constant 0 : i32
    return %c0_i32, %c0_i32_0 : i32, i32
  }
  func.func @transform_2(%arg0: i32) -> (i32, i32) {
    %c0_i32 = arith.constant 0 : i32
    %c0_i32_0 = arith.constant 0 : i32
    %c0_i32_1 = arith.constant 0 : i32
    return %c0_i32, %c0_i32_0 : i32, i32
  }
  func.func @transform_3(%arg0: i32) -> (i32, i32) {
    %c0_i32 = arith.constant 0 : i32
    %c0_i32_0 = arith.constant 0 : i32
    return %arg0, %c0_i32 : i32, i32
  }
}

module attributes {stable_mosaic.version = 11 : i64} {
  func.func @_matmul_act_kernel(%arg0: i32, %arg1: memref<16x16xf32, #tpu.memory_space<vmem>>, %arg2: memref<16x64xbf16, #tpu.memory_space<vmem>>, %arg3: memref<16x64xf32, #tpu.memory_space<vmem>>) attributes {dimension_semantics = [#tpu.dimension_semantics<parallel>], iteration_bounds = array<i64: 1>, scalar_prefetch = 0 : i64, scratch_operands = 0 : i64, tpu.core_type = #tpu.core_type<tc>, window_params = [{transform_indices = @transform_0, window_bounds = array<i64: 16, 16>}, {pipeline_mode = #tpu.pipeline_mode<synchronous>, transform_indices = @transform_1, window_bounds = array<i64: 16, 64>}, {transform_indices = @transform_2, window_bounds = array<i64: 16, 64>}]} {
    %c0 = arith.constant 0 : index
    %c0_0 = arith.constant 0 : index
    %0 = vector.load %arg1[%c0, %c0_0] : memref<16x16xf32, #tpu.memory_space<vmem>>, vector<16x16xf32>
    %1 = arith.truncf %0 : vector<16x16xf32> to vector<16x16xbf16>
    %c0_1 = arith.constant 0 : index
    %c0_2 = arith.constant 0 : index
    %2 = vector.load %arg2[%c0_1, %c0_2] : memref<16x64xbf16, #tpu.memory_space<vmem>>, vector<16x64xbf16>
    %cst = arith.constant dense<0.000000e+00> : vector<16x64xf32>
    %3 = tpu.matmul %1, %2, %cst {dimension_numbers = #tpu.dot_dimension_numbers<[1], [0], [0], [1], [0, 0, 1, 1], [], []>} : vector<16x16xbf16>, vector<16x64xbf16>, vector<16x64xf32> -> vector<16x64xf32>
    %c0_3 = arith.constant 0 : index
    %c0_4 = arith.constant 0 : index
    %4 = vector.load %arg3[%c0_3, %c0_4] : memref<16x64xf32, #tpu.memory_space<vmem>>, vector<16x64xf32>
    tpu.vector_store %arg3[%c0_3, %c0_4], %3 {strides = array<i32>} : memref<16x64xf32, #tpu.memory_space<vmem>>, vector<16x64xf32>,
    return
  }
  func.func @transform_0(%arg0: i32) -> (i32, i32) {
    %c0_i32 = arith.constant 0 : i32
    %c0_i32_0 = arith.constant 0 : i32
    return %arg0, %c0_i32 : i32, i32
  }
  func.func @transform_1(%arg0: i32) -> (i32, i32) {
    %c0_i32 = arith.constant 0 : i32
    %c0_i32_0 = arith.constant 0 : i32
    %c0_i32_1 = arith.constant 0 : i32
    return %c0_i32, %c0_i32_0 : i32, i32
  }
  func.func @transform_2(%arg0: i32) -> (i32, i32) {
    %c0_i32 = arith.constant 0 : i32
    %c0_i32_0 = arith.constant 0 : i32
    return %arg0, %c0_i32 : i32, i32
  }
}

module attributes {stable_mosaic.version = 11 : i64} {
  func.func @_adaln_matmul_kernel(%arg0: i32, %arg1: i32, %arg2: memref<1x8x64xf32, #tpu.memory_space<vmem>>, %arg3: memref<1x1x64xf32, #tpu.memory_space<vmem>>, %arg4: memref<1x1x64xf32, #tpu.memory_space<vmem>>, %arg5: memref<64x192xbf16, #tpu.memory_space<vmem>>, %arg6: memref<1x8x192xbf16, #tpu.memory_space<vmem>>) attributes {dimension_semantics = [#tpu.dimension_semantics<parallel>, #tpu.dimension_semantics<parallel>], iteration_bounds = array<i64: 2, 1>, scalar_prefetch = 0 : i64, scratch_operands = 0 : i64, tpu.core_type = #tpu.core_type<tc>, window_params = [{transform_indices = @transform_0, window_bounds = array<i64: 1, 8, 64>}, {transform_indices = @transform_1, window_bounds = array<i64: 1, 1, 64>}, {transform_indices = @transform_2, window_bounds = array<i64: 1, 1, 64>}, {pipeline_mode = #tpu.pipeline_mode<synchronous>, transform_indices = @transform_3, window_bounds = array<i64: 64, 192>}, {transform_indices = @transform_4, window_bounds = array<i64: 1, 8, 192>}]} {
    %c0 = arith.constant 0 : index
    %c0_0 = arith.constant 0 : index
    %c0_1 = arith.constant 0 : index
    %0 = vector.load %arg2[%c0, %c0_0, %c0_1] : memref<1x8x64xf32, #tpu.memory_space<vmem>>, vector<1x8x64xf32>
    %1 = vector.shape_cast %0 : vector<1x8x64xf32> to vector<8x64xf32>
    %cst = arith.constant dense<0.000000e+00> : vector<8xf32>
    %2 = vector.multi_reduction <add>, %1, %cst [1] : vector<8x64xf32> to vector<8xf32>
    %3 = vector.shape_cast %2 : vector<8xf32> to vector<8x1xf32>
    %cst_2 = arith.constant 6.400000e+01 : f32
    %4 = vector.broadcast %cst_2 : f32 to vector<8x1xf32>
    %5 = arith.divf %3, %4 : vector<8x1xf32>
    %6 = vector.broadcast %5 : vector<8x1xf32> to vector<8x64xf32>
    %7 = arith.subf %1, %6 : vector<8x64xf32>
    %8 = arith.mulf %7, %7 : vector<8x64xf32>
    %cst_3 = arith.constant dense<0.000000e+00> : vector<8xf32>
    %9 = vector.multi_reduction <add>, %8, %cst_3 [1] : vector<8x64xf32> to vector<8xf32>
    %10 = vector.shape_cast %9 : vector<8xf32> to vector<8x1xf32>
    %cst_4 = arith.constant 6.400000e+01 : f32
    %11 = vector.broadcast %cst_4 : f32 to vector<8x1xf32>
    %12 = arith.divf %10, %11 : vector<8x1xf32>
    %13 = vector.broadcast %5 : vector<8x1xf32> to vector<8x64xf32>
    %14 = arith.subf %1, %13 : vector<8x64xf32>
    %cst_5 = arith.constant 9.99999974E-6 : f32
    %15 = vector.broadcast %cst_5 : f32 to vector<8x1xf32>
    %16 = arith.addf %12, %15 : vector<8x1xf32>
    %17 = math.rsqrt %16 : vector<8x1xf32>
    %18 = vector.broadcast %17 : vector<8x1xf32> to vector<8x64xf32>
    %19 = arith.mulf %14, %18 : vector<8x64xf32>
    %c0_6 = arith.constant 0 : index
    %c0_7 = arith.constant 0 : index
    %c0_8 = arith.constant 0 : index
    %20 = vector.load %arg3[%c0_6, %c0_7, %c0_8] : memref<1x1x64xf32, #tpu.memory_space<vmem>>, vector<1x1x64xf32>
    %21 = vector.shape_cast %20 : vector<1x1x64xf32> to vector<1x64xf32>
    %cst_9 = arith.constant 1.000000e+00 : f32
    %22 = vector.broadcast %cst_9 : f32 to vector<1x64xf32>
    %23 = arith.addf %22, %21 : vector<1x64xf32>
    %24 = vector.broadcast %23 : vector<1x64xf32> to vector<8x64xf32>
    %25 = arith.mulf %19, %24 : vector<8x64xf32>
    %c0_10 = arith.constant 0 : index
    %c0_11 = arith.constant 0 : index
    %c0_12 = arith.constant 0 : index
    %26 = vector.load %arg4[%c0_10, %c0_11, %c0_12] : memref<1x1x64xf32, #tpu.memory_space<vmem>>, vector<1x1x64xf32>
    %27 = vector.shape_cast %26 : vector<1x1x64xf32> to vector<1x64xf32>
    %28 = vector.broadcast %27 : vector<1x64xf32> to vector<8x64xf32>
    %29 = arith.addf %25, %28 : vector<8x64xf32>
    %30 = arith.truncf %29 : vector<8x64xf32> to vector<8x64xbf16>
    %c0_13 = arith.constant 0 : index
    %c0_14 = arith.constant 0 : index
    %31 = vector.load %arg5[%c0_13, %c0_14] : memref<64x192xbf16, #tpu.memory_space<vmem>>, vector<64x192xbf16>
    %cst_15 = arith.constant dense<0.000000e+00> : vector<8x192xf32>
    %32 = tpu.matmul %30, %31, %cst_15 {dimension_numbers = #tpu.dot_dimension_numbers<[1], [0], [0], [1], [0, 0, 1, 1], [], []>} : vector<8x64xbf16>, vector<64x192xbf16>, vector<8x192xf32> -> vector<8x192xf32>
    %33 = arith.truncf %32 : vector<8x192xf32> to vector<8x192xbf16>
    %c0_16 = arith.constant 0 : index
    %c0_17 = arith.constant 0 : index
    %c0_18 = arith.constant 0 : index
    %34 = vector.load %arg6[%c0_16, %c0_17, %c0_18] : memref<1x8x192xbf16, #tpu.memory_space<vmem>>, vector<1x8x192xbf16>
    %35 = vector.shape_cast %34 : vector<1x8x192xbf16> to vector<8x192xbf16>
    %36 = vector.shape_cast %33 : vector<8x192xbf16> to vector<1x8x192xbf16>
    tpu.vector_store %arg6[%c0_16, %c0_17, %c0_18], %36 {strides = array<i32>} : memref<1x8x192xbf16, #tpu.memory_space<vmem>>, vector<1x8x192xbf16>,
    return
  }
  func.func @transform_0(%arg0: i32, %arg1: i32) -> (i32, i32, i32) {
    %c0_i32 = arith.constant 0 : i32
    %c0_i32_0 = arith.constant 0 : i32
    return %arg0, %arg1, %c0_i32 : i32, i32, i32
  }
  func.func @transform_1(%arg0: i32, %arg1: i32) -> (i32, i32, i32) {
    %c0_i32 = arith.constant 0 : i32
    %c0_i32_0 = arith.constant 0 : i32
    %c0_i32_1 = arith.constant 0 : i32
    return %arg0, %c0_i32, %c0_i32_0 : i32, i32, i32
  }
  func.func @transform_2(%arg0: i32, %arg1: i32) -> (i32, i32, i32) {
    %c0_i32 = arith.constant 0 : i32
    %c0_i32_0 = arith.constant 0 : i32
    %c0_i32_1 = arith.constant 0 : i32
    return %arg0, %c0_i32, %c0_i32_0 : i32, i32, i32
  }
  func.func @transform_3(%arg0: i32, %arg1: i32) -> (i32, i32) {
    %c0_i32 = arith.constant 0 : i32
    %c0_i32_0 = arith.constant 0 : i32
    %c0_i32_1 = arith.constant 0 : i32
    return %c0_i32, %c0_i32_0 : i32, i32
  }
  func.func @transform_4(%arg0: i32, %arg1: i32) -> (i32, i32, i32) {
    %c0_i32 = arith.constant 0 : i32
    %c0_i32_0 = arith.constant 0 : i32
    return %arg0, %arg1, %c0_i32 : i32, i32, i32
  }
}

module attributes {stable_mosaic.version = 11 : i64} {
  func.func @_self_attn_kernel(%arg0: i32, %arg1: memref<1x8x192xbf16, #tpu.memory_space<vmem>>, %arg2: memref<64x64xbf16, #tpu.memory_space<vmem>>, %arg3: memref<1x64xf32, #tpu.memory_space<vmem>>, %arg4: memref<1x8x64xf32, #tpu.memory_space<vmem>>, %arg5: memref<1x8x64xf32, #tpu.memory_space<vmem>>) attributes {dimension_semantics = [#tpu.dimension_semantics<parallel>], iteration_bounds = array<i64: 2>, scalar_prefetch = 0 : i64, scratch_operands = 0 : i64, tpu.core_type = #tpu.core_type<tc>, window_params = [{transform_indices = @transform_0, window_bounds = array<i64: 1, 8, 192>}, {pipeline_mode = #tpu.pipeline_mode<synchronous>, transform_indices = @transform_1, window_bounds = array<i64: 64, 64>}, {pipeline_mode = #tpu.pipeline_mode<synchronous>, transform_indices = @transform_2, window_bounds = array<i64: 1, 64>}, {transform_indices = @transform_3, window_bounds = array<i64: 1, 8, 64>}, {transform_indices = @transform_4, window_bounds = array<i64: 1, 8, 64>}]} {
    %c0 = arith.constant 0 : index
    %c0_0 = arith.constant 0 : index
    %c0_1 = arith.constant 0 : index
    %0 = vector.load %arg1[%c0, %c0_0, %c0_1] : memref<1x8x192xbf16, #tpu.memory_space<vmem>>, vector<1x8x192xbf16>
    %1 = vector.shape_cast %0 : vector<1x8x192xbf16> to vector<8x192xbf16>
    %c0_2 = arith.constant 0 : index
    %c0_3 = arith.constant 0 : index
    %2 = vector.load %arg2[%c0_2, %c0_3] : memref<64x64xbf16, #tpu.memory_space<vmem>>, vector<64x64xbf16>
    %3 = vector.extract_strided_slice %1 {offsets = [0, 0], sizes = [8, 64], strides = [1, 1]} : vector<8x192xbf16> to vector<8x64xbf16>
    %4 = vector.extract_strided_slice %1 {offsets = [0, 64], sizes = [8, 64], strides = [1, 1]} : vector<8x192xbf16> to vector<8x64xbf16>
    %5 = vector.extract_strided_slice %1 {offsets = [0, 128], sizes = [8, 64], strides = [1, 1]} : vector<8x192xbf16> to vector<8x64xbf16>
    %cst = arith.constant 2.500000e-01 : bf16
    %6 = vector.broadcast %cst : bf16 to vector<8x64xbf16>
    %7 = arith.mulf %3, %6 : vector<8x64xbf16>
    %cst_4 = arith.constant 0.000000e+00 : f32
    %8 = vector.broadcast %cst_4 : f32 to vector<8x64xf32>
    %9 = vector.extract_strided_slice %7 {offsets = [0, 0], sizes = [8, 16], strides = [1, 1]} : vector<8x64xbf16> to vector<8x16xbf16>
    %10 = vector.extract_strided_slice %4 {offsets = [0, 0], sizes = [8, 16], strides = [1, 1]} : vector<8x64xbf16> to vector<8x16xbf16>
    %cst_5 = arith.constant dense<0.000000e+00> : vector<8x8xf32>
    %11 = tpu.matmul %9, %10, %cst_5 {dimension_numbers = #tpu.dot_dimension_numbers<[1], [1], [0], [0], [0, 0, 1, 0], [], []>} : vector<8x16xbf16>, vector<8x16xbf16>, vector<8x8xf32> -> vector<8x8xf32>
    %cst_6 = arith.constant dense<0xFF800000> : vector<8xf32>
    %12 = vector.multi_reduction <maximumf>, %11, %cst_6 [1] : vector<8x8xf32> to vector<8xf32>
    %13 = vector.shape_cast %12 : vector<8xf32> to vector<8x1xf32>
    %14 = vector.broadcast %13 : vector<8x1xf32> to vector<8x8xf32>
    %15 = arith.subf %11, %14 : vector<8x8xf32>
    %16 = math.exp %15 : vector<8x8xf32>
    %cst_7 = arith.constant dense<0.000000e+00> : vector<8xf32>
    %17 = vector.multi_reduction <add>, %16, %cst_7 [1] : vector<8x8xf32> to vector<8xf32>
    %18 = vector.shape_cast %17 : vector<8xf32> to vector<8x1xf32>
    %19 = tpu.reciprocal %18 {approx = true} : vector<8x1xf32> -> vector<8x1xf32>
    %20 = vector.broadcast %19 : vector<8x1xf32> to vector<8x8xf32>
    %21 = arith.mulf %16, %20 : vector<8x8xf32>
    %22 = arith.truncf %21 : vector<8x8xf32> to vector<8x8xbf16>
    %23 = vector.extract_strided_slice %5 {offsets = [0, 0], sizes = [8, 16], strides = [1, 1]} : vector<8x64xbf16> to vector<8x16xbf16>
    %cst_8 = arith.constant dense<0.000000e+00> : vector<8x16xf32>
    %24 = tpu.matmul %22, %23, %cst_8 {dimension_numbers = #tpu.dot_dimension_numbers<[1], [0], [0], [1], [0, 0, 1, 1], [], []>} : vector<8x8xbf16>, vector<8x16xbf16>, vector<8x16xf32> -> vector<8x16xf32>
    %25 = arith.truncf %24 : vector<8x16xf32> to vector<8x16xbf16>
    %26 = vector.extract_strided_slice %2 {offsets = [0, 0], sizes = [16, 64], strides = [1, 1]} : vector<64x64xbf16> to vector<16x64xbf16>
    %cst_9 = arith.constant dense<0.000000e+00> : vector<8x64xf32>
    %27 = tpu.matmul %25, %26, %cst_9 {dimension_numbers = #tpu.dot_dimension_numbers<[1], [0], [0], [1], [0, 0, 1, 1], [], []>} : vector<8x16xbf16>, vector<16x64xbf16>, vector<8x64xf32> -> vector<8x64xf32>
    %28 = arith.addf %8, %27 : vector<8x64xf32>
    %29 = vector.extract_strided_slice %7 {offsets = [0, 16], sizes = [8, 16], strides = [1, 1]} : vector<8x64xbf16> to vector<8x16xbf16>
    %30 = vector.extract_strided_slice %4 {offsets = [0, 16], sizes = [8, 16], strides = [1, 1]} : vector<8x64xbf16> to vector<8x16xbf16>
    %cst_10 = arith.constant dense<0.000000e+00> : vector<8x8xf32>
    %31 = tpu.matmul %29, %30, %cst_10 {dimension_numbers = #tpu.dot_dimension_numbers<[1], [1], [0], [0], [0, 0, 1, 0], [], []>} : vector<8x16xbf16>, vector<8x16xbf16>, vector<8x8xf32> -> vector<8x8xf32>
    %cst_11 = arith.constant dense<0xFF800000> : vector<8xf32>
    %32 = vector.multi_reduction <maximumf>, %31, %cst_11 [1] : vector<8x8xf32> to vector<8xf32>
    %33 = vector.shape_cast %32 : vector<8xf32> to vector<8x1xf32>
    %34 = vector.broadcast %33 : vector<8x1xf32> to vector<8x8xf32>
    %35 = arith.subf %31, %34 : vector<8x8xf32>
    %36 = math.exp %35 : vector<8x8xf32>
    %cst_12 = arith.constant dense<0.000000e+00> : vector<8xf32>
    %37 = vector.multi_reduction <add>, %36, %cst_12 [1] : vector<8x8xf32> to vector<8xf32>
    %38 = vector.shape_cast %37 : vector<8xf32> to vector<8x1xf32>
    %39 = tpu.reciprocal %38 {approx = true} : vector<8x1xf32> -> vector<8x1xf32>
    %40 = vector.broadcast %39 : vector<8x1xf32> to vector<8x8xf32>
    %41 = arith.mulf %36, %40 : vector<8x8xf32>
    %42 = arith.truncf %41 : vector<8x8xf32> to vector<8x8xbf16>
    %43 = vector.extract_strided_slice %5 {offsets = [0, 16], sizes = [8, 16], strides = [1, 1]} : vector<8x64xbf16> to vector<8x16xbf16>
    %cst_13 = arith.constant dense<0.000000e+00> : vector<8x16xf32>
    %44 = tpu.matmul %42, %43, %cst_13 {dimension_numbers = #tpu.dot_dimension_numbers<[1], [0], [0], [1], [0, 0, 1, 1], [], []>} : vector<8x8xbf16>, vector<8x16xbf16>, vector<8x16xf32> -> vector<8x16xf32>
    %45 = arith.truncf %44 : vector<8x16xf32> to vector<8x16xbf16>
    %46 = vector.extract_strided_slice %2 {offsets = [16, 0], sizes = [16, 64], strides = [1, 1]} : vector<64x64xbf16> to vector<16x64xbf16>
    %cst_14 = arith.constant dense<0.000000e+00> : vector<8x64xf32>
    %47 = tpu.matmul %45, %46, %cst_14 {dimension_numbers = #tpu.dot_dimension_numbers<[1], [0], [0], [1], [0, 0, 1, 1], [], []>} : vector<8x16xbf16>, vector<16x64xbf16>, vector<8x64xf32> -> vector<8x64xf32>
    %48 = arith.addf %28, %47 : vector<8x64xf32>
    %49 = vector.extract_strided_slice %7 {offsets = [0, 32], sizes = [8, 16], strides = [1, 1]} : vector<8x64xbf16> to vector<8x16xbf16>
    %50 = vector.extract_strided_slice %4 {offsets = [0, 32], sizes = [8, 16], strides = [1, 1]} : vector<8x64xbf16> to vector<8x16xbf16>
    %cst_15 = arith.constant dense<0.000000e+00> : vector<8x8xf32>
    %51 = tpu.matmul %49, %50, %cst_15 {dimension_numbers = #tpu.dot_dimension_numbers<[1], [1], [0], [0], [0, 0, 1, 0], [], []>} : vector<8x16xbf16>, vector<8x16xbf16>, vector<8x8xf32> -> vector<8x8xf32>
    %cst_16 = arith.constant dense<0xFF800000> : vector<8xf32>
    %52 = vector.multi_reduction <maximumf>, %51, %cst_16 [1] : vector<8x8xf32> to vector<8xf32>
    %53 = vector.shape_cast %52 : vector<8xf32> to vector<8x1xf32>
    %54 = vector.broadcast %53 : vector<8x1xf32> to vector<8x8xf32>
    %55 = arith.subf %51, %54 : vector<8x8xf32>
    %56 = math.exp %55 : vector<8x8xf32>
    %cst_17 = arith.constant dense<0.000000e+00> : vector<8xf32>
    %57 = vector.multi_reduction <add>, %56, %cst_17 [1] : vector<8x8xf32> to vector<8xf32>
    %58 = vector.shape_cast %57 : vector<8xf32> to vector<8x1xf32>
    %59 = tpu.reciprocal %58 {approx = true} : vector<8x1xf32> -> vector<8x1xf32>
    %60 = vector.broadcast %59 : vector<8x1xf32> to vector<8x8xf32>
    %61 = arith.mulf %56, %60 : vector<8x8xf32>
    %62 = arith.truncf %61 : vector<8x8xf32> to vector<8x8xbf16>
    %63 = vector.extract_strided_slice %5 {offsets = [0, 32], sizes = [8, 16], strides = [1, 1]} : vector<8x64xbf16> to vector<8x16xbf16>
    %cst_18 = arith.constant dense<0.000000e+00> : vector<8x16xf32>
    %64 = tpu.matmul %62, %63, %cst_18 {dimension_numbers = #tpu.dot_dimension_numbers<[1], [0], [0], [1], [0, 0, 1, 1], [], []>} : vector<8x8xbf16>, vector<8x16xbf16>, vector<8x16xf32> -> vector<8x16xf32>
    %65 = arith.truncf %64 : vector<8x16xf32> to vector<8x16xbf16>
    %66 = vector.extract_strided_slice %2 {offsets = [32, 0], sizes = [16, 64], strides = [1, 1]} : vector<64x64xbf16> to vector<16x64xbf16>
    %cst_19 = arith.constant dense<0.000000e+00> : vector<8x64xf32>
    %67 = tpu.matmul %65, %66, %cst_19 {dimension_numbers = #tpu.dot_dimension_numbers<[1], [0], [0], [1], [0, 0, 1, 1], [], []>} : vector<8x16xbf16>, vector<16x64xbf16>, vector<8x64xf32> -> vector<8x64xf32>
    %68 = arith.addf %48, %67 : vector<8x64xf32>
    %69 = vector.extract_strided_slice %7 {offsets = [0, 48], sizes = [8, 16], strides = [1, 1]} : vector<8x64xbf16> to vector<8x16xbf16>
    %70 = vector.extract_strided_slice %4 {offsets = [0, 48], sizes = [8, 16], strides = [1, 1]} : vector<8x64xbf16> to vector<8x16xbf16>
    %cst_20 = arith.constant dense<0.000000e+00> : vector<8x8xf32>
    %71 = tpu.matmul %69, %70, %cst_20 {dimension_numbers = #tpu.dot_dimension_numbers<[1], [1], [0], [0], [0, 0, 1, 0], [], []>} : vector<8x16xbf16>, vector<8x16xbf16>, vector<8x8xf32> -> vector<8x8xf32>
    %cst_21 = arith.constant dense<0xFF800000> : vector<8xf32>
    %72 = vector.multi_reduction <maximumf>, %71, %cst_21 [1] : vector<8x8xf32> to vector<8xf32>
    %73 = vector.shape_cast %72 : vector<8xf32> to vector<8x1xf32>
    %74 = vector.broadcast %73 : vector<8x1xf32> to vector<8x8xf32>
    %75 = arith.subf %71, %74 : vector<8x8xf32>
    %76 = math.exp %75 : vector<8x8xf32>
    %cst_22 = arith.constant dense<0.000000e+00> : vector<8xf32>
    %77 = vector.multi_reduction <add>, %76, %cst_22 [1] : vector<8x8xf32> to vector<8xf32>
    %78 = vector.shape_cast %77 : vector<8xf32> to vector<8x1xf32>
    %79 = tpu.reciprocal %78 {approx = true} : vector<8x1xf32> -> vector<8x1xf32>
    %80 = vector.broadcast %79 : vector<8x1xf32> to vector<8x8xf32>
    %81 = arith.mulf %76, %80 : vector<8x8xf32>
    %82 = arith.truncf %81 : vector<8x8xf32> to vector<8x8xbf16>
    %83 = vector.extract_strided_slice %5 {offsets = [0, 48], sizes = [8, 16], strides = [1, 1]} : vector<8x64xbf16> to vector<8x16xbf16>
    %cst_23 = arith.constant dense<0.000000e+00> : vector<8x16xf32>
    %84 = tpu.matmul %82, %83, %cst_23 {dimension_numbers = #tpu.dot_dimension_numbers<[1], [0], [0], [1], [0, 0, 1, 1], [], []>} : vector<8x8xbf16>, vector<8x16xbf16>, vector<8x16xf32> -> vector<8x16xf32>
    %85 = arith.truncf %84 : vector<8x16xf32> to vector<8x16xbf16>
    %86 = vector.extract_strided_slice %2 {offsets = [48, 0], sizes = [16, 64], strides = [1, 1]} : vector<64x64xbf16> to vector<16x64xbf16>
    %cst_24 = arith.constant dense<0.000000e+00> : vector<8x64xf32>
    %87 = tpu.matmul %85, %86, %cst_24 {dimension_numbers = #tpu.dot_dimension_numbers<[1], [0], [0], [1], [0, 0, 1, 1], [], []>} : vector<8x16xbf16>, vector<16x64xbf16>, vector<8x64xf32> -> vector<8x64xf32>
    %88 = arith.addf %68, %87 : vector<8x64xf32>
    %c0_25 = arith.constant 0 : index
    %c0_26 = arith.constant 0 : index
    %89 = vector.load %arg3[%c0_25, %c0_26] : memref<1x64xf32, #tpu.memory_space<vmem>>, vector<1x64xf32>
    %90 = vector.broadcast %89 : vector<1x64xf32> to vector<8x64xf32>
    %91 = arith.addf %88, %90 : vector<8x64xf32>
    %c0_27 = arith.constant 0 : index
    %c0_28 = arith.constant 0 : index
    %c0_29 = arith.constant 0 : index
    %92 = vector.load %arg4[%c0_27, %c0_28, %c0_29] : memref<1x8x64xf32, #tpu.memory_space<vmem>>, vector<1x8x64xf32>
    %93 = vector.shape_cast %92 : vector<1x8x64xf32> to vector<8x64xf32>
    %94 = arith.addf %91, %93 : vector<8x64xf32>
    %c0_30 = arith.constant 0 : index
    %c0_31 = arith.constant 0 : index
    %c0_32 = arith.constant 0 : index
    %95 = vector.load %arg5[%c0_30, %c0_31, %c0_32] : memref<1x8x64xf32, #tpu.memory_space<vmem>>, vector<1x8x64xf32>
    %96 = vector.shape_cast %95 : vector<1x8x64xf32> to vector<8x64xf32>
    %97 = vector.shape_cast %94 : vector<8x64xf32> to vector<1x8x64xf32>
    tpu.vector_store %arg5[%c0_30, %c0_31, %c0_32], %97 {strides = array<i32>} : memref<1x8x64xf32, #tpu.memory_space<vmem>>, vector<1x8x64xf32>,
    return
  }
  func.func @transform_0(%arg0: i32) -> (i32, i32, i32) {
    %c0_i32 = arith.constant 0 : i32
    %c0_i32_0 = arith.constant 0 : i32
    %c0_i32_1 = arith.constant 0 : i32
    return %arg0, %c0_i32, %c0_i32_0 : i32, i32, i32
  }
  func.func @transform_1(%arg0: i32) -> (i32, i32) {
    %c0_i32 = arith.constant 0 : i32
    %c0_i32_0 = arith.constant 0 : i32
    %c0_i32_1 = arith.constant 0 : i32
    return %c0_i32, %c0_i32_0 : i32, i32
  }
  func.func @transform_2(%arg0: i32) -> (i32, i32) {
    %c0_i32 = arith.constant 0 : i32
    %c0_i32_0 = arith.constant 0 : i32
    %c0_i32_1 = arith.constant 0 : i32
    return %c0_i32, %c0_i32_0 : i32, i32
  }
  func.func @transform_3(%arg0: i32) -> (i32, i32, i32) {
    %c0_i32 = arith.constant 0 : i32
    %c0_i32_0 = arith.constant 0 : i32
    %c0_i32_1 = arith.constant 0 : i32
    return %arg0, %c0_i32, %c0_i32_0 : i32, i32, i32
  }
  func.func @transform_4(%arg0: i32) -> (i32, i32, i32) {
    %c0_i32 = arith.constant 0 : i32
    %c0_i32_0 = arith.constant 0 : i32
    %c0_i32_1 = arith.constant 0 : i32
    return %arg0, %c0_i32, %c0_i32_0 : i32, i32, i32
  }
}

module attributes {stable_mosaic.version = 11 : i64} {
  func.func @_adaln_matmul_kernel(%arg0: i32, %arg1: i32, %arg2: memref<1x8x64xf32, #tpu.memory_space<vmem>>, %arg3: memref<1x1x64xf32, #tpu.memory_space<vmem>>, %arg4: memref<1x1x64xf32, #tpu.memory_space<vmem>>, %arg5: memref<64x64xbf16, #tpu.memory_space<vmem>>, %arg6: memref<1x8x64xbf16, #tpu.memory_space<vmem>>) attributes {dimension_semantics = [#tpu.dimension_semantics<parallel>, #tpu.dimension_semantics<parallel>], iteration_bounds = array<i64: 2, 1>, scalar_prefetch = 0 : i64, scratch_operands = 0 : i64, tpu.core_type = #tpu.core_type<tc>, window_params = [{transform_indices = @transform_0, window_bounds = array<i64: 1, 8, 64>}, {transform_indices = @transform_1, window_bounds = array<i64: 1, 1, 64>}, {transform_indices = @transform_2, window_bounds = array<i64: 1, 1, 64>}, {pipeline_mode = #tpu.pipeline_mode<synchronous>, transform_indices = @transform_3, window_bounds = array<i64: 64, 64>}, {transform_indices = @transform_4, window_bounds = array<i64: 1, 8, 64>}]} {
    %c0 = arith.constant 0 : index
    %c0_0 = arith.constant 0 : index
    %c0_1 = arith.constant 0 : index
    %0 = vector.load %arg2[%c0, %c0_0, %c0_1] : memref<1x8x64xf32, #tpu.memory_space<vmem>>, vector<1x8x64xf32>
    %1 = vector.shape_cast %0 : vector<1x8x64xf32> to vector<8x64xf32>
    %cst = arith.constant dense<0.000000e+00> : vector<8xf32>
    %2 = vector.multi_reduction <add>, %1, %cst [1] : vector<8x64xf32> to vector<8xf32>
    %3 = vector.shape_cast %2 : vector<8xf32> to vector<8x1xf32>
    %cst_2 = arith.constant 6.400000e+01 : f32
    %4 = vector.broadcast %cst_2 : f32 to vector<8x1xf32>
    %5 = arith.divf %3, %4 : vector<8x1xf32>
    %6 = vector.broadcast %5 : vector<8x1xf32> to vector<8x64xf32>
    %7 = arith.subf %1, %6 : vector<8x64xf32>
    %8 = arith.mulf %7, %7 : vector<8x64xf32>
    %cst_3 = arith.constant dense<0.000000e+00> : vector<8xf32>
    %9 = vector.multi_reduction <add>, %8, %cst_3 [1] : vector<8x64xf32> to vector<8xf32>
    %10 = vector.shape_cast %9 : vector<8xf32> to vector<8x1xf32>
    %cst_4 = arith.constant 6.400000e+01 : f32
    %11 = vector.broadcast %cst_4 : f32 to vector<8x1xf32>
    %12 = arith.divf %10, %11 : vector<8x1xf32>
    %13 = vector.broadcast %5 : vector<8x1xf32> to vector<8x64xf32>
    %14 = arith.subf %1, %13 : vector<8x64xf32>
    %cst_5 = arith.constant 9.99999974E-6 : f32
    %15 = vector.broadcast %cst_5 : f32 to vector<8x1xf32>
    %16 = arith.addf %12, %15 : vector<8x1xf32>
    %17 = math.rsqrt %16 : vector<8x1xf32>
    %18 = vector.broadcast %17 : vector<8x1xf32> to vector<8x64xf32>
    %19 = arith.mulf %14, %18 : vector<8x64xf32>
    %c0_6 = arith.constant 0 : index
    %c0_7 = arith.constant 0 : index
    %c0_8 = arith.constant 0 : index
    %20 = vector.load %arg3[%c0_6, %c0_7, %c0_8] : memref<1x1x64xf32, #tpu.memory_space<vmem>>, vector<1x1x64xf32>
    %21 = vector.shape_cast %20 : vector<1x1x64xf32> to vector<1x64xf32>
    %cst_9 = arith.constant 1.000000e+00 : f32
    %22 = vector.broadcast %cst_9 : f32 to vector<1x64xf32>
    %23 = arith.addf %22, %21 : vector<1x64xf32>
    %24 = vector.broadcast %23 : vector<1x64xf32> to vector<8x64xf32>
    %25 = arith.mulf %19, %24 : vector<8x64xf32>
    %c0_10 = arith.constant 0 : index
    %c0_11 = arith.constant 0 : index
    %c0_12 = arith.constant 0 : index
    %26 = vector.load %arg4[%c0_10, %c0_11, %c0_12] : memref<1x1x64xf32, #tpu.memory_space<vmem>>, vector<1x1x64xf32>
    %27 = vector.shape_cast %26 : vector<1x1x64xf32> to vector<1x64xf32>
    %28 = vector.broadcast %27 : vector<1x64xf32> to vector<8x64xf32>
    %29 = arith.addf %25, %28 : vector<8x64xf32>
    %30 = arith.truncf %29 : vector<8x64xf32> to vector<8x64xbf16>
    %c0_13 = arith.constant 0 : index
    %c0_14 = arith.constant 0 : index
    %31 = vector.load %arg5[%c0_13, %c0_14] : memref<64x64xbf16, #tpu.memory_space<vmem>>, vector<64x64xbf16>
    %cst_15 = arith.constant dense<0.000000e+00> : vector<8x64xf32>
    %32 = tpu.matmul %30, %31, %cst_15 {dimension_numbers = #tpu.dot_dimension_numbers<[1], [0], [0], [1], [0, 0, 1, 1], [], []>} : vector<8x64xbf16>, vector<64x64xbf16>, vector<8x64xf32> -> vector<8x64xf32>
    %33 = arith.truncf %32 : vector<8x64xf32> to vector<8x64xbf16>
    %c0_16 = arith.constant 0 : index
    %c0_17 = arith.constant 0 : index
    %c0_18 = arith.constant 0 : index
    %34 = vector.load %arg6[%c0_16, %c0_17, %c0_18] : memref<1x8x64xbf16, #tpu.memory_space<vmem>>, vector<1x8x64xbf16>
    %35 = vector.shape_cast %34 : vector<1x8x64xbf16> to vector<8x64xbf16>
    %36 = vector.shape_cast %33 : vector<8x64xbf16> to vector<1x8x64xbf16>
    tpu.vector_store %arg6[%c0_16, %c0_17, %c0_18], %36 {strides = array<i32>} : memref<1x8x64xbf16, #tpu.memory_space<vmem>>, vector<1x8x64xbf16>,
    return
  }
  func.func @transform_0(%arg0: i32, %arg1: i32) -> (i32, i32, i32) {
    %c0_i32 = arith.constant 0 : i32
    %c0_i32_0 = arith.constant 0 : i32
    return %arg0, %arg1, %c0_i32 : i32, i32, i32
  }
  func.func @transform_1(%arg0: i32, %arg1: i32) -> (i32, i32, i32) {
    %c0_i32 = arith.constant 0 : i32
    %c0_i32_0 = arith.constant 0 : i32
    %c0_i32_1 = arith.constant 0 : i32
    return %arg0, %c0_i32, %c0_i32_0 : i32, i32, i32
  }
  func.func @transform_2(%arg0: i32, %arg1: i32) -> (i32, i32, i32) {
    %c0_i32 = arith.constant 0 : i32
    %c0_i32_0 = arith.constant 0 : i32
    %c0_i32_1 = arith.constant 0 : i32
    return %arg0, %c0_i32, %c0_i32_0 : i32, i32, i32
  }
  func.func @transform_3(%arg0: i32, %arg1: i32) -> (i32, i32) {
    %c0_i32 = arith.constant 0 : i32
    %c0_i32_0 = arith.constant 0 : i32
    %c0_i32_1 = arith.constant 0 : i32
    return %c0_i32, %c0_i32_0 : i32, i32
  }
  func.func @transform_4(%arg0: i32, %arg1: i32) -> (i32, i32, i32) {
    %c0_i32 = arith.constant 0 : i32
    %c0_i32_0 = arith.constant 0 : i32
    return %arg0, %arg1, %c0_i32 : i32, i32, i32
  }
}

module attributes {stable_mosaic.version = 11 : i64} {
  func.func @_matmul_act_kernel(%arg0: i32, %arg1: memref<12x32xf32, #tpu.memory_space<vmem>>, %arg2: memref<32x128xbf16, #tpu.memory_space<vmem>>, %arg3: memref<12x128xbf16, #tpu.memory_space<vmem>>) attributes {dimension_semantics = [#tpu.dimension_semantics<parallel>], iteration_bounds = array<i64: 1>, scalar_prefetch = 0 : i64, scratch_operands = 0 : i64, tpu.core_type = #tpu.core_type<tc>, window_params = [{transform_indices = @transform_0, window_bounds = array<i64: 12, 32>}, {pipeline_mode = #tpu.pipeline_mode<synchronous>, transform_indices = @transform_1, window_bounds = array<i64: 32, 128>}, {transform_indices = @transform_2, window_bounds = array<i64: 12, 128>}]} {
    %c0 = arith.constant 0 : index
    %c0_0 = arith.constant 0 : index
    %0 = vector.load %arg1[%c0, %c0_0] : memref<12x32xf32, #tpu.memory_space<vmem>>, vector<12x32xf32>
    %1 = arith.truncf %0 : vector<12x32xf32> to vector<12x32xbf16>
    %c0_1 = arith.constant 0 : index
    %c0_2 = arith.constant 0 : index
    %2 = vector.load %arg2[%c0_1, %c0_2] : memref<32x128xbf16, #tpu.memory_space<vmem>>, vector<32x128xbf16>
    %cst = arith.constant dense<0.000000e+00> : vector<12x128xf32>
    %3 = tpu.matmul %1, %2, %cst {dimension_numbers = #tpu.dot_dimension_numbers<[1], [0], [0], [1], [0, 0, 1, 1], [], []>} : vector<12x32xbf16>, vector<32x128xbf16>, vector<12x128xf32> -> vector<12x128xf32>
    %4 = arith.truncf %3 : vector<12x128xf32> to vector<12x128xbf16>
    %c0_3 = arith.constant 0 : index
    %c0_4 = arith.constant 0 : index
    %5 = vector.load %arg3[%c0_3, %c0_4] : memref<12x128xbf16, #tpu.memory_space<vmem>>, vector<12x128xbf16>
    tpu.vector_store %arg3[%c0_3, %c0_4], %4 {strides = array<i32>} : memref<12x128xbf16, #tpu.memory_space<vmem>>, vector<12x128xbf16>,
    return
  }
  func.func @transform_0(%arg0: i32) -> (i32, i32) {
    %c0_i32 = arith.constant 0 : i32
    %c0_i32_0 = arith.constant 0 : i32
    return %arg0, %c0_i32 : i32, i32
  }
  func.func @transform_1(%arg0: i32) -> (i32, i32) {
    %c0_i32 = arith.constant 0 : i32
    %c0_i32_0 = arith.constant 0 : i32
    %c0_i32_1 = arith.constant 0 : i32
    return %c0_i32, %c0_i32_0 : i32, i32
  }
  func.func @transform_2(%arg0: i32) -> (i32, i32) {
    %c0_i32 = arith.constant 0 : i32
    %c0_i32_0 = arith.constant 0 : i32
    return %arg0, %c0_i32 : i32, i32
  }
}

module attributes {stable_mosaic.version = 11 : i64} {
  func.func @_cross_attn_kernel(%arg0: i32, %arg1: memref<1x8x64xbf16, #tpu.memory_space<vmem>>, %arg2: memref<1x6x128xbf16, #tpu.memory_space<vmem>>, %arg3: memref<64x64xbf16, #tpu.memory_space<vmem>>, %arg4: memref<1x64xf32, #tpu.memory_space<vmem>>, %arg5: memref<1x8x64xf32, #tpu.memory_space<vmem>>, %arg6: memref<1x8x64xf32, #tpu.memory_space<vmem>>) attributes {dimension_semantics = [#tpu.dimension_semantics<parallel>], iteration_bounds = array<i64: 2>, scalar_prefetch = 0 : i64, scratch_operands = 0 : i64, tpu.core_type = #tpu.core_type<tc>, window_params = [{transform_indices = @transform_0, window_bounds = array<i64: 1, 8, 64>}, {transform_indices = @transform_1, window_bounds = array<i64: 1, 6, 128>}, {pipeline_mode = #tpu.pipeline_mode<synchronous>, transform_indices = @transform_2, window_bounds = array<i64: 64, 64>}, {pipeline_mode = #tpu.pipeline_mode<synchronous>, transform_indices = @transform_3, window_bounds = array<i64: 1, 64>}, {transform_indices = @transform_4, window_bounds = array<i64: 1, 8, 64>}, {transform_indices = @transform_5, window_bounds = array<i64: 1, 8, 64>}]} {
    %c0 = arith.constant 0 : index
    %c0_0 = arith.constant 0 : index
    %c0_1 = arith.constant 0 : index
    %0 = vector.load %arg2[%c0, %c0_0, %c0_1] : memref<1x6x128xbf16, #tpu.memory_space<vmem>>, vector<1x6x128xbf16>
    %1 = vector.shape_cast %0 : vector<1x6x128xbf16> to vector<6x128xbf16>
    %c0_2 = arith.constant 0 : index
    %c0_3 = arith.constant 0 : index
    %2 = vector.load %arg3[%c0_2, %c0_3] : memref<64x64xbf16, #tpu.memory_space<vmem>>, vector<64x64xbf16>
    %c0_4 = arith.constant 0 : index
    %c0_5 = arith.constant 0 : index
    %c0_6 = arith.constant 0 : index
    %3 = vector.load %arg1[%c0_4, %c0_5, %c0_6] : memref<1x8x64xbf16, #tpu.memory_space<vmem>>, vector<1x8x64xbf16>
    %4 = vector.shape_cast %3 : vector<1x8x64xbf16> to vector<8x64xbf16>
    %5 = vector.extract_strided_slice %1 {offsets = [0, 0], sizes = [6, 64], strides = [1, 1]} : vector<6x128xbf16> to vector<6x64xbf16>
    %6 = vector.extract_strided_slice %1 {offsets = [0, 64], sizes = [6, 64], strides = [1, 1]} : vector<6x128xbf16> to vector<6x64xbf16>
    %cst = arith.constant 2.500000e-01 : bf16
    %7 = vector.broadcast %cst : bf16 to vector<8x64xbf16>
    %8 = arith.mulf %4, %7 : vector<8x64xbf16>
    %cst_7 = arith.constant 0.000000e+00 : f32
    %9 = vector.broadcast %cst_7 : f32 to vector<8x64xf32>
    %10 = vector.extract_strided_slice %8 {offsets = [0, 0], sizes = [8, 16], strides = [1, 1]} : vector<8x64xbf16> to vector<8x16xbf16>
    %11 = vector.extract_strided_slice %5 {offsets = [0, 0], sizes = [6, 16], strides = [1, 1]} : vector<6x64xbf16> to vector<6x16xbf16>
    %cst_8 = arith.constant dense<0.000000e+00> : vector<8x6xf32>
    %12 = tpu.matmul %10, %11, %cst_8 {dimension_numbers = #tpu.dot_dimension_numbers<[1], [1], [0], [0], [0, 0, 1, 0], [], []>} : vector<8x16xbf16>, vector<6x16xbf16>, vector<8x6xf32> -> vector<8x6xf32>
    %cst_9 = arith.constant dense<0xFF800000> : vector<8xf32>
    %13 = vector.multi_reduction <maximumf>, %12, %cst_9 [1] : vector<8x6xf32> to vector<8xf32>
    %14 = vector.shape_cast %13 : vector<8xf32> to vector<8x1xf32>
    %15 = vector.broadcast %14 : vector<8x1xf32> to vector<8x6xf32>
    %16 = arith.subf %12, %15 : vector<8x6xf32>
    %17 = math.exp %16 : vector<8x6xf32>
    %cst_10 = arith.constant dense<0.000000e+00> : vector<8xf32>
    %18 = vector.multi_reduction <add>, %17, %cst_10 [1] : vector<8x6xf32> to vector<8xf32>
    %19 = vector.shape_cast %18 : vector<8xf32> to vector<8x1xf32>
    %20 = tpu.reciprocal %19 {approx = true} : vector<8x1xf32> -> vector<8x1xf32>
    %21 = vector.broadcast %20 : vector<8x1xf32> to vector<8x6xf32>
    %22 = arith.mulf %17, %21 : vector<8x6xf32>
    %23 = arith.truncf %22 : vector<8x6xf32> to vector<8x6xbf16>
    %24 = vector.extract_strided_slice %6 {offsets = [0, 0], sizes = [6, 16], strides = [1, 1]} : vector<6x64xbf16> to vector<6x16xbf16>
    %cst_11 = arith.constant dense<0.000000e+00> : vector<8x16xf32>
    %25 = tpu.matmul %23, %24, %cst_11 {dimension_numbers = #tpu.dot_dimension_numbers<[1], [0], [0], [1], [0, 0, 1, 1], [], []>} : vector<8x6xbf16>, vector<6x16xbf16>, vector<8x16xf32> -> vector<8x16xf32>
    %26 = arith.truncf %25 : vector<8x16xf32> to vector<8x16xbf16>
    %27 = vector.extract_strided_slice %2 {offsets = [0, 0], sizes = [16, 64], strides = [1, 1]} : vector<64x64xbf16> to vector<16x64xbf16>
    %cst_12 = arith.constant dense<0.000000e+00> : vector<8x64xf32>
    %28 = tpu.matmul %26, %27, %cst_12 {dimension_numbers = #tpu.dot_dimension_numbers<[1], [0], [0], [1], [0, 0, 1, 1], [], []>} : vector<8x16xbf16>, vector<16x64xbf16>, vector<8x64xf32> -> vector<8x64xf32>
    %29 = arith.addf %9, %28 : vector<8x64xf32>
    %30 = vector.extract_strided_slice %8 {offsets = [0, 16], sizes = [8, 16], strides = [1, 1]} : vector<8x64xbf16> to vector<8x16xbf16>
    %31 = vector.extract_strided_slice %5 {offsets = [0, 16], sizes = [6, 16], strides = [1, 1]} : vector<6x64xbf16> to vector<6x16xbf16>
    %cst_13 = arith.constant dense<0.000000e+00> : vector<8x6xf32>
    %32 = tpu.matmul %30, %31, %cst_13 {dimension_numbers = #tpu.dot_dimension_numbers<[1], [1], [0], [0], [0, 0, 1, 0], [], []>} : vector<8x16xbf16>, vector<6x16xbf16>, vector<8x6xf32> -> vector<8x6xf32>
    %cst_14 = arith.constant dense<0xFF800000> : vector<8xf32>
    %33 = vector.multi_reduction <maximumf>, %32, %cst_14 [1] : vector<8x6xf32> to vector<8xf32>
    %34 = vector.shape_cast %33 : vector<8xf32> to vector<8x1xf32>
    %35 = vector.broadcast %34 : vector<8x1xf32> to vector<8x6xf32>
    %36 = arith.subf %32, %35 : vector<8x6xf32>
    %37 = math.exp %36 : vector<8x6xf32>
    %cst_15 = arith.constant dense<0.000000e+00> : vector<8xf32>
    %38 = vector.multi_reduction <add>, %37, %cst_15 [1] : vector<8x6xf32> to vector<8xf32>
    %39 = vector.shape_cast %38 : vector<8xf32> to vector<8x1xf32>
    %40 = tpu.reciprocal %39 {approx = true} : vector<8x1xf32> -> vector<8x1xf32>
    %41 = vector.broadcast %40 : vector<8x1xf32> to vector<8x6xf32>
    %42 = arith.mulf %37, %41 : vector<8x6xf32>
    %43 = arith.truncf %42 : vector<8x6xf32> to vector<8x6xbf16>
    %44 = vector.extract_strided_slice %6 {offsets = [0, 16], sizes = [6, 16], strides = [1, 1]} : vector<6x64xbf16> to vector<6x16xbf16>
    %cst_16 = arith.constant dense<0.000000e+00> : vector<8x16xf32>
    %45 = tpu.matmul %43, %44, %cst_16 {dimension_numbers = #tpu.dot_dimension_numbers<[1], [0], [0], [1], [0, 0, 1, 1], [], []>} : vector<8x6xbf16>, vector<6x16xbf16>, vector<8x16xf32> -> vector<8x16xf32>
    %46 = arith.truncf %45 : vector<8x16xf32> to vector<8x16xbf16>
    %47 = vector.extract_strided_slice %2 {offsets = [16, 0], sizes = [16, 64], strides = [1, 1]} : vector<64x64xbf16> to vector<16x64xbf16>
    %cst_17 = arith.constant dense<0.000000e+00> : vector<8x64xf32>
    %48 = tpu.matmul %46, %47, %cst_17 {dimension_numbers = #tpu.dot_dimension_numbers<[1], [0], [0], [1], [0, 0, 1, 1], [], []>} : vector<8x16xbf16>, vector<16x64xbf16>, vector<8x64xf32> -> vector<8x64xf32>
    %49 = arith.addf %29, %48 : vector<8x64xf32>
    %50 = vector.extract_strided_slice %8 {offsets = [0, 32], sizes = [8, 16], strides = [1, 1]} : vector<8x64xbf16> to vector<8x16xbf16>
    %51 = vector.extract_strided_slice %5 {offsets = [0, 32], sizes = [6, 16], strides = [1, 1]} : vector<6x64xbf16> to vector<6x16xbf16>
    %cst_18 = arith.constant dense<0.000000e+00> : vector<8x6xf32>
    %52 = tpu.matmul %50, %51, %cst_18 {dimension_numbers = #tpu.dot_dimension_numbers<[1], [1], [0], [0], [0, 0, 1, 0], [], []>} : vector<8x16xbf16>, vector<6x16xbf16>, vector<8x6xf32> -> vector<8x6xf32>
    %cst_19 = arith.constant dense<0xFF800000> : vector<8xf32>
    %53 = vector.multi_reduction <maximumf>, %52, %cst_19 [1] : vector<8x6xf32> to vector<8xf32>
    %54 = vector.shape_cast %53 : vector<8xf32> to vector<8x1xf32>
    %55 = vector.broadcast %54 : vector<8x1xf32> to vector<8x6xf32>
    %56 = arith.subf %52, %55 : vector<8x6xf32>
    %57 = math.exp %56 : vector<8x6xf32>
    %cst_20 = arith.constant dense<0.000000e+00> : vector<8xf32>
    %58 = vector.multi_reduction <add>, %57, %cst_20 [1] : vector<8x6xf32> to vector<8xf32>
    %59 = vector.shape_cast %58 : vector<8xf32> to vector<8x1xf32>
    %60 = tpu.reciprocal %59 {approx = true} : vector<8x1xf32> -> vector<8x1xf32>
    %61 = vector.broadcast %60 : vector<8x1xf32> to vector<8x6xf32>
    %62 = arith.mulf %57, %61 : vector<8x6xf32>
    %63 = arith.truncf %62 : vector<8x6xf32> to vector<8x6xbf16>
    %64 = vector.extract_strided_slice %6 {offsets = [0, 32], sizes = [6, 16], strides = [1, 1]} : vector<6x64xbf16> to vector<6x16xbf16>
    %cst_21 = arith.constant dense<0.000000e+00> : vector<8x16xf32>
    %65 = tpu.matmul %63, %64, %cst_21 {dimension_numbers = #tpu.dot_dimension_numbers<[1], [0], [0], [1], [0, 0, 1, 1], [], []>} : vector<8x6xbf16>, vector<6x16xbf16>, vector<8x16xf32> -> vector<8x16xf32>
    %66 = arith.truncf %65 : vector<8x16xf32> to vector<8x16xbf16>
    %67 = vector.extract_strided_slice %2 {offsets = [32, 0], sizes = [16, 64], strides = [1, 1]} : vector<64x64xbf16> to vector<16x64xbf16>
    %cst_22 = arith.constant dense<0.000000e+00> : vector<8x64xf32>
    %68 = tpu.matmul %66, %67, %cst_22 {dimension_numbers = #tpu.dot_dimension_numbers<[1], [0], [0], [1], [0, 0, 1, 1], [], []>} : vector<8x16xbf16>, vector<16x64xbf16>, vector<8x64xf32> -> vector<8x64xf32>
    %69 = arith.addf %49, %68 : vector<8x64xf32>
    %70 = vector.extract_strided_slice %8 {offsets = [0, 48], sizes = [8, 16], strides = [1, 1]} : vector<8x64xbf16> to vector<8x16xbf16>
    %71 = vector.extract_strided_slice %5 {offsets = [0, 48], sizes = [6, 16], strides = [1, 1]} : vector<6x64xbf16> to vector<6x16xbf16>
    %cst_23 = arith.constant dense<0.000000e+00> : vector<8x6xf32>
    %72 = tpu.matmul %70, %71, %cst_23 {dimension_numbers = #tpu.dot_dimension_numbers<[1], [1], [0], [0], [0, 0, 1, 0], [], []>} : vector<8x16xbf16>, vector<6x16xbf16>, vector<8x6xf32> -> vector<8x6xf32>
    %cst_24 = arith.constant dense<0xFF800000> : vector<8xf32>
    %73 = vector.multi_reduction <maximumf>, %72, %cst_24 [1] : vector<8x6xf32> to vector<8xf32>
    %74 = vector.shape_cast %73 : vector<8xf32> to vector<8x1xf32>
    %75 = vector.broadcast %74 : vector<8x1xf32> to vector<8x6xf32>
    %76 = arith.subf %72, %75 : vector<8x6xf32>
    %77 = math.exp %76 : vector<8x6xf32>
    %cst_25 = arith.constant dense<0.000000e+00> : vector<8xf32>
    %78 = vector.multi_reduction <add>, %77, %cst_25 [1] : vector<8x6xf32> to vector<8xf32>
    %79 = vector.shape_cast %78 : vector<8xf32> to vector<8x1xf32>
    %80 = tpu.reciprocal %79 {approx = true} : vector<8x1xf32> -> vector<8x1xf32>
    %81 = vector.broadcast %80 : vector<8x1xf32> to vector<8x6xf32>
    %82 = arith.mulf %77, %81 : vector<8x6xf32>
    %83 = arith.truncf %82 : vector<8x6xf32> to vector<8x6xbf16>
    %84 = vector.extract_strided_slice %6 {offsets = [0, 48], sizes = [6, 16], strides = [1, 1]} : vector<6x64xbf16> to vector<6x16xbf16>
    %cst_26 = arith.constant dense<0.000000e+00> : vector<8x16xf32>
    %85 = tpu.matmul %83, %84, %cst_26 {dimension_numbers = #tpu.dot_dimension_numbers<[1], [0], [0], [1], [0, 0, 1, 1], [], []>} : vector<8x6xbf16>, vector<6x16xbf16>, vector<8x16xf32> -> vector<8x16xf32>
    %86 = arith.truncf %85 : vector<8x16xf32> to vector<8x16xbf16>
    %87 = vector.extract_strided_slice %2 {offsets = [48, 0], sizes = [16, 64], strides = [1, 1]} : vector<64x64xbf16> to vector<16x64xbf16>
    %cst_27 = arith.constant dense<0.000000e+00> : vector<8x64xf32>
    %88 = tpu.matmul %86, %87, %cst_27 {dimension_numbers = #tpu.dot_dimension_numbers<[1], [0], [0], [1], [0, 0, 1, 1], [], []>} : vector<8x16xbf16>, vector<16x64xbf16>, vector<8x64xf32> -> vector<8x64xf32>
    %89 = arith.addf %69, %88 : vector<8x64xf32>
    %c0_28 = arith.constant 0 : index
    %c0_29 = arith.constant 0 : index
    %90 = vector.load %arg4[%c0_28, %c0_29] : memref<1x64xf32, #tpu.memory_space<vmem>>, vector<1x64xf32>
    %91 = vector.broadcast %90 : vector<1x64xf32> to vector<8x64xf32>
    %92 = arith.addf %89, %91 : vector<8x64xf32>
    %c0_30 = arith.constant 0 : index
    %c0_31 = arith.constant 0 : index
    %c0_32 = arith.constant 0 : index
    %93 = vector.load %arg5[%c0_30, %c0_31, %c0_32] : memref<1x8x64xf32, #tpu.memory_space<vmem>>, vector<1x8x64xf32>
    %94 = vector.shape_cast %93 : vector<1x8x64xf32> to vector<8x64xf32>
    %95 = arith.addf %92, %94 : vector<8x64xf32>
    %c0_33 = arith.constant 0 : index
    %c0_34 = arith.constant 0 : index
    %c0_35 = arith.constant 0 : index
    %96 = vector.load %arg6[%c0_33, %c0_34, %c0_35] : memref<1x8x64xf32, #tpu.memory_space<vmem>>, vector<1x8x64xf32>
    %97 = vector.shape_cast %96 : vector<1x8x64xf32> to vector<8x64xf32>
    %98 = vector.shape_cast %95 : vector<8x64xf32> to vector<1x8x64xf32>
    tpu.vector_store %arg6[%c0_33, %c0_34, %c0_35], %98 {strides = array<i32>} : memref<1x8x64xf32, #tpu.memory_space<vmem>>, vector<1x8x64xf32>,
    return
  }
  func.func @transform_0(%arg0: i32) -> (i32, i32, i32) {
    %c0_i32 = arith.constant 0 : i32
    %c0_i32_0 = arith.constant 0 : i32
    %c0_i32_1 = arith.constant 0 : i32
    return %arg0, %c0_i32, %c0_i32_0 : i32, i32, i32
  }
  func.func @transform_1(%arg0: i32) -> (i32, i32, i32) {
    %c0_i32 = arith.constant 0 : i32
    %c0_i32_0 = arith.constant 0 : i32
    %c0_i32_1 = arith.constant 0 : i32
    return %arg0, %c0_i32, %c0_i32_0 : i32, i32, i32
  }
  func.func @transform_2(%arg0: i32) -> (i32, i32) {
    %c0_i32 = arith.constant 0 : i32
    %c0_i32_0 = arith.constant 0 : i32
    %c0_i32_1 = arith.constant 0 : i32
    return %c0_i32, %c0_i32_0 : i32, i32
  }
  func.func @transform_3(%arg0: i32) -> (i32, i32) {
    %c0_i32 = arith.constant 0 : i32
    %c0_i32_0 = arith.constant 0 : i32
    %c0_i32_1 = arith.constant 0 : i32
    return %c0_i32, %c0_i32_0 : i32, i32
  }
  func.func @transform_4(%arg0: i32) -> (i32, i32, i32) {
    %c0_i32 = arith.constant 0 : i32
    %c0_i32_0 = arith.constant 0 : i32
    %c0_i32_1 = arith.constant 0 : i32
    return %arg0, %c0_i32, %c0_i32_0 : i32, i32, i32
  }
  func.func @transform_5(%arg0: i32) -> (i32, i32, i32) {
    %c0_i32 = arith.constant 0 : i32
    %c0_i32_0 = arith.constant 0 : i32
    %c0_i32_1 = arith.constant 0 : i32
    return %arg0, %c0_i32, %c0_i32_0 : i32, i32, i32
  }
}

module attributes {stable_mosaic.version = 11 : i64} {
  func.func @_matmul_act_kernel(%arg0: i32, %arg1: memref<12x32xf32, #tpu.memory_space<vmem>>, %arg2: memref<32x128xbf16, #tpu.memory_space<vmem>>, %arg3: memref<12x128xbf16, #tpu.memory_space<vmem>>) attributes {dimension_semantics = [#tpu.dimension_semantics<parallel>], iteration_bounds = array<i64: 1>, scalar_prefetch = 0 : i64, scratch_operands = 0 : i64, tpu.core_type = #tpu.core_type<tc>, window_params = [{transform_indices = @transform_0, window_bounds = array<i64: 12, 32>}, {pipeline_mode = #tpu.pipeline_mode<synchronous>, transform_indices = @transform_1, window_bounds = array<i64: 32, 128>}, {transform_indices = @transform_2, window_bounds = array<i64: 12, 128>}]} {
    %c0 = arith.constant 0 : index
    %c0_0 = arith.constant 0 : index
    %0 = vector.load %arg1[%c0, %c0_0] : memref<12x32xf32, #tpu.memory_space<vmem>>, vector<12x32xf32>
    %1 = arith.truncf %0 : vector<12x32xf32> to vector<12x32xbf16>
    %c0_1 = arith.constant 0 : index
    %c0_2 = arith.constant 0 : index
    %2 = vector.load %arg2[%c0_1, %c0_2] : memref<32x128xbf16, #tpu.memory_space<vmem>>, vector<32x128xbf16>
    %cst = arith.constant dense<0.000000e+00> : vector<12x128xf32>
    %3 = tpu.matmul %1, %2, %cst {dimension_numbers = #tpu.dot_dimension_numbers<[1], [0], [0], [1], [0, 0, 1, 1], [], []>} : vector<12x32xbf16>, vector<32x128xbf16>, vector<12x128xf32> -> vector<12x128xf32>
    %4 = arith.truncf %3 : vector<12x128xf32> to vector<12x128xbf16>
    %c0_3 = arith.constant 0 : index
    %c0_4 = arith.constant 0 : index
    %5 = vector.load %arg3[%c0_3, %c0_4] : memref<12x128xbf16, #tpu.memory_space<vmem>>, vector<12x128xbf16>
    tpu.vector_store %arg3[%c0_3, %c0_4], %4 {strides = array<i32>} : memref<12x128xbf16, #tpu.memory_space<vmem>>, vector<12x128xbf16>,
    return
  }
  func.func @transform_0(%arg0: i32) -> (i32, i32) {
    %c0_i32 = arith.constant 0 : i32
    %c0_i32_0 = arith.constant 0 : i32
    return %arg0, %c0_i32 : i32, i32
  }
  func.func @transform_1(%arg0: i32) -> (i32, i32) {
    %c0_i32 = arith.constant 0 : i32
    %c0_i32_0 = arith.constant 0 : i32
    %c0_i32_1 = arith.constant 0 : i32
    return %c0_i32, %c0_i32_0 : i32, i32
  }
  func.func @transform_2(%arg0: i32) -> (i32, i32) {
    %c0_i32 = arith.constant 0 : i32
    %c0_i32_0 = arith.constant 0 : i32
    return %arg0, %c0_i32 : i32, i32
  }
}

module attributes {stable_mosaic.version = 11 : i64} {
  func.func @_ff_fused_kernel(%arg0: i32, %arg1: i32, %arg2: i32, %arg3: memref<1x8x64xf32, #tpu.memory_space<vmem>>, %arg4: memref<1x1x64xf32, #tpu.memory_space<vmem>>, %arg5: memref<1x1x64xf32, #tpu.memory_space<vmem>>, %arg6: memref<64x256xbf16, #tpu.memory_space<vmem>>, %arg7: memref<64x256xbf16, #tpu.memory_space<vmem>>, %arg8: memref<1x256xf32, #tpu.memory_space<vmem>>, %arg9: memref<1x256xf32, #tpu.memory_space<vmem>>, %arg10: memref<256x64xbf16, #tpu.memory_space<vmem>>, %arg11: memref<1x64xf32, #tpu.memory_space<vmem>>, %arg12: memref<1x8x64xf32, #tpu.memory_space<vmem>>, %arg13: memref<8x64xf32, #tpu.memory_space<vmem>>, %arg14: memref<8x64xf32, #tpu.memory_space<vmem>>) attributes {dimension_semantics = [#tpu.dimension_semantics<parallel>, #tpu.dimension_semantics<parallel>, #tpu.dimension_semantics<arbitrary>], iteration_bounds = array<i64: 2, 1, 1>, scalar_prefetch = 0 : i64, scratch_operands = 2 : i64, tpu.core_type = #tpu.core_type<tc>, window_params = [{transform_indices = @transform_0, window_bounds = array<i64: 1, 8, 64>}, {transform_indices = @transform_1, window_bounds = array<i64: 1, 1, 64>}, {transform_indices = @transform_2, window_bounds = array<i64: 1, 1, 64>}, {transform_indices = @transform_3, window_bounds = array<i64: 64, 256>}, {transform_indices = @transform_4, window_bounds = array<i64: 64, 256>}, {transform_indices = @transform_5, window_bounds = array<i64: 1, 256>}, {transform_indices = @transform_6, window_bounds = array<i64: 1, 256>}, {transform_indices = @transform_7, window_bounds = array<i64: 256, 64>}, {pipeline_mode = #tpu.pipeline_mode<synchronous>, transform_indices = @transform_8, window_bounds = array<i64: 1, 64>}, {transform_indices = @transform_9, window_bounds = array<i64: 1, 8, 64>}]} {
    %c0_i32 = arith.constant 0 : i32
    %0 = arith.cmpi eq, %arg2, %c0_i32 : i32
    %1 = arith.extui %0 : i1 to i32
    %c0_i32_0 = arith.constant 0 : i32
    %2 = arith.cmpi ne, %1, %c0_i32_0 : i32
    scf.if %2 {
      %c0_24 = arith.constant 0 : index
      %c0_25 = arith.constant 0 : index
      %c0_26 = arith.constant 0 : index
      %38 = vector.load %arg3[%c0_24, %c0_25, %c0_26] : memref<1x8x64xf32, #tpu.memory_space<vmem>>, vector<1x8x64xf32>
      %39 = vector.shape_cast %38 : vector<1x8x64xf32> to vector<8x64xf32>
      %cst_27 = arith.constant dense<0.000000e+00> : vector<8xf32>
      %40 = vector.multi_reduction <add>, %39, %cst_27 [1] : vector<8x64xf32> to vector<8xf32>
      %41 = vector.shape_cast %40 : vector<8xf32> to vector<8x1xf32>
      %cst_28 = arith.constant 6.400000e+01 : f32
      %42 = vector.broadcast %cst_28 : f32 to vector<8x1xf32>
      %43 = arith.divf %41, %42 : vector<8x1xf32>
      %44 = vector.broadcast %43 : vector<8x1xf32> to vector<8x64xf32>
      %45 = arith.subf %39, %44 : vector<8x64xf32>
      %46 = arith.mulf %45, %45 : vector<8x64xf32>
      %cst_29 = arith.constant dense<0.000000e+00> : vector<8xf32>
      %47 = vector.multi_reduction <add>, %46, %cst_29 [1] : vector<8x64xf32> to vector<8xf32>
      %48 = vector.shape_cast %47 : vector<8xf32> to vector<8x1xf32>
      %cst_30 = arith.constant 6.400000e+01 : f32
      %49 = vector.broadcast %cst_30 : f32 to vector<8x1xf32>
      %50 = arith.divf %48, %49 : vector<8x1xf32>
      %51 = vector.broadcast %43 : vector<8x1xf32> to vector<8x64xf32>
      %52 = arith.subf %39, %51 : vector<8x64xf32>
      %cst_31 = arith.constant 9.99999974E-6 : f32
      %53 = vector.broadcast %cst_31 : f32 to vector<8x1xf32>
      %54 = arith.addf %50, %53 : vector<8x1xf32>
      %55 = math.rsqrt %54 : vector<8x1xf32>
      %56 = vector.broadcast %55 : vector<8x1xf32> to vector<8x64xf32>
      %57 = arith.mulf %52, %56 : vector<8x64xf32>
      %c0_32 = arith.constant 0 : index
      %c0_33 = arith.constant 0 : index
      %c0_34 = arith.constant 0 : index
      %58 = vector.load %arg4[%c0_32, %c0_33, %c0_34] : memref<1x1x64xf32, #tpu.memory_space<vmem>>, vector<1x1x64xf32>
      %59 = vector.shape_cast %58 : vector<1x1x64xf32> to vector<1x64xf32>
      %cst_35 = arith.constant 1.000000e+00 : f32
      %60 = vector.broadcast %cst_35 : f32 to vector<1x64xf32>
      %61 = arith.addf %60, %59 : vector<1x64xf32>
      %62 = vector.broadcast %61 : vector<1x64xf32> to vector<8x64xf32>
      %63 = arith.mulf %57, %62 : vector<8x64xf32>
      %c0_36 = arith.constant 0 : index
      %c0_37 = arith.constant 0 : index
      %c0_38 = arith.constant 0 : index
      %64 = vector.load %arg5[%c0_36, %c0_37, %c0_38] : memref<1x1x64xf32, #tpu.memory_space<vmem>>, vector<1x1x64xf32>
      %65 = vector.shape_cast %64 : vector<1x1x64xf32> to vector<1x64xf32>
      %66 = vector.broadcast %65 : vector<1x64xf32> to vector<8x64xf32>
      %67 = arith.addf %63, %66 : vector<8x64xf32>
      %c0_39 = arith.constant 0 : index
      %c0_40 = arith.constant 0 : index
      %68 = vector.load %arg13[%c0_39, %c0_40] : memref<8x64xf32, #tpu.memory_space<vmem>>, vector<8x64xf32>
      tpu.vector_store %arg13[%c0_39, %c0_40], %67 {strides = array<i32>} : memref<8x64xf32, #tpu.memory_space<vmem>>, vector<8x64xf32>,
      %cst_41 = arith.constant 0.000000e+00 : f32
      %69 = vector.broadcast %cst_41 : f32 to vector<8x64xf32>
      %c0_42 = arith.constant 0 : index
      %c0_43 = arith.constant 0 : index
      %70 = vector.load %arg14[%c0_42, %c0_43] : memref<8x64xf32, #tpu.memory_space<vmem>>, vector<8x64xf32>
      tpu.vector_store %arg14[%c0_42, %c0_43], %69 {strides = array<i32>} : memref<8x64xf32, #tpu.memory_space<vmem>>, vector<8x64xf32>,
    } else {
    }
    %c0 = arith.constant 0 : index
    %c0_1 = arith.constant 0 : index
    %3 = vector.load %arg13[%c0, %c0_1] : memref<8x64xf32, #tpu.memory_space<vmem>>, vector<8x64xf32>
    %4 = arith.truncf %3 : vector<8x64xf32> to vector<8x64xbf16>
    %c0_2 = arith.constant 0 : index
    %c0_3 = arith.constant 0 : index
    %5 = vector.load %arg6[%c0_2, %c0_3] : memref<64x256xbf16, #tpu.memory_space<vmem>>, vector<64x256xbf16>
    %cst = arith.constant dense<0.000000e+00> : vector<8x256xf32>
    %6 = tpu.matmul %4, %5, %cst {dimension_numbers = #tpu.dot_dimension_numbers<[1], [0], [0], [1], [0, 0, 1, 1], [], []>} : vector<8x64xbf16>, vector<64x256xbf16>, vector<8x256xf32> -> vector<8x256xf32>
    %c0_4 = arith.constant 0 : index
    %c0_5 = arith.constant 0 : index
    %7 = vector.load %arg8[%c0_4, %c0_5] : memref<1x256xf32, #tpu.memory_space<vmem>>, vector<1x256xf32>
    %8 = vector.broadcast %7 : vector<1x256xf32> to vector<8x256xf32>
    %9 = arith.addf %6, %8 : vector<8x256xf32>
    %c0_6 = arith.constant 0 : index
    %c0_7 = arith.constant 0 : index
    %10 = vector.load %arg7[%c0_6, %c0_7] : memref<64x256xbf16, #tpu.memory_space<vmem>>, vector<64x256xbf16>
    %cst_8 = arith.constant dense<0.000000e+00> : vector<8x256xf32>
    %11 = tpu.matmul %4, %10, %cst_8 {dimension_numbers = #tpu.dot_dimension_numbers<[1], [0], [0], [1], [0, 0, 1, 1], [], []>} : vector<8x64xbf16>, vector<64x256xbf16>, vector<8x256xf32> -> vector<8x256xf32>
    %c0_9 = arith.constant 0 : index
    %c0_10 = arith.constant 0 : index
    %12 = vector.load %arg9[%c0_9, %c0_10] : memref<1x256xf32, #tpu.memory_space<vmem>>, vector<1x256xf32>
    %13 = vector.broadcast %12 : vector<1x256xf32> to vector<8x256xf32>
    %14 = arith.addf %11, %13 : vector<8x256xf32>
    %15 = arith.mulf %14, %14 : vector<8x256xf32>
    %16 = arith.mulf %14, %15 : vector<8x256xf32>
    %cst_11 = arith.constant 4.471500e-02 : f32
    %17 = vector.broadcast %cst_11 : f32 to vector<8x256xf32>
    %18 = arith.mulf %17, %16 : vector<8x256xf32>
    %19 = arith.addf %14, %18 : vector<8x256xf32>
    %cst_12 = arith.constant 0.797884583 : f32
    %20 = vector.broadcast %cst_12 : f32 to vector<8x256xf32>
    %21 = arith.mulf %20, %19 : vector<8x256xf32>
    %22 = math.tanh %21 : vector<8x256xf32>
    %cst_13 = arith.constant 1.000000e+00 : f32
    %23 = vector.broadcast %cst_13 : f32 to vector<8x256xf32>
    %24 = arith.addf %23, %22 : vector<8x256xf32>
    %cst_14 = arith.constant 5.000000e-01 : f32
    %25 = vector.broadcast %cst_14 : f32 to vector<8x256xf32>
    %26 = arith.mulf %25, %24 : vector<8x256xf32>
    %27 = arith.mulf %14, %26 : vector<8x256xf32>
    %28 = arith.mulf %9, %27 : vector<8x256xf32>
    %c0_15 = arith.constant 0 : index
    %c0_16 = arith.constant 0 : index
    %29 = vector.load %arg14[%c0_15, %c0_16] : memref<8x64xf32, #tpu.memory_space<vmem>>, vector<8x64xf32>
    %30 = arith.truncf %28 : vector<8x256xf32> to vector<8x256xbf16>
    %c0_17 = arith.constant 0 : index
    %c0_18 = arith.constant 0 : index
    %31 = vector.load %arg10[%c0_17, %c0_18] : memref<256x64xbf16, #tpu.memory_space<vmem>>, vector<256x64xbf16>
    %cst_19 = arith.constant dense<0.000000e+00> : vector<8x64xf32>
    %32 = tpu.matmul %30, %31, %cst_19 {dimension_numbers = #tpu.dot_dimension_numbers<[1], [0], [0], [1], [0, 0, 1, 1], [], []>} : vector<8x256xbf16>, vector<256x64xbf16>, vector<8x64xf32> -> vector<8x64xf32>
    %33 = arith.addf %29, %32 : vector<8x64xf32>
    %c0_20 = arith.constant 0 : index
    %c0_21 = arith.constant 0 : index
    %34 = vector.load %arg14[%c0_20, %c0_21] : memref<8x64xf32, #tpu.memory_space<vmem>>, vector<8x64xf32>
    tpu.vector_store %arg14[%c0_20, %c0_21], %33 {strides = array<i32>} : memref<8x64xf32, #tpu.memory_space<vmem>>, vector<8x64xf32>,
    %c0_i32_22 = arith.constant 0 : i32
    %35 = arith.cmpi eq, %arg2, %c0_i32_22 : i32
    %36 = arith.extui %35 : i1 to i32
    %c0_i32_23 = arith.constant 0 : i32
    %37 = arith.cmpi ne, %36, %c0_i32_23 : i32
    scf.if %37 {
      %c0_24 = arith.constant 0 : index
      %c0_25 = arith.constant 0 : index
      %38 = vector.load %arg14[%c0_24, %c0_25] : memref<8x64xf32, #tpu.memory_space<vmem>>, vector<8x64xf32>
      %c0_26 = arith.constant 0 : index
      %c0_27 = arith.constant 0 : index
      %39 = vector.load %arg11[%c0_26, %c0_27] : memref<1x64xf32, #tpu.memory_space<vmem>>, vector<1x64xf32>
      %40 = vector.broadcast %39 : vector<1x64xf32> to vector<8x64xf32>
      %41 = arith.addf %38, %40 : vector<8x64xf32>
      %c0_28 = arith.constant 0 : index
      %c0_29 = arith.constant 0 : index
      %c0_30 = arith.constant 0 : index
      %42 = vector.load %arg3[%c0_28, %c0_29, %c0_30] : memref<1x8x64xf32, #tpu.memory_space<vmem>>, vector<1x8x64xf32>
      %43 = vector.shape_cast %42 : vector<1x8x64xf32> to vector<8x64xf32>
      %44 = arith.addf %41, %43 : vector<8x64xf32>
      %c0_31 = arith.constant 0 : index
      %c0_32 = arith.constant 0 : index
      %c0_33 = arith.constant 0 : index
      %45 = vector.load %arg12[%c0_31, %c0_32, %c0_33] : memref<1x8x64xf32, #tpu.memory_space<vmem>>, vector<1x8x64xf32>
      %46 = vector.shape_cast %45 : vector<1x8x64xf32> to vector<8x64xf32>
      %47 = vector.shape_cast %44 : vector<8x64xf32> to vector<1x8x64xf32>
      tpu.vector_store %arg12[%c0_31, %c0_32, %c0_33], %47 {strides = array<i32>} : memref<1x8x64xf32, #tpu.memory_space<vmem>>, vector<1x8x64xf32>,
    } else {
    }
    return
  }
  func.func @transform_0(%arg0: i32, %arg1: i32, %arg2: i32) -> (i32, i32, i32) {
    %c0_i32 = arith.constant 0 : i32
    %c0_i32_0 = arith.constant 0 : i32
    return %arg0, %arg1, %c0_i32 : i32, i32, i32
  }
  func.func @transform_1(%arg0: i32, %arg1: i32, %arg2: i32) -> (i32, i32, i32) {
    %c0_i32 = arith.constant 0 : i32
    %c0_i32_0 = arith.constant 0 : i32
    %c0_i32_1 = arith.constant 0 : i32
    return %arg0, %c0_i32, %c0_i32_0 : i32, i32, i32
  }
  func.func @transform_2(%arg0: i32, %arg1: i32, %arg2: i32) -> (i32, i32, i32) {
    %c0_i32 = arith.constant 0 : i32
    %c0_i32_0 = arith.constant 0 : i32
    %c0_i32_1 = arith.constant 0 : i32
    return %arg0, %c0_i32, %c0_i32_0 : i32, i32, i32
  }
  func.func @transform_3(%arg0: i32, %arg1: i32, %arg2: i32) -> (i32, i32) {
    %c0_i32 = arith.constant 0 : i32
    %c0_i32_0 = arith.constant 0 : i32
    return %c0_i32, %arg2 : i32, i32
  }
  func.func @transform_4(%arg0: i32, %arg1: i32, %arg2: i32) -> (i32, i32) {
    %c0_i32 = arith.constant 0 : i32
    %c0_i32_0 = arith.constant 0 : i32
    return %c0_i32, %arg2 : i32, i32
  }
  func.func @transform_5(%arg0: i32, %arg1: i32, %arg2: i32) -> (i32, i32) {
    %c0_i32 = arith.constant 0 : i32
    %c0_i32_0 = arith.constant 0 : i32
    return %c0_i32, %arg2 : i32, i32
  }
  func.func @transform_6(%arg0: i32, %arg1: i32, %arg2: i32) -> (i32, i32) {
    %c0_i32 = arith.constant 0 : i32
    %c0_i32_0 = arith.constant 0 : i32
    return %c0_i32, %arg2 : i32, i32
  }
  func.func @transform_7(%arg0: i32, %arg1: i32, %arg2: i32) -> (i32, i32) {
    %c0_i32 = arith.constant 0 : i32
    %c0_i32_0 = arith.constant 0 : i32
    return %arg2, %c0_i32 : i32, i32
  }
  func.func @transform_8(%arg0: i32, %arg1: i32, %arg2: i32) -> (i32, i32) {
    %c0_i32 = arith.constant 0 : i32
    %c0_i32_0 = arith.constant 0 : i32
    %c0_i32_1 = arith.constant 0 : i32
    return %c0_i32, %c0_i32_0 : i32, i32
  }
  func.func @transform_9(%arg0: i32, %arg1: i32, %arg2: i32) -> (i32, i32, i32) {
    %c0_i32 = arith.constant 0 : i32
    %c0_i32_0 = arith.constant 0 : i32
    return %arg0, %arg1, %c0_i32 : i32, i32, i32
  }
}

module attributes {stable_mosaic.version = 11 : i64} {
  func.func @_adaln_matmul_kernel(%arg0: i32, %arg1: i32, %arg2: memref<1x8x64xf32, #tpu.memory_space<vmem>>, %arg3: memref<1x1x64xf32, #tpu.memory_space<vmem>>, %arg4: memref<1x1x64xf32, #tpu.memory_space<vmem>>, %arg5: memref<64x192xbf16, #tpu.memory_space<vmem>>, %arg6: memref<1x8x192xbf16, #tpu.memory_space<vmem>>) attributes {dimension_semantics = [#tpu.dimension_semantics<parallel>, #tpu.dimension_semantics<parallel>], iteration_bounds = array<i64: 2, 1>, scalar_prefetch = 0 : i64, scratch_operands = 0 : i64, tpu.core_type = #tpu.core_type<tc>, window_params = [{transform_indices = @transform_0, window_bounds = array<i64: 1, 8, 64>}, {transform_indices = @transform_1, window_bounds = array<i64: 1, 1, 64>}, {transform_indices = @transform_2, window_bounds = array<i64: 1, 1, 64>}, {pipeline_mode = #tpu.pipeline_mode<synchronous>, transform_indices = @transform_3, window_bounds = array<i64: 64, 192>}, {transform_indices = @transform_4, window_bounds = array<i64: 1, 8, 192>}]} {
    %c0 = arith.constant 0 : index
    %c0_0 = arith.constant 0 : index
    %c0_1 = arith.constant 0 : index
    %0 = vector.load %arg2[%c0, %c0_0, %c0_1] : memref<1x8x64xf32, #tpu.memory_space<vmem>>, vector<1x8x64xf32>
    %1 = vector.shape_cast %0 : vector<1x8x64xf32> to vector<8x64xf32>
    %cst = arith.constant dense<0.000000e+00> : vector<8xf32>
    %2 = vector.multi_reduction <add>, %1, %cst [1] : vector<8x64xf32> to vector<8xf32>
    %3 = vector.shape_cast %2 : vector<8xf32> to vector<8x1xf32>
    %cst_2 = arith.constant 6.400000e+01 : f32
    %4 = vector.broadcast %cst_2 : f32 to vector<8x1xf32>
    %5 = arith.divf %3, %4 : vector<8x1xf32>
    %6 = vector.broadcast %5 : vector<8x1xf32> to vector<8x64xf32>
    %7 = arith.subf %1, %6 : vector<8x64xf32>
    %8 = arith.mulf %7, %7 : vector<8x64xf32>
    %cst_3 = arith.constant dense<0.000000e+00> : vector<8xf32>
    %9 = vector.multi_reduction <add>, %8, %cst_3 [1] : vector<8x64xf32> to vector<8xf32>
    %10 = vector.shape_cast %9 : vector<8xf32> to vector<8x1xf32>
    %cst_4 = arith.constant 6.400000e+01 : f32
    %11 = vector.broadcast %cst_4 : f32 to vector<8x1xf32>
    %12 = arith.divf %10, %11 : vector<8x1xf32>
    %13 = vector.broadcast %5 : vector<8x1xf32> to vector<8x64xf32>
    %14 = arith.subf %1, %13 : vector<8x64xf32>
    %cst_5 = arith.constant 9.99999974E-6 : f32
    %15 = vector.broadcast %cst_5 : f32 to vector<8x1xf32>
    %16 = arith.addf %12, %15 : vector<8x1xf32>
    %17 = math.rsqrt %16 : vector<8x1xf32>
    %18 = vector.broadcast %17 : vector<8x1xf32> to vector<8x64xf32>
    %19 = arith.mulf %14, %18 : vector<8x64xf32>
    %c0_6 = arith.constant 0 : index
    %c0_7 = arith.constant 0 : index
    %c0_8 = arith.constant 0 : index
    %20 = vector.load %arg3[%c0_6, %c0_7, %c0_8] : memref<1x1x64xf32, #tpu.memory_space<vmem>>, vector<1x1x64xf32>
    %21 = vector.shape_cast %20 : vector<1x1x64xf32> to vector<1x64xf32>
    %cst_9 = arith.constant 1.000000e+00 : f32
    %22 = vector.broadcast %cst_9 : f32 to vector<1x64xf32>
    %23 = arith.addf %22, %21 : vector<1x64xf32>
    %24 = vector.broadcast %23 : vector<1x64xf32> to vector<8x64xf32>
    %25 = arith.mulf %19, %24 : vector<8x64xf32>
    %c0_10 = arith.constant 0 : index
    %c0_11 = arith.constant 0 : index
    %c0_12 = arith.constant 0 : index
    %26 = vector.load %arg4[%c0_10, %c0_11, %c0_12] : memref<1x1x64xf32, #tpu.memory_space<vmem>>, vector<1x1x64xf32>
    %27 = vector.shape_cast %26 : vector<1x1x64xf32> to vector<1x64xf32>
    %28 = vector.broadcast %27 : vector<1x64xf32> to vector<8x64xf32>
    %29 = arith.addf %25, %28 : vector<8x64xf32>
    %30 = arith.truncf %29 : vector<8x64xf32> to vector<8x64xbf16>
    %c0_13 = arith.constant 0 : index
    %c0_14 = arith.constant 0 : index
    %31 = vector.load %arg5[%c0_13, %c0_14] : memref<64x192xbf16, #tpu.memory_space<vmem>>, vector<64x192xbf16>
    %cst_15 = arith.constant dense<0.000000e+00> : vector<8x192xf32>
    %32 = tpu.matmul %30, %31, %cst_15 {dimension_numbers = #tpu.dot_dimension_numbers<[1], [0], [0], [1], [0, 0, 1, 1], [], []>} : vector<8x64xbf16>, vector<64x192xbf16>, vector<8x192xf32> -> vector<8x192xf32>
    %33 = arith.truncf %32 : vector<8x192xf32> to vector<8x192xbf16>
    %c0_16 = arith.constant 0 : index
    %c0_17 = arith.constant 0 : index
    %c0_18 = arith.constant 0 : index
    %34 = vector.load %arg6[%c0_16, %c0_17, %c0_18] : memref<1x8x192xbf16, #tpu.memory_space<vmem>>, vector<1x8x192xbf16>
    %35 = vector.shape_cast %34 : vector<1x8x192xbf16> to vector<8x192xbf16>
    %36 = vector.shape_cast %33 : vector<8x192xbf16> to vector<1x8x192xbf16>
    tpu.vector_store %arg6[%c0_16, %c0_17, %c0_18], %36 {strides = array<i32>} : memref<1x8x192xbf16, #tpu.memory_space<vmem>>, vector<1x8x192xbf16>,
    return
  }
  func.func @transform_0(%arg0: i32, %arg1: i32) -> (i32, i32, i32) {
    %c0_i32 = arith.constant 0 : i32
    %c0_i32_0 = arith.constant 0 : i32
    return %arg0, %arg1, %c0_i32 : i32, i32, i32
  }
  func.func @transform_1(%arg0: i32, %arg1: i32) -> (i32, i32, i32) {
    %c0_i32 = arith.constant 0 : i32
    %c0_i32_0 = arith.constant 0 : i32
    %c0_i32_1 = arith.constant 0 : i32
    return %arg0, %c0_i32, %c0_i32_0 : i32, i32, i32
  }
  func.func @transform_2(%arg0: i32, %arg1: i32) -> (i32, i32, i32) {
    %c0_i32 = arith.constant 0 : i32
    %c0_i32_0 = arith.constant 0 : i32
    %c0_i32_1 = arith.constant 0 : i32
    return %arg0, %c0_i32, %c0_i32_0 : i32, i32, i32
  }
  func.func @transform_3(%arg0: i32, %arg1: i32) -> (i32, i32) {
    %c0_i32 = arith.constant 0 : i32
    %c0_i32_0 = arith.constant 0 : i32
    %c0_i32_1 = arith.constant 0 : i32
    return %c0_i32, %c0_i32_0 : i32, i32
  }
  func.func @transform_4(%arg0: i32, %arg1: i32) -> (i32, i32, i32) {
    %c0_i32 = arith.constant 0 : i32
    %c0_i32_0 = arith.constant 0 : i32
    return %arg0, %arg1, %c0_i32 : i32, i32, i32
  }
}

module attributes {stable_mosaic.version = 11 : i64} {
  func.func @_cross_attn_kernel(%arg0: i32, %arg1: memref<1x8x64xbf16, #tpu.memory_space<vmem>>, %arg2: memref<1x6x128xbf16, #tpu.memory_space<vmem>>, %arg3: memref<64x64xbf16, #tpu.memory_space<vmem>>, %arg4: memref<1x64xf32, #tpu.memory_space<vmem>>, %arg5: memref<1x8x64xf32, #tpu.memory_space<vmem>>, %arg6: memref<1x8x64xf32, #tpu.memory_space<vmem>>) attributes {dimension_semantics = [#tpu.dimension_semantics<parallel>], iteration_bounds = array<i64: 2>, scalar_prefetch = 0 : i64, scratch_operands = 0 : i64, tpu.core_type = #tpu.core_type<tc>, window_params = [{transform_indices = @transform_0, window_bounds = array<i64: 1, 8, 64>}, {transform_indices = @transform_1, window_bounds = array<i64: 1, 6, 128>}, {pipeline_mode = #tpu.pipeline_mode<synchronous>, transform_indices = @transform_2, window_bounds = array<i64: 64, 64>}, {pipeline_mode = #tpu.pipeline_mode<synchronous>, transform_indices = @transform_3, window_bounds = array<i64: 1, 64>}, {transform_indices = @transform_4, window_bounds = array<i64: 1, 8, 64>}, {transform_indices = @transform_5, window_bounds = array<i64: 1, 8, 64>}]} {
    %c0 = arith.constant 0 : index
    %c0_0 = arith.constant 0 : index
    %c0_1 = arith.constant 0 : index
    %0 = vector.load %arg2[%c0, %c0_0, %c0_1] : memref<1x6x128xbf16, #tpu.memory_space<vmem>>, vector<1x6x128xbf16>
    %1 = vector.shape_cast %0 : vector<1x6x128xbf16> to vector<6x128xbf16>
    %c0_2 = arith.constant 0 : index
    %c0_3 = arith.constant 0 : index
    %2 = vector.load %arg3[%c0_2, %c0_3] : memref<64x64xbf16, #tpu.memory_space<vmem>>, vector<64x64xbf16>
    %c0_4 = arith.constant 0 : index
    %c0_5 = arith.constant 0 : index
    %c0_6 = arith.constant 0 : index
    %3 = vector.load %arg1[%c0_4, %c0_5, %c0_6] : memref<1x8x64xbf16, #tpu.memory_space<vmem>>, vector<1x8x64xbf16>
    %4 = vector.shape_cast %3 : vector<1x8x64xbf16> to vector<8x64xbf16>
    %5 = vector.extract_strided_slice %1 {offsets = [0, 0], sizes = [6, 64], strides = [1, 1]} : vector<6x128xbf16> to vector<6x64xbf16>
    %6 = vector.extract_strided_slice %1 {offsets = [0, 64], sizes = [6, 64], strides = [1, 1]} : vector<6x128xbf16> to vector<6x64xbf16>
    %cst = arith.constant 2.500000e-01 : bf16
    %7 = vector.broadcast %cst : bf16 to vector<8x64xbf16>
    %8 = arith.mulf %4, %7 : vector<8x64xbf16>
    %cst_7 = arith.constant 0.000000e+00 : f32
    %9 = vector.broadcast %cst_7 : f32 to vector<8x64xf32>
    %10 = vector.extract_strided_slice %8 {offsets = [0, 0], sizes = [8, 16], strides = [1, 1]} : vector<8x64xbf16> to vector<8x16xbf16>
    %11 = vector.extract_strided_slice %5 {offsets = [0, 0], sizes = [6, 16], strides = [1, 1]} : vector<6x64xbf16> to vector<6x16xbf16>
    %cst_8 = arith.constant dense<0.000000e+00> : vector<8x6xf32>
    %12 = tpu.matmul %10, %11, %cst_8 {dimension_numbers = #tpu.dot_dimension_numbers<[1], [1], [0], [0], [0, 0, 1, 0], [], []>} : vector<8x16xbf16>, vector<6x16xbf16>, vector<8x6xf32> -> vector<8x6xf32>
    %cst_9 = arith.constant dense<0xFF800000> : vector<8xf32>
    %13 = vector.multi_reduction <maximumf>, %12, %cst_9 [1] : vector<8x6xf32> to vector<8xf32>
    %14 = vector.shape_cast %13 : vector<8xf32> to vector<8x1xf32>
    %15 = vector.broadcast %14 : vector<8x1xf32> to vector<8x6xf32>
    %16 = arith.subf %12, %15 : vector<8x6xf32>
    %17 = math.exp %16 : vector<8x6xf32>
    %cst_10 = arith.constant dense<0.000000e+00> : vector<8xf32>
    %18 = vector.multi_reduction <add>, %17, %cst_10 [1] : vector<8x6xf32> to vector<8xf32>
    %19 = vector.shape_cast %18 : vector<8xf32> to vector<8x1xf32>
    %20 = tpu.reciprocal %19 {approx = true} : vector<8x1xf32> -> vector<8x1xf32>
    %21 = vector.broadcast %20 : vector<8x1xf32> to vector<8x6xf32>
    %22 = arith.mulf %17, %21 : vector<8x6xf32>
    %23 = arith.truncf %22 : vector<8x6xf32> to vector<8x6xbf16>
    %24 = vector.extract_strided_slice %6 {offsets = [0, 0], sizes = [6, 16], strides = [1, 1]} : vector<6x64xbf16> to vector<6x16xbf16>
    %cst_11 = arith.constant dense<0.000000e+00> : vector<8x16xf32>
    %25 = tpu.matmul %23, %24, %cst_11 {dimension_numbers = #tpu.dot_dimension_numbers<[1], [0], [0], [1], [0, 0, 1, 1], [], []>} : vector<8x6xbf16>, vector<6x16xbf16>, vector<8x16xf32> -> vector<8x16xf32>
    %26 = arith.truncf %25 : vector<8x16xf32> to vector<8x16xbf16>
    %27 = vector.extract_strided_slice %2 {offsets = [0, 0], sizes = [16, 64], strides = [1, 1]} : vector<64x64xbf16> to vector<16x64xbf16>
    %cst_12 = arith.constant dense<0.000000e+00> : vector<8x64xf32>
    %28 = tpu.matmul %26, %27, %cst_12 {dimension_numbers = #tpu.dot_dimension_numbers<[1], [0], [0], [1], [0, 0, 1, 1], [], []>} : vector<8x16xbf16>, vector<16x64xbf16>, vector<8x64xf32> -> vector<8x64xf32>
    %29 = arith.addf %9, %28 : vector<8x64xf32>
    %30 = vector.extract_strided_slice %8 {offsets = [0, 16], sizes = [8, 16], strides = [1, 1]} : vector<8x64xbf16> to vector<8x16xbf16>
    %31 = vector.extract_strided_slice %5 {offsets = [0, 16], sizes = [6, 16], strides = [1, 1]} : vector<6x64xbf16> to vector<6x16xbf16>
    %cst_13 = arith.constant dense<0.000000e+00> : vector<8x6xf32>
    %32 = tpu.matmul %30, %31, %cst_13 {dimension_numbers = #tpu.dot_dimension_numbers<[1], [1], [0], [0], [0, 0, 1, 0], [], []>} : vector<8x16xbf16>, vector<6x16xbf16>, vector<8x6xf32> -> vector<8x6xf32>
    %cst_14 = arith.constant dense<0xFF800000> : vector<8xf32>
    %33 = vector.multi_reduction <maximumf>, %32, %cst_14 [1] : vector<8x6xf32> to vector<8xf32>
    %34 = vector.shape_cast %33 : vector<8xf32> to vector<8x1xf32>
    %35 = vector.broadcast %34 : vector<8x1xf32> to vector<8x6xf32>
    %36 = arith.subf %32, %35 : vector<8x6xf32>
    %37 = math.exp %36 : vector<8x6xf32>
    %cst_15 = arith.constant dense<0.000000e+00> : vector<8xf32>
    %38 = vector.multi_reduction <add>, %37, %cst_15 [1] : vector<8x6xf32> to vector<8xf32>
    %39 = vector.shape_cast %38 : vector<8xf32> to vector<8x1xf32>
    %40 = tpu.reciprocal %39 {approx = true} : vector<8x1xf32> -> vector<8x1xf32>
    %41 = vector.broadcast %40 : vector<8x1xf32> to vector<8x6xf32>
    %42 = arith.mulf %37, %41 : vector<8x6xf32>
    %43 = arith.truncf %42 : vector<8x6xf32> to vector<8x6xbf16>
    %44 = vector.extract_strided_slice %6 {offsets = [0, 16], sizes = [6, 16], strides = [1, 1]} : vector<6x64xbf16> to vector<6x16xbf16>
    %cst_16 = arith.constant dense<0.000000e+00> : vector<8x16xf32>
    %45 = tpu.matmul %43, %44, %cst_16 {dimension_numbers = #tpu.dot_dimension_numbers<[1], [0], [0], [1], [0, 0, 1, 1], [], []>} : vector<8x6xbf16>, vector<6x16xbf16>, vector<8x16xf32> -> vector<8x16xf32>
    %46 = arith.truncf %45 : vector<8x16xf32> to vector<8x16xbf16>
    %47 = vector.extract_strided_slice %2 {offsets = [16, 0], sizes = [16, 64], strides = [1, 1]} : vector<64x64xbf16> to vector<16x64xbf16>
    %cst_17 = arith.constant dense<0.000000e+00> : vector<8x64xf32>
    %48 = tpu.matmul %46, %47, %cst_17 {dimension_numbers = #tpu.dot_dimension_numbers<[1], [0], [0], [1], [0, 0, 1, 1], [], []>} : vector<8x16xbf16>, vector<16x64xbf16>, vector<8x64xf32> -> vector<8x64xf32>
    %49 = arith.addf %29, %48 : vector<8x64xf32>
    %50 = vector.extract_strided_slice %8 {offsets = [0, 32], sizes = [8, 16], strides = [1, 1]} : vector<8x64xbf16> to vector<8x16xbf16>
    %51 = vector.extract_strided_slice %5 {offsets = [0, 32], sizes = [6, 16], strides = [1, 1]} : vector<6x64xbf16> to vector<6x16xbf16>
    %cst_18 = arith.constant dense<0.000000e+00> : vector<8x6xf32>
    %52 = tpu.matmul %50, %51, %cst_18 {dimension_numbers = #tpu.dot_dimension_numbers<[1], [1], [0], [0], [0, 0, 1, 0], [], []>} : vector<8x16xbf16>, vector<6x16xbf16>, vector<8x6xf32> -> vector<8x6xf32>
    %cst_19 = arith.constant dense<0xFF800000> : vector<8xf32>
    %53 = vector.multi_reduction <maximumf>, %52, %cst_19 [1] : vector<8x6xf32> to vector<8xf32>
    %54 = vector.shape_cast %53 : vector<8xf32> to vector<8x1xf32>
    %55 = vector.broadcast %54 : vector<8x1xf32> to vector<8x6xf32>
    %56 = arith.subf %52, %55 : vector<8x6xf32>
    %57 = math.exp %56 : vector<8x6xf32>
    %cst_20 = arith.constant dense<0.000000e+00> : vector<8xf32>
    %58 = vector.multi_reduction <add>, %57, %cst_20 [1] : vector<8x6xf32> to vector<8xf32>
    %59 = vector.shape_cast %58 : vector<8xf32> to vector<8x1xf32>
    %60 = tpu.reciprocal %59 {approx = true} : vector<8x1xf32> -> vector<8x1xf32>
    %61 = vector.broadcast %60 : vector<8x1xf32> to vector<8x6xf32>
    %62 = arith.mulf %57, %61 : vector<8x6xf32>
    %63 = arith.truncf %62 : vector<8x6xf32> to vector<8x6xbf16>
    %64 = vector.extract_strided_slice %6 {offsets = [0, 32], sizes = [6, 16], strides = [1, 1]} : vector<6x64xbf16> to vector<6x16xbf16>
    %cst_21 = arith.constant dense<0.000000e+00> : vector<8x16xf32>
    %65 = tpu.matmul %63, %64, %cst_21 {dimension_numbers = #tpu.dot_dimension_numbers<[1], [0], [0], [1], [0, 0, 1, 1], [], []>} : vector<8x6xbf16>, vector<6x16xbf16>, vector<8x16xf32> -> vector<8x16xf32>
    %66 = arith.truncf %65 : vector<8x16xf32> to vector<8x16xbf16>
    %67 = vector.extract_strided_slice %2 {offsets = [32, 0], sizes = [16, 64], strides = [1, 1]} : vector<64x64xbf16> to vector<16x64xbf16>
    %cst_22 = arith.constant dense<0.000000e+00> : vector<8x64xf32>
    %68 = tpu.matmul %66, %67, %cst_22 {dimension_numbers = #tpu.dot_dimension_numbers<[1], [0], [0], [1], [0, 0, 1, 1], [], []>} : vector<8x16xbf16>, vector<16x64xbf16>, vector<8x64xf32> -> vector<8x64xf32>
    %69 = arith.addf %49, %68 : vector<8x64xf32>
    %70 = vector.extract_strided_slice %8 {offsets = [0, 48], sizes = [8, 16], strides = [1, 1]} : vector<8x64xbf16> to vector<8x16xbf16>
    %71 = vector.extract_strided_slice %5 {offsets = [0, 48], sizes = [6, 16], strides = [1, 1]} : vector<6x64xbf16> to vector<6x16xbf16>
    %cst_23 = arith.constant dense<0.000000e+00> : vector<8x6xf32>
    %72 = tpu.matmul %70, %71, %cst_23 {dimension_numbers = #tpu.dot_dimension_numbers<[1], [1], [0], [0], [0, 0, 1, 0], [], []>} : vector<8x16xbf16>, vector<6x16xbf16>, vector<8x6xf32> -> vector<8x6xf32>
    %cst_24 = arith.constant dense<0xFF800000> : vector<8xf32>
    %73 = vector.multi_reduction <maximumf>, %72, %cst_24 [1] : vector<8x6xf32> to vector<8xf32>
    %74 = vector.shape_cast %73 : vector<8xf32> to vector<8x1xf32>
    %75 = vector.broadcast %74 : vector<8x1xf32> to vector<8x6xf32>
    %76 = arith.subf %72, %75 : vector<8x6xf32>
    %77 = math.exp %76 : vector<8x6xf32>
    %cst_25 = arith.constant dense<0.000000e+00> : vector<8xf32>
    %78 = vector.multi_reduction <add>, %77, %cst_25 [1] : vector<8x6xf32> to vector<8xf32>
    %79 = vector.shape_cast %78 : vector<8xf32> to vector<8x1xf32>
    %80 = tpu.reciprocal %79 {approx = true} : vector<8x1xf32> -> vector<8x1xf32>
    %81 = vector.broadcast %80 : vector<8x1xf32> to vector<8x6xf32>
    %82 = arith.mulf %77, %81 : vector<8x6xf32>
    %83 = arith.truncf %82 : vector<8x6xf32> to vector<8x6xbf16>
    %84 = vector.extract_strided_slice %6 {offsets = [0, 48], sizes = [6, 16], strides = [1, 1]} : vector<6x64xbf16> to vector<6x16xbf16>
    %cst_26 = arith.constant dense<0.000000e+00> : vector<8x16xf32>
    %85 = tpu.matmul %83, %84, %cst_26 {dimension_numbers = #tpu.dot_dimension_numbers<[1], [0], [0], [1], [0, 0, 1, 1], [], []>} : vector<8x6xbf16>, vector<6x16xbf16>, vector<8x16xf32> -> vector<8x16xf32>
    %86 = arith.truncf %85 : vector<8x16xf32> to vector<8x16xbf16>
    %87 = vector.extract_strided_slice %2 {offsets = [48, 0], sizes = [16, 64], strides = [1, 1]} : vector<64x64xbf16> to vector<16x64xbf16>
    %cst_27 = arith.constant dense<0.000000e+00> : vector<8x64xf32>
    %88 = tpu.matmul %86, %87, %cst_27 {dimension_numbers = #tpu.dot_dimension_numbers<[1], [0], [0], [1], [0, 0, 1, 1], [], []>} : vector<8x16xbf16>, vector<16x64xbf16>, vector<8x64xf32> -> vector<8x64xf32>
    %89 = arith.addf %69, %88 : vector<8x64xf32>
    %c0_28 = arith.constant 0 : index
    %c0_29 = arith.constant 0 : index
    %90 = vector.load %arg4[%c0_28, %c0_29] : memref<1x64xf32, #tpu.memory_space<vmem>>, vector<1x64xf32>
    %91 = vector.broadcast %90 : vector<1x64xf32> to vector<8x64xf32>
    %92 = arith.addf %89, %91 : vector<8x64xf32>
    %c0_30 = arith.constant 0 : index
    %c0_31 = arith.constant 0 : index
    %c0_32 = arith.constant 0 : index
    %93 = vector.load %arg5[%c0_30, %c0_31, %c0_32] : memref<1x8x64xf32, #tpu.memory_space<vmem>>, vector<1x8x64xf32>
    %94 = vector.shape_cast %93 : vector<1x8x64xf32> to vector<8x64xf32>
    %95 = arith.addf %92, %94 : vector<8x64xf32>
    %c0_33 = arith.constant 0 : index
    %c0_34 = arith.constant 0 : index
    %c0_35 = arith.constant 0 : index
    %96 = vector.load %arg6[%c0_33, %c0_34, %c0_35] : memref<1x8x64xf32, #tpu.memory_space<vmem>>, vector<1x8x64xf32>
    %97 = vector.shape_cast %96 : vector<1x8x64xf32> to vector<8x64xf32>
    %98 = vector.shape_cast %95 : vector<8x64xf32> to vector<1x8x64xf32>
    tpu.vector_store %arg6[%c0_33, %c0_34, %c0_35], %98 {strides = array<i32>} : memref<1x8x64xf32, #tpu.memory_space<vmem>>, vector<1x8x64xf32>,
    return
  }
  func.func @transform_0(%arg0: i32) -> (i32, i32, i32) {
    %c0_i32 = arith.constant 0 : i32
    %c0_i32_0 = arith.constant 0 : i32
    %c0_i32_1 = arith.constant 0 : i32
    return %arg0, %c0_i32, %c0_i32_0 : i32, i32, i32
  }
  func.func @transform_1(%arg0: i32) -> (i32, i32, i32) {
    %c0_i32 = arith.constant 0 : i32
    %c0_i32_0 = arith.constant 0 : i32
    %c0_i32_1 = arith.constant 0 : i32
    return %arg0, %c0_i32, %c0_i32_0 : i32, i32, i32
  }
  func.func @transform_2(%arg0: i32) -> (i32, i32) {
    %c0_i32 = arith.constant 0 : i32
    %c0_i32_0 = arith.constant 0 : i32
    %c0_i32_1 = arith.constant 0 : i32
    return %c0_i32, %c0_i32_0 : i32, i32
  }
  func.func @transform_3(%arg0: i32) -> (i32, i32) {
    %c0_i32 = arith.constant 0 : i32
    %c0_i32_0 = arith.constant 0 : i32
    %c0_i32_1 = arith.constant 0 : i32
    return %c0_i32, %c0_i32_0 : i32, i32
  }
  func.func @transform_4(%arg0: i32) -> (i32, i32, i32) {
    %c0_i32 = arith.constant 0 : i32
    %c0_i32_0 = arith.constant 0 : i32
    %c0_i32_1 = arith.constant 0 : i32
    return %arg0, %c0_i32, %c0_i32_0 : i32, i32, i32
  }
  func.func @transform_5(%arg0: i32) -> (i32, i32, i32) {
    %c0_i32 = arith.constant 0 : i32
    %c0_i32_0 = arith.constant 0 : i32
    %c0_i32_1 = arith.constant 0 : i32
    return %arg0, %c0_i32, %c0_i32_0 : i32, i32, i32
  }
}

module attributes {stable_mosaic.version = 11 : i64} {
  func.func @_ff_fused_kernel(%arg0: i32, %arg1: i32, %arg2: i32, %arg3: memref<1x8x64xf32, #tpu.memory_space<vmem>>, %arg4: memref<1x1x64xf32, #tpu.memory_space<vmem>>, %arg5: memref<1x1x64xf32, #tpu.memory_space<vmem>>, %arg6: memref<64x256xbf16, #tpu.memory_space<vmem>>, %arg7: memref<64x256xbf16, #tpu.memory_space<vmem>>, %arg8: memref<1x256xf32, #tpu.memory_space<vmem>>, %arg9: memref<1x256xf32, #tpu.memory_space<vmem>>, %arg10: memref<256x64xbf16, #tpu.memory_space<vmem>>, %arg11: memref<1x64xf32, #tpu.memory_space<vmem>>, %arg12: memref<1x8x64xf32, #tpu.memory_space<vmem>>, %arg13: memref<8x64xf32, #tpu.memory_space<vmem>>, %arg14: memref<8x64xf32, #tpu.memory_space<vmem>>) attributes {dimension_semantics = [#tpu.dimension_semantics<parallel>, #tpu.dimension_semantics<parallel>, #tpu.dimension_semantics<arbitrary>], iteration_bounds = array<i64: 2, 1, 1>, scalar_prefetch = 0 : i64, scratch_operands = 2 : i64, tpu.core_type = #tpu.core_type<tc>, window_params = [{transform_indices = @transform_0, window_bounds = array<i64: 1, 8, 64>}, {transform_indices = @transform_1, window_bounds = array<i64: 1, 1, 64>}, {transform_indices = @transform_2, window_bounds = array<i64: 1, 1, 64>}, {transform_indices = @transform_3, window_bounds = array<i64: 64, 256>}, {transform_indices = @transform_4, window_bounds = array<i64: 64, 256>}, {transform_indices = @transform_5, window_bounds = array<i64: 1, 256>}, {transform_indices = @transform_6, window_bounds = array<i64: 1, 256>}, {transform_indices = @transform_7, window_bounds = array<i64: 256, 64>}, {pipeline_mode = #tpu.pipeline_mode<synchronous>, transform_indices = @transform_8, window_bounds = array<i64: 1, 64>}, {transform_indices = @transform_9, window_bounds = array<i64: 1, 8, 64>}]} {
    %c0_i32 = arith.constant 0 : i32
    %0 = arith.cmpi eq, %arg2, %c0_i32 : i32
    %1 = arith.extui %0 : i1 to i32
    %c0_i32_0 = arith.constant 0 : i32
    %2 = arith.cmpi ne, %1, %c0_i32_0 : i32
    scf.if %2 {
      %c0_24 = arith.constant 0 : index
      %c0_25 = arith.constant 0 : index
      %c0_26 = arith.constant 0 : index
      %38 = vector.load %arg3[%c0_24, %c0_25, %c0_26] : memref<1x8x64xf32, #tpu.memory_space<vmem>>, vector<1x8x64xf32>
      %39 = vector.shape_cast %38 : vector<1x8x64xf32> to vector<8x64xf32>
      %cst_27 = arith.constant dense<0.000000e+00> : vector<8xf32>
      %40 = vector.multi_reduction <add>, %39, %cst_27 [1] : vector<8x64xf32> to vector<8xf32>
      %41 = vector.shape_cast %40 : vector<8xf32> to vector<8x1xf32>
      %cst_28 = arith.constant 6.400000e+01 : f32
      %42 = vector.broadcast %cst_28 : f32 to vector<8x1xf32>
      %43 = arith.divf %41, %42 : vector<8x1xf32>
      %44 = vector.broadcast %43 : vector<8x1xf32> to vector<8x64xf32>
      %45 = arith.subf %39, %44 : vector<8x64xf32>
      %46 = arith.mulf %45, %45 : vector<8x64xf32>
      %cst_29 = arith.constant dense<0.000000e+00> : vector<8xf32>
      %47 = vector.multi_reduction <add>, %46, %cst_29 [1] : vector<8x64xf32> to vector<8xf32>
      %48 = vector.shape_cast %47 : vector<8xf32> to vector<8x1xf32>
      %cst_30 = arith.constant 6.400000e+01 : f32
      %49 = vector.broadcast %cst_30 : f32 to vector<8x1xf32>
      %50 = arith.divf %48, %49 : vector<8x1xf32>
      %51 = vector.broadcast %43 : vector<8x1xf32> to vector<8x64xf32>
      %52 = arith.subf %39, %51 : vector<8x64xf32>
      %cst_31 = arith.constant 9.99999974E-6 : f32
      %53 = vector.broadcast %cst_31 : f32 to vector<8x1xf32>
      %54 = arith.addf %50, %53 : vector<8x1xf32>
      %55 = math.rsqrt %54 : vector<8x1xf32>
      %56 = vector.broadcast %55 : vector<8x1xf32> to vector<8x64xf32>
      %57 = arith.mulf %52, %56 : vector<8x64xf32>
      %c0_32 = arith.constant 0 : index
      %c0_33 = arith.constant 0 : index
      %c0_34 = arith.constant 0 : index
      %58 = vector.load %arg4[%c0_32, %c0_33, %c0_34] : memref<1x1x64xf32, #tpu.memory_space<vmem>>, vector<1x1x64xf32>
      %59 = vector.shape_cast %58 : vector<1x1x64xf32> to vector<1x64xf32>
      %cst_35 = arith.constant 1.000000e+00 : f32
      %60 = vector.broadcast %cst_35 : f32 to vector<1x64xf32>
      %61 = arith.addf %60, %59 : vector<1x64xf32>
      %62 = vector.broadcast %61 : vector<1x64xf32> to vector<8x64xf32>
      %63 = arith.mulf %57, %62 : vector<8x64xf32>
      %c0_36 = arith.constant 0 : index
      %c0_37 = arith.constant 0 : index
      %c0_38 = arith.constant 0 : index
      %64 = vector.load %arg5[%c0_36, %c0_37, %c0_38] : memref<1x1x64xf32, #tpu.memory_space<vmem>>, vector<1x1x64xf32>
      %65 = vector.shape_cast %64 : vector<1x1x64xf32> to vector<1x64xf32>
      %66 = vector.broadcast %65 : vector<1x64xf32> to vector<8x64xf32>
      %67 = arith.addf %63, %66 : vector<8x64xf32>
      %c0_39 = arith.constant 0 : index
      %c0_40 = arith.constant 0 : index
      %68 = vector.load %arg13[%c0_39, %c0_40] : memref<8x64xf32, #tpu.memory_space<vmem>>, vector<8x64xf32>
      tpu.vector_store %arg13[%c0_39, %c0_40], %67 {strides = array<i32>} : memref<8x64xf32, #tpu.memory_space<vmem>>, vector<8x64xf32>,
      %cst_41 = arith.constant 0.000000e+00 : f32
      %69 = vector.broadcast %cst_41 : f32 to vector<8x64xf32>
      %c0_42 = arith.constant 0 : index
      %c0_43 = arith.constant 0 : index
      %70 = vector.load %arg14[%c0_42, %c0_43] : memref<8x64xf32, #tpu.memory_space<vmem>>, vector<8x64xf32>
      tpu.vector_store %arg14[%c0_42, %c0_43], %69 {strides = array<i32>} : memref<8x64xf32, #tpu.memory_space<vmem>>, vector<8x64xf32>,
    } else {
    }
    %c0 = arith.constant 0 : index
    %c0_1 = arith.constant 0 : index
    %3 = vector.load %arg13[%c0, %c0_1] : memref<8x64xf32, #tpu.memory_space<vmem>>, vector<8x64xf32>
    %4 = arith.truncf %3 : vector<8x64xf32> to vector<8x64xbf16>
    %c0_2 = arith.constant 0 : index
    %c0_3 = arith.constant 0 : index
    %5 = vector.load %arg6[%c0_2, %c0_3] : memref<64x256xbf16, #tpu.memory_space<vmem>>, vector<64x256xbf16>
    %cst = arith.constant dense<0.000000e+00> : vector<8x256xf32>
    %6 = tpu.matmul %4, %5, %cst {dimension_numbers = #tpu.dot_dimension_numbers<[1], [0], [0], [1], [0, 0, 1, 1], [], []>} : vector<8x64xbf16>, vector<64x256xbf16>, vector<8x256xf32> -> vector<8x256xf32>
    %c0_4 = arith.constant 0 : index
    %c0_5 = arith.constant 0 : index
    %7 = vector.load %arg8[%c0_4, %c0_5] : memref<1x256xf32, #tpu.memory_space<vmem>>, vector<1x256xf32>
    %8 = vector.broadcast %7 : vector<1x256xf32> to vector<8x256xf32>
    %9 = arith.addf %6, %8 : vector<8x256xf32>
    %c0_6 = arith.constant 0 : index
    %c0_7 = arith.constant 0 : index
    %10 = vector.load %arg7[%c0_6, %c0_7] : memref<64x256xbf16, #tpu.memory_space<vmem>>, vector<64x256xbf16>
    %cst_8 = arith.constant dense<0.000000e+00> : vector<8x256xf32>
    %11 = tpu.matmul %4, %10, %cst_8 {dimension_numbers = #tpu.dot_dimension_numbers<[1], [0], [0], [1], [0, 0, 1, 1], [], []>} : vector<8x64xbf16>, vector<64x256xbf16>, vector<8x256xf32> -> vector<8x256xf32>
    %c0_9 = arith.constant 0 : index
    %c0_10 = arith.constant 0 : index
    %12 = vector.load %arg9[%c0_9, %c0_10] : memref<1x256xf32, #tpu.memory_space<vmem>>, vector<1x256xf32>
    %13 = vector.broadcast %12 : vector<1x256xf32> to vector<8x256xf32>
    %14 = arith.addf %11, %13 : vector<8x256xf32>
    %15 = arith.mulf %14, %14 : vector<8x256xf32>
    %16 = arith.mulf %14, %15 : vector<8x256xf32>
    %cst_11 = arith.constant 4.471500e-02 : f32
    %17 = vector.broadcast %cst_11 : f32 to vector<8x256xf32>
    %18 = arith.mulf %17, %16 : vector<8x256xf32>
    %19 = arith.addf %14, %18 : vector<8x256xf32>
    %cst_12 = arith.constant 0.797884583 : f32
    %20 = vector.broadcast %cst_12 : f32 to vector<8x256xf32>
    %21 = arith.mulf %20, %19 : vector<8x256xf32>
    %22 = math.tanh %21 : vector<8x256xf32>
    %cst_13 = arith.constant 1.000000e+00 : f32
    %23 = vector.broadcast %cst_13 : f32 to vector<8x256xf32>
    %24 = arith.addf %23, %22 : vector<8x256xf32>
    %cst_14 = arith.constant 5.000000e-01 : f32
    %25 = vector.broadcast %cst_14 : f32 to vector<8x256xf32>
    %26 = arith.mulf %25, %24 : vector<8x256xf32>
    %27 = arith.mulf %14, %26 : vector<8x256xf32>
    %28 = arith.mulf %9, %27 : vector<8x256xf32>
    %c0_15 = arith.constant 0 : index
    %c0_16 = arith.constant 0 : index
    %29 = vector.load %arg14[%c0_15, %c0_16] : memref<8x64xf32, #tpu.memory_space<vmem>>, vector<8x64xf32>
    %30 = arith.truncf %28 : vector<8x256xf32> to vector<8x256xbf16>
    %c0_17 = arith.constant 0 : index
    %c0_18 = arith.constant 0 : index
    %31 = vector.load %arg10[%c0_17, %c0_18] : memref<256x64xbf16, #tpu.memory_space<vmem>>, vector<256x64xbf16>
    %cst_19 = arith.constant dense<0.000000e+00> : vector<8x64xf32>
    %32 = tpu.matmul %30, %31, %cst_19 {dimension_numbers = #tpu.dot_dimension_numbers<[1], [0], [0], [1], [0, 0, 1, 1], [], []>} : vector<8x256xbf16>, vector<256x64xbf16>, vector<8x64xf32> -> vector<8x64xf32>
    %33 = arith.addf %29, %32 : vector<8x64xf32>
    %c0_20 = arith.constant 0 : index
    %c0_21 = arith.constant 0 : index
    %34 = vector.load %arg14[%c0_20, %c0_21] : memref<8x64xf32, #tpu.memory_space<vmem>>, vector<8x64xf32>
    tpu.vector_store %arg14[%c0_20, %c0_21], %33 {strides = array<i32>} : memref<8x64xf32, #tpu.memory_space<vmem>>, vector<8x64xf32>,
    %c0_i32_22 = arith.constant 0 : i32
    %35 = arith.cmpi eq, %arg2, %c0_i32_22 : i32
    %36 = arith.extui %35 : i1 to i32
    %c0_i32_23 = arith.constant 0 : i32
    %37 = arith.cmpi ne, %36, %c0_i32_23 : i32
    scf.if %37 {
      %c0_24 = arith.constant 0 : index
      %c0_25 = arith.constant 0 : index
      %38 = vector.load %arg14[%c0_24, %c0_25] : memref<8x64xf32, #tpu.memory_space<vmem>>, vector<8x64xf32>
      %c0_26 = arith.constant 0 : index
      %c0_27 = arith.constant 0 : index
      %39 = vector.load %arg11[%c0_26, %c0_27] : memref<1x64xf32, #tpu.memory_space<vmem>>, vector<1x64xf32>
      %40 = vector.broadcast %39 : vector<1x64xf32> to vector<8x64xf32>
      %41 = arith.addf %38, %40 : vector<8x64xf32>
      %c0_28 = arith.constant 0 : index
      %c0_29 = arith.constant 0 : index
      %c0_30 = arith.constant 0 : index
      %42 = vector.load %arg3[%c0_28, %c0_29, %c0_30] : memref<1x8x64xf32, #tpu.memory_space<vmem>>, vector<1x8x64xf32>
      %43 = vector.shape_cast %42 : vector<1x8x64xf32> to vector<8x64xf32>
      %44 = arith.addf %41, %43 : vector<8x64xf32>
      %c0_31 = arith.constant 0 : index
      %c0_32 = arith.constant 0 : index
      %c0_33 = arith.constant 0 : index
      %45 = vector.load %arg12[%c0_31, %c0_32, %c0_33] : memref<1x8x64xf32, #tpu.memory_space<vmem>>, vector<1x8x64xf32>
      %46 = vector.shape_cast %45 : vector<1x8x64xf32> to vector<8x64xf32>
      %47 = vector.shape_cast %44 : vector<8x64xf32> to vector<1x8x64xf32>
      tpu.vector_store %arg12[%c0_31, %c0_32, %c0_33], %47 {strides = array<i32>} : memref<1x8x64xf32, #tpu.memory_space<vmem>>, vector<1x8x64xf32>,
    } else {
    }
    return
  }
  func.func @transform_0(%arg0: i32, %arg1: i32, %arg2: i32) -> (i32, i32, i32) {
    %c0_i32 = arith.constant 0 : i32
    %c0_i32_0 = arith.constant 0 : i32
    return %arg0, %arg1, %c0_i32 : i32, i32, i32
  }
  func.func @transform_1(%arg0: i32, %arg1: i32, %arg2: i32) -> (i32, i32, i32) {
    %c0_i32 = arith.constant 0 : i32
    %c0_i32_0 = arith.constant 0 : i32
    %c0_i32_1 = arith.constant 0 : i32
    return %arg0, %c0_i32, %c0_i32_0 : i32, i32, i32
  }
  func.func @transform_2(%arg0: i32, %arg1: i32, %arg2: i32) -> (i32, i32, i32) {
    %c0_i32 = arith.constant 0 : i32
    %c0_i32_0 = arith.constant 0 : i32
    %c0_i32_1 = arith.constant 0 : i32
    return %arg0, %c0_i32, %c0_i32_0 : i32, i32, i32
  }
  func.func @transform_3(%arg0: i32, %arg1: i32, %arg2: i32) -> (i32, i32) {
    %c0_i32 = arith.constant 0 : i32
    %c0_i32_0 = arith.constant 0 : i32
    return %c0_i32, %arg2 : i32, i32
  }
  func.func @transform_4(%arg0: i32, %arg1: i32, %arg2: i32) -> (i32, i32) {
    %c0_i32 = arith.constant 0 : i32
    %c0_i32_0 = arith.constant 0 : i32
    return %c0_i32, %arg2 : i32, i32
  }
  func.func @transform_5(%arg0: i32, %arg1: i32, %arg2: i32) -> (i32, i32) {
    %c0_i32 = arith.constant 0 : i32
    %c0_i32_0 = arith.constant 0 : i32
    return %c0_i32, %arg2 : i32, i32
  }
  func.func @transform_6(%arg0: i32, %arg1: i32, %arg2: i32) -> (i32, i32) {
    %c0_i32 = arith.constant 0 : i32
    %c0_i32_0 = arith.constant 0 : i32
    return %c0_i32, %arg2 : i32, i32
  }
  func.func @transform_7(%arg0: i32, %arg1: i32, %arg2: i32) -> (i32, i32) {
    %c0_i32 = arith.constant 0 : i32
    %c0_i32_0 = arith.constant 0 : i32
    return %arg2, %c0_i32 : i32, i32
  }
  func.func @transform_8(%arg0: i32, %arg1: i32, %arg2: i32) -> (i32, i32) {
    %c0_i32 = arith.constant 0 : i32
    %c0_i32_0 = arith.constant 0 : i32
    %c0_i32_1 = arith.constant 0 : i32
    return %c0_i32, %c0_i32_0 : i32, i32
  }
  func.func @transform_9(%arg0: i32, %arg1: i32, %arg2: i32) -> (i32, i32, i32) {
    %c0_i32 = arith.constant 0 : i32
    %c0_i32_0 = arith.constant 0 : i32
    return %arg0, %arg1, %c0_i32 : i32, i32, i32
  }
}

module attributes {stable_mosaic.version = 11 : i64} {
  func.func @_ln_matmul_kernel(%arg0: i32, %arg1: memref<16x64xf32, #tpu.memory_space<vmem>>, %arg2: memref<1x64xf32, #tpu.memory_space<vmem>>, %arg3: memref<1x64xf32, #tpu.memory_space<vmem>>, %arg4: memref<64x16xbf16, #tpu.memory_space<vmem>>, %arg5: memref<16x16xf32, #tpu.memory_space<vmem>>) attributes {dimension_semantics = [#tpu.dimension_semantics<parallel>], iteration_bounds = array<i64: 1>, scalar_prefetch = 0 : i64, scratch_operands = 0 : i64, tpu.core_type = #tpu.core_type<tc>, window_params = [{transform_indices = @transform_0, window_bounds = array<i64: 16, 64>}, {pipeline_mode = #tpu.pipeline_mode<synchronous>, transform_indices = @transform_1, window_bounds = array<i64: 1, 64>}, {pipeline_mode = #tpu.pipeline_mode<synchronous>, transform_indices = @transform_2, window_bounds = array<i64: 1, 64>}, {pipeline_mode = #tpu.pipeline_mode<synchronous>, transform_indices = @transform_3, window_bounds = array<i64: 64, 16>}, {transform_indices = @transform_4, window_bounds = array<i64: 16, 16>}]} {
    %c0 = arith.constant 0 : index
    %c0_0 = arith.constant 0 : index
    %0 = vector.load %arg1[%c0, %c0_0] : memref<16x64xf32, #tpu.memory_space<vmem>>, vector<16x64xf32>
    %cst = arith.constant dense<0.000000e+00> : vector<16xf32>
    %1 = vector.multi_reduction <add>, %0, %cst [1] : vector<16x64xf32> to vector<16xf32>
    %2 = vector.shape_cast %1 : vector<16xf32> to vector<16x1xf32>
    %cst_1 = arith.constant 6.400000e+01 : f32
    %3 = vector.broadcast %cst_1 : f32 to vector<16x1xf32>
    %4 = arith.divf %2, %3 : vector<16x1xf32>
    %5 = vector.broadcast %4 : vector<16x1xf32> to vector<16x64xf32>
    %6 = arith.subf %0, %5 : vector<16x64xf32>
    %7 = arith.mulf %6, %6 : vector<16x64xf32>
    %cst_2 = arith.constant dense<0.000000e+00> : vector<16xf32>
    %8 = vector.multi_reduction <add>, %7, %cst_2 [1] : vector<16x64xf32> to vector<16xf32>
    %9 = vector.shape_cast %8 : vector<16xf32> to vector<16x1xf32>
    %cst_3 = arith.constant 6.400000e+01 : f32
    %10 = vector.broadcast %cst_3 : f32 to vector<16x1xf32>
    %11 = arith.divf %9, %10 : vector<16x1xf32>
    %12 = vector.broadcast %4 : vector<16x1xf32> to vector<16x64xf32>
    %13 = arith.subf %0, %12 : vector<16x64xf32>
    %cst_4 = arith.constant 9.99999974E-6 : f32
    %14 = vector.broadcast %cst_4 : f32 to vector<16x1xf32>
    %15 = arith.addf %11, %14 : vector<16x1xf32>
    %16 = math.rsqrt %15 : vector<16x1xf32>
    %17 = vector.broadcast %16 : vector<16x1xf32> to vector<16x64xf32>
    %18 = arith.mulf %13, %17 : vector<16x64xf32>
    %c0_5 = arith.constant 0 : index
    %c0_6 = arith.constant 0 : index
    %19 = vector.load %arg2[%c0_5, %c0_6] : memref<1x64xf32, #tpu.memory_space<vmem>>, vector<1x64xf32>
    %20 = vector.broadcast %19 : vector<1x64xf32> to vector<16x64xf32>
    %21 = arith.mulf %18, %20 : vector<16x64xf32>
    %c0_7 = arith.constant 0 : index
    %c0_8 = arith.constant 0 : index
    %22 = vector.load %arg3[%c0_7, %c0_8] : memref<1x64xf32, #tpu.memory_space<vmem>>, vector<1x64xf32>
    %23 = vector.broadcast %22 : vector<1x64xf32> to vector<16x64xf32>
    %24 = arith.addf %21, %23 : vector<16x64xf32>
    %25 = arith.truncf %24 : vector<16x64xf32> to vector<16x64xbf16>
    %c0_9 = arith.constant 0 : index
    %c0_10 = arith.constant 0 : index
    %26 = vector.load %arg4[%c0_9, %c0_10] : memref<64x16xbf16, #tpu.memory_space<vmem>>, vector<64x16xbf16>
    %cst_11 = arith.constant dense<0.000000e+00> : vector<16x16xf32>
    %27 = tpu.matmul %25, %26, %cst_11 {dimension_numbers = #tpu.dot_dimension_numbers<[1], [0], [0], [1], [0, 0, 1, 1], [], []>} : vector<16x64xbf16>, vector<64x16xbf16>, vector<16x16xf32> -> vector<16x16xf32>
    %c0_12 = arith.constant 0 : index
    %c0_13 = arith.constant 0 : index
    %28 = vector.load %arg5[%c0_12, %c0_13] : memref<16x16xf32, #tpu.memory_space<vmem>>, vector<16x16xf32>
    tpu.vector_store %arg5[%c0_12, %c0_13], %27 {strides = array<i32>} : memref<16x16xf32, #tpu.memory_space<vmem>>, vector<16x16xf32>,
    return
  }
  func.func @transform_0(%arg0: i32) -> (i32, i32) {
    %c0_i32 = arith.constant 0 : i32
    %c0_i32_0 = arith.constant 0 : i32
    return %arg0, %c0_i32 : i32, i32
  }
  func.func @transform_1(%arg0: i32) -> (i32, i32) {
    %c0_i32 = arith.constant 0 : i32
    %c0_i32_0 = arith.constant 0 : i32
    %c0_i32_1 = arith.constant 0 : i32
    return %c0_i32, %c0_i32_0 : i32, i32
  }
  func.func @transform_2(%arg0: i32) -> (i32, i32) {
    %c0_i32 = arith.constant 0 : i32
    %c0_i32_0 = arith.constant 0 : i32
    %c0_i32_1 = arith.constant 0 : i32
    return %c0_i32, %c0_i32_0 : i32, i32
  }
  func.func @transform_3(%arg0: i32) -> (i32, i32) {
    %c0_i32 = arith.constant 0 : i32
    %c0_i32_0 = arith.constant 0 : i32
    %c0_i32_1 = arith.constant 0 : i32
    return %c0_i32, %c0_i32_0 : i32, i32
  }
  func.func @transform_4(%arg0: i32) -> (i32, i32) {
    %c0_i32 = arith.constant 0 : i32
    %c0_i32_0 = arith.constant 0 : i32
    return %arg0, %c0_i32 : i32, i32
  }
}

</mosaic_0001>

<llo_original>
// kernel: latent_array_transformer.16
$region0: #{latent_array_transformer.16}
  #allocation0 [shape = 'u32[]', space=smem, size = 0x4, offset = 0x4, fixed_abs, tag = 'smem constant byte address 0x4 - core index']
  #allocation1 [shape = 'u32[72,128]{1,0:T(1,128)}', space=vmem, size = 0x9000, scoped, tag = 'internal scratch']
  %s0 = inlined_call_operand.vmem [shape: f32[2,1], index: 0, kind: input, shape index: {}]
  %s1 = inlined_call_operand.vmem [shape: f32[1,16], index: 1, kind: input, shape index: {}]
  %s2 = inlined_call_operand.vmem [shape: f32[16,64], index: 2, kind: input, shape index: {}]
  %s3 = inlined_call_operand.hbm [shape: f32[16,64], index: 3, kind: input, shape index: {}]
  %s4 = inlined_call_operand.vmem [shape: f32[1,64], index: 4, kind: input, shape index: {}]
  %s5 = inlined_call_operand.hbm [shape: f32[64,64], index: 5, kind: input, shape index: {}]
  %s6 = inlined_call_operand.vmem [shape: f32[1,64], index: 6, kind: input, shape index: {}]
  %s7 = inlined_call_operand.vmem [shape: f32[2,64], index: 7, kind: input, shape index: {}]
  %s8 = inlined_call_operand.vmem [shape: f32[2,64], index: 8, kind: output, shape index: {}]
  %s9 = sld [smem:[#allocation0]]
  $region50: #{latent_array_transformer.16} parent=0
    _
  %s11 = ssub.s32 1, %s9
  %s12 = scalar_select 0, %s11, %s9
  $region1: #{latent_array_transformer.16} parent=0
    #allocation2 [shape = 'u8[8192]{0}', space=vmem, size = 0x2000, scoped, tag = 'input window, operand 3, single buffered']
    #allocation3 [shape = 's32[1]{0}', space=sflag, size = 0x4, scoped, tag = 'scoped memory for latent_array_transformer.16']
    #allocation4 [shape = 'u8[32768]{0}', space=vmem, size = 0x8000, scoped, tag = 'input window, operand 5, single buffered']
    #allocation5 [shape = 's32[1]{0}', space=sflag, size = 0x4, scoped, tag = 'scoped memory for latent_array_transformer.16']
    %13 = vsyncpa [#allocation3], 0
    %14 = vsyncpa [#allocation5], 0
    // Predicated region
    $region2: #{latent_array_transformer.16} parent=1 // pred_check
      _
    $region3: #{latent_array_transformer.16} parent=1 // pred_check_branch
      %16 = sbr.rel (0) target = $region5
    $region4: #{latent_array_transformer.16} parent=1 // pred_region
      _
    $region5: #{latent_array_transformer.16} parent=1 // pred_fallthru
      _
    // Predicated region
    $region6: #{latent_array_transformer.16} parent=1 // pred_check
      _
    $region7: #{latent_array_transformer.16} parent=1 // pred_check_branch
      %18 = sbr.rel (0) target = $region9
    $region8: #{latent_array_transformer.16} parent=1 // pred_region
      _
    $region9: #{latent_array_transformer.16} parent=1 // pred_fallthru
      _
    // Predicated region
    $region10: #{latent_array_transformer.16} parent=1 // pred_check
      _
    $region11: #{latent_array_transformer.16} parent=1 // pred_check_branch
      %20 = sbr.rel (0) target = $region13
    $region12: #{latent_array_transformer.16} parent=1 // pred_region
      _
    $region13: #{latent_array_transformer.16} parent=1 // pred_fallthru
      _
    // Predicated region
    $region14: #{latent_array_transformer.16} parent=1 // pred_check
      _
    $region15: #{latent_array_transformer.16} parent=1 // pred_check_branch
      %22 = sbr.rel (0) target = $region17
    $region16: #{latent_array_transformer.16} parent=1 // pred_region
      %24 = vsyncadd [#allocation3], 0
      %s25 = sshll.u32 %s3, 4
      %s26 = int_to_ptr.hbm [resolvable:$true] %s25
      %s27 = sshll.u32 [#allocation2], 4
      %s28 = int_to_ptr.vmem [resolvable:$true] %s27
      %33 = dma.hbm_to_vmem [thread:$0]  %s26, 256, %s28, [#allocation3], 128, 128, 8
    $region17: #{latent_array_transformer.16} parent=1 // pred_fallthru
      _
    // Predicated region
    $region18: #{latent_array_transformer.16} parent=1 // pred_check
      _
    $region19: #{latent_array_transformer.16} parent=1 // pred_check_branch
      %35 = sbr.rel (0) target = $region21
    $region20: #{latent_array_transformer.16} parent=1 // pred_region
      _
    $region21: #{latent_array_transformer.16} parent=1 // pred_fallthru
      _
    // Predicated region
    $region22: #{latent_array_transformer.16} parent=1 // pred_check
      _
    $region23: #{latent_array_transformer.16} parent=1 // pred_check_branch
      %37 = sbr.rel (0) target = $region25
    $region24: #{latent_array_transformer.16} parent=1 // pred_region
      %39 = vsyncadd [#allocation5], 0
      %s40 = sshll.u32 %s5, 4
      %s41 = int_to_ptr.hbm [resolvable:$true] %s40
      %s42 = sshll.u32 [#allocation4], 4
      %s43 = int_to_ptr.vmem [resolvable:$true] %s42
      %48 = dma.hbm_to_vmem [thread:$0]  %s41, 1024, %s43, [#allocation5], 128, 128, 8
    $region25: #{latent_array_transformer.16} parent=1 // pred_fallthru
      _
    // Predicated region
    $region26: #{latent_array_transformer.16} parent=1 // pred_check
      _
    $region27: #{latent_array_transformer.16} parent=1 // pred_check_branch
      %50 = sbr.rel (0) target = $region29
    $region28: #{latent_array_transformer.16} parent=1 // pred_region
      _
    $region29: #{latent_array_transformer.16} parent=1 // pred_fallthru
      _
    // Predicated region
    $region30: #{latent_array_transformer.16} parent=1 // pred_check
      _
    $region31: #{latent_array_transformer.16} parent=1 // pred_check_branch
      %52 = sbr.rel (0) target = $region33
    $region32: #{latent_array_transformer.16} parent=1 // pred_region
      _
    $region33: #{latent_array_transformer.16} parent=1 // pred_fallthru
      _
    // Predicated region
    $region34: #{latent_array_transformer.16} parent=1 // pred_check
      _
    $region35: #{latent_array_transformer.16} parent=1 // pred_check_branch
      %54 = sbr.rel (0) target = $region37
    $region36: #{latent_array_transformer.16} parent=1 // pred_region
      %56 = dma.done [#allocation3], 256
    $region37: #{latent_array_transformer.16} parent=1 // pred_fallthru
      _
    // Predicated region
    $region38: #{latent_array_transformer.16} parent=1 // pred_check
      _
    $region39: #{latent_array_transformer.16} parent=1 // pred_check_branch
      %58 = sbr.rel (0) target = $region41
    $region40: #{latent_array_transformer.16} parent=1 // pred_region
      %60 = dma.done [#allocation5], 1024
    $region41: #{latent_array_transformer.16} parent=1 // pred_fallthru
      _
    %v61 = vld [vmem:[%s0] sm:$0x3]
    %v62 = vld [vmem:[%s1] sm:$0x1]
    %64 = vset.pattern.permute.xlu0 0
    %65 = vperm.xlu0 %64, %v61
    %v66 = vpop.permute.xlu0 %65
    %v69 = vperm.slane %v62, 0
    %v71 = vmul.f32 %v66, %v69
    %v72 = vand.u32 2147483647, %v71
    %vm73 = vcmp.le.f32.partialorder %v72, 0.7853982
    %vm74 = vcmp.lt.s32.totalorder %v71, 0
    %v75 = vand.u32 %v71, 2139095040
    %v76 = vshrl.u32 %v75, 23
    %v77 = vsub.s32 %v76, 127
    %v78 = vand.u32 2147483647, %v71
    %v79 = vand.u32 %v78, 8388607
    %v80 = vor.u32 %v79, 8388608
    %v81 = vsub.s32 0, %v80
    %v82 = vadd.s32 %v77, 1
    %vm83 = vcmp.gt.s32.totalorder %v82, 0
    %v84 = vsel %vm83, %v82, 0
    %v85 = vshrl.u32 %v84, 5
    %v86 = vand.u32 %v84, 31
    %v87 = vsub.s32 32, %v86
    %v88 = vshrl.u32 683565275, %v87
    %v89 = vshll.u32 683565275, %v86
    %v90 = vshrl.u32 2475754826, %v87
    %v91 = vor.u32 %v89, %v90
    %v92 = vshll.u32 2475754826, %v86
    %v93 = vshrl.u32 2131351028, %v87
    %v94 = vor.u32 %v92, %v93
    %v95 = vshll.u32 2131351028, %v86
    %v96 = vshrl.u32 2102212464, %v87
    %v97 = vor.u32 %v95, %v96
    %v98 = vshll.u32 2102212464, %v86
    %v99 = vshrl.u32 920167782, %v87
    %v100 = vor.u32 %v98, %v99
    %v101 = vshll.u32 920167782, %v86
    %v102 = vshrl.u32 1326507024, %v87
    %v103 = vor.u32 %v101, %v102
    %vm104 = vcmp.lt.s32.totalorder %v85, 1
    %vm105 = vcmp.lt.s32.totalorder %v85, 2
    %vm106 = vcmp.lt.s32.totalorder %v85, 3
    %vm107 = vcmp.lt.s32.totalorder %v85, 4
    %v108 = vsel %vm104, %v88, %v91
    %v109 = vsel %vm107, %v97, 2102212464
    %v110 = vsel %vm106, %v94, %v109
    %v111 = vsel %vm105, %v108, %v110
    %v112 = vsel %vm104, %v91, %v94
    %v113 = vsel %vm107, %v100, 920167782
    %v114 = vsel %vm106, %v97, %v113
    %v115 = vsel %vm105, %v112, %v114
    %v116 = vsel %vm104, %v94, %v97
    %v117 = vsel %vm107, %v103, 1326507024
    %v118 = vsel %vm106, %v100, %v117
    %v119 = vsel %vm105, %v116, %v118
    %v120 = vshll.u32 %v80, 8
    %v121 = vand.u32 %v120, 65535
    %v122 = vshrl.u32 %v120, 16
    %v123 = vand.u32 %v119, 65535
    %v124 = vshrl.u32 %v119, 16
    %v125 = vmul.u32 %v121, %v123
    %v126 = vmul.u32 %v121, %v124
    %v127 = vmul.u32 %v122, %v123
    %v128 = vmul.u32 %v122, %v124
    %v129 = vshll.u32 %v126, 16
    %v130 = vshrl.u32 %v126, 16
    %v131 = vshll.u32 %v127, 16
    %v132 = vshrl.u32 %v127, 16
    %vm133 = vc.u32 %v125, %v129
    %v134 = vsel %vm133, 1, 0
    %v135 = vadd.s32 %v125, %v129
    %v136 = vadd.s32 %v128, %v134
    %vm137 = vc.u32 %v135, %v131
    %v138 = vsel %vm137, 1, 0
    %v139 = vadd.s32 %v135, %v131
    %v140 = vadd.s32 %v136, %v138
    %v141 = vadd.s32 %v140, %v130
    %v142 = vadd.s32 %v141, %v132
    %v143 = vand.u32 %v120, 65535
    %v144 = vshrl.u32 %v120, 16
    %v145 = vand.u32 %v115, 65535
    %v146 = vshrl.u32 %v115, 16
    %v147 = vmul.u32 %v143, %v145
    %v148 = vmul.u32 %v143, %v146
    %v149 = vmul.u32 %v144, %v145
    %v150 = vmul.u32 %v144, %v146
    %v151 = vshll.u32 %v148, 16
    %v152 = vshrl.u32 %v148, 16
    %v153 = vshll.u32 %v149, 16
    %v154 = vshrl.u32 %v149, 16
    %vm155 = vc.u32 %v147, %v151
    %v156 = vsel %vm155, 1, 0
    %v157 = vadd.s32 %v147, %v151
    %v158 = vadd.s32 %v150, %v156
    %vm159 = vc.u32 %v157, %v153
    %v160 = vsel %vm159, 1, 0
    %v161 = vadd.s32 %v157, %v153
    %v162 = vadd.s32 %v158, %v160
    %v163 = vadd.s32 %v162, %v152
    %v164 = vadd.s32 %v163, %v154
    %v165 = vmul.u32 %v120, %v111
    %v166 = vadd.s32 %v142, %v161
    %vm167 = vc.u32 %v142, %v161
    %v168 = vadd.s32 %v164, 1
    %v169 = vsel %vm167, %v168, %v164
    %v170 = vadd.s32 %v165, %v169
    %v171 = vadd.s32 %v170, 536870912
    %v172 = vshrl.u32 %v171, 30
    %v173 = vshll.u32 %v172, 30
    %v174 = vsub.s32 %v170, %v173
    %vm175 = vcmp.lt.s32.totalorder %v174, 0
    %v176 = vsub.s32 0, %v174
    %v177 = vsel %vm175, %v176, %v174
    %v178 = vclz %v177
    %v179 = vsub.s32 %v178, 2
    %vm180 = vcmp.gt.s32.totalorder 0, %v179
    %v181 = vsel %vm180, 0, %v179
    %v182 = vsub.s32 32, %v181
    %v183 = vshll.u32 %v174, %v181
    %v184 = vshrl.u32 %v166, %v182
    %v185 = vor.u32 %v183, %v184
    %v186 = vsub.s32 4294967266, %v181
    %v187 = vadd.s32 %v186, 127
    %v188 = vshll.u32 %v187, 23
    %v189 = vor.u32 4788187, %v188
    %v190 = vand.u32 2147483647, %v189
    %v192 = vcvt.s32.f32 %v185
    %v193 = vmul.f32 %v192, %v190
    %v194 = vxor.u32 %v193, 2147483648
    %v195 = vsel %vm74, %v194, %v193
    %v196 = vsub.s32 4, %v172
    %v197 = vsel %vm74, %v196, %v172
    %v198 = vsel %vm73, %v71, %v195
    %v199 = vsel %vm73, 0, %v197
    %v200 = vmul.f32 %v198, %v198
    %v201 = vmul.f32 %v200, -0.001358992
    %v202 = vadd.f32 %v201, 0.041655596
    %v203 = vmul.f32 %v200, %v202
    %v204 = vadd.f32 %v203, -0.4999988
    %v205 = vmul.f32 %v200, %v204
    %v206 = vadd.f32 1.0, %v205
    %v207 = vmul.f32 %v198, %v198
    %v208 = vmul.f32 %v207, -0.00019511016
    %v209 = vadd.f32 %v208, 0.008332121
    %v210 = vmul.f32 %v207, %v209
    %v211 = vadd.f32 %v210, -0.16666654
    %v212 = vmul.f32 %v207, %v211
    %v213 = vadd.f32 %v212, 1.0
    %v214 = vmul.f32 %v213, %v198
    %vm215 = vweird.f32 %v71
    %v216 = vand.u32 %v199, 3
    %vm217 = vcmp.lt.s32.totalorder %v216, 2
    %vm218 = vcmp.eq.s32.totalorder %v216, 0
    %v219 = vxor.u32 %v214, 2147483648
    %v220 = vsel %vm218, %v206, %v219
    %vm221 = vcmp.eq.s32.totalorder %v216, 2
    %v222 = vxor.u32 %v206, 2147483648
    %v223 = vsel %vm221, %v222, %v214
    %v224 = vsel %vm217, %v220, %v223
    %v225 = vsel %vm215, nan, %v224
    %v226 = vld [vmem:[%s2] sm:$0xff]
    %v227 = vld [vmem:[%s2 + $0x8] sm:$0xff]
    %v228 = vand.u32 2147483647, %v71
    %vm229 = vcmp.le.f32.partialorder %v228, 0.7853982
    %vm230 = vcmp.lt.s32.totalorder %v71, 0
    %v231 = vand.u32 %v71, 2139095040
    %v232 = vshrl.u32 %v231, 23
    %v233 = vsub.s32 %v232, 127
    %v234 = vand.u32 2147483647, %v71
    %v235 = vand.u32 %v234, 8388607
    %v236 = vor.u32 %v235, 8388608
    %v237 = vsub.s32 0, %v236
    %v238 = vadd.s32 %v233, 1
    %vm239 = vcmp.gt.s32.totalorder %v238, 0
    %v240 = vsel %vm239, %v238, 0
    %v241 = vshrl.u32 %v240, 5
    %v242 = vand.u32 %v240, 31
    %v243 = vsub.s32 32, %v242
    %v244 = vshrl.u32 683565275, %v243
    %v245 = vshll.u32 683565275, %v242
    %v246 = vshrl.u32 2475754826, %v243
    %v247 = vor.u32 %v245, %v246
    %v248 = vshll.u32 2475754826, %v242
    %v249 = vshrl.u32 2131351028, %v243
    %v250 = vor.u32 %v248, %v249
    %v251 = vshll.u32 2131351028, %v242
    %v252 = vshrl.u32 2102212464, %v243
    %v253 = vor.u32 %v251, %v252
    %v254 = vshll.u32 2102212464, %v242
    %v255 = vshrl.u32 920167782, %v243
    %v256 = vor.u32 %v254, %v255
    %v257 = vshll.u32 920167782, %v242
    %v258 = vshrl.u32 1326507024, %v243
    %v259 = vor.u32 %v257, %v258
    %vm260 = vcmp.lt.s32.totalorder %v241, 1
    %vm261 = vcmp.lt.s32.totalorder %v241, 2
    %vm262 = vcmp.lt.s32.totalorder %v241, 3
    %vm263 = vcmp.lt.s32.totalorder %v241, 4
    %v264 = vsel %vm260, %v244, %v247
    %v265 = vsel %vm263, %v253, 2102212464
    %v266 = vsel %vm262, %v250, %v265
    %v267 = vsel %vm261, %v264, %v266
    %v268 = vsel %vm260, %v247, %v250
    %v269 = vsel %vm263, %v256, 920167782
    %v270 = vsel %vm262, %v253, %v269
    %v271 = vsel %vm261, %v268, %v270
    %v272 = vsel %vm260, %v250, %v253
    %v273 = vsel %vm263, %v259, 1326507024
    %v274 = vsel %vm262, %v256, %v273
    %v275 = vsel %vm261, %v272, %v274
    %v276 = vshll.u32 %v236, 8
    %v277 = vand.u32 %v276, 65535
    %v278 = vshrl.u32 %v276, 16
    %v279 = vand.u32 %v275, 65535
    %v280 = vshrl.u32 %v275, 16
    %v281 = vmul.u32 %v277, %v279
    %v282 = vmul.u32 %v277, %v280
    %v283 = vmul.u32 %v278, %v279
    %v284 = vmul.u32 %v278, %v280
    %v285 = vshll.u32 %v282, 16
    %v286 = vshrl.u32 %v282, 16
    %v287 = vshll.u32 %v283, 16
    %v288 = vshrl.u32 %v283, 16
    %vm289 = vc.u32 %v281, %v285
    %v290 = vsel %vm289, 1, 0
    %v291 = vadd.s32 %v281, %v285
    %v292 = vadd.s32 %v284, %v290
    %vm293 = vc.u32 %v291, %v287
    %v294 = vsel %vm293, 1, 0
    %v295 = vadd.s32 %v291, %v287
    %v296 = vadd.s32 %v292, %v294
    %v297 = vadd.s32 %v296, %v286
    %v298 = vadd.s32 %v297, %v288
    %v299 = vand.u32 %v276, 65535
    %v300 = vshrl.u32 %v276, 16
    %v301 = vand.u32 %v271, 65535
    %v302 = vshrl.u32 %v271, 16
    %v303 = vmul.u32 %v299, %v301
    %v304 = vmul.u32 %v299, %v302
    %v305 = vmul.u32 %v300, %v301
    %v306 = vmul.u32 %v300, %v302
    %v307 = vshll.u32 %v304, 16
    %v308 = vshrl.u32 %v304, 16
    %v309 = vshll.u32 %v305, 16
    %v310 = vshrl.u32 %v305, 16
    %vm311 = vc.u32 %v303, %v307
    %v312 = vsel %vm311, 1, 0
    %v313 = vadd.s32 %v303, %v307
    %v314 = vadd.s32 %v306, %v312
    %vm315 = vc.u32 %v313, %v309
    %v316 = vsel %vm315, 1, 0
    %v317 = vadd.s32 %v313, %v309
    %v318 = vadd.s32 %v314, %v316
    %v319 = vadd.s32 %v318, %v308
    %v320 = vadd.s32 %v319, %v310
    %v321 = vmul.u32 %v276, %v267
    %v322 = vadd.s32 %v298, %v317
    %vm323 = vc.u32 %v298, %v317
    %v324 = vadd.s32 %v320, 1
    %v325 = vsel %vm323, %v324, %v320
    %v326 = vadd.s32 %v321, %v325
    %v327 = vadd.s32 %v326, 536870912
    %v328 = vshrl.u32 %v327, 30
    %v329 = vshll.u32 %v328, 30
    %v330 = vsub.s32 %v326, %v329
    %vm331 = vcmp.lt.s32.totalorder %v330, 0
    %v332 = vsub.s32 0, %v330
    %v333 = vsel %vm331, %v332, %v330
    %v334 = vclz %v333
    %v335 = vsub.s32 %v334, 2
    %vm336 = vcmp.gt.s32.totalorder 0, %v335
    %v337 = vsel %vm336, 0, %v335
    %v338 = vsub.s32 32, %v337
    %v339 = vshll.u32 %v330, %v337
    %v340 = vshrl.u32 %v322, %v338
    %v341 = vor.u32 %v339, %v340
    %v342 = vsub.s32 4294967266, %v337
    %v343 = vadd.s32 %v342, 127
    %v344 = vshll.u32 %v343, 23
    %v345 = vor.u32 4788187, %v344
    %v346 = vand.u32 2147483647, %v345
    %v348 = vcvt.s32.f32 %v341
    %v349 = vmul.f32 %v348, %v346
    %v350 = vxor.u32 %v349, 2147483648
    %v351 = vsel %vm230, %v350, %v349
    %v352 = vsub.s32 4, %v328
    %v353 = vsel %vm230, %v352, %v328
    %v354 = vsel %vm229, %v71, %v351
    %v355 = vsel %vm229, 0, %v353
    %v356 = vmul.f32 %v354, %v354
    %v357 = vmul.f32 %v356, -0.001358992
    %v358 = vadd.f32 %v357, 0.041655596
    %v359 = vmul.f32 %v356, %v358
    %v360 = vadd.f32 %v359, -0.4999988
    %v361 = vmul.f32 %v356, %v360
    %v362 = vadd.f32 1.0, %v361
    %v363 = vmul.f32 %v354, %v354
    %v364 = vmul.f32 %v363, -0.00019511016
    %v365 = vadd.f32 %v364, 0.008332121
    %v366 = vmul.f32 %v363, %v365
    %v367 = vadd.f32 %v366, -0.16666654
    %v368 = vmul.f32 %v363, %v367
    %v369 = vadd.f32 %v368, 1.0
    %v370 = vmul.f32 %v369, %v354
    %vm371 = vweird.f32 %v71
    %v372 = vadd.s32 %v355, 3
    %v373 = vand.u32 %v372, 3
    %vm374 = vcmp.lt.s32.totalorder %v373, 2
    %vm375 = vcmp.eq.s32.totalorder %v373, 0
    %v376 = vxor.u32 %v370, 2147483648
    %v377 = vsel %vm375, %v362, %v376
    %vm378 = vcmp.eq.s32.totalorder %v373, 2
    %v379 = vxor.u32 %v362, 2147483648
    %v380 = vsel %vm378, %v379, %v370
    %v381 = vsel %vm374, %v377, %v380
    %v382 = vsel %vm371, nan, %v381
    %v383 = vld [vmem:[#allocation2] sm:$0xff]
    %v384 = vld [vmem:[#allocation2 + $0x8] sm:$0xff]
    %vm385 = vcmask 130048
    %v387 = vsel %vm385, %v382, 0
    %389 = vmatpush.msra.mxu0 0.0
    %390 = vmatpush.msra.mxu0 0.0
    %391 = vmatpush.msra.mxu0 0.0
    %392 = vmatpush.msra.mxu0 0.0
    %393 = vmatpush.msra.mxu0 0.0
    %394 = vmatpush.msra.mxu0 0.0
    %395 = vmatpush.msra.mxu0 0.0
    %396 = vmatpush.msra.mxu0 0.0
    %397 = vmatpush.msra.mxu0 0.0
    %398 = vmatpush.msra.mxu0 0.0
    %399 = vmatpush.msra.mxu0 0.0
    %400 = vmatpush.msra.mxu0 0.0
    %401 = vmatpush.msra.mxu0 0.0
    %402 = vmatpush.msra.mxu0 0.0
    %403 = vmatpush.msra.mxu0 %v384
    %404 = vmatpush.msra.mxu0 %v383
    %405 = vmatmul.f32.gmra.mxu0 %v387
    %v406 = vpop.f32.mrf.mxu0
    %v407 = vadd.f32 0.0, %v406
    %408 = vdwg.mxu0
    %v410 = vsel %vm385, %v225, 0
    %412 = vmatpush.msra.mxu0 0.0
    %413 = vmatpush.msra.mxu0 0.0
    %414 = vmatpush.msra.mxu0 0.0
    %415 = vmatpush.msra.mxu0 0.0
    %416 = vmatpush.msra.mxu0 0.0
    %417 = vmatpush.msra.mxu0 0.0
    %418 = vmatpush.msra.mxu0 0.0
    %419 = vmatpush.msra.mxu0 0.0
    %420 = vmatpush.msra.mxu0 0.0
    %421 = vmatpush.msra.mxu0 0.0
    %422 = vmatpush.msra.mxu0 0.0
    %423 = vmatpush.msra.mxu0 0.0
    %424 = vmatpush.msra.mxu0 0.0
    %425 = vmatpush.msra.mxu0 0.0
    %426 = vmatpush.msra.mxu0 %v227
    %427 = vmatpush.msra.mxu0 %v226
    %428 = vmatmul.f32.gmra.mxu0 %v410
    %v429 = vpop.f32.mrf.mxu0
    %v430 = vadd.f32 %v407, %v429
    %431 = vdwg.mxu0
    %v432 = vld [vmem:[%s4] sm:$0x1]
    %v434 = vperm.slane %v432, 0
    %v436 = vadd.f32 %v430, %v434
    %v437 = vxor.u32 %v436, 2147483648
    %v438 = vmul.f32 %v437, 1.442695
    %v439 = vpow.pop %v438
    %v440 = vadd.f32 %v439, 1.0
    %v441 = vrcp.pop %v440
    %v442 = vmul.f32 %v440, %v441
    %v443 = vsub.f32 1.0, %v442
    %v444 = vmul.f32 %v441, %v443
    %v445 = vadd.f32 %v441, %v444
    %vm446 = vweird.f32 %v440
    %vm447 = vweird.f32 %v441
    %vm448 = vmor %vm446, %vm447
    %v449 = vsel %vm448, %v441, %v445
    %v450 = vand.u32 2147483647, %v440
    %vm451 = vcmp.eq.f32.partialorder %v450, 8.507059e+37
    %v452 = vand.u32 %v440, 2147483648
    %v453 = vor.u32 1.1754944e-38, %v452
    %v454 = vsel %vm451, %v453, %v449
    %v455 = vmul.f32 1.0, %v454
    %v456 = vmul.f32 %v436, %v455
    %v457 = vld [vmem:[#allocation4] sm:$0xff]
    %v458 = vld [vmem:[#allocation4 + $0x8] sm:$0xff]
    %v459 = vld [vmem:[#allocation4 + $0x10] sm:$0xff]
    %v460 = vld [vmem:[#allocation4 + $0x18] sm:$0xff]
    %v461 = vld [vmem:[#allocation4 + $0x20] sm:$0xff]
    %v462 = vld [vmem:[#allocation4 + $0x28] sm:$0xff]
    %v463 = vld [vmem:[#allocation4 + $0x30] sm:$0xff]
    %v464 = vld [vmem:[#allocation4 + $0x38] sm:$0xff]
    %v465 = vld [vmem:[%s6] sm:$0x1]
    %v467 = vperm.slane %v465, 0
    %vm469 = vcmask 523264
    %v471 = vsel %vm469, %v456, 0
    %473 = vmatpush.msra.mxu0 0.0
    %474 = vmatpush.msra.mxu0 0.0
    %475 = vmatpush.msra.mxu0 0.0
    %476 = vmatpush.msra.mxu0 0.0
    %477 = vmatpush.msra.mxu0 0.0
    %478 = vmatpush.msra.mxu0 0.0
    %479 = vmatpush.msra.mxu0 0.0
    %480 = vmatpush.msra.mxu0 0.0
    %481 = vmatpush.msra.mxu0 %v464
    %482 = vmatpush.msra.mxu0 %v463
    %483 = vmatpush.msra.mxu0 %v462
    %484 = vmatpush.msra.mxu0 %v461
    %485 = vmatpush.msra.mxu0 %v460
    %486 = vmatpush.msra.mxu0 %v459
    %487 = vmatpush.msra.mxu0 %v458
    %488 = vmatpush.msra.mxu0 %v457
    %489 = vmatmul.f32.gmra.mxu0 %v471
    %v490 = vpop.f32.mrf.mxu0
    %v491 = vadd.f32 %v467, %v490
    %492 = vdwg.mxu0
    %v493 = vxor.u32 %v491, 2147483648
    %v494 = vmul.f32 %v493, 1.442695
    %v495 = vpow.pop %v494
    %v496 = vadd.f32 %v495, 1.0
    %v497 = vrcp.pop %v496
    %v498 = vmul.f32 %v496, %v497
    %v499 = vsub.f32 1.0, %v498
    %v500 = vmul.f32 %v497, %v499
    %v501 = vadd.f32 %v497, %v500
    %vm502 = vweird.f32 %v496
    %vm503 = vweird.f32 %v497
    %vm504 = vmor %vm502, %vm503
    %v505 = vsel %vm504, %v497, %v501
    %v506 = vand.u32 2147483647, %v496
    %vm507 = vcmp.eq.f32.partialorder %v506, 8.507059e+37
    %v508 = vand.u32 %v496, 2147483648
    %v509 = vor.u32 1.1754944e-38, %v508
    %v510 = vsel %vm507, %v509, %v505
    %v511 = vmul.f32 1.0, %v510
    %v512 = vmul.f32 %v491, %v511
    %v513 = vld [vmem:[%s7] sm:$0x3]
    %v514 = vadd.f32 %v512, %v513
    %vm515 = vcmask 517120
    %516 = vst.msk [vmem:[%s8] sm:$0x3] %vm515, %v514
    // Predicated region
    $region42: #{latent_array_transformer.16} parent=1 // pred_check
      _
    $region43: #{latent_array_transformer.16} parent=1 // pred_check_branch
      %518 = sbr.rel (0) target = $region45
    $region44: #{latent_array_transformer.16} parent=1 // pred_region
      _
    $region45: #{latent_array_transformer.16} parent=1 // pred_fallthru
      _
    // Predicated region
    $region46: #{latent_array_transformer.16} parent=1 // pred_check
      _
    $region47: #{latent_array_transformer.16} parent=1 // pred_check_branch
      %520 = sbr.rel (0) target = $region49
    $region48: #{latent_array_transformer.16} parent=1 // pred_region
      _
    $region49: #{latent_array_transformer.16} parent=1 // pred_fallthru
      _
    %521 = vsyncpa [#allocation3], 1
    %522 = vsyncpa [#allocation5], 1

// kernel: latent_array_transformer.17
$region0: #{latent_array_transformer.17}
  #allocation0 [shape = 'u32[]', space=smem, size = 0x4, offset = 0x4, fixed_abs, tag = 'smem constant byte address 0x4 - core index']
  #allocation1 [shape = 'u32[72,128]{1,0:T(1,128)}', space=vmem, size = 0x9000, scoped, tag = 'internal scratch']
  %s0 = inlined_call_operand.vmem [shape: f32[2,64], index: 0, kind: input, shape index: {}]
  %s1 = inlined_call_operand.hbm [shape: f32[64,768], index: 1, kind: input, shape index: {}]
  %s2 = inlined_call_operand.vmem [shape: f32[1,768], index: 2, kind: input, shape index: {}]
  %s3 = inlined_call_operand.vmem [shape: f32[2,768], index: 3, kind: output, shape index: {}]
  %s4 = sld [smem:[#allocation0]]
  $region26: #{latent_array_transformer.17} parent=0
    _
  %s6 = ssub.s32 1, %s4
  %s7 = scalar_select 0, %s6, %s4
  $region1: #{latent_array_transformer.17} parent=0
    #allocation2 [shape = 'u8[196608]{0}', space=vmem, size = 0x30000, scoped, tag = 'input window, operand 1, single buffered']
    #allocation3 [shape = 's32[1]{0}', space=sflag, size = 0x4, scoped, tag = 'scoped memory for latent_array_transformer.17']
    %8 = vsyncpa [#allocation3], 0
    // Predicated region
    $region2: #{latent_array_transformer.17} parent=1 // pred_check
      _
    $region3: #{latent_array_transformer.17} parent=1 // pred_check_branch
      %10 = sbr.rel (0) target = $region5
    $region4: #{latent_array_transformer.17} parent=1 // pred_region
      _
    $region5: #{latent_array_transformer.17} parent=1 // pred_fallthru
      _
    // Predicated region
    $region6: #{latent_array_transformer.17} parent=1 // pred_check
      _
    $region7: #{latent_array_transformer.17} parent=1 // pred_check_branch
      %12 = sbr.rel (0) target = $region9
    $region8: #{latent_array_transformer.17} parent=1 // pred_region
      %14 = vsyncadd [#allocation3], 0
      %s15 = sshll.u32 %s1, 4
      %s16 = int_to_ptr.hbm [resolvable:$true] %s15
      %s17 = sshll.u32 [#allocation2], 4
      %s18 = int_to_ptr.vmem [resolvable:$true] %s17
      %23 = dma.hbm_to_vmem [thread:$0]  %s16, 6144, %s18, [#allocation3], 768, 768, 48
    $region9: #{latent_array_transformer.17} parent=1 // pred_fallthru
      _
    // Predicated region
    $region10: #{latent_array_transformer.17} parent=1 // pred_check
      _
    $region11: #{latent_array_transformer.17} parent=1 // pred_check_branch
      %25 = sbr.rel (0) target = $region13
    $region12: #{latent_array_transformer.17} parent=1 // pred_region
      _
    $region13: #{latent_array_transformer.17} parent=1 // pred_fallthru
      _
    // Predicated region
    $region14: #{latent_array_transformer.17} parent=1 // pred_check
      _
    $region15: #{latent_array_transformer.17} parent=1 // pred_check_branch
      %27 = sbr.rel (0) target = $region17
    $region16: #{latent_array_transformer.17} parent=1 // pred_region
      %29 = dma.done [#allocation3], 6144
    $region17: #{latent_array_transformer.17} parent=1 // pred_fallthru
      _
    %v30 = vld [vmem:[%s0] sm:$0x3]
    %v31 = vld [vmem:[#allocation2] sm:$0xff]
    %v32 = vld [vmem:[#allocation2 + $0x8] sm:$0xff]
    %v33 = vld [vmem:[#allocation2 + $0x10] sm:$0xff]
    %v34 = vld [vmem:[#allocation2 + $0x18] sm:$0xff]
    %v35 = vld [vmem:[#allocation2 + $0x20] sm:$0xff]
    %v36 = vld [vmem:[#allocation2 + $0x28] sm:$0xff]
    %v37 = vld [vmem:[#allocation2 + $0x30] sm:$0xff]
    %v38 = vld [vmem:[#allocation2 + $0x38] sm:$0xff]
    %v39 = vld [vmem:[#allocation2 + $0x40] sm:$0xff]
    %v40 = vld [vmem:[#allocation2 + $0x48] sm:$0xff]
    %v41 = vld [vmem:[#allocation2 + $0x50] sm:$0xff]
    %v42 = vld [vmem:[#allocation2 + $0x58] sm:$0xff]
    %v43 = vld [vmem:[#allocation2 + $0x60] sm:$0xff]
    %v44 = vld [vmem:[#allocation2 + $0x68] sm:$0xff]
    %v45 = vld [vmem:[#allocation2 + $0x70] sm:$0xff]
    %v46 = vld [vmem:[#allocation2 + $0x78] sm:$0xff]
    %v47 = vld [vmem:[#allocation2 + $0x80] sm:$0xff]
    %v48 = vld [vmem:[#allocation2 + $0x88] sm:$0xff]
    %v49 = vld [vmem:[#allocation2 + $0x90] sm:$0xff]
    %v50 = vld [vmem:[#allocation2 + $0x98] sm:$0xff]
    %v51 = vld [vmem:[#allocation2 + $0xa0] sm:$0xff]
    %v52 = vld [vmem:[#allocation2 + $0xa8] sm:$0xff]
    %v53 = vld [vmem:[#allocation2 + $0xb0] sm:$0xff]
    %v54 = vld [vmem:[#allocation2 + $0xb8] sm:$0xff]
    %v55 = vld [vmem:[#allocation2 + $0xc0] sm:$0xff]
    %v56 = vld [vmem:[#allocation2 + $0xc8] sm:$0xff]
    %v57 = vld [vmem:[#allocation2 + $0xd0] sm:$0xff]
    %v58 = vld [vmem:[#allocation2 + $0xd8] sm:$0xff]
    %v59 = vld [vmem:[#allocation2 + $0xe0] sm:$0xff]
    %v60 = vld [vmem:[#allocation2 + $0xe8] sm:$0xff]
    %v61 = vld [vmem:[#allocation2 + $0xf0] sm:$0xff]
    %v62 = vld [vmem:[#allocation2 + $0xf8] sm:$0xff]
    %v63 = vld [vmem:[#allocation2 + $0x100] sm:$0xff]
    %v64 = vld [vmem:[#allocation2 + $0x108] sm:$0xff]
    %v65 = vld [vmem:[#allocation2 + $0x110] sm:$0xff]
    %v66 = vld [vmem:[#allocation2 + $0x118] sm:$0xff]
    %v67 = vld [vmem:[#allocation2 + $0x120] sm:$0xff]
    %v68 = vld [vmem:[#allocation2 + $0x128] sm:$0xff]
    %v69 = vld [vmem:[#allocation2 + $0x130] sm:$0xff]
    %v70 = vld [vmem:[#allocation2 + $0x138] sm:$0xff]
    %v71 = vld [vmem:[#allocation2 + $0x140] sm:$0xff]
    %v72 = vld [vmem:[#allocation2 + $0x148] sm:$0xff]
    %v73 = vld [vmem:[#allocation2 + $0x150] sm:$0xff]
    %v74 = vld [vmem:[#allocation2 + $0x158] sm:$0xff]
    %v75 = vld [vmem:[#allocation2 + $0x160] sm:$0xff]
    %v76 = vld [vmem:[#allocation2 + $0x168] sm:$0xff]
    %v77 = vld [vmem:[#allocation2 + $0x170] sm:$0xff]
    %v78 = vld [vmem:[#allocation2 + $0x178] sm:$0xff]
    %v79 = vld [vmem:[%s2] sm:$0x3f]
    %v81 = vperm.slane %v79, 0
    %v82 = vperm.slane %v79, 1
    %v83 = vperm.slane %v79, 2
    %v84 = vperm.slane %v79, 3
    %v85 = vperm.slane %v79, 4
    %v86 = vperm.slane %v79, 5
    %vm93 = vcmask 523264
    %v95 = vsel %vm93, %v30, 0
    %97 = vmatpush.msra.mxu0 0.0
    %98 = vmatpush.msra.mxu0 0.0
    %99 = vmatpush.msra.mxu0 0.0
    %100 = vmatpush.msra.mxu0 0.0
    %101 = vmatpush.msra.mxu0 0.0
    %102 = vmatpush.msra.mxu0 0.0
    %103 = vmatpush.msra.mxu0 0.0
    %104 = vmatpush.msra.mxu0 0.0
    %105 = vmatpush.msra.mxu0 %v73
    %106 = vmatpush.msra.mxu0 %v67
    %107 = vmatpush.msra.mxu0 %v61
    %108 = vmatpush.msra.mxu0 %v55
    %109 = vmatpush.msra.mxu0 %v49
    %110 = vmatpush.msra.mxu0 %v43
    %111 = vmatpush.msra.mxu0 %v37
    %112 = vmatpush.msra.mxu0 %v31
    %113 = vmatmul.f32.gmra.mxu0 %v95
    %v114 = vpop.f32.mrf.mxu0
    %v115 = vadd.f32 %v81, %v114
    %116 = vdwg.mxu0
    %117 = vmatpush.msra.mxu0 0.0
    %118 = vmatpush.msra.mxu0 0.0
    %119 = vmatpush.msra.mxu0 0.0
    %120 = vmatpush.msra.mxu0 0.0
    %121 = vmatpush.msra.mxu0 0.0
    %122 = vmatpush.msra.mxu0 0.0
    %123 = vmatpush.msra.mxu0 0.0
    %124 = vmatpush.msra.mxu0 0.0
    %125 = vmatpush.msra.mxu0 %v74
    %126 = vmatpush.msra.mxu0 %v68
    %127 = vmatpush.msra.mxu0 %v62
    %128 = vmatpush.msra.mxu0 %v56
    %129 = vmatpush.msra.mxu0 %v50
    %130 = vmatpush.msra.mxu0 %v44
    %131 = vmatpush.msra.mxu0 %v38
    %132 = vmatpush.msra.mxu0 %v32
    %133 = vmatmul.f32.gmra.mxu0 %v95
    %v134 = vpop.f32.mrf.mxu0
    %v135 = vadd.f32 %v82, %v134
    %136 = vdwg.mxu0
    %137 = vmatpush.msra.mxu0 0.0
    %138 = vmatpush.msra.mxu0 0.0
    %139 = vmatpush.msra.mxu0 0.0
    %140 = vmatpush.msra.mxu0 0.0
    %141 = vmatpush.msra.mxu0 0.0
    %142 = vmatpush.msra.mxu0 0.0
    %143 = vmatpush.msra.mxu0 0.0
    %144 = vmatpush.msra.mxu0 0.0
    %145 = vmatpush.msra.mxu0 %v75
    %146 = vmatpush.msra.mxu0 %v69
    %147 = vmatpush.msra.mxu0 %v63
    %148 = vmatpush.msra.mxu0 %v57
    %149 = vmatpush.msra.mxu0 %v51
    %150 = vmatpush.msra.mxu0 %v45
    %151 = vmatpush.msra.mxu0 %v39
    %152 = vmatpush.msra.mxu0 %v33
    %153 = vmatmul.f32.gmra.mxu0 %v95
    %v154 = vpop.f32.mrf.mxu0
    %v155 = vadd.f32 %v83, %v154
    %156 = vdwg.mxu0
    %157 = vmatpush.msra.mxu0 0.0
    %158 = vmatpush.msra.mxu0 0.0
    %159 = vmatpush.msra.mxu0 0.0
    %160 = vmatpush.msra.mxu0 0.0
    %161 = vmatpush.msra.mxu0 0.0
    %162 = vmatpush.msra.mxu0 0.0
    %163 = vmatpush.msra.mxu0 0.0
    %164 = vmatpush.msra.mxu0 0.0
    %165 = vmatpush.msra.mxu0 %v76
    %166 = vmatpush.msra.mxu0 %v70
    %167 = vmatpush.msra.mxu0 %v64
    %168 = vmatpush.msra.mxu0 %v58
    %169 = vmatpush.msra.mxu0 %v52
    %170 = vmatpush.msra.mxu0 %v46
    %171 = vmatpush.msra.mxu0 %v40
    %172 = vmatpush.msra.mxu0 %v34
    %173 = vmatmul.f32.gmra.mxu0 %v95
    %v174 = vpop.f32.mrf.mxu0
    %v175 = vadd.f32 %v84, %v174
    %176 = vdwg.mxu0
    %177 = vmatpush.msra.mxu0 0.0
    %178 = vmatpush.msra.mxu0 0.0
    %179 = vmatpush.msra.mxu0 0.0
    %180 = vmatpush.msra.mxu0 0.0
    %181 = vmatpush.msra.mxu0 0.0
    %182 = vmatpush.msra.mxu0 0.0
    %183 = vmatpush.msra.mxu0 0.0
    %184 = vmatpush.msra.mxu0 0.0
    %185 = vmatpush.msra.mxu0 %v77
    %186 = vmatpush.msra.mxu0 %v71
    %187 = vmatpush.msra.mxu0 %v65
    %188 = vmatpush.msra.mxu0 %v59
    %189 = vmatpush.msra.mxu0 %v53
    %190 = vmatpush.msra.mxu0 %v47
    %191 = vmatpush.msra.mxu0 %v41
    %192 = vmatpush.msra.mxu0 %v35
    %193 = vmatmul.f32.gmra.mxu0 %v95
    %v194 = vpop.f32.mrf.mxu0
    %v195 = vadd.f32 %v85, %v194
    %196 = vdwg.mxu0
    %197 = vmatpush.msra.mxu0 0.0
    %198 = vmatpush.msra.mxu0 0.0
    %199 = vmatpush.msra.mxu0 0.0
    %200 = vmatpush.msra.mxu0 0.0
    %201 = vmatpush.msra.mxu0 0.0
    %202 = vmatpush.msra.mxu0 0.0
    %203 = vmatpush.msra.mxu0 0.0
    %204 = vmatpush.msra.mxu0 0.0
    %205 = vmatpush.msra.mxu0 %v78
    %206 = vmatpush.msra.mxu0 %v72
    %207 = vmatpush.msra.mxu0 %v66
    %208 = vmatpush.msra.mxu0 %v60
    %209 = vmatpush.msra.mxu0 %v54
    %210 = vmatpush.msra.mxu0 %v48
    %211 = vmatpush.msra.mxu0 %v42
    %212 = vmatpush.msra.mxu0 %v36
    %213 = vmatmul.f32.gmra.mxu0 %v95
    %v214 = vpop.f32.mrf.mxu0
    %v215 = vadd.f32 %v86, %v214
    %216 = vdwg.mxu0
    %v223 = vrot.slane %v135, 6
    %v224 = vrot.slane %v155, 4
    %v225 = vrot.slane %v175, 2
    %v226 = vrot.slane %v215, 6
    %vm227 = vcmask 1041408
    %v228 = vsel %vm227, %v115, %v223
    %vm229 = vcmask 1045508
    %v230 = vsel %vm229, %v224, %v225
    %vm231 = vcmask 1043456
    %v232 = vsel %vm231, %v228, %v230
    %v233 = vsel %vm227, %v195, %v226
    %236 = vst [vmem:[%s3] sm:$0xff] %v232
    %237 = vst [vmem:[%s3 + $0x8] sm:$0xf] %v233
    // Predicated region
    $region18: #{latent_array_transformer.17} parent=1 // pred_check
      _
    $region19: #{latent_array_transformer.17} parent=1 // pred_check_branch
      %239 = sbr.rel (0) target = $region21
    $region20: #{latent_array_transformer.17} parent=1 // pred_region
      _
    $region21: #{latent_array_transformer.17} parent=1 // pred_fallthru
      _
    // Predicated region
    $region22: #{latent_array_transformer.17} parent=1 // pred_check
      _
    $region23: #{latent_array_transformer.17} parent=1 // pred_check_branch
      %241 = sbr.rel (0) target = $region25
    $region24: #{latent_array_transformer.17} parent=1 // pred_region
      _
    $region25: #{latent_array_transformer.17} parent=1 // pred_fallthru
      _
    %242 = vsyncpa [#allocation3], 1

// kernel: latent_array_transformer.18
$region0: #{latent_array_transformer.18}
  #allocation0 [shape = 'u32[]', space=smem, size = 0x4, offset = 0x4, fixed_abs, tag = 'smem constant byte address 0x4 - core index']
  #allocation1 [shape = 'u32[72,128]{1,0:T(1,128)}', space=vmem, size = 0x9000, scoped, tag = 'internal scratch']
  %s0 = inlined_call_operand.hbm [shape: f32[16,16], index: 0, kind: input, shape index: {}]
  %s1 = inlined_call_operand.hbm [shape: bf16[16,64], index: 1, kind: input, shape index: {}]
  %s2 = inlined_call_operand.vmem [shape: f32[16,64], index: 2, kind: output, shape index: {}]
  %s3 = sld [smem:[#allocation0]]
  $region26: #{latent_array_transformer.18} parent=0
    _
  %s5 = ssub.s32 1, %s3
  %s6 = scalar_select 0, %s5, %s3
  $region1: #{latent_array_transformer.18} parent=0
    #allocation2 [shape = 'u8[8192]{0}', space=vmem, size = 0x2000, scoped, tag = 'input window, operand 0, single buffered']
    #allocation3 [shape = 's32[1]{0}', space=sflag, size = 0x4, scoped, tag = 'scoped memory for latent_array_transformer.18']
    #allocation4 [shape = 'u8[4096]{0}', space=vmem, size = 0x1000, scoped, tag = 'input window, operand 1, single buffered']
    #allocation5 [shape = 's32[1]{0}', space=sflag, size = 0x4, scoped, tag = 'scoped memory for latent_array_transformer.18']
    %7 = vsyncpa [#allocation3], 0
    %8 = vsyncpa [#allocation5], 0
    // Predicated region
    $region2: #{latent_array_transformer.18} parent=1 // pred_check
      _
    $region3: #{latent_array_transformer.18} parent=1 // pred_check_branch
      %10 = sbr.rel (0) target = $region5
    $region4: #{latent_array_transformer.18} parent=1 // pred_region
      %12 = vsyncadd [#allocation3], 0
      %s13 = sshll.u32 %s0, 4
      %s14 = int_to_ptr.hbm [resolvable:$true] %s13
      %s15 = sshll.u32 [#allocation2], 4
      %s16 = int_to_ptr.vmem [resolvable:$true] %s15
      %21 = dma.hbm_to_vmem [thread:$0]  %s14, 256, %s16, [#allocation3], 128, 128, 8
    $region5: #{latent_array_transformer.18} parent=1 // pred_fallthru
      _
    // Predicated region
    $region6: #{latent_array_transformer.18} parent=1 // pred_check
      _
    $region7: #{latent_array_transformer.18} parent=1 // pred_check_branch
      %23 = sbr.rel (0) target = $region9
    $region8: #{latent_array_transformer.18} parent=1 // pred_region
      %25 = vsyncadd [#allocation5], 0
      %s26 = sshll.u32 %s1, 4
      %s27 = int_to_ptr.hbm [resolvable:$true] %s26
      %s28 = sshll.u32 [#allocation4], 4
      %s29 = int_to_ptr.vmem [resolvable:$true] %s28
      %34 = dma.hbm_to_vmem [thread:$0]  %s27, 128, %s29, [#allocation5], 64, 64, 4
    $region9: #{latent_array_transformer.18} parent=1 // pred_fallthru
      _
    // Predicated region
    $region10: #{latent_array_transformer.18} parent=1 // pred_check
      _
    $region11: #{latent_array_transformer.18} parent=1 // pred_check_branch
      %36 = sbr.rel (0) target = $region13
    $region12: #{latent_array_transformer.18} parent=1 // pred_region
      %38 = dma.done [#allocation3], 256
    $region13: #{latent_array_transformer.18} parent=1 // pred_fallthru
      _
    // Predicated region
    $region14: #{latent_array_transformer.18} parent=1 // pred_check
      _
    $region15: #{latent_array_transformer.18} parent=1 // pred_check_branch
      %40 = sbr.rel (0) target = $region17
    $region16: #{latent_array_transformer.18} parent=1 // pred_region
      %42 = dma.done [#allocation5], 128
    $region17: #{latent_array_transformer.18} parent=1 // pred_fallthru
      _
    %v44 = vld [vmem:[#allocation2] sm:$0xff]
    %v45 = vld [vmem:[#allocation2 + $0x8] sm:$0xff]
    %v46 = vpack.c.bf16 %v45, %v44
    %v47 = vld [vmem:[#allocation4] sm:$0xf]
    %v48 = vld [vmem:[#allocation4 + $0x4] sm:$0xf]
    %v51 = vunpack.c.l.b16 %v47
    %v52 = vunpack.c.l.b16 %v48
    %v53 = vpack.c.b16 %v52, %v51
    %vm55 = vcmask 130048
    %v57 = vsel %vm55, %v46, 0
    %59 = vmatpush.bf16.msra.mxu0 0
    %60 = vmatpush.bf16.msra.mxu0 0
    %61 = vmatpush.bf16.msra.mxu0 0
    %62 = vmatpush.bf16.msra.mxu0 0
    %63 = vmatpush.bf16.msra.mxu0 0
    %64 = vmatpush.bf16.msra.mxu0 0
    %65 = vmatpush.bf16.msra.mxu0 0
    %66 = vmatpush.bf16.msra.mxu0 %v53
    %67 = vmatmul.bf16.gmra.mxu0 %v57
    %v68 = vpop.f32.mrf.mxu0
    %v69 = vadd.f32 0.0, %v68
    %v70 = vpop.f32.mrf.mxu0
    %v71 = vadd.f32 0.0, %v70
    %72 = vdwg.mxu0
    %vm73 = vcmask 523264
    %74 = vst.msk [vmem:[%s2] sm:$0xff] %vm73, %v69
    %75 = vst.msk [vmem:[%s2 + $0x8] sm:$0xff] %vm73, %v71
    // Predicated region
    $region18: #{latent_array_transformer.18} parent=1 // pred_check
      _
    $region19: #{latent_array_transformer.18} parent=1 // pred_check_branch
      %77 = sbr.rel (0) target = $region21
    $region20: #{latent_array_transformer.18} parent=1 // pred_region
      _
    $region21: #{latent_array_transformer.18} parent=1 // pred_fallthru
      _
    // Predicated region
    $region22: #{latent_array_transformer.18} parent=1 // pred_check
      _
    $region23: #{latent_array_transformer.18} parent=1 // pred_check_branch
      %79 = sbr.rel (0) target = $region25
    $region24: #{latent_array_transformer.18} parent=1 // pred_region
      _
    $region25: #{latent_array_transformer.18} parent=1 // pred_fallthru
      _
    %80 = vsyncpa [#allocation3], 1
    %81 = vsyncpa [#allocation5], 1

// kernel: latent_array_transformer.19
$region0: #{latent_array_transformer.19}
  #allocation0 [shape = 'u32[]', space=smem, size = 0x4, offset = 0x4, fixed_abs, tag = 'smem constant byte address 0x4 - core index']
  #allocation1 [shape = 'u32[72,128]{1,0:T(1,128)}', space=vmem, size = 0x9000, scoped, tag = 'internal scratch']
  %s0 = inlined_call_operand.vmem [shape: f32[2,8,64], index: 0, kind: input, shape index: {}]
  %s1 = inlined_call_operand.vmem [shape: f32[2,1,64], index: 1, kind: input, shape index: {}]
  %s2 = inlined_call_operand.vmem [shape: f32[2,1,64], index: 2, kind: input, shape index: {}]
  %s3 = inlined_call_operand.vmem [shape: bf16[64,192], index: 3, kind: input, shape index: {}]
  %s4 = inlined_call_operand.vmem [shape: bf16[2,8,192], index: 4, kind: output, shape index: {}]
  %s5 = sld [smem:[#allocation0]]
  $region49: #{latent_array_transformer.19} parent=0
    _
  %s7 = ssub.s32 1, %s5
  %s8 = scalar_select 0, %s7, %s5
  loop: start=0, step=1, limit=4
  $region2: #{latent_array_transformer.19} parent=0 // loop_pre_header
    _
  $region3: #{latent_array_transformer.19} parent=0 // loop_header
    %s10 = sphi 0, %s14
    %p11 = scmp.ge.s32.totalorder %s10, 4
    %s17 = sphi 0, %s29
    %s18 = sphi 0, %s25
    %s19 = sphi 0, %s17
    %s20 = sphi 0, %s18
    %s21 = sphi 0, %s19
    %s22 = sphi 0, %s20
    %s34 = sphi 0, %s36
    %s37 = sphi 0, %s34
    %s38 = sphi 0, %s37
    %s54 = sphi 0, %s38
    %s60 = sphi 0, %s62
    %s63 = sphi 0, %s60
    %s64 = sphi 0, %s63
    %s80 = sphi 0, %s64
    %s86 = sphi 0, %s88
    %s89 = sphi 0, %s86
    %s90 = sphi 0, %s89
    %s106 = sphi 0, %s90
    %s110 = sphi 0, %s110
    %s112 = sphi 0, %s110
    %s113 = sphi 0, %s112
    %s127 = sphi 0, %s113
    %s135 = sphi 0, %s137
    %s138 = sphi 0, %s135
    %s139 = sphi 0, %s138
    %s155 = sphi 0, %s139
  $region4: #{latent_array_transformer.19} parent=0 // loop_header_branch
    %13 = sbr.rel (%p11) target = $region8
  $region5: #{latent_array_transformer.19} parent=0 // loop_body
    %s15 = ssub.s32 %s10, 1
    %s16 = ssub.s32 %s10, 2
    %s23 = sadd.s32 1, %s18
    %p24 = scmp.ge.s32.totalorder %s23, 1
    %s25 = scalar_select %p24, 0, %s23
    %s26 = sadd.s32 1, %s17
    %s27 = scalar_select %p24, %s26, %s17
    %p28 = scmp.ge.s32.totalorder %s27, 2
    %s29 = scalar_select %p28, 0, %s27
    %s30 = ssub.s32 %s17, %s29
    %s31 = ssub.s32 %s18, %s25
    %s32 = sor.u32 %s30, %s31
    %p33 = scmp.eq.s32.totalorder %s32, 0
    %s35 = sadd.s32 %s34, 1
    %s36 = scalar_select %p33, %s34, %s35
    %p39 = pneg %p33
    %p40 = scmp.eq.s32.totalorder %s10, 1
    %p41 = por %p39, %p40
    %p42 = scmp.ne.s32.totalorder %s34, %s37
    %p43 = scmp.eq.s32.totalorder %s10, 0
    %p44 = por %p42, %p43
    %p45 = scmp.ne.s32.totalorder %s34, %s37
    %p46 = scmp.eq.s32.totalorder %s15, 1
    %p47 = por %p45, %p46
    %p48 = scmp.ne.s32.totalorder %s37, %s38
    %p49 = scmp.eq.s32.totalorder %s15, 0
    %p50 = por %p48, %p49
    %p51 = scmp.ne.s32.totalorder %s37, %s38
    %p52 = scmp.eq.s32.totalorder %s16, 1
    %p53 = por %p51, %p52
    %p55 = scmp.ne.s32.totalorder %s38, %s54
    %p56 = scmp.eq.s32.totalorder %s16, 0
    %p57 = por %p55, %p56
    %s58 = ssub.s32 %s17, %s29
    %p59 = scmp.eq.s32.totalorder %s58, 0
    %s61 = sadd.s32 %s60, 1
    %s62 = scalar_select %p59, %s60, %s61
    %p65 = pneg %p59
    %p66 = scmp.eq.s32.totalorder %s10, 1
    %p67 = por %p65, %p66
    %p68 = scmp.ne.s32.totalorder %s60, %s63
    %p69 = scmp.eq.s32.totalorder %s10, 0
    %p70 = por %p68, %p69
    %p71 = scmp.ne.s32.totalorder %s60, %s63
    %p72 = scmp.eq.s32.totalorder %s15, 1
    %p73 = por %p71, %p72
    %p74 = scmp.ne.s32.totalorder %s63, %s64
    %p75 = scmp.eq.s32.totalorder %s15, 0
    %p76 = por %p74, %p75
    %p77 = scmp.ne.s32.totalorder %s63, %s64
    %p78 = scmp.eq.s32.totalorder %s16, 1
    %p79 = por %p77, %p78
    %p81 = scmp.ne.s32.totalorder %s64, %s80
    %p82 = scmp.eq.s32.totalorder %s16, 0
    %p83 = por %p81, %p82
    %s84 = ssub.s32 %s17, %s29
    %p85 = scmp.eq.s32.totalorder %s84, 0
    %s87 = sadd.s32 %s86, 1
    %s88 = scalar_select %p85, %s86, %s87
    %p91 = pneg %p85
    %p92 = scmp.eq.s32.totalorder %s10, 1
    %p93 = por %p91, %p92
    %p94 = scmp.ne.s32.totalorder %s86, %s89
    %p95 = scmp.eq.s32.totalorder %s10, 0
    %p96 = por %p94, %p95
    %p97 = scmp.ne.s32.totalorder %s86, %s89
    %p98 = scmp.eq.s32.totalorder %s15, 1
    %p99 = por %p97, %p98
    %p100 = scmp.ne.s32.totalorder %s89, %s90
    %p101 = scmp.eq.s32.totalorder %s15, 0
    %p102 = por %p100, %p101
    %p103 = scmp.ne.s32.totalorder %s89, %s90
    %p104 = scmp.eq.s32.totalorder %s16, 1
    %p105 = por %p103, %p104
    %p107 = scmp.ne.s32.totalorder %s90, %s106
    %p108 = scmp.eq.s32.totalorder %s16, 0
    %p109 = por %p107, %p108
    %s111 = sadd.s32 %s110, 1
    %p114 = scmp.eq.s32.totalorder %s10, 1
    %p115 = scmp.ne.s32.totalorder %s110, %s112
    %p116 = scmp.eq.s32.totalorder %s10, 0
    %p117 = por %p115, %p116
    %p118 = scmp.ne.s32.totalorder %s110, %s112
    %p119 = scmp.eq.s32.totalorder %s15, 1
    %p120 = por %p118, %p119
    %p121 = scmp.ne.s32.totalorder %s112, %s113
    %p122 = scmp.eq.s32.totalorder %s15, 0
    %p123 = por %p121, %p122
    %p124 = scmp.ne.s32.totalorder %s112, %s113
    %p125 = scmp.eq.s32.totalorder %s16, 1
    %p126 = por %p124, %p125
    %p128 = scmp.ne.s32.totalorder %s113, %s127
    %p129 = scmp.eq.s32.totalorder %s16, 0
    %p130 = por %p128, %p129
    %s131 = ssub.s32 %s17, %s29
    %s132 = ssub.s32 %s18, %s25
    %s133 = sor.u32 %s131, %s132
    %p134 = scmp.eq.s32.totalorder %s133, 0
    %s136 = sadd.s32 %s135, 1
    %s137 = scalar_select %p134, %s135, %s136
    %p140 = pneg %p134
    %p141 = scmp.eq.s32.totalorder %s10, 1
    %p142 = por %p140, %p141
    %p143 = scmp.ne.s32.totalorder %s135, %s138
    %p144 = scmp.eq.s32.totalorder %s10, 0
    %p145 = por %p143, %p144
    %p146 = scmp.ne.s32.totalorder %s135, %s138
    %p147 = scmp.eq.s32.totalorder %s15, 1
    %p148 = por %p146, %p147
    %p149 = scmp.ne.s32.totalorder %s138, %s139
    %p150 = scmp.eq.s32.totalorder %s15, 0
    %p151 = por %p149, %p150
    %p152 = scmp.ne.s32.totalorder %s138, %s139
    %p153 = scmp.eq.s32.totalorder %s16, 1
    %p154 = por %p152, %p153
    %p156 = scmp.ne.s32.totalorder %s139, %s155
    %p157 = scmp.eq.s32.totalorder %s16, 0
    %p158 = por %p156, %p157
    %p159 = scmp.le.s32.totalorder 1, %s10
    %p160 = scmp.lt.s32.totalorder %s10, 3
    %p161 = pnand %p159, %p160
    %p162 = pneg %p161
    // Predicated region
    $region9: #{latent_array_transformer.19} parent=5 // pred_check
      _
    $region10: #{latent_array_transformer.19} parent=5 // pred_check_branch
      %164 = sbr.rel (%p161) target = $region12
    $region11: #{latent_array_transformer.19} parent=5 // pred_region
      %s165 = ssub.s32 %s10, 1
      // Predicated region
      $region13: #{latent_array_transformer.19} parent=11 // pred_check
        %p166 = pneg %p123
      $region14: #{latent_array_transformer.19} parent=11 // pred_check_branch
        %168 = sbr.rel (%p166) target = $region16
      $region15: #{latent_array_transformer.19} parent=11 // pred_region
        _
      $region16: #{latent_array_transformer.19} parent=11 // pred_fallthru
        _
    $region12: #{latent_array_transformer.19} parent=5 // pred_fallthru
      _
    %p169 = scmp.lt.s32.totalorder %s10, 2
    // Predicated region
    $region17: #{latent_array_transformer.19} parent=5 // pred_check
      %p170 = pneg %p169
    $region18: #{latent_array_transformer.19} parent=5 // pred_check_branch
      %172 = sbr.rel (%p170) target = $region20
    $region19: #{latent_array_transformer.19} parent=5 // pred_region
      // Predicated region
      $region21: #{latent_array_transformer.19} parent=19 // pred_check
        %p173 = pneg %p44
      $region22: #{latent_array_transformer.19} parent=19 // pred_check_branch
        %175 = sbr.rel (%p173) target = $region24
      $region23: #{latent_array_transformer.19} parent=19 // pred_region
        %p176 = scmp.lt.s32.totalorder %s17, 1
        %s177 = scalar_select %p176, %s17, 1
        %p178 = scmp.lt.s32.totalorder %s18, 0
        %s179 = scalar_select %p178, %s18, 0
        %s180 = sadd.s32 %s179, %s177
        %s181 = smul.addr %s180, 8
        %s182 = scalar_lea.vmem %s0, %s181
      $region24: #{latent_array_transformer.19} parent=19 // pred_fallthru
        _
      // Predicated region
      $region25: #{latent_array_transformer.19} parent=19 // pred_check
        %p183 = pneg %p70
      $region26: #{latent_array_transformer.19} parent=19 // pred_check_branch
        %185 = sbr.rel (%p183) target = $region28
      $region27: #{latent_array_transformer.19} parent=19 // pred_region
        %p186 = scmp.lt.s32.totalorder %s17, 1
        %s187 = scalar_select %p186, %s17, 1
        %s188 = scalar_lea.vmem %s1, %s187
      $region28: #{latent_array_transformer.19} parent=19 // pred_fallthru
        _
      // Predicated region
      $region29: #{latent_array_transformer.19} parent=19 // pred_check
        %p189 = pneg %p96
      $region30: #{latent_array_transformer.19} parent=19 // pred_check_branch
        %191 = sbr.rel (%p189) target = $region32
      $region31: #{latent_array_transformer.19} parent=19 // pred_region
        %p192 = scmp.lt.s32.totalorder %s17, 1
        %s193 = scalar_select %p192, %s17, 1
        %s194 = scalar_lea.vmem %s2, %s193
      $region32: #{latent_array_transformer.19} parent=19 // pred_fallthru
        _
    $region20: #{latent_array_transformer.19} parent=5 // pred_fallthru
      _
    %p195 = scmp.le.s32.totalorder 1, %s10
    %p196 = scmp.lt.s32.totalorder %s10, 3
    %p197 = pnand %p195, %p196
    %p198 = pneg %p197
    // Predicated region
    $region33: #{latent_array_transformer.19} parent=5 // pred_check
      _
    $region34: #{latent_array_transformer.19} parent=5 // pred_check_branch
      %200 = sbr.rel (%p197) target = $region36
    $region35: #{latent_array_transformer.19} parent=5 // pred_region
      %s201 = ssub.s32 %s10, 1
      %p202 = scmp.lt.s32.totalorder %s19, 1
      %s203 = scalar_select %p202, %s19, 1
      %p204 = scmp.lt.s32.totalorder %s20, 0
      %s205 = scalar_select %p204, %s20, 0
      %s206 = sadd.s32 %s205, %s203
      %s207 = smul.addr %s206, 8
      %s208 = scalar_lea.vmem %s0, %s207
      %p209 = pneg %p50
      %p210 = pneg %p47
      %p211 = scmp.lt.s32.totalorder %s19, 1
      %s212 = scalar_select %p211, %s19, 1
      %s213 = scalar_lea.vmem %s1, %s212
      %p214 = pneg %p76
      %p215 = pneg %p73
      %p216 = scmp.lt.s32.totalorder %s19, 1
      %s217 = scalar_select %p216, %s19, 1
      %s218 = scalar_lea.vmem %s2, %s217
      %p219 = pneg %p102
      %p220 = pneg %p99
      %p221 = pneg %p123
      %p222 = pneg %p120
      %p223 = pneg %p151
      %p224 = pneg %p148
      %p225 = scmp.lt.s32.totalorder %s19, 1
      %s226 = scalar_select %p225, %s19, 1
      %p227 = scmp.lt.s32.totalorder %s20, 0
      %s228 = scalar_select %p227, %s20, 0
      %s229 = smul.addr %s228, 2
      %s230 = smul.addr %s226, 2
      %s231 = sadd.s32 %s229, %s230
      %s232 = smul.addr %s231, 4
      %s233 = scalar_lea.vmem %s4, %s232
      %p234 = scmp.lt.s32.totalorder %s19, 1
      %s235 = scalar_select %p234, %s19, 1
      %p236 = scmp.lt.s32.totalorder %s20, 0
      %s237 = scalar_select %p236, %s20, 0
      %s238 = sadd.s32 %s237, %s235
      %s239 = smul.addr %s238, 8
      %s240 = scalar_lea.vmem %s0, %s239
      %p241 = scmp.lt.s32.totalorder %s19, 1
      %s242 = scalar_select %p241, %s19, 1
      %s243 = scalar_lea.vmem %s1, %s242
      %p244 = scmp.lt.s32.totalorder %s19, 1
      %s245 = scalar_select %p244, %s19, 1
      %s246 = scalar_lea.vmem %s2, %s245
      %p247 = scmp.lt.s32.totalorder %s19, 1
      %s248 = scalar_select %p247, %s19, 1
      %p249 = scmp.lt.s32.totalorder %s20, 0
      %s250 = scalar_select %p249, %s20, 0
      %s251 = smul.addr %s250, 2
      %s252 = smul.addr %s248, 2
      %s253 = sadd.s32 %s251, %s252
      %s254 = smul.addr %s253, 4
      %s255 = scalar_lea.vmem %s4, %s254
      %v257 = vld [vmem:[%s240] sm:$0xff]
      %vm258 = vcmask 523264
      %v259 = vsel %vm258, %v257, 0.0
      %260 = vadd.xlane.f32.xlu0 %v259
      %v261 = vpop.xlane.xlu0 %260
      %v262 = vrcp.pop 64.0
      %v263 = vmul.f32 64.0, %v262
      %v264 = vsub.f32 1.0, %v263
      %v265 = vmul.f32 %v262, %v264
      %v266 = vadd.f32 %v262, %v265
      %vm267 = vweird.f32 %v262
      %v268 = vsel %vm267, %v262, %v266
      %v269 = vmul.f32 %v261, %v268
      %v270 = vsub.f32 %v257, %v269
      %v271 = vmul.f32 %v270, %v270
      %v272 = vsel %vm258, %v271, 0.0
      %273 = vadd.xlane.f32.xlu0 %v272
      %v274 = vpop.xlane.xlu0 %273
      %v275 = vmul.f32 %v274, %v268
      %v276 = vadd.f32 %v275, 1e-05
      %v277 = vrsqrt.pop %v276
      %v278 = vmul.f32 %v277, %v276
      %v279 = vmul.f32 %v278, %v277
      %v280 = vmul.f32 0.5, %v279
      %v281 = vsub.f32 1.5, %v280
      %v282 = vmul.f32 %v277, %v281
      %vm283 = vweird.f32 %v276
      %vm284 = vweird.f32 %v277
      %vm285 = vmor %vm283, %vm284
      %v286 = vsel %vm285, %v277, %v282
      %v287 = vmul.f32 %v270, %v286
      %v288 = vld [vmem:[%s243] sm:$0x1]
      %v289 = vadd.f32 %v288, 1.0
      %v291 = vperm.slane %v289, 0
      %v293 = vmul.f32 %v287, %v291
      %v294 = vld [vmem:[%s246] sm:$0x1]
      %v296 = vperm.slane %v294, 0
      %v298 = vadd.f32 %v293, %v296
      %v299 = vpack.c.bf16 %v298, %v298
      %v300 = vld [vmem:[%s3] sm:$0xff]
      %v301 = vld [vmem:[%s3 + $0x8] sm:$0xff]
      %v302 = vld [vmem:[%s3 + $0x10] sm:$0xff]
      %v303 = vld [vmem:[%s3 + $0x18] sm:$0xff]
      %v304 = vld [vmem:[%s3 + $0x20] sm:$0xff]
      %v305 = vld [vmem:[%s3 + $0x28] sm:$0xff]
      %v306 = vld [vmem:[%s3 + $0x30] sm:$0xff]
      %v307 = vld [vmem:[%s3 + $0x38] sm:$0xff]
      %v316 = vunpack.c.l.b16 %v300
      %v317 = vunpack.c.h.b16 %v300
      %v318 = vunpack.c.l.b16 %v301
      %v319 = vunpack.c.h.b16 %v301
      %v320 = vunpack.c.l.b16 %v302
      %v321 = vunpack.c.h.b16 %v302
      %v322 = vunpack.c.l.b16 %v303
      %v323 = vunpack.c.h.b16 %v303
      %v324 = vunpack.c.l.b16 %v304
      %v325 = vunpack.c.h.b16 %v304
      %v326 = vunpack.c.l.b16 %v305
      %v327 = vunpack.c.h.b16 %v305
      %v328 = vunpack.c.l.b16 %v306
      %v329 = vunpack.c.h.b16 %v306
      %v330 = vunpack.c.l.b16 %v307
      %v331 = vunpack.c.h.b16 %v307
      %v332 = vpack.c.b16 %v318, %v316
      %v333 = vpack.c.b16 %v319, %v317
      %v334 = vpack.c.b16 %v322, %v320
      %v335 = vpack.c.b16 %v323, %v321
      %v336 = vpack.c.b16 %v326, %v324
      %v337 = vpack.c.b16 %v327, %v325
      %v338 = vpack.c.b16 %v330, %v328
      %v339 = vpack.c.b16 %v331, %v329
      %v349 = vsel %vm258, %v299, 0
      %351 = vmatpush.bf16.msra.mxu0 0
      %352 = vmatpush.bf16.msra.mxu0 0
      %353 = vmatpush.bf16.msra.mxu0 0
      %354 = vmatpush.bf16.msra.mxu0 0
      %355 = vmatpush.bf16.msra.mxu0 %v338
      %356 = vmatpush.bf16.msra.mxu0 %v336
      %357 = vmatpush.bf16.msra.mxu0 %v334
      %358 = vmatpush.bf16.msra.mxu0 %v332
      %359 = vmatmul.bf16.gmra.mxu0 %v349
      %v360 = vpop.f32.mrf.mxu0
      %v361 = vadd.f32 0.0, %v360
      %v362 = vpop.f32.mrf.mxu0
      %363 = vdwg.mxu0
      %364 = vmatpush.bf16.msra.mxu0 0
      %365 = vmatpush.bf16.msra.mxu0 0
      %366 = vmatpush.bf16.msra.mxu0 0
      %367 = vmatpush.bf16.msra.mxu0 0
      %368 = vmatpush.bf16.msra.mxu0 %v339
      %369 = vmatpush.bf16.msra.mxu0 %v337
      %370 = vmatpush.bf16.msra.mxu0 %v335
      %371 = vmatpush.bf16.msra.mxu0 %v333
      %372 = vmatmul.bf16.gmra.mxu0 %v349
      %v373 = vpop.f32.mrf.mxu0
      %v374 = vadd.f32 0.0, %v373
      %v375 = vpop.f32.mrf.mxu0
      %376 = vdwg.mxu0
      %v377 = vpack.c.bf16 %v374, %v361
      %vm378 = vcmask 1043456
      %vm379 = vcmask 523268
      %vm380 = vmor %vm379, %vm378
      %381 = vst.msk [vmem:[%s255] sm:$0xff] %vm380, %v377
      %p382 = scmp.lt.s32.totalorder %s19, 1
      %s383 = scalar_select %p382, %s19, 1
      %p384 = scmp.lt.s32.totalorder %s20, 0
      %s385 = scalar_select %p384, %s20, 0
      %s386 = smul.addr %s385, 2
      %s387 = smul.addr %s383, 2
      %s388 = sadd.s32 %s386, %s387
      %s389 = smul.addr %s388, 4
      %s390 = scalar_lea.vmem %s4, %s389
      // Predicated region
      $region37: #{latent_array_transformer.19} parent=35 // pred_check
        %p391 = pneg %p148
      $region38: #{latent_array_transformer.19} parent=35 // pred_check_branch
        %393 = sbr.rel (%p391) target = $region40
      $region39: #{latent_array_transformer.19} parent=35 // pred_region
        _
      $region40: #{latent_array_transformer.19} parent=35 // pred_fallthru
        _
    $region36: #{latent_array_transformer.19} parent=5 // pred_fallthru
      _
    %p394 = scmp.le.s32.totalorder 2, %s10
    // Predicated region
    $region41: #{latent_array_transformer.19} parent=5 // pred_check
      %p395 = pneg %p394
    $region42: #{latent_array_transformer.19} parent=5 // pred_check_branch
      %397 = sbr.rel (%p395) target = $region44
    $region43: #{latent_array_transformer.19} parent=5 // pred_region
      %s398 = ssub.s32 %s10, 2
      // Predicated region
      $region45: #{latent_array_transformer.19} parent=43 // pred_check
        %p399 = pneg %p154
      $region46: #{latent_array_transformer.19} parent=43 // pred_check_branch
        %401 = sbr.rel (%p399) target = $region48
      $region47: #{latent_array_transformer.19} parent=43 // pred_region
        %p402 = scmp.lt.s32.totalorder %s21, 1
        %s403 = scalar_select %p402, %s21, 1
        %p404 = scmp.lt.s32.totalorder %s22, 0
        %s405 = scalar_select %p404, %s22, 0
        %s406 = smul.addr %s405, 2
        %s407 = smul.addr %s403, 2
        %s408 = sadd.s32 %s406, %s407
        %s409 = smul.addr %s408, 4
        %s410 = scalar_lea.vmem %s4, %s409
      $region48: #{latent_array_transformer.19} parent=43 // pred_fallthru
        _
    $region44: #{latent_array_transformer.19} parent=5 // pred_fallthru
      _
  $region6: #{latent_array_transformer.19} parent=0 // loop_footer
    %s14 = sadd.s32 1, %s10
  $region7: #{latent_array_transformer.19} parent=0 // loop_footer_branch
    %9 = sbr.rel target = $region3
  $region8: #{latent_array_transformer.19} parent=0 // loop_exit
    _

// kernel: latent_array_transformer.22
$region0: #{latent_array_transformer.22}
  #allocation0 [shape = 'u32[]', space=smem, size = 0x4, offset = 0x4, fixed_abs, tag = 'smem constant byte address 0x4 - core index']
  #allocation1 [shape = 'u32[72,128]{1,0:T(1,128)}', space=vmem, size = 0x9000, scoped, tag = 'internal scratch']
  %s0 = inlined_call_operand.vmem [shape: f32[12,32], index: 0, kind: input, shape index: {}]
  %s1 = inlined_call_operand.hbm [shape: bf16[32,128], index: 1, kind: input, shape index: {}]
  %s2 = inlined_call_operand.vmem [shape: bf16[12,128], index: 2, kind: output, shape index: {}]
  %s3 = sld [smem:[#allocation0]]
  $region22: #{latent_array_transformer.22} parent=0
    _
  %s5 = ssub.s32 1, %s3
  %s6 = scalar_select 0, %s5, %s3
  $region1: #{latent_array_transformer.22} parent=0
    #allocation2 [shape = 'u8[8192]{0}', space=vmem, size = 0x2000, scoped, tag = 'input window, operand 1, single buffered']
    #allocation3 [shape = 's32[1]{0}', space=sflag, size = 0x4, scoped, tag = 'scoped memory for latent_array_transformer.22']
    %7 = vsyncpa [#allocation3], 0
    // Predicated region
    $region2: #{latent_array_transformer.22} parent=1 // pred_check
      _
    $region3: #{latent_array_transformer.22} parent=1 // pred_check_branch
      %9 = sbr.rel (0) target = $region5
    $region4: #{latent_array_transformer.22} parent=1 // pred_region
      _
    $region5: #{latent_array_transformer.22} parent=1 // pred_fallthru
      _
    // Predicated region
    $region6: #{latent_array_transformer.22} parent=1 // pred_check
      _
    $region7: #{latent_array_transformer.22} parent=1 // pred_check_branch
      %11 = sbr.rel (0) target = $region9
    $region8: #{latent_array_transformer.22} parent=1 // pred_region
      %13 = vsyncadd [#allocation3], 0
      %s14 = sshll.u32 %s1, 4
      %s15 = int_to_ptr.hbm [resolvable:$true] %s14
      %s16 = sshll.u32 [#allocation2], 4
      %s17 = int_to_ptr.vmem [resolvable:$true] %s16
      %22 = dma.hbm_to_vmem [thread:$0]  %s15, 256, %s17, [#allocation3], 64, 64, 4
    $region9: #{latent_array_transformer.22} parent=1 // pred_fallthru
      _
    // Predicated region
    $region10: #{latent_array_transformer.22} parent=1 // pred_check
      _
    $region11: #{latent_array_transformer.22} parent=1 // pred_check_branch
      %24 = sbr.rel (0) target = $region13
    $region12: #{latent_array_transformer.22} parent=1 // pred_region
      %26 = dma.done [#allocation3], 256
    $region13: #{latent_array_transformer.22} parent=1 // pred_fallthru
      _
    %v28 = vld [vmem:[%s0] sm:$0xff]
    %v29 = vld [vmem:[%s0 + $0x8] sm:$0xf]
    %v30 = vpack.c.bf16 %v29, %v28
    %v31 = vld [vmem:[#allocation2] sm:$0xf]
    %v32 = vld [vmem:[#allocation2 + $0x4] sm:$0xf]
    %v33 = vld [vmem:[#allocation2 + $0x8] sm:$0xf]
    %v34 = vld [vmem:[#allocation2 + $0xc] sm:$0xf]
    %v39 = vunpack.c.l.b16 %v31
    %v40 = vunpack.c.l.b16 %v32
    %v41 = vunpack.c.l.b16 %v33
    %v42 = vunpack.c.l.b16 %v34
    %v43 = vpack.c.b16 %v40, %v39
    %v44 = vpack.c.b16 %v42, %v41
    %vm47 = vcmask 261120
    %v49 = vsel %vm47, %v30, 0
    %51 = vmatpush.bf16.msra.mxu0 0
    %52 = vmatpush.bf16.msra.mxu0 0
    %53 = vmatpush.bf16.msra.mxu0 0
    %54 = vmatpush.bf16.msra.mxu0 0
    %55 = vmatpush.bf16.msra.mxu0 0
    %56 = vmatpush.bf16.msra.mxu0 0
    %57 = vmatpush.bf16.msra.mxu0 %v44
    %58 = vmatpush.bf16.msra.mxu0 %v43
    %59 = vmatmul.bf16.gmra.mxu0 %v49
    %v60 = vpop.f32.mrf.mxu0
    %v61 = vadd.f32 0.0, %v60
    %v62 = vpop.f32.mrf.mxu0
    %v63 = vadd.f32 0.0, %v62
    %64 = vdwg.mxu0
    %v65 = vpack.c.bf16 %v61, %v61
    %v66 = vpack.c.bf16 %v63, %v63
    %67 = vst [vmem:[%s2] sm:$0xf] %v65
    %68 = vst [vmem:[%s2 + $0x4] sm:$0x3] %v66
    // Predicated region
    $region14: #{latent_array_transformer.22} parent=1 // pred_check
      _
    $region15: #{latent_array_transformer.22} parent=1 // pred_check_branch
      %70 = sbr.rel (0) target = $region17
    $region16: #{latent_array_transformer.22} parent=1 // pred_region
      _
    $region17: #{latent_array_transformer.22} parent=1 // pred_fallthru
      _
    // Predicated region
    $region18: #{latent_array_transformer.22} parent=1 // pred_check
      _
    $region19: #{latent_array_transformer.22} parent=1 // pred_check_branch
      %72 = sbr.rel (0) target = $region21
    $region20: #{latent_array_transformer.22} parent=1 // pred_region
      _
    $region21: #{latent_array_transformer.22} parent=1 // pred_fallthru
      _
    %73 = vsyncpa [#allocation3], 1

// kernel: latent_array_transformer.21
$region0: #{latent_array_transformer.21}
  #allocation0 [shape = 'u32[]', space=smem, size = 0x4, offset = 0x4, fixed_abs, tag = 'smem constant byte address 0x4 - core index']
  #allocation1 [shape = 'u32[72,128]{1,0:T(1,128)}', space=vmem, size = 0x9000, scoped, tag = 'internal scratch']
  %s0 = inlined_call_operand.vmem [shape: f32[2,8,64], index: 0, kind: input, shape index: {}]
  %s1 = inlined_call_operand.vmem [shape: f32[2,1,64], index: 1, kind: input, shape index: {}]
  %s2 = inlined_call_operand.vmem [shape: f32[2,1,64], index: 2, kind: input, shape index: {}]
  %s3 = inlined_call_operand.hbm [shape: bf16[64,64], index: 3, kind: input, shape index: {}]
  %s4 = inlined_call_operand.vmem [shape: bf16[2,8,64], index: 4, kind: output, shape index: {}]
  %s5 = sld [smem:[#allocation0]]
  $region53: #{latent_array_transformer.21} parent=0
    _
  %s7 = ssub.s32 1, %s5
  %s8 = scalar_select 0, %s7, %s5
  $region1: #{latent_array_transformer.21} parent=0
    #allocation2 [shape = 'u8[16384]{0}', space=vmem, size = 0x4000, scoped, tag = 'input window, operand 3, single buffered']
    #allocation3 [shape = 's32[2]{0}', space=sflag, size = 0x8, scoped, tag = 'scoped memory for latent_array_transformer.21']
    %9 = vsyncpa [#allocation3], 0
    loop: start=0, step=1, limit=4
    $region2: #{latent_array_transformer.21} parent=1 // loop_pre_header
      _
    $region3: #{latent_array_transformer.21} parent=1 // loop_header
      %s11 = sphi 0, %s15
      %p12 = scmp.ge.s32.totalorder %s11, 4
      %s18 = sphi 0, %s30
      %s19 = sphi 0, %s26
      %s20 = sphi 0, %s18
      %s21 = sphi 0, %s19
      %s22 = sphi 0, %s20
      %s23 = sphi 0, %s21
      %s35 = sphi 0, %s37
      %s38 = sphi 0, %s35
      %s39 = sphi 0, %s38
      %s55 = sphi 0, %s39
      %s61 = sphi 0, %s63
      %s64 = sphi 0, %s61
      %s65 = sphi 0, %s64
      %s81 = sphi 0, %s65
      %s87 = sphi 0, %s89
      %s90 = sphi 0, %s87
      %s91 = sphi 0, %s90
      %s107 = sphi 0, %s91
      %s111 = sphi 0, %s111
      %s113 = sphi 0, %s111
      %s114 = sphi 0, %s113
      %s128 = sphi 0, %s114
      %s136 = sphi 0, %s138
      %s139 = sphi 0, %s136
      %s140 = sphi 0, %s139
      %s156 = sphi 0, %s140
    $region4: #{latent_array_transformer.21} parent=1 // loop_header_branch
      %14 = sbr.rel (%p12) target = $region8
    $region5: #{latent_array_transformer.21} parent=1 // loop_body
      %s16 = ssub.s32 %s11, 1
      %s17 = ssub.s32 %s11, 2
      %s24 = sadd.s32 1, %s19
      %p25 = scmp.ge.s32.totalorder %s24, 1
      %s26 = scalar_select %p25, 0, %s24
      %s27 = sadd.s32 1, %s18
      %s28 = scalar_select %p25, %s27, %s18
      %p29 = scmp.ge.s32.totalorder %s28, 2
      %s30 = scalar_select %p29, 0, %s28
      %s31 = ssub.s32 %s18, %s30
      %s32 = ssub.s32 %s19, %s26
      %s33 = sor.u32 %s31, %s32
      %p34 = scmp.eq.s32.totalorder %s33, 0
      %s36 = sadd.s32 %s35, 1
      %s37 = scalar_select %p34, %s35, %s36
      %p40 = pneg %p34
      %p41 = scmp.eq.s32.totalorder %s11, 1
      %p42 = por %p40, %p41
      %p43 = scmp.ne.s32.totalorder %s35, %s38
      %p44 = scmp.eq.s32.totalorder %s11, 0
      %p45 = por %p43, %p44
      %p46 = scmp.ne.s32.totalorder %s35, %s38
      %p47 = scmp.eq.s32.totalorder %s16, 1
      %p48 = por %p46, %p47
      %p49 = scmp.ne.s32.totalorder %s38, %s39
      %p50 = scmp.eq.s32.totalorder %s16, 0
      %p51 = por %p49, %p50
      %p52 = scmp.ne.s32.totalorder %s38, %s39
      %p53 = scmp.eq.s32.totalorder %s17, 1
      %p54 = por %p52, %p53
      %p56 = scmp.ne.s32.totalorder %s39, %s55
      %p57 = scmp.eq.s32.totalorder %s17, 0
      %p58 = por %p56, %p57
      %s59 = ssub.s32 %s18, %s30
      %p60 = scmp.eq.s32.totalorder %s59, 0
      %s62 = sadd.s32 %s61, 1
      %s63 = scalar_select %p60, %s61, %s62
      %p66 = pneg %p60
      %p67 = scmp.eq.s32.totalorder %s11, 1
      %p68 = por %p66, %p67
      %p69 = scmp.ne.s32.totalorder %s61, %s64
      %p70 = scmp.eq.s32.totalorder %s11, 0
      %p71 = por %p69, %p70
      %p72 = scmp.ne.s32.totalorder %s61, %s64
      %p73 = scmp.eq.s32.totalorder %s16, 1
      %p74 = por %p72, %p73
      %p75 = scmp.ne.s32.totalorder %s64, %s65
      %p76 = scmp.eq.s32.totalorder %s16, 0
      %p77 = por %p75, %p76
      %p78 = scmp.ne.s32.totalorder %s64, %s65
      %p79 = scmp.eq.s32.totalorder %s17, 1
      %p80 = por %p78, %p79
      %p82 = scmp.ne.s32.totalorder %s65, %s81
      %p83 = scmp.eq.s32.totalorder %s17, 0
      %p84 = por %p82, %p83
      %s85 = ssub.s32 %s18, %s30
      %p86 = scmp.eq.s32.totalorder %s85, 0
      %s88 = sadd.s32 %s87, 1
      %s89 = scalar_select %p86, %s87, %s88
      %p92 = pneg %p86
      %p93 = scmp.eq.s32.totalorder %s11, 1
      %p94 = por %p92, %p93
      %p95 = scmp.ne.s32.totalorder %s87, %s90
      %p96 = scmp.eq.s32.totalorder %s11, 0
      %p97 = por %p95, %p96
      %p98 = scmp.ne.s32.totalorder %s87, %s90
      %p99 = scmp.eq.s32.totalorder %s16, 1
      %p100 = por %p98, %p99
      %p101 = scmp.ne.s32.totalorder %s90, %s91
      %p102 = scmp.eq.s32.totalorder %s16, 0
      %p103 = por %p101, %p102
      %p104 = scmp.ne.s32.totalorder %s90, %s91
      %p105 = scmp.eq.s32.totalorder %s17, 1
      %p106 = por %p104, %p105
      %p108 = scmp.ne.s32.totalorder %s91, %s107
      %p109 = scmp.eq.s32.totalorder %s17, 0
      %p110 = por %p108, %p109
      %s112 = sadd.s32 %s111, 1
      %p115 = scmp.eq.s32.totalorder %s11, 1
      %p116 = scmp.ne.s32.totalorder %s111, %s113
      %p117 = scmp.eq.s32.totalorder %s11, 0
      %p118 = por %p116, %p117
      %p119 = scmp.ne.s32.totalorder %s111, %s113
      %p120 = scmp.eq.s32.totalorder %s16, 1
      %p121 = por %p119, %p120
      %p122 = scmp.ne.s32.totalorder %s113, %s114
      %p123 = scmp.eq.s32.totalorder %s16, 0
      %p124 = por %p122, %p123
      %p125 = scmp.ne.s32.totalorder %s113, %s114
      %p126 = scmp.eq.s32.totalorder %s17, 1
      %p127 = por %p125, %p126
      %p129 = scmp.ne.s32.totalorder %s114, %s128
      %p130 = scmp.eq.s32.totalorder %s17, 0
      %p131 = por %p129, %p130
      %s132 = ssub.s32 %s18, %s30
      %s133 = ssub.s32 %s19, %s26
      %s134 = sor.u32 %s132, %s133
      %p135 = scmp.eq.s32.totalorder %s134, 0
      %s137 = sadd.s32 %s136, 1
      %s138 = scalar_select %p135, %s136, %s137
      %p141 = pneg %p135
      %p142 = scmp.eq.s32.totalorder %s11, 1
      %p143 = por %p141, %p142
      %p144 = scmp.ne.s32.totalorder %s136, %s139
      %p145 = scmp.eq.s32.totalorder %s11, 0
      %p146 = por %p144, %p145
      %p147 = scmp.ne.s32.totalorder %s136, %s139
      %p148 = scmp.eq.s32.totalorder %s16, 1
      %p149 = por %p147, %p148
      %p150 = scmp.ne.s32.totalorder %s139, %s140
      %p151 = scmp.eq.s32.totalorder %s16, 0
      %p152 = por %p150, %p151
      %p153 = scmp.ne.s32.totalorder %s139, %s140
      %p154 = scmp.eq.s32.totalorder %s17, 1
      %p155 = por %p153, %p154
      %p157 = scmp.ne.s32.totalorder %s140, %s156
      %p158 = scmp.eq.s32.totalorder %s17, 0
      %p159 = por %p157, %p158
      %p160 = scmp.le.s32.totalorder 1, %s11
      %p161 = scmp.lt.s32.totalorder %s11, 3
      %p162 = pnand %p160, %p161
      %p163 = pneg %p162
      // Predicated region
      $region9: #{latent_array_transformer.21} parent=5 // pred_check
        _
      $region10: #{latent_array_transformer.21} parent=5 // pred_check_branch
        %165 = sbr.rel (%p162) target = $region12
      $region11: #{latent_array_transformer.21} parent=5 // pred_region
        %s166 = ssub.s32 %s11, 1
        // Predicated region
        $region13: #{latent_array_transformer.21} parent=11 // pred_check
          %p167 = pneg %p124
        $region14: #{latent_array_transformer.21} parent=11 // pred_check_branch
          %169 = sbr.rel (%p167) target = $region16
        $region15: #{latent_array_transformer.21} parent=11 // pred_region
          %171 = vsyncadd [#allocation3], 0
          %s172 = sshll.u32 %s3, 4
          %s173 = int_to_ptr.hbm [resolvable:$true] %s172
          %s174 = sshll.u32 [#allocation2], 4
          %s175 = int_to_ptr.vmem [resolvable:$true] %s174
          %180 = dma.hbm_to_vmem [thread:$0]  %s173, 512, %s175, [#allocation3], 64, 64, 4
        $region16: #{latent_array_transformer.21} parent=11 // pred_fallthru
          _
      $region12: #{latent_array_transformer.21} parent=5 // pred_fallthru
        _
      %p181 = scmp.lt.s32.totalorder %s11, 2
      // Predicated region
      $region17: #{latent_array_transformer.21} parent=5 // pred_check
        %p182 = pneg %p181
      $region18: #{latent_array_transformer.21} parent=5 // pred_check_branch
        %184 = sbr.rel (%p182) target = $region20
      $region19: #{latent_array_transformer.21} parent=5 // pred_region
        // Predicated region
        $region21: #{latent_array_transformer.21} parent=19 // pred_check
          %p185 = pneg %p45
        $region22: #{latent_array_transformer.21} parent=19 // pred_check_branch
          %187 = sbr.rel (%p185) target = $region24
        $region23: #{latent_array_transformer.21} parent=19 // pred_region
          %p188 = scmp.lt.s32.totalorder %s18, 1
          %s189 = scalar_select %p188, %s18, 1
          %p190 = scmp.lt.s32.totalorder %s19, 0
          %s191 = scalar_select %p190, %s19, 0
          %s192 = sadd.s32 %s191, %s189
          %s193 = smul.addr %s192, 8
          %s194 = scalar_lea.vmem %s0, %s193
        $region24: #{latent_array_transformer.21} parent=19 // pred_fallthru
          _
        // Predicated region
        $region25: #{latent_array_transformer.21} parent=19 // pred_check
          %p195 = pneg %p71
        $region26: #{latent_array_transformer.21} parent=19 // pred_check_branch
          %197 = sbr.rel (%p195) target = $region28
        $region27: #{latent_array_transformer.21} parent=19 // pred_region
          %p198 = scmp.lt.s32.totalorder %s18, 1
          %s199 = scalar_select %p198, %s18, 1
          %s200 = scalar_lea.vmem %s1, %s199
        $region28: #{latent_array_transformer.21} parent=19 // pred_fallthru
          _
        // Predicated region
        $region29: #{latent_array_transformer.21} parent=19 // pred_check
          %p201 = pneg %p97
        $region30: #{latent_array_transformer.21} parent=19 // pred_check_branch
          %203 = sbr.rel (%p201) target = $region32
        $region31: #{latent_array_transformer.21} parent=19 // pred_region
          %p204 = scmp.lt.s32.totalorder %s18, 1
          %s205 = scalar_select %p204, %s18, 1
          %s206 = scalar_lea.vmem %s2, %s205
        $region32: #{latent_array_transformer.21} parent=19 // pred_fallthru
          _
      $region20: #{latent_array_transformer.21} parent=5 // pred_fallthru
        _
      %p207 = scmp.le.s32.totalorder 1, %s11
      %p208 = scmp.lt.s32.totalorder %s11, 3
      %p209 = pnand %p207, %p208
      %p210 = pneg %p209
      // Predicated region
      $region33: #{latent_array_transformer.21} parent=5 // pred_check
        _
      $region34: #{latent_array_transformer.21} parent=5 // pred_check_branch
        %212 = sbr.rel (%p209) target = $region36
      $region35: #{latent_array_transformer.21} parent=5 // pred_region
        %s213 = ssub.s32 %s11, 1
        // Predicated region
        $region37: #{latent_array_transformer.21} parent=35 // pred_check
          %p214 = pneg %p124
        $region38: #{latent_array_transformer.21} parent=35 // pred_check_branch
          %216 = sbr.rel (%p214) target = $region40
        $region39: #{latent_array_transformer.21} parent=35 // pred_region
          %218 = dma.done [#allocation3], 512
        $region40: #{latent_array_transformer.21} parent=35 // pred_fallthru
          _
        %p219 = scmp.lt.s32.totalorder %s20, 1
        %s220 = scalar_select %p219, %s20, 1
        %p221 = scmp.lt.s32.totalorder %s21, 0
        %s222 = scalar_select %p221, %s21, 0
        %s223 = sadd.s32 %s222, %s220
        %s224 = smul.addr %s223, 8
        %s225 = scalar_lea.vmem %s0, %s224
        %p226 = pneg %p51
        %p227 = pneg %p48
        %p228 = scmp.lt.s32.totalorder %s20, 1
        %s229 = scalar_select %p228, %s20, 1
        %s230 = scalar_lea.vmem %s1, %s229
        %p231 = pneg %p77
        %p232 = pneg %p74
        %p233 = scmp.lt.s32.totalorder %s20, 1
        %s234 = scalar_select %p233, %s20, 1
        %s235 = scalar_lea.vmem %s2, %s234
        %p236 = pneg %p103
        %p237 = pneg %p100
        %p238 = pneg %p124
        %p239 = pneg %p121
        %p240 = pneg %p152
        %p241 = pneg %p149
        %p242 = scmp.lt.s32.totalorder %s20, 1
        %s243 = scalar_select %p242, %s20, 1
        %p244 = scmp.lt.s32.totalorder %s21, 0
        %s245 = scalar_select %p244, %s21, 0
        %s246 = sadd.s32 %s245, %s243
        %s247 = smul.addr %s246, 4
        %s248 = scalar_lea.vmem %s4, %s247
        %p249 = scmp.lt.s32.totalorder %s20, 1
        %s250 = scalar_select %p249, %s20, 1
        %p251 = scmp.lt.s32.totalorder %s21, 0
        %s252 = scalar_select %p251, %s21, 0
        %s253 = sadd.s32 %s252, %s250
        %s254 = smul.addr %s253, 8
        %s255 = scalar_lea.vmem %s0, %s254
        %p256 = scmp.lt.s32.totalorder %s20, 1
        %s257 = scalar_select %p256, %s20, 1
        %s258 = scalar_lea.vmem %s1, %s257
        %p259 = scmp.lt.s32.totalorder %s20, 1
        %s260 = scalar_select %p259, %s20, 1
        %s261 = scalar_lea.vmem %s2, %s260
        %p262 = scmp.lt.s32.totalorder %s20, 1
        %s263 = scalar_select %p262, %s20, 1
        %p264 = scmp.lt.s32.totalorder %s21, 0
        %s265 = scalar_select %p264, %s21, 0
        %s266 = sadd.s32 %s265, %s263
        %s267 = smul.addr %s266, 4
        %s268 = scalar_lea.vmem %s4, %s267
        %v270 = vld [vmem:[%s255] sm:$0xff]
        %vm271 = vcmask 523264
        %v272 = vsel %vm271, %v270, 0.0
        %273 = vadd.xlane.f32.xlu0 %v272
        %v274 = vpop.xlane.xlu0 %273
        %v275 = vrcp.pop 64.0
        %v276 = vmul.f32 64.0, %v275
        %v277 = vsub.f32 1.0, %v276
        %v278 = vmul.f32 %v275, %v277
        %v279 = vadd.f32 %v275, %v278
        %vm280 = vweird.f32 %v275
        %v281 = vsel %vm280, %v275, %v279
        %v282 = vmul.f32 %v274, %v281
        %v283 = vsub.f32 %v270, %v282
        %v284 = vmul.f32 %v283, %v283
        %v285 = vsel %vm271, %v284, 0.0
        %286 = vadd.xlane.f32.xlu0 %v285
        %v287 = vpop.xlane.xlu0 %286
        %v288 = vmul.f32 %v287, %v281
        %v289 = vadd.f32 %v288, 1e-05
        %v290 = vrsqrt.pop %v289
        %v291 = vmul.f32 %v290, %v289
        %v292 = vmul.f32 %v291, %v290
        %v293 = vmul.f32 0.5, %v292
        %v294 = vsub.f32 1.5, %v293
        %v295 = vmul.f32 %v290, %v294
        %vm296 = vweird.f32 %v289
        %vm297 = vweird.f32 %v290
        %vm298 = vmor %vm296, %vm297
        %v299 = vsel %vm298, %v290, %v295
        %v300 = vmul.f32 %v283, %v299
        %v301 = vld [vmem:[%s258] sm:$0x1]
        %v302 = vadd.f32 %v301, 1.0
        %v304 = vperm.slane %v302, 0
        %v306 = vmul.f32 %v300, %v304
        %v307 = vld [vmem:[%s261] sm:$0x1]
        %v309 = vperm.slane %v307, 0
        %v311 = vadd.f32 %v306, %v309
        %v312 = vpack.c.bf16 %v311, %v311
        %v313 = vld [vmem:[#allocation2] sm:$0xf]
        %v314 = vld [vmem:[#allocation2 + $0x4] sm:$0xf]
        %v315 = vld [vmem:[#allocation2 + $0x8] sm:$0xf]
        %v316 = vld [vmem:[#allocation2 + $0xc] sm:$0xf]
        %v317 = vld [vmem:[#allocation2 + $0x10] sm:$0xf]
        %v318 = vld [vmem:[#allocation2 + $0x14] sm:$0xf]
        %v319 = vld [vmem:[#allocation2 + $0x18] sm:$0xf]
        %v320 = vld [vmem:[#allocation2 + $0x1c] sm:$0xf]
        %v329 = vunpack.c.l.b16 %v313
        %v330 = vunpack.c.l.b16 %v314
        %v331 = vunpack.c.l.b16 %v315
        %v332 = vunpack.c.l.b16 %v316
        %v333 = vunpack.c.l.b16 %v317
        %v334 = vunpack.c.l.b16 %v318
        %v335 = vunpack.c.l.b16 %v319
        %v336 = vunpack.c.l.b16 %v320
        %v337 = vpack.c.b16 %v330, %v329
        %v338 = vpack.c.b16 %v332, %v331
        %v339 = vpack.c.b16 %v334, %v333
        %v340 = vpack.c.b16 %v336, %v335
        %v346 = vsel %vm271, %v312, 0
        %348 = vmatpush.bf16.msra.mxu0 0
        %349 = vmatpush.bf16.msra.mxu0 0
        %350 = vmatpush.bf16.msra.mxu0 0
        %351 = vmatpush.bf16.msra.mxu0 0
        %352 = vmatpush.bf16.msra.mxu0 %v340
        %353 = vmatpush.bf16.msra.mxu0 %v339
        %354 = vmatpush.bf16.msra.mxu0 %v338
        %355 = vmatpush.bf16.msra.mxu0 %v337
        %356 = vmatmul.bf16.gmra.mxu0 %v346
        %v357 = vpop.f32.mrf.mxu0
        %v358 = vadd.f32 0.0, %v357
        %v359 = vpop.f32.mrf.mxu0
        %360 = vdwg.mxu0
        %v361 = vpack.c.bf16 %v358, %v358
        %vm362 = vcmask 519168
        %363 = vst.msk [vmem:[%s268] sm:$0xf] %vm362, %v361
        %p364 = scmp.lt.s32.totalorder %s20, 1
        %s365 = scalar_select %p364, %s20, 1
        %p366 = scmp.lt.s32.totalorder %s21, 0
        %s367 = scalar_select %p366, %s21, 0
        %s368 = sadd.s32 %s367, %s365
        %s369 = smul.addr %s368, 4
        %s370 = scalar_lea.vmem %s4, %s369
        // Predicated region
        $region41: #{latent_array_transformer.21} parent=35 // pred_check
          %p371 = pneg %p149
        $region42: #{latent_array_transformer.21} parent=35 // pred_check_branch
          %373 = sbr.rel (%p371) target = $region44
        $region43: #{latent_array_transformer.21} parent=35 // pred_region
          _
        $region44: #{latent_array_transformer.21} parent=35 // pred_fallthru
          _
      $region36: #{latent_array_transformer.21} parent=5 // pred_fallthru
        _
      %p374 = scmp.le.s32.totalorder 2, %s11
      // Predicated region
      $region45: #{latent_array_transformer.21} parent=5 // pred_check
        %p375 = pneg %p374
      $region46: #{latent_array_transformer.21} parent=5 // pred_check_branch
        %377 = sbr.rel (%p375) target = $region48
      $region47: #{latent_array_transformer.21} parent=5 // pred_region
        %s378 = ssub.s32 %s11, 2
        // Predicated region
        $region49: #{latent_array_transformer.21} parent=47 // pred_check
          %p379 = pneg %p155
        $region50: #{latent_array_transformer.21} parent=47 // pred_check_branch
          %381 = sbr.rel (%p379) target = $region52
        $region51: #{latent_array_transformer.21} parent=47 // pred_region
          %p382 = scmp.lt.s32.totalorder %s22, 1
          %s383 = scalar_select %p382, %s22, 1
          %p384 = scmp.lt.s32.totalorder %s23, 0
          %s385 = scalar_select %p384, %s23, 0
          %s386 = sadd.s32 %s385, %s383
          %s387 = smul.addr %s386, 4
          %s388 = scalar_lea.vmem %s4, %s387
        $region52: #{latent_array_transformer.21} parent=47 // pred_fallthru
          _
      $region48: #{latent_array_transformer.21} parent=5 // pred_fallthru
        _
    $region6: #{latent_array_transformer.21} parent=1 // loop_footer
      %s15 = sadd.s32 1, %s11
    $region7: #{latent_array_transformer.21} parent=1 // loop_footer_branch
      %10 = sbr.rel target = $region3
    $region8: #{latent_array_transformer.21} parent=1 // loop_exit
      _
    %389 = vsyncpa [#allocation3], 1
    %s390 = scalar_lea.sflag [#allocation3], 1
    %391 = vsyncpa %s390, 1

// kernel: latent_array_transformer.20
$region0: #{latent_array_transformer.20}
  #allocation0 [shape = 'u32[]', space=smem, size = 0x4, offset = 0x4, fixed_abs, tag = 'smem constant byte address 0x4 - core index']
  #allocation1 [shape = 'u32[72,128]{1,0:T(1,128)}', space=vmem, size = 0x9000, scoped, tag = 'internal scratch']
  %s0 = inlined_call_operand.vmem [shape: bf16[2,8,192], index: 0, kind: input, shape index: {}]
  %s1 = inlined_call_operand.hbm [shape: bf16[64,64], index: 1, kind: input, shape index: {}]
  %s2 = inlined_call_operand.vmem [shape: f32[1,64], index: 2, kind: input, shape index: {}]
  %s3 = inlined_call_operand.vmem [shape: f32[2,8,64], index: 3, kind: input, shape index: {}]
  %s4 = inlined_call_operand.vmem [shape: f32[2,8,64], index: 4, kind: output, shape index: {}]
  %s5 = sld [smem:[#allocation0]]
  $region53: #{latent_array_transformer.20} parent=0
    _
  %s7 = ssub.s32 1, %s5
  %s8 = scalar_select 0, %s7, %s5
  $region1: #{latent_array_transformer.20} parent=0
    #allocation2 [shape = 'u8[16384]{0}', space=vmem, size = 0x4000, scoped, tag = 'input window, operand 1, single buffered']
    #allocation3 [shape = 's32[2]{0}', space=sflag, size = 0x8, scoped, tag = 'scoped memory for latent_array_transformer.20']
    %9 = vsyncpa [#allocation3], 0
    loop: start=0, step=1, limit=4
    $region2: #{latent_array_transformer.20} parent=1 // loop_pre_header
      _
    $region3: #{latent_array_transformer.20} parent=1 // loop_header
      %s11 = sphi 0, %s15
      %p12 = scmp.ge.s32.totalorder %s11, 4
      %s21 = sphi 0, %s23
      %s24 = sphi 0, %s21
      %s25 = sphi 0, %s24
      %s41 = sphi 0, %s25
      %s45 = sphi 0, %s45
      %s47 = sphi 0, %s45
      %s48 = sphi 0, %s47
      %s62 = sphi 0, %s48
      %s66 = sphi 0, %s66
      %s68 = sphi 0, %s66
      %s69 = sphi 0, %s68
      %s83 = sphi 0, %s69
      %s89 = sphi 0, %s91
      %s92 = sphi 0, %s89
      %s93 = sphi 0, %s92
      %s109 = sphi 0, %s93
      %s115 = sphi 0, %s117
      %s118 = sphi 0, %s115
      %s119 = sphi 0, %s118
      %s135 = sphi 0, %s119
    $region4: #{latent_array_transformer.20} parent=1 // loop_header_branch
      %14 = sbr.rel (%p12) target = $region8
    $region5: #{latent_array_transformer.20} parent=1 // loop_body
      %s16 = ssub.s32 %s11, 1
      %s17 = ssub.s32 %s11, 2
      %s18 = sadd.s32 %s11, 1
      %s19 = ssub.s32 %s11, %s18
      %p20 = scmp.eq.s32.totalorder %s19, 0
      %s22 = sadd.s32 %s21, 1
      %s23 = scalar_select %p20, %s21, %s22
      %p26 = pneg %p20
      %p27 = scmp.eq.s32.totalorder %s11, 1
      %p28 = por %p26, %p27
      %p29 = scmp.ne.s32.totalorder %s21, %s24
      %p30 = scmp.eq.s32.totalorder %s11, 0
      %p31 = por %p29, %p30
      %p32 = scmp.ne.s32.totalorder %s21, %s24
      %p33 = scmp.eq.s32.totalorder %s16, 1
      %p34 = por %p32, %p33
      %p35 = scmp.ne.s32.totalorder %s24, %s25
      %p36 = scmp.eq.s32.totalorder %s16, 0
      %p37 = por %p35, %p36
      %p38 = scmp.ne.s32.totalorder %s24, %s25
      %p39 = scmp.eq.s32.totalorder %s17, 1
      %p40 = por %p38, %p39
      %p42 = scmp.ne.s32.totalorder %s25, %s41
      %p43 = scmp.eq.s32.totalorder %s17, 0
      %p44 = por %p42, %p43
      %s46 = sadd.s32 %s45, 1
      %p49 = scmp.eq.s32.totalorder %s11, 1
      %p50 = scmp.ne.s32.totalorder %s45, %s47
      %p51 = scmp.eq.s32.totalorder %s11, 0
      %p52 = por %p50, %p51
      %p53 = scmp.ne.s32.totalorder %s45, %s47
      %p54 = scmp.eq.s32.totalorder %s16, 1
      %p55 = por %p53, %p54
      %p56 = scmp.ne.s32.totalorder %s47, %s48
      %p57 = scmp.eq.s32.totalorder %s16, 0
      %p58 = por %p56, %p57
      %p59 = scmp.ne.s32.totalorder %s47, %s48
      %p60 = scmp.eq.s32.totalorder %s17, 1
      %p61 = por %p59, %p60
      %p63 = scmp.ne.s32.totalorder %s48, %s62
      %p64 = scmp.eq.s32.totalorder %s17, 0
      %p65 = por %p63, %p64
      %s67 = sadd.s32 %s66, 1
      %p70 = scmp.eq.s32.totalorder %s11, 1
      %p71 = scmp.ne.s32.totalorder %s66, %s68
      %p72 = scmp.eq.s32.totalorder %s11, 0
      %p73 = por %p71, %p72
      %p74 = scmp.ne.s32.totalorder %s66, %s68
      %p75 = scmp.eq.s32.totalorder %s16, 1
      %p76 = por %p74, %p75
      %p77 = scmp.ne.s32.totalorder %s68, %s69
      %p78 = scmp.eq.s32.totalorder %s16, 0
      %p79 = por %p77, %p78
      %p80 = scmp.ne.s32.totalorder %s68, %s69
      %p81 = scmp.eq.s32.totalorder %s17, 1
      %p82 = por %p80, %p81
      %p84 = scmp.ne.s32.totalorder %s69, %s83
      %p85 = scmp.eq.s32.totalorder %s17, 0
      %p86 = por %p84, %p85
      %s87 = ssub.s32 %s11, %s18
      %p88 = scmp.eq.s32.totalorder %s87, 0
      %s90 = sadd.s32 %s89, 1
      %s91 = scalar_select %p88, %s89, %s90
      %p94 = pneg %p88
      %p95 = scmp.eq.s32.totalorder %s11, 1
      %p96 = por %p94, %p95
      %p97 = scmp.ne.s32.totalorder %s89, %s92
      %p98 = scmp.eq.s32.totalorder %s11, 0
      %p99 = por %p97, %p98
      %p100 = scmp.ne.s32.totalorder %s89, %s92
      %p101 = scmp.eq.s32.totalorder %s16, 1
      %p102 = por %p100, %p101
      %p103 = scmp.ne.s32.totalorder %s92, %s93
      %p104 = scmp.eq.s32.totalorder %s16, 0
      %p105 = por %p103, %p104
      %p106 = scmp.ne.s32.totalorder %s92, %s93
      %p107 = scmp.eq.s32.totalorder %s17, 1
      %p108 = por %p106, %p107
      %p110 = scmp.ne.s32.totalorder %s93, %s109
      %p111 = scmp.eq.s32.totalorder %s17, 0
      %p112 = por %p110, %p111
      %s113 = ssub.s32 %s11, %s18
      %p114 = scmp.eq.s32.totalorder %s113, 0
      %s116 = sadd.s32 %s115, 1
      %s117 = scalar_select %p114, %s115, %s116
      %p120 = pneg %p114
      %p121 = scmp.eq.s32.totalorder %s11, 1
      %p122 = por %p120, %p121
      %p123 = scmp.ne.s32.totalorder %s115, %s118
      %p124 = scmp.eq.s32.totalorder %s11, 0
      %p125 = por %p123, %p124
      %p126 = scmp.ne.s32.totalorder %s115, %s118
      %p127 = scmp.eq.s32.totalorder %s16, 1
      %p128 = por %p126, %p127
      %p129 = scmp.ne.s32.totalorder %s118, %s119
      %p130 = scmp.eq.s32.totalorder %s16, 0
      %p131 = por %p129, %p130
      %p132 = scmp.ne.s32.totalorder %s118, %s119
      %p133 = scmp.eq.s32.totalorder %s17, 1
      %p134 = por %p132, %p133
      %p136 = scmp.ne.s32.totalorder %s119, %s135
      %p137 = scmp.eq.s32.totalorder %s17, 0
      %p138 = por %p136, %p137
      %p139 = scmp.le.s32.totalorder 1, %s11
      %p140 = scmp.lt.s32.totalorder %s11, 3
      %p141 = pnand %p139, %p140
      %p142 = pneg %p141
      // Predicated region
      $region9: #{latent_array_transformer.20} parent=5 // pred_check
        _
      $region10: #{latent_array_transformer.20} parent=5 // pred_check_branch
        %144 = sbr.rel (%p141) target = $region12
      $region11: #{latent_array_transformer.20} parent=5 // pred_region
        %s145 = ssub.s32 %s11, 1
        // Predicated region
        $region13: #{latent_array_transformer.20} parent=11 // pred_check
          %p146 = pneg %p58
        $region14: #{latent_array_transformer.20} parent=11 // pred_check_branch
          %148 = sbr.rel (%p146) target = $region16
        $region15: #{latent_array_transformer.20} parent=11 // pred_region
          %150 = vsyncadd [#allocation3], 0
          %s151 = sshll.u32 %s1, 4
          %s152 = int_to_ptr.hbm [resolvable:$true] %s151
          %s153 = sshll.u32 [#allocation2], 4
          %s154 = int_to_ptr.vmem [resolvable:$true] %s153
          %159 = dma.hbm_to_vmem [thread:$0]  %s152, 512, %s154, [#allocation3], 64, 64, 4
        $region16: #{latent_array_transformer.20} parent=11 // pred_fallthru
          _
        // Predicated region
        $region17: #{latent_array_transformer.20} parent=11 // pred_check
          %p160 = pneg %p79
        $region18: #{latent_array_transformer.20} parent=11 // pred_check_branch
          %162 = sbr.rel (%p160) target = $region20
        $region19: #{latent_array_transformer.20} parent=11 // pred_region
          _
        $region20: #{latent_array_transformer.20} parent=11 // pred_fallthru
          _
      $region12: #{latent_array_transformer.20} parent=5 // pred_fallthru
        _
      %p163 = scmp.lt.s32.totalorder %s11, 2
      // Predicated region
      $region21: #{latent_array_transformer.20} parent=5 // pred_check
        %p164 = pneg %p163
      $region22: #{latent_array_transformer.20} parent=5 // pred_check_branch
        %166 = sbr.rel (%p164) target = $region24
      $region23: #{latent_array_transformer.20} parent=5 // pred_region
        // Predicated region
        $region25: #{latent_array_transformer.20} parent=23 // pred_check
          %p167 = pneg %p31
        $region26: #{latent_array_transformer.20} parent=23 // pred_check_branch
          %169 = sbr.rel (%p167) target = $region28
        $region27: #{latent_array_transformer.20} parent=23 // pred_region
          %p170 = scmp.lt.s32.totalorder %s11, 1
          %s171 = scalar_select %p170, %s11, 1
          %s172 = smul.addr %s171, 2
          %s173 = smul.addr %s172, 4
          %s174 = scalar_lea.vmem %s0, %s173
        $region28: #{latent_array_transformer.20} parent=23 // pred_fallthru
          _
        // Predicated region
        $region29: #{latent_array_transformer.20} parent=23 // pred_check
          %p175 = pneg %p99
        $region30: #{latent_array_transformer.20} parent=23 // pred_check_branch
          %177 = sbr.rel (%p175) target = $region32
        $region31: #{latent_array_transformer.20} parent=23 // pred_region
          %p178 = scmp.lt.s32.totalorder %s11, 1
          %s179 = scalar_select %p178, %s11, 1
          %s180 = smul.addr %s179, 8
          %s181 = scalar_lea.vmem %s3, %s180
        $region32: #{latent_array_transformer.20} parent=23 // pred_fallthru
          _
      $region24: #{latent_array_transformer.20} parent=5 // pred_fallthru
        _
      %p182 = scmp.le.s32.totalorder 1, %s11
      %p183 = scmp.lt.s32.totalorder %s11, 3
      %p184 = pnand %p182, %p183
      %p185 = pneg %p184
      // Predicated region
      $region33: #{latent_array_transformer.20} parent=5 // pred_check
        _
      $region34: #{latent_array_transformer.20} parent=5 // pred_check_branch
        %187 = sbr.rel (%p184) target = $region36
      $region35: #{latent_array_transformer.20} parent=5 // pred_region
        %s188 = ssub.s32 %s11, 1
        // Predicated region
        $region37: #{latent_array_transformer.20} parent=35 // pred_check
          %p189 = pneg %p58
        $region38: #{latent_array_transformer.20} parent=35 // pred_check_branch
          %191 = sbr.rel (%p189) target = $region40
        $region39: #{latent_array_transformer.20} parent=35 // pred_region
          %193 = dma.done [#allocation3], 512
        $region40: #{latent_array_transformer.20} parent=35 // pred_fallthru
          _
        %p194 = scmp.lt.s32.totalorder %s16, 1
        %s195 = scalar_select %p194, %s16, 1
        %s196 = smul.addr %s195, 2
        %s197 = smul.addr %s196, 4
        %s198 = scalar_lea.vmem %s0, %s197
        %p199 = pneg %p37
        %p200 = pneg %p34
        %p201 = pneg %p58
        %p202 = pneg %p55
        %p203 = pneg %p79
        %p204 = pneg %p76
        %p205 = scmp.lt.s32.totalorder %s16, 1
        %s206 = scalar_select %p205, %s16, 1
        %s207 = smul.addr %s206, 8
        %s208 = scalar_lea.vmem %s3, %s207
        %p209 = pneg %p105
        %p210 = pneg %p102
        %p211 = pneg %p131
        %p212 = pneg %p128
        %p213 = scmp.lt.s32.totalorder %s16, 1
        %s214 = scalar_select %p213, %s16, 1
        %s215 = smul.addr %s214, 8
        %s216 = scalar_lea.vmem %s4, %s215
        %p217 = scmp.lt.s32.totalorder %s16, 1
        %s218 = scalar_select %p217, %s16, 1
        %s219 = smul.addr %s218, 2
        %s220 = smul.addr %s219, 4
        %s221 = scalar_lea.vmem %s0, %s220
        %p222 = scmp.lt.s32.totalorder %s16, 1
        %s223 = scalar_select %p222, %s16, 1
        %s224 = smul.addr %s223, 8
        %s225 = scalar_lea.vmem %s3, %s224
        %p226 = scmp.lt.s32.totalorder %s16, 1
        %s227 = scalar_select %p226, %s16, 1
        %s228 = smul.addr %s227, 8
        %s229 = scalar_lea.vmem %s4, %s228
        %v231 = vld [vmem:[%s221] sm:$0xff]
        %v232 = vld [vmem:[#allocation2] sm:$0xf]
        %v233 = vld [vmem:[#allocation2 + $0x4] sm:$0xf]
        %v234 = vld [vmem:[#allocation2 + $0x8] sm:$0xf]
        %v235 = vld [vmem:[#allocation2 + $0xc] sm:$0xf]
        %v236 = vld [vmem:[#allocation2 + $0x10] sm:$0xf]
        %v237 = vld [vmem:[#allocation2 + $0x14] sm:$0xf]
        %v238 = vld [vmem:[#allocation2 + $0x18] sm:$0xf]
        %v239 = vld [vmem:[#allocation2 + $0x1c] sm:$0xf]
        %v240 = vunpack.c.l.bf16 %v231
        %v241 = vmul.f32 %v240, 0.25
        %v242 = vpack.c.bf16 %v241, %v241
        %v244 = vunpack.c.l.b16 %v231
        %v245 = vpack.c.b16 %v244, %v244
        %246 = vrot.lane.b32.xlu0 %v245, 64
        %v247 = vpop.permute.xlu0 %246
        %vm248 = vcmask 130048
        %v250 = vsel %vm248, %v242, 0
        %v253 = vsel %vm248, %v247, 0
        %255 = vmatpush.bf16.xpose.msra.mxu0 0
        %256 = vmatpush.bf16.xpose.msra.mxu0 0
        %257 = vmatpush.bf16.xpose.msra.mxu0 0
        %258 = vmatpush.bf16.xpose.msra.mxu0 0
        %259 = vmatpush.bf16.xpose.msra.mxu0 0
        %260 = vmatpush.bf16.xpose.msra.mxu0 0
        %261 = vmatpush.bf16.xpose.msra.mxu0 0
        %262 = vmatpush.bf16.xpose.msra.mxu0 %v253
        %263 = vmatmul.bf16.gmra.mxu0 %v250
        %v264 = vpop.f32.mrf.mxu0
        %v265 = vadd.f32 0.0, %v264
        %v266 = vpop.f32.mrf.mxu0
        %267 = vdwg.mxu0
        %vm268 = vcmask 64512
        %v269 = vsel %vm268, %v265, -inf
        %270 = vmax.xlane.f32.xlu0 %v269
        %v271 = vpop.xlane.xlu0 %270
        %v272 = vsub.f32 %v265, %v271
        %v273 = vmul.f32 %v272, 1.442695
        %v274 = vpow.pop %v273
        %v275 = vsel %vm268, %v274, 0.0
        %276 = vadd.xlane.f32.xlu0 %v275
        %v277 = vpop.xlane.xlu0 %276
        %v278 = vrcp.pop %v277
        %v279 = vmul.f32 %v274, %v278
        %v280 = vpack.c.bf16 %v279, %v279
        %v281 = vunpack.c.h.b16 %v231
        %v282 = vpack.c.b16 %v281, %v281
        %v284 = vsel %vm268, %v280, 0
        %vm286 = vcmask 1043456
        %v288 = vsel %vm286, %v282, 0
        %290 = vmatpush.bf16.msra.mxu0 0
        %291 = vmatpush.bf16.msra.mxu0 0
        %292 = vmatpush.bf16.msra.mxu0 0
        %293 = vmatpush.bf16.msra.mxu0 0
        %294 = vmatpush.bf16.msra.mxu0 0
        %295 = vmatpush.bf16.msra.mxu0 0
        %296 = vmatpush.bf16.msra.mxu0 0
        %297 = vmatpush.bf16.msra.mxu0 %v288
        %298 = vmatmul.bf16.gmra.mxu0 %v284
        %v299 = vpop.f32.mrf.mxu0
        %v300 = vadd.f32 0.0, %v299
        %v301 = vpop.f32.mrf.mxu0
        %302 = vdwg.mxu0
        %v303 = vpack.c.bf16 %v300, %v300
        %v305 = vunpack.c.l.b16 %v242
        %v306 = vpack.c.b16 %v305, %v305
        %307 = vrot.lane.b32.xlu0 %v306, 112
        %v308 = vpop.permute.xlu0 %307
        %309 = vrot.lane.b32.xlu0 %v245, 48
        %v310 = vpop.permute.xlu0 %309
        %v312 = vsel %vm248, %v308, 0
        %v315 = vsel %vm248, %v310, 0
        %317 = vmatpush.bf16.xpose.msra.mxu0 0
        %318 = vmatpush.bf16.xpose.msra.mxu0 0
        %319 = vmatpush.bf16.xpose.msra.mxu0 0
        %320 = vmatpush.bf16.xpose.msra.mxu0 0
        %321 = vmatpush.bf16.xpose.msra.mxu0 0
        %322 = vmatpush.bf16.xpose.msra.mxu0 0
        %323 = vmatpush.bf16.xpose.msra.mxu0 0
        %324 = vmatpush.bf16.xpose.msra.mxu0 %v315
        %325 = vmatmul.bf16.gmra.mxu0 %v312
        %v326 = vpop.f32.mrf.mxu0
        %v327 = vadd.f32 0.0, %v326
        %v328 = vpop.f32.mrf.mxu0
        %329 = vdwg.mxu0
        %v330 = vsel %vm268, %v327, -inf
        %331 = vmax.xlane.f32.xlu0 %v330
        %v332 = vpop.xlane.xlu0 %331
        %v333 = vsub.f32 %v327, %v332
        %v334 = vmul.f32 %v333, 1.442695
        %v335 = vpow.pop %v334
        %v336 = vsel %vm268, %v335, 0.0
        %337 = vadd.xlane.f32.xlu0 %v336
        %v338 = vpop.xlane.xlu0 %337
        %v339 = vrcp.pop %v338
        %v340 = vmul.f32 %v335, %v339
        %v341 = vpack.c.bf16 %v340, %v340
        %342 = vrot.lane.b32.xlu0 %v282, 112
        %v343 = vpop.permute.xlu0 %342
        %v345 = vsel %vm268, %v341, 0
        %v348 = vsel %vm286, %v343, 0
        %350 = vmatpush.bf16.msra.mxu0 0
        %351 = vmatpush.bf16.msra.mxu0 0
        %352 = vmatpush.bf16.msra.mxu0 0
        %353 = vmatpush.bf16.msra.mxu0 0
        %354 = vmatpush.bf16.msra.mxu0 0
        %355 = vmatpush.bf16.msra.mxu0 0
        %356 = vmatpush.bf16.msra.mxu0 0
        %357 = vmatpush.bf16.msra.mxu0 %v348
        %358 = vmatmul.bf16.gmra.mxu0 %v345
        %v359 = vpop.f32.mrf.mxu0
        %v360 = vadd.f32 0.0, %v359
        %v361 = vpop.f32.mrf.mxu0
        %362 = vdwg.mxu0
        %v363 = vpack.c.bf16 %v360, %v360
        %v366 = vunpack.c.l.b16 %v234
        %v367 = vunpack.c.l.b16 %v235
        %v368 = vpack.c.b16 %v367, %v366
        %v371 = vsel %vm248, %v363, 0
        %373 = vmatpush.bf16.msra.mxu0 0
        %374 = vmatpush.bf16.msra.mxu0 0
        %375 = vmatpush.bf16.msra.mxu0 0
        %376 = vmatpush.bf16.msra.mxu0 0
        %377 = vmatpush.bf16.msra.mxu0 0
        %378 = vmatpush.bf16.msra.mxu0 0
        %379 = vmatpush.bf16.msra.mxu0 0
        %380 = vmatpush.bf16.msra.mxu0 %v368
        %381 = vmatmul.bf16.gmra.mxu0 %v371
        %v382 = vpop.f32.mrf.mxu0
        %v383 = vadd.f32 0.0, %v382
        %v384 = vpop.f32.mrf.mxu0
        %385 = vdwg.mxu0
        %v388 = vunpack.c.l.b16 %v232
        %v389 = vunpack.c.l.b16 %v233
        %v390 = vpack.c.b16 %v389, %v388
        %v393 = vsel %vm248, %v303, 0
        %395 = vmatpush.bf16.msra.mxu0 0
        %396 = vmatpush.bf16.msra.mxu0 0
        %397 = vmatpush.bf16.msra.mxu0 0
        %398 = vmatpush.bf16.msra.mxu0 0
        %399 = vmatpush.bf16.msra.mxu0 0
        %400 = vmatpush.bf16.msra.mxu0 0
        %401 = vmatpush.bf16.msra.mxu0 0
        %402 = vmatpush.bf16.msra.mxu0 %v390
        %403 = vmatmul.bf16.gmra.mxu0 %v393
        %v404 = vpop.f32.mrf.mxu0
        %v405 = vadd.f32 %v383, %v404
        %v406 = vpop.f32.mrf.mxu0
        %407 = vdwg.mxu0
        %408 = vrot.lane.b32.xlu0 %v306, 96
        %v409 = vpop.permute.xlu0 %408
        %410 = vrot.lane.b32.xlu0 %v245, 32
        %v411 = vpop.permute.xlu0 %410
        %v413 = vsel %vm248, %v409, 0
        %v416 = vsel %vm248, %v411, 0
        %418 = vmatpush.bf16.xpose.msra.mxu0 0
        %419 = vmatpush.bf16.xpose.msra.mxu0 0
        %420 = vmatpush.bf16.xpose.msra.mxu0 0
        %421 = vmatpush.bf16.xpose.msra.mxu0 0
        %422 = vmatpush.bf16.xpose.msra.mxu0 0
        %423 = vmatpush.bf16.xpose.msra.mxu0 0
        %424 = vmatpush.bf16.xpose.msra.mxu0 0
        %425 = vmatpush.bf16.xpose.msra.mxu0 %v416
        %426 = vmatmul.bf16.gmra.mxu0 %v413
        %v427 = vpop.f32.mrf.mxu0
        %v428 = vadd.f32 0.0, %v427
        %v429 = vpop.f32.mrf.mxu0
        %430 = vdwg.mxu0
        %v431 = vsel %vm268, %v428, -inf
        %432 = vmax.xlane.f32.xlu0 %v431
        %v433 = vpop.xlane.xlu0 %432
        %v434 = vsub.f32 %v428, %v433
        %v435 = vmul.f32 %v434, 1.442695
        %v436 = vpow.pop %v435
        %v437 = vsel %vm268, %v436, 0.0
        %438 = vadd.xlane.f32.xlu0 %v437
        %v439 = vpop.xlane.xlu0 %438
        %v440 = vrcp.pop %v439
        %v441 = vmul.f32 %v436, %v440
        %v442 = vpack.c.bf16 %v441, %v441
        %443 = vrot.lane.b32.xlu0 %v282, 96
        %v444 = vpop.permute.xlu0 %443
        %v446 = vsel %vm268, %v442, 0
        %v449 = vsel %vm286, %v444, 0
        %451 = vmatpush.bf16.msra.mxu0 0
        %452 = vmatpush.bf16.msra.mxu0 0
        %453 = vmatpush.bf16.msra.mxu0 0
        %454 = vmatpush.bf16.msra.mxu0 0
        %455 = vmatpush.bf16.msra.mxu0 0
        %456 = vmatpush.bf16.msra.mxu0 0
        %457 = vmatpush.bf16.msra.mxu0 0
        %458 = vmatpush.bf16.msra.mxu0 %v449
        %459 = vmatmul.bf16.gmra.mxu0 %v446
        %v460 = vpop.f32.mrf.mxu0
        %v461 = vadd.f32 0.0, %v460
        %v462 = vpop.f32.mrf.mxu0
        %463 = vdwg.mxu0
        %v464 = vpack.c.bf16 %v461, %v461
        %v467 = vunpack.c.l.b16 %v236
        %v468 = vunpack.c.l.b16 %v237
        %v469 = vpack.c.b16 %v468, %v467
        %v472 = vsel %vm248, %v464, 0
        %474 = vmatpush.bf16.msra.mxu0 0
        %475 = vmatpush.bf16.msra.mxu0 0
        %476 = vmatpush.bf16.msra.mxu0 0
        %477 = vmatpush.bf16.msra.mxu0 0
        %478 = vmatpush.bf16.msra.mxu0 0
        %479 = vmatpush.bf16.msra.mxu0 0
        %480 = vmatpush.bf16.msra.mxu0 0
        %481 = vmatpush.bf16.msra.mxu0 %v469
        %482 = vmatmul.bf16.gmra.mxu0 %v472
        %v483 = vpop.f32.mrf.mxu0
        %v484 = vadd.f32 0.0, %v483
        %v485 = vpop.f32.mrf.mxu0
        %486 = vdwg.mxu0
        %v487 = vadd.f32 %v405, %v484
        %488 = vrot.lane.b32.xlu0 %v306, 80
        %v489 = vpop.permute.xlu0 %488
        %490 = vrot.lane.b32.xlu0 %v245, 16
        %v491 = vpop.permute.xlu0 %490
        %v493 = vsel %vm248, %v489, 0
        %v496 = vsel %vm248, %v491, 0
        %498 = vmatpush.bf16.xpose.msra.mxu0 0
        %499 = vmatpush.bf16.xpose.msra.mxu0 0
        %500 = vmatpush.bf16.xpose.msra.mxu0 0
        %501 = vmatpush.bf16.xpose.msra.mxu0 0
        %502 = vmatpush.bf16.xpose.msra.mxu0 0
        %503 = vmatpush.bf16.xpose.msra.mxu0 0
        %504 = vmatpush.bf16.xpose.msra.mxu0 0
        %505 = vmatpush.bf16.xpose.msra.mxu0 %v496
        %506 = vmatmul.bf16.gmra.mxu0 %v493
        %v507 = vpop.f32.mrf.mxu0
        %v508 = vadd.f32 0.0, %v507
        %v509 = vpop.f32.mrf.mxu0
        %510 = vdwg.mxu0
        %v511 = vsel %vm268, %v508, -inf
        %512 = vmax.xlane.f32.xlu0 %v511
        %v513 = vpop.xlane.xlu0 %512
        %v514 = vsub.f32 %v508, %v513
        %v515 = vmul.f32 %v514, 1.442695
        %v516 = vpow.pop %v515
        %v517 = vsel %vm268, %v516, 0.0
        %518 = vadd.xlane.f32.xlu0 %v517
        %v519 = vpop.xlane.xlu0 %518
        %v520 = vrcp.pop %v519
        %v521 = vmul.f32 %v516, %v520
        %v522 = vpack.c.bf16 %v521, %v521
        %523 = vrot.lane.b32.xlu0 %v282, 80
        %v524 = vpop.permute.xlu0 %523
        %v526 = vsel %vm268, %v522, 0
        %v529 = vsel %vm286, %v524, 0
        %531 = vmatpush.bf16.msra.mxu0 0
        %532 = vmatpush.bf16.msra.mxu0 0
        %533 = vmatpush.bf16.msra.mxu0 0
        %534 = vmatpush.bf16.msra.mxu0 0
        %535 = vmatpush.bf16.msra.mxu0 0
        %536 = vmatpush.bf16.msra.mxu0 0
        %537 = vmatpush.bf16.msra.mxu0 0
        %538 = vmatpush.bf16.msra.mxu0 %v529
        %539 = vmatmul.bf16.gmra.mxu0 %v526
        %v540 = vpop.f32.mrf.mxu0
        %v541 = vadd.f32 0.0, %v540
        %v542 = vpop.f32.mrf.mxu0
        %543 = vdwg.mxu0
        %v544 = vpack.c.bf16 %v541, %v541
        %v547 = vunpack.c.l.b16 %v238
        %v548 = vunpack.c.l.b16 %v239
        %v549 = vpack.c.b16 %v548, %v547
        %v552 = vsel %vm248, %v544, 0
        %554 = vmatpush.bf16.msra.mxu0 0
        %555 = vmatpush.bf16.msra.mxu0 0
        %556 = vmatpush.bf16.msra.mxu0 0
        %557 = vmatpush.bf16.msra.mxu0 0
        %558 = vmatpush.bf16.msra.mxu0 0
        %559 = vmatpush.bf16.msra.mxu0 0
        %560 = vmatpush.bf16.msra.mxu0 0
        %561 = vmatpush.bf16.msra.mxu0 %v549
        %562 = vmatmul.bf16.gmra.mxu0 %v552
        %v563 = vpop.f32.mrf.mxu0
        %v564 = vadd.f32 0.0, %v563
        %v565 = vpop.f32.mrf.mxu0
        %566 = vdwg.mxu0
        %v567 = vadd.f32 %v487, %v564
        %v568 = vld [vmem:[%s2] sm:$0x1]
        %v570 = vperm.slane %v568, 0
        %v572 = vadd.f32 %v567, %v570
        %v573 = vld [vmem:[%s225] sm:$0xff]
        %v574 = vadd.f32 %v572, %v573
        %vm575 = vcmask 523264
        %576 = vst.msk [vmem:[%s229] sm:$0xff] %vm575, %v574
        %p577 = scmp.lt.s32.totalorder %s16, 1
        %s578 = scalar_select %p577, %s16, 1
        %s579 = smul.addr %s578, 8
        %s580 = scalar_lea.vmem %s4, %s579
        // Predicated region
        $region41: #{latent_array_transformer.20} parent=35 // pred_check
          %p581 = pneg %p128
        $region42: #{latent_array_transformer.20} parent=35 // pred_check_branch
          %583 = sbr.rel (%p581) target = $region44
        $region43: #{latent_array_transformer.20} parent=35 // pred_region
          _
        $region44: #{latent_array_transformer.20} parent=35 // pred_fallthru
          _
      $region36: #{latent_array_transformer.20} parent=5 // pred_fallthru
        _
      %p584 = scmp.le.s32.totalorder 2, %s11
      // Predicated region
      $region45: #{latent_array_transformer.20} parent=5 // pred_check
        %p585 = pneg %p584
      $region46: #{latent_array_transformer.20} parent=5 // pred_check_branch
        %587 = sbr.rel (%p585) target = $region48
      $region47: #{latent_array_transformer.20} parent=5 // pred_region
        %s588 = ssub.s32 %s11, 2
        // Predicated region
        $region49: #{latent_array_transformer.20} parent=47 // pred_check
          %p589 = pneg %p134
        $region50: #{latent_array_transformer.20} parent=47 // pred_check_branch
          %591 = sbr.rel (%p589) target = $region52
        $region51: #{latent_array_transformer.20} parent=47 // pred_region
          %p592 = scmp.lt.s32.totalorder %s17, 1
          %s593 = scalar_select %p592, %s17, 1
          %s594 = smul.addr %s593, 8
          %s595 = scalar_lea.vmem %s4, %s594
        $region52: #{latent_array_transformer.20} parent=47 // pred_fallthru
          _
      $region48: #{latent_array_transformer.20} parent=5 // pred_fallthru
        _
    $region6: #{latent_array_transformer.20} parent=1 // loop_footer
      %s15 = sadd.s32 1, %s11
    $region7: #{latent_array_transformer.20} parent=1 // loop_footer_branch
      %10 = sbr.rel target = $region3
    $region8: #{latent_array_transformer.20} parent=1 // loop_exit
      _
    %596 = vsyncpa [#allocation3], 1
    %s597 = scalar_lea.sflag [#allocation3], 1
    %598 = vsyncpa %s597, 1

// kernel: latent_array_transformer.23
$region0: #{latent_array_transformer.23}
  #allocation0 [shape = 'u32[]', space=smem, size = 0x4, offset = 0x4, fixed_abs, tag = 'smem constant byte address 0x4 - core index']
  #allocation1 [shape = 'u32[72,128]{1,0:T(1,128)}', space=vmem, size = 0x9000, scoped, tag = 'internal scratch']
  %s0 = inlined_call_operand.vmem [shape: bf16[2,8,64], index: 0, kind: input, shape index: {}]
  %s1 = inlined_call_operand.vmem [shape: bf16[2,6,128], index: 1, kind: input, shape index: {}]
  %s2 = inlined_call_operand.hbm [shape: bf16[64,64], index: 2, kind: input, shape index: {}]
  %s3 = inlined_call_operand.hbm [shape: f32[1,64], index: 3, kind: input, shape index: {}]
  %s4 = inlined_call_operand.vmem [shape: f32[2,8,64], index: 4, kind: input, shape index: {}]
  %s5 = inlined_call_operand.vmem [shape: f32[2,8,64], index: 5, kind: output, shape index: {}]
  %s6 = sld [smem:[#allocation0]]
  $region61: #{latent_array_transformer.23} parent=0
    _
  %s8 = ssub.s32 1, %s6
  %s9 = scalar_select 0, %s8, %s6
  $region1: #{latent_array_transformer.23} parent=0
    #allocation2 [shape = 'u8[16384]{0}', space=vmem, size = 0x4000, scoped, tag = 'input window, operand 2, single buffered']
    #allocation3 [shape = 's32[2]{0}', space=sflag, size = 0x8, scoped, tag = 'scoped memory for latent_array_transformer.23']
    #allocation4 [shape = 'u8[512]{0}', space=vmem, size = 0x400, scoped, tag = 'input window, operand 3, single buffered']
    #allocation5 [shape = 's32[1]{0}', space=sflag, size = 0x4, scoped, tag = 'scoped memory for latent_array_transformer.23']
    %10 = vsyncpa [#allocation3], 0
    %11 = vsyncpa [#allocation5], 0
    loop: start=0, step=1, limit=4
    $region2: #{latent_array_transformer.23} parent=1 // loop_pre_header
      _
    $region3: #{latent_array_transformer.23} parent=1 // loop_header
      %s13 = sphi 0, %s17
      %p14 = scmp.ge.s32.totalorder %s13, 4
      %s23 = sphi 0, %s25
      %s26 = sphi 0, %s23
      %s27 = sphi 0, %s26
      %s43 = sphi 0, %s27
      %s49 = sphi 0, %s51
      %s52 = sphi 0, %s49
      %s53 = sphi 0, %s52
      %s69 = sphi 0, %s53
      %s73 = sphi 0, %s73
      %s75 = sphi 0, %s73
      %s76 = sphi 0, %s75
      %s90 = sphi 0, %s76
      %s94 = sphi 0, %s94
      %s96 = sphi 0, %s94
      %s97 = sphi 0, %s96
      %s111 = sphi 0, %s97
      %s117 = sphi 0, %s119
      %s120 = sphi 0, %s117
      %s121 = sphi 0, %s120
      %s137 = sphi 0, %s121
      %s143 = sphi 0, %s145
      %s146 = sphi 0, %s143
      %s147 = sphi 0, %s146
      %s163 = sphi 0, %s147
    $region4: #{latent_array_transformer.23} parent=1 // loop_header_branch
      %16 = sbr.rel (%p14) target = $region8
    $region5: #{latent_array_transformer.23} parent=1 // loop_body
      %s18 = ssub.s32 %s13, 1
      %s19 = ssub.s32 %s13, 2
      %s20 = sadd.s32 %s13, 1
      %s21 = ssub.s32 %s13, %s20
      %p22 = scmp.eq.s32.totalorder %s21, 0
      %s24 = sadd.s32 %s23, 1
      %s25 = scalar_select %p22, %s23, %s24
      %p28 = pneg %p22
      %p29 = scmp.eq.s32.totalorder %s13, 1
      %p30 = por %p28, %p29
      %p31 = scmp.ne.s32.totalorder %s23, %s26
      %p32 = scmp.eq.s32.totalorder %s13, 0
      %p33 = por %p31, %p32
      %p34 = scmp.ne.s32.totalorder %s23, %s26
      %p35 = scmp.eq.s32.totalorder %s18, 1
      %p36 = por %p34, %p35
      %p37 = scmp.ne.s32.totalorder %s26, %s27
      %p38 = scmp.eq.s32.totalorder %s18, 0
      %p39 = por %p37, %p38
      %p40 = scmp.ne.s32.totalorder %s26, %s27
      %p41 = scmp.eq.s32.totalorder %s19, 1
      %p42 = por %p40, %p41
      %p44 = scmp.ne.s32.totalorder %s27, %s43
      %p45 = scmp.eq.s32.totalorder %s19, 0
      %p46 = por %p44, %p45
      %s47 = ssub.s32 %s13, %s20
      %p48 = scmp.eq.s32.totalorder %s47, 0
      %s50 = sadd.s32 %s49, 1
      %s51 = scalar_select %p48, %s49, %s50
      %p54 = pneg %p48
      %p55 = scmp.eq.s32.totalorder %s13, 1
      %p56 = por %p54, %p55
      %p57 = scmp.ne.s32.totalorder %s49, %s52
      %p58 = scmp.eq.s32.totalorder %s13, 0
      %p59 = por %p57, %p58
      %p60 = scmp.ne.s32.totalorder %s49, %s52
      %p61 = scmp.eq.s32.totalorder %s18, 1
      %p62 = por %p60, %p61
      %p63 = scmp.ne.s32.totalorder %s52, %s53
      %p64 = scmp.eq.s32.totalorder %s18, 0
      %p65 = por %p63, %p64
      %p66 = scmp.ne.s32.totalorder %s52, %s53
      %p67 = scmp.eq.s32.totalorder %s19, 1
      %p68 = por %p66, %p67
      %p70 = scmp.ne.s32.totalorder %s53, %s69
      %p71 = scmp.eq.s32.totalorder %s19, 0
      %p72 = por %p70, %p71
      %s74 = sadd.s32 %s73, 1
      %p77 = scmp.eq.s32.totalorder %s13, 1
      %p78 = scmp.ne.s32.totalorder %s73, %s75
      %p79 = scmp.eq.s32.totalorder %s13, 0
      %p80 = por %p78, %p79
      %p81 = scmp.ne.s32.totalorder %s73, %s75
      %p82 = scmp.eq.s32.totalorder %s18, 1
      %p83 = por %p81, %p82
      %p84 = scmp.ne.s32.totalorder %s75, %s76
      %p85 = scmp.eq.s32.totalorder %s18, 0
      %p86 = por %p84, %p85
      %p87 = scmp.ne.s32.totalorder %s75, %s76
      %p88 = scmp.eq.s32.totalorder %s19, 1
      %p89 = por %p87, %p88
      %p91 = scmp.ne.s32.totalorder %s76, %s90
      %p92 = scmp.eq.s32.totalorder %s19, 0
      %p93 = por %p91, %p92
      %s95 = sadd.s32 %s94, 1
      %p98 = scmp.eq.s32.totalorder %s13, 1
      %p99 = scmp.ne.s32.totalorder %s94, %s96
      %p100 = scmp.eq.s32.totalorder %s13, 0
      %p101 = por %p99, %p100
      %p102 = scmp.ne.s32.totalorder %s94, %s96
      %p103 = scmp.eq.s32.totalorder %s18, 1
      %p104 = por %p102, %p103
      %p105 = scmp.ne.s32.totalorder %s96, %s97
      %p106 = scmp.eq.s32.totalorder %s18, 0
      %p107 = por %p105, %p106
      %p108 = scmp.ne.s32.totalorder %s96, %s97
      %p109 = scmp.eq.s32.totalorder %s19, 1
      %p110 = por %p108, %p109
      %p112 = scmp.ne.s32.totalorder %s97, %s111
      %p113 = scmp.eq.s32.totalorder %s19, 0
      %p114 = por %p112, %p113
      %s115 = ssub.s32 %s13, %s20
      %p116 = scmp.eq.s32.totalorder %s115, 0
      %s118 = sadd.s32 %s117, 1
      %s119 = scalar_select %p116, %s117, %s118
      %p122 = pneg %p116
      %p123 = scmp.eq.s32.totalorder %s13, 1
      %p124 = por %p122, %p123
      %p125 = scmp.ne.s32.totalorder %s117, %s120
      %p126 = scmp.eq.s32.totalorder %s13, 0
      %p127 = por %p125, %p126
      %p128 = scmp.ne.s32.totalorder %s117, %s120
      %p129 = scmp.eq.s32.totalorder %s18, 1
      %p130 = por %p128, %p129
      %p131 = scmp.ne.s32.totalorder %s120, %s121
      %p132 = scmp.eq.s32.totalorder %s18, 0
      %p133 = por %p131, %p132
      %p134 = scmp.ne.s32.totalorder %s120, %s121
      %p135 = scmp.eq.s32.totalorder %s19, 1
      %p136 = por %p134, %p135
      %p138 = scmp.ne.s32.totalorder %s121, %s137
      %p139 = scmp.eq.s32.totalorder %s19, 0
      %p140 = por %p138, %p139
      %s141 = ssub.s32 %s13, %s20
      %p142 = scmp.eq.s32.totalorder %s141, 0
      %s144 = sadd.s32 %s143, 1
      %s145 = scalar_select %p142, %s143, %s144
      %p148 = pneg %p142
      %p149 = scmp.eq.s32.totalorder %s13, 1
      %p150 = por %p148, %p149
      %p151 = scmp.ne.s32.totalorder %s143, %s146
      %p152 = scmp.eq.s32.totalorder %s13, 0
      %p153 = por %p151, %p152
      %p154 = scmp.ne.s32.totalorder %s143, %s146
      %p155 = scmp.eq.s32.totalorder %s18, 1
      %p156 = por %p154, %p155
      %p157 = scmp.ne.s32.totalorder %s146, %s147
      %p158 = scmp.eq.s32.totalorder %s18, 0
      %p159 = por %p157, %p158
      %p160 = scmp.ne.s32.totalorder %s146, %s147
      %p161 = scmp.eq.s32.totalorder %s19, 1
      %p162 = por %p160, %p161
      %p164 = scmp.ne.s32.totalorder %s147, %s163
      %p165 = scmp.eq.s32.totalorder %s19, 0
      %p166 = por %p164, %p165
      %p167 = scmp.le.s32.totalorder 1, %s13
      %p168 = scmp.lt.s32.totalorder %s13, 3
      %p169 = pnand %p167, %p168
      %p170 = pneg %p169
      // Predicated region
      $region9: #{latent_array_transformer.23} parent=5 // pred_check
        _
      $region10: #{latent_array_transformer.23} parent=5 // pred_check_branch
        %172 = sbr.rel (%p169) target = $region12
      $region11: #{latent_array_transformer.23} parent=5 // pred_region
        %s173 = ssub.s32 %s13, 1
        // Predicated region
        $region13: #{latent_array_transformer.23} parent=11 // pred_check
          %p174 = pneg %p86
        $region14: #{latent_array_transformer.23} parent=11 // pred_check_branch
          %176 = sbr.rel (%p174) target = $region16
        $region15: #{latent_array_transformer.23} parent=11 // pred_region
          %178 = vsyncadd [#allocation3], 0
          %s179 = sshll.u32 %s2, 4
          %s180 = int_to_ptr.hbm [resolvable:$true] %s179
          %s181 = sshll.u32 [#allocation2], 4
          %s182 = int_to_ptr.vmem [resolvable:$true] %s181
          %187 = dma.hbm_to_vmem [thread:$0]  %s180, 512, %s182, [#allocation3], 64, 64, 4
        $region16: #{latent_array_transformer.23} parent=11 // pred_fallthru
          _
        // Predicated region
        $region17: #{latent_array_transformer.23} parent=11 // pred_check
          %p188 = pneg %p107
        $region18: #{latent_array_transformer.23} parent=11 // pred_check_branch
          %190 = sbr.rel (%p188) target = $region20
        $region19: #{latent_array_transformer.23} parent=11 // pred_region
          %192 = vsyncadd [#allocation5], 0
          %s194 = sshll.u32 %s3, 4
          %s195 = int_to_ptr.hbm [resolvable:$true] %s194
          %s196 = sshll.u32 [#allocation4], 4
          %s197 = int_to_ptr.vmem [resolvable:$true] %s196
          %199 = dma.hbm_to_vmem [thread:$0]  %s195, 16, %s197, [#allocation5]
        $region20: #{latent_array_transformer.23} parent=11 // pred_fallthru
          _
      $region12: #{latent_array_transformer.23} parent=5 // pred_fallthru
        _
      %p200 = scmp.lt.s32.totalorder %s13, 2
      // Predicated region
      $region21: #{latent_array_transformer.23} parent=5 // pred_check
        %p201 = pneg %p200
      $region22: #{latent_array_transformer.23} parent=5 // pred_check_branch
        %203 = sbr.rel (%p201) target = $region24
      $region23: #{latent_array_transformer.23} parent=5 // pred_region
        // Predicated region
        $region25: #{latent_array_transformer.23} parent=23 // pred_check
          %p204 = pneg %p33
        $region26: #{latent_array_transformer.23} parent=23 // pred_check_branch
          %206 = sbr.rel (%p204) target = $region28
        $region27: #{latent_array_transformer.23} parent=23 // pred_region
          %p207 = scmp.lt.s32.totalorder %s13, 1
          %s208 = scalar_select %p207, %s13, 1
          %s209 = smul.addr %s208, 4
          %s210 = scalar_lea.vmem %s0, %s209
        $region28: #{latent_array_transformer.23} parent=23 // pred_fallthru
          _
        // Predicated region
        $region29: #{latent_array_transformer.23} parent=23 // pred_check
          %p211 = pneg %p59
        $region30: #{latent_array_transformer.23} parent=23 // pred_check_branch
          %213 = sbr.rel (%p211) target = $region32
        $region31: #{latent_array_transformer.23} parent=23 // pred_region
          %p214 = scmp.lt.s32.totalorder %s13, 1
          %s215 = scalar_select %p214, %s13, 1
          %s216 = smul.addr %s215, 4
          %s217 = scalar_lea.vmem %s1, %s216
        $region32: #{latent_array_transformer.23} parent=23 // pred_fallthru
          _
        // Predicated region
        $region33: #{latent_array_transformer.23} parent=23 // pred_check
          %p218 = pneg %p127
        $region34: #{latent_array_transformer.23} parent=23 // pred_check_branch
          %220 = sbr.rel (%p218) target = $region36
        $region35: #{latent_array_transformer.23} parent=23 // pred_region
          %p221 = scmp.lt.s32.totalorder %s13, 1
          %s222 = scalar_select %p221, %s13, 1
          %s223 = smul.addr %s222, 8
          %s224 = scalar_lea.vmem %s4, %s223
        $region36: #{latent_array_transformer.23} parent=23 // pred_fallthru
          _
      $region24: #{latent_array_transformer.23} parent=5 // pred_fallthru
        _
      %p225 = scmp.le.s32.totalorder 1, %s13
      %p226 = scmp.lt.s32.totalorder %s13, 3
      %p227 = pnand %p225, %p226
      %p228 = pneg %p227
      // Predicated region
      $region37: #{latent_array_transformer.23} parent=5 // pred_check
        _
      $region38: #{latent_array_transformer.23} parent=5 // pred_check_branch
        %230 = sbr.rel (%p227) target = $region40
      $region39: #{latent_array_transformer.23} parent=5 // pred_region
        %s231 = ssub.s32 %s13, 1
        // Predicated region
        $region41: #{latent_array_transformer.23} parent=39 // pred_check
          %p232 = pneg %p86
        $region42: #{latent_array_transformer.23} parent=39 // pred_check_branch
          %234 = sbr.rel (%p232) target = $region44
        $region43: #{latent_array_transformer.23} parent=39 // pred_region
          %236 = dma.done [#allocation3], 512
        $region44: #{latent_array_transformer.23} parent=39 // pred_fallthru
          _
        // Predicated region
        $region45: #{latent_array_transformer.23} parent=39 // pred_check
          %p237 = pneg %p107
        $region46: #{latent_array_transformer.23} parent=39 // pred_check_branch
          %239 = sbr.rel (%p237) target = $region48
        $region47: #{latent_array_transformer.23} parent=39 // pred_region
          %241 = dma.done [#allocation5], 16
        $region48: #{latent_array_transformer.23} parent=39 // pred_fallthru
          _
        %p242 = scmp.lt.s32.totalorder %s18, 1
        %s243 = scalar_select %p242, %s18, 1
        %s244 = smul.addr %s243, 4
        %s245 = scalar_lea.vmem %s0, %s244
        %p246 = pneg %p39
        %p247 = pneg %p36
        %p248 = scmp.lt.s32.totalorder %s18, 1
        %s249 = scalar_select %p248, %s18, 1
        %s250 = smul.addr %s249, 4
        %s251 = scalar_lea.vmem %s1, %s250
        %p252 = pneg %p65
        %p253 = pneg %p62
        %p254 = pneg %p86
        %p255 = pneg %p83
        %p256 = pneg %p107
        %p257 = pneg %p104
        %p258 = scmp.lt.s32.totalorder %s18, 1
        %s259 = scalar_select %p258, %s18, 1
        %s260 = smul.addr %s259, 8
        %s261 = scalar_lea.vmem %s4, %s260
        %p262 = pneg %p133
        %p263 = pneg %p130
        %p264 = pneg %p159
        %p265 = pneg %p156
        %p266 = scmp.lt.s32.totalorder %s18, 1
        %s267 = scalar_select %p266, %s18, 1
        %s268 = smul.addr %s267, 8
        %s269 = scalar_lea.vmem %s5, %s268
        %p270 = scmp.lt.s32.totalorder %s18, 1
        %s271 = scalar_select %p270, %s18, 1
        %s272 = smul.addr %s271, 4
        %s273 = scalar_lea.vmem %s0, %s272
        %p274 = scmp.lt.s32.totalorder %s18, 1
        %s275 = scalar_select %p274, %s18, 1
        %s276 = smul.addr %s275, 4
        %s277 = scalar_lea.vmem %s1, %s276
        %p278 = scmp.lt.s32.totalorder %s18, 1
        %s279 = scalar_select %p278, %s18, 1
        %s280 = smul.addr %s279, 8
        %s281 = scalar_lea.vmem %s4, %s280
        %p282 = scmp.lt.s32.totalorder %s18, 1
        %s283 = scalar_select %p282, %s18, 1
        %s284 = smul.addr %s283, 8
        %s285 = scalar_lea.vmem %s5, %s284
        %v287 = vld [vmem:[%s277] sm:$0x7]
        %v288 = vld [vmem:[#allocation2] sm:$0xf]
        %v289 = vld [vmem:[#allocation2 + $0x4] sm:$0xf]
        %v290 = vld [vmem:[#allocation2 + $0x8] sm:$0xf]
        %v291 = vld [vmem:[#allocation2 + $0xc] sm:$0xf]
        %v292 = vld [vmem:[#allocation2 + $0x10] sm:$0xf]
        %v293 = vld [vmem:[#allocation2 + $0x14] sm:$0xf]
        %v294 = vld [vmem:[#allocation2 + $0x18] sm:$0xf]
        %v295 = vld [vmem:[#allocation2 + $0x1c] sm:$0xf]
        %v296 = vld [vmem:[%s273] sm:$0xf]
        %v297 = vunpack.c.l.bf16 %v296
        %v298 = vmul.f32 %v297, 0.25
        %v299 = vpack.c.bf16 %v298, %v298
        %vm300 = vcmask 130048
        %v302 = vsel %vm300, %v299, 0
        %v305 = vsel %vm300, %v287, 0
        %307 = vmatpush.bf16.xpose.msra.mxu0 0
        %308 = vmatpush.bf16.xpose.msra.mxu0 0
        %309 = vmatpush.bf16.xpose.msra.mxu0 0
        %310 = vmatpush.bf16.xpose.msra.mxu0 0
        %311 = vmatpush.bf16.xpose.msra.mxu0 0
        %312 = vmatpush.bf16.xpose.msra.mxu0 0
        %313 = vmatpush.bf16.xpose.msra.mxu0 0
        %314 = vmatpush.bf16.xpose.msra.mxu0 %v305
        %315 = vmatmul.bf16.gmra.mxu0 %v302
        %v316 = vpop.f32.mrf.mxu0
        %v317 = vadd.f32 0.0, %v316
        %v318 = vpop.f32.mrf.mxu0
        %319 = vdwg.mxu0
        %vm320 = vcmask 48128
        %v321 = vsel %vm320, %v317, -inf
        %322 = vmax.xlane.f32.xlu0 %v321
        %v323 = vpop.xlane.xlu0 %322
        %v324 = vsub.f32 %v317, %v323
        %v325 = vmul.f32 %v324, 1.442695
        %v326 = vpow.pop %v325
        %v327 = vsel %vm320, %v326, 0.0
        %328 = vadd.xlane.f32.xlu0 %v327
        %v329 = vpop.xlane.xlu0 %328
        %v330 = vrcp.pop %v329
        %v331 = vmul.f32 %v326, %v330
        %v332 = vpack.c.bf16 %v331, %v331
        %v334 = vunpack.c.l.b16 %v287
        %v335 = vpack.c.b16 %v334, %v334
        %336 = vrot.lane.b32.xlu0 %v335, 64
        %v337 = vpop.permute.xlu0 %336
        %v339 = vsel %vm320, %v332, 0
        %vm341 = vcmask 1042432
        %v343 = vsel %vm341, %v337, 0
        %345 = vmatpush.bf16.msra.mxu0 0
        %346 = vmatpush.bf16.msra.mxu0 0
        %347 = vmatpush.bf16.msra.mxu0 0
        %348 = vmatpush.bf16.msra.mxu0 0
        %349 = vmatpush.bf16.msra.mxu0 0
        %350 = vmatpush.bf16.msra.mxu0 0
        %351 = vmatpush.bf16.msra.mxu0 0
        %352 = vmatpush.bf16.msra.mxu0 %v343
        %353 = vmatmul.bf16.gmra.mxu0 %v339
        %v354 = vpop.f32.mrf.mxu0
        %v355 = vadd.f32 0.0, %v354
        %v356 = vpop.f32.mrf.mxu0
        %357 = vdwg.mxu0
        %v358 = vpack.c.bf16 %v355, %v355
        %v360 = vunpack.c.l.b16 %v299
        %v361 = vpack.c.b16 %v360, %v360
        %362 = vrot.lane.b32.xlu0 %v361, 112
        %v363 = vpop.permute.xlu0 %362
        %364 = vrot.lane.b32.xlu0 %v335, 112
        %v365 = vpop.permute.xlu0 %364
        %v367 = vsel %vm300, %v363, 0
        %v370 = vsel %vm300, %v365, 0
        %372 = vmatpush.bf16.xpose.msra.mxu0 0
        %373 = vmatpush.bf16.xpose.msra.mxu0 0
        %374 = vmatpush.bf16.xpose.msra.mxu0 0
        %375 = vmatpush.bf16.xpose.msra.mxu0 0
        %376 = vmatpush.bf16.xpose.msra.mxu0 0
        %377 = vmatpush.bf16.xpose.msra.mxu0 0
        %378 = vmatpush.bf16.xpose.msra.mxu0 0
        %379 = vmatpush.bf16.xpose.msra.mxu0 %v370
        %380 = vmatmul.bf16.gmra.mxu0 %v367
        %v381 = vpop.f32.mrf.mxu0
        %v382 = vadd.f32 0.0, %v381
        %v383 = vpop.f32.mrf.mxu0
        %384 = vdwg.mxu0
        %v385 = vsel %vm320, %v382, -inf
        %386 = vmax.xlane.f32.xlu0 %v385
        %v387 = vpop.xlane.xlu0 %386
        %v388 = vsub.f32 %v382, %v387
        %v389 = vmul.f32 %v388, 1.442695
        %v390 = vpow.pop %v389
        %v391 = vsel %vm320, %v390, 0.0
        %392 = vadd.xlane.f32.xlu0 %v391
        %v393 = vpop.xlane.xlu0 %392
        %v394 = vrcp.pop %v393
        %v395 = vmul.f32 %v390, %v394
        %v396 = vpack.c.bf16 %v395, %v395
        %397 = vrot.lane.b32.xlu0 %v335, 48
        %v398 = vpop.permute.xlu0 %397
        %v400 = vsel %vm320, %v396, 0
        %v403 = vsel %vm341, %v398, 0
        %405 = vmatpush.bf16.msra.mxu0 0
        %406 = vmatpush.bf16.msra.mxu0 0
        %407 = vmatpush.bf16.msra.mxu0 0
        %408 = vmatpush.bf16.msra.mxu0 0
        %409 = vmatpush.bf16.msra.mxu0 0
        %410 = vmatpush.bf16.msra.mxu0 0
        %411 = vmatpush.bf16.msra.mxu0 0
        %412 = vmatpush.bf16.msra.mxu0 %v403
        %413 = vmatmul.bf16.gmra.mxu0 %v400
        %v414 = vpop.f32.mrf.mxu0
        %v415 = vadd.f32 0.0, %v414
        %v416 = vpop.f32.mrf.mxu0
        %417 = vdwg.mxu0
        %v418 = vpack.c.bf16 %v415, %v415
        %v421 = vunpack.c.l.b16 %v290
        %v422 = vunpack.c.l.b16 %v291
        %v423 = vpack.c.b16 %v422, %v421
        %v426 = vsel %vm300, %v418, 0
        %428 = vmatpush.bf16.msra.mxu0 0
        %429 = vmatpush.bf16.msra.mxu0 0
        %430 = vmatpush.bf16.msra.mxu0 0
        %431 = vmatpush.bf16.msra.mxu0 0
        %432 = vmatpush.bf16.msra.mxu0 0
        %433 = vmatpush.bf16.msra.mxu0 0
        %434 = vmatpush.bf16.msra.mxu0 0
        %435 = vmatpush.bf16.msra.mxu0 %v423
        %436 = vmatmul.bf16.gmra.mxu0 %v426
        %v437 = vpop.f32.mrf.mxu0
        %v438 = vadd.f32 0.0, %v437
        %v439 = vpop.f32.mrf.mxu0
        %440 = vdwg.mxu0
        %v443 = vunpack.c.l.b16 %v288
        %v444 = vunpack.c.l.b16 %v289
        %v445 = vpack.c.b16 %v444, %v443
        %v448 = vsel %vm300, %v358, 0
        %450 = vmatpush.bf16.msra.mxu0 0
        %451 = vmatpush.bf16.msra.mxu0 0
        %452 = vmatpush.bf16.msra.mxu0 0
        %453 = vmatpush.bf16.msra.mxu0 0
        %454 = vmatpush.bf16.msra.mxu0 0
        %455 = vmatpush.bf16.msra.mxu0 0
        %456 = vmatpush.bf16.msra.mxu0 0
        %457 = vmatpush.bf16.msra.mxu0 %v445
        %458 = vmatmul.bf16.gmra.mxu0 %v448
        %v459 = vpop.f32.mrf.mxu0
        %v460 = vadd.f32 %v438, %v459
        %v461 = vpop.f32.mrf.mxu0
        %462 = vdwg.mxu0
        %463 = vrot.lane.b32.xlu0 %v361, 96
        %v464 = vpop.permute.xlu0 %463
        %465 = vrot.lane.b32.xlu0 %v335, 96
        %v466 = vpop.permute.xlu0 %465
        %v468 = vsel %vm300, %v464, 0
        %v471 = vsel %vm300, %v466, 0
        %473 = vmatpush.bf16.xpose.msra.mxu0 0
        %474 = vmatpush.bf16.xpose.msra.mxu0 0
        %475 = vmatpush.bf16.xpose.msra.mxu0 0
        %476 = vmatpush.bf16.xpose.msra.mxu0 0
        %477 = vmatpush.bf16.xpose.msra.mxu0 0
        %478 = vmatpush.bf16.xpose.msra.mxu0 0
        %479 = vmatpush.bf16.xpose.msra.mxu0 0
        %480 = vmatpush.bf16.xpose.msra.mxu0 %v471
        %481 = vmatmul.bf16.gmra.mxu0 %v468
        %v482 = vpop.f32.mrf.mxu0
        %v483 = vadd.f32 0.0, %v482
        %v484 = vpop.f32.mrf.mxu0
        %485 = vdwg.mxu0
        %v486 = vsel %vm320, %v483, -inf
        %487 = vmax.xlane.f32.xlu0 %v486
        %v488 = vpop.xlane.xlu0 %487
        %v489 = vsub.f32 %v483, %v488
        %v490 = vmul.f32 %v489, 1.442695
        %v491 = vpow.pop %v490
        %v492 = vsel %vm320, %v491, 0.0
        %493 = vadd.xlane.f32.xlu0 %v492
        %v494 = vpop.xlane.xlu0 %493
        %v495 = vrcp.pop %v494
        %v496 = vmul.f32 %v491, %v495
        %v497 = vpack.c.bf16 %v496, %v496
        %498 = vrot.lane.b32.xlu0 %v335, 32
        %v499 = vpop.permute.xlu0 %498
        %v501 = vsel %vm320, %v497, 0
        %v504 = vsel %vm341, %v499, 0
        %506 = vmatpush.bf16.msra.mxu0 0
        %507 = vmatpush.bf16.msra.mxu0 0
        %508 = vmatpush.bf16.msra.mxu0 0
        %509 = vmatpush.bf16.msra.mxu0 0
        %510 = vmatpush.bf16.msra.mxu0 0
        %511 = vmatpush.bf16.msra.mxu0 0
        %512 = vmatpush.bf16.msra.mxu0 0
        %513 = vmatpush.bf16.msra.mxu0 %v504
        %514 = vmatmul.bf16.gmra.mxu0 %v501
        %v515 = vpop.f32.mrf.mxu0
        %v516 = vadd.f32 0.0, %v515
        %v517 = vpop.f32.mrf.mxu0
        %518 = vdwg.mxu0
        %v519 = vpack.c.bf16 %v516, %v516
        %v522 = vunpack.c.l.b16 %v292
        %v523 = vunpack.c.l.b16 %v293
        %v524 = vpack.c.b16 %v523, %v522
        %v527 = vsel %vm300, %v519, 0
        %529 = vmatpush.bf16.msra.mxu0 0
        %530 = vmatpush.bf16.msra.mxu0 0
        %531 = vmatpush.bf16.msra.mxu0 0
        %532 = vmatpush.bf16.msra.mxu0 0
        %533 = vmatpush.bf16.msra.mxu0 0
        %534 = vmatpush.bf16.msra.mxu0 0
        %535 = vmatpush.bf16.msra.mxu0 0
        %536 = vmatpush.bf16.msra.mxu0 %v524
        %537 = vmatmul.bf16.gmra.mxu0 %v527
        %v538 = vpop.f32.mrf.mxu0
        %v539 = vadd.f32 0.0, %v538
        %v540 = vpop.f32.mrf.mxu0
        %541 = vdwg.mxu0
        %v542 = vadd.f32 %v460, %v539
        %543 = vrot.lane.b32.xlu0 %v361, 80
        %v544 = vpop.permute.xlu0 %543
        %545 = vrot.lane.b32.xlu0 %v335, 80
        %v546 = vpop.permute.xlu0 %545
        %v548 = vsel %vm300, %v544, 0
        %v551 = vsel %vm300, %v546, 0
        %553 = vmatpush.bf16.xpose.msra.mxu0 0
        %554 = vmatpush.bf16.xpose.msra.mxu0 0
        %555 = vmatpush.bf16.xpose.msra.mxu0 0
        %556 = vmatpush.bf16.xpose.msra.mxu0 0
        %557 = vmatpush.bf16.xpose.msra.mxu0 0
        %558 = vmatpush.bf16.xpose.msra.mxu0 0
        %559 = vmatpush.bf16.xpose.msra.mxu0 0
        %560 = vmatpush.bf16.xpose.msra.mxu0 %v551
        %561 = vmatmul.bf16.gmra.mxu0 %v548
        %v562 = vpop.f32.mrf.mxu0
        %v563 = vadd.f32 0.0, %v562
        %v564 = vpop.f32.mrf.mxu0
        %565 = vdwg.mxu0
        %v566 = vsel %vm320, %v563, -inf
        %567 = vmax.xlane.f32.xlu0 %v566
        %v568 = vpop.xlane.xlu0 %567
        %v569 = vsub.f32 %v563, %v568
        %v570 = vmul.f32 %v569, 1.442695
        %v571 = vpow.pop %v570
        %v572 = vsel %vm320, %v571, 0.0
        %573 = vadd.xlane.f32.xlu0 %v572
        %v574 = vpop.xlane.xlu0 %573
        %v575 = vrcp.pop %v574
        %v576 = vmul.f32 %v571, %v575
        %v577 = vpack.c.bf16 %v576, %v576
        %578 = vrot.lane.b32.xlu0 %v335, 16
        %v579 = vpop.permute.xlu0 %578
        %v581 = vsel %vm320, %v577, 0
        %v584 = vsel %vm341, %v579, 0
        %586 = vmatpush.bf16.msra.mxu0 0
        %587 = vmatpush.bf16.msra.mxu0 0
        %588 = vmatpush.bf16.msra.mxu0 0
        %589 = vmatpush.bf16.msra.mxu0 0
        %590 = vmatpush.bf16.msra.mxu0 0
        %591 = vmatpush.bf16.msra.mxu0 0
        %592 = vmatpush.bf16.msra.mxu0 0
        %593 = vmatpush.bf16.msra.mxu0 %v584
        %594 = vmatmul.bf16.gmra.mxu0 %v581
        %v595 = vpop.f32.mrf.mxu0
        %v596 = vadd.f32 0.0, %v595
        %v597 = vpop.f32.mrf.mxu0
        %598 = vdwg.mxu0
        %v599 = vpack.c.bf16 %v596, %v596
        %v602 = vunpack.c.l.b16 %v294
        %v603 = vunpack.c.l.b16 %v295
        %v604 = vpack.c.b16 %v603, %v602
        %v607 = vsel %vm300, %v599, 0
        %609 = vmatpush.bf16.msra.mxu0 0
        %610 = vmatpush.bf16.msra.mxu0 0
        %611 = vmatpush.bf16.msra.mxu0 0
        %612 = vmatpush.bf16.msra.mxu0 0
        %613 = vmatpush.bf16.msra.mxu0 0
        %614 = vmatpush.bf16.msra.mxu0 0
        %615 = vmatpush.bf16.msra.mxu0 0
        %616 = vmatpush.bf16.msra.mxu0 %v604
        %617 = vmatmul.bf16.gmra.mxu0 %v607
        %v618 = vpop.f32.mrf.mxu0
        %v619 = vadd.f32 0.0, %v618
        %v620 = vpop.f32.mrf.mxu0
        %621 = vdwg.mxu0
        %v622 = vadd.f32 %v542, %v619
        %v623 = vld [vmem:[#allocation4] sm:$0x1]
        %v625 = vperm.slane %v623, 0
        %v627 = vadd.f32 %v622, %v625
        %v628 = vld [vmem:[%s281] sm:$0xff]
        %v629 = vadd.f32 %v627, %v628
        %vm630 = vcmask 523264
        %631 = vst.msk [vmem:[%s285] sm:$0xff] %vm630, %v629
        %p632 = scmp.lt.s32.totalorder %s18, 1
        %s633 = scalar_select %p632, %s18, 1
        %s634 = smul.addr %s633, 8
        %s635 = scalar_lea.vmem %s5, %s634
        // Predicated region
        $region49: #{latent_array_transformer.23} parent=39 // pred_check
          %p636 = pneg %p156
        $region50: #{latent_array_transformer.23} parent=39 // pred_check_branch
          %638 = sbr.rel (%p636) target = $region52
        $region51: #{latent_array_transformer.23} parent=39 // pred_region
          _
        $region52: #{latent_array_transformer.23} parent=39 // pred_fallthru
          _
      $region40: #{latent_array_transformer.23} parent=5 // pred_fallthru
        _
      %p639 = scmp.le.s32.totalorder 2, %s13
      // Predicated region
      $region53: #{latent_array_transformer.23} parent=5 // pred_check
        %p640 = pneg %p639
      $region54: #{latent_array_transformer.23} parent=5 // pred_check_branch
        %642 = sbr.rel (%p640) target = $region56
      $region55: #{latent_array_transformer.23} parent=5 // pred_region
        %s643 = ssub.s32 %s13, 2
        // Predicated region
        $region57: #{latent_array_transformer.23} parent=55 // pred_check
          %p644 = pneg %p162
        $region58: #{latent_array_transformer.23} parent=55 // pred_check_branch
          %646 = sbr.rel (%p644) target = $region60
        $region59: #{latent_array_transformer.23} parent=55 // pred_region
          %p647 = scmp.lt.s32.totalorder %s19, 1
          %s648 = scalar_select %p647, %s19, 1
          %s649 = smul.addr %s648, 8
          %s650 = scalar_lea.vmem %s5, %s649
        $region60: #{latent_array_transformer.23} parent=55 // pred_fallthru
          _
      $region56: #{latent_array_transformer.23} parent=5 // pred_fallthru
        _
    $region6: #{latent_array_transformer.23} parent=1 // loop_footer
      %s17 = sadd.s32 1, %s13
    $region7: #{latent_array_transformer.23} parent=1 // loop_footer_branch
      %12 = sbr.rel target = $region3
    $region8: #{latent_array_transformer.23} parent=1 // loop_exit
      _
    %651 = vsyncpa [#allocation3], 1
    %s652 = scalar_lea.sflag [#allocation3], 1
    %653 = vsyncpa %s652, 1
    %654 = vsyncpa [#allocation5], 1

// kernel: latent_array_transformer.28
$region0: #{latent_array_transformer.28}
  #allocation0 [shape = 'u32[]', space=smem, size = 0x4, offset = 0x4, fixed_abs, tag = 'smem constant byte address 0x4 - core index']
  #allocation1 [shape = 'u32[72,128]{1,0:T(1,128)}', space=vmem, size = 0x9000, scoped, tag = 'internal scratch']
  %s0 = inlined_call_operand.vmem [shape: f32[12,32], index: 0, kind: input, shape index: {}]
  %s1 = inlined_call_operand.vmem [shape: bf16[32,128], index: 1, kind: input, shape index: {}]
  %s2 = inlined_call_operand.vmem [shape: bf16[12,128], index: 2, kind: output, shape index: {}]
  %s3 = sld [smem:[#allocation0]]
  $region18: #{latent_array_transformer.28} parent=0
    _
  %s5 = ssub.s32 1, %s3
  %s6 = scalar_select 0, %s5, %s3
  // Predicated region
  $region2: #{latent_array_transformer.28} parent=0 // pred_check
    _
  $region3: #{latent_array_transformer.28} parent=0 // pred_check_branch
    %8 = sbr.rel (0) target = $region5
  $region4: #{latent_array_transformer.28} parent=0 // pred_region
    _
  $region5: #{latent_array_transformer.28} parent=0 // pred_fallthru
    _
  // Predicated region
  $region6: #{latent_array_transformer.28} parent=0 // pred_check
    _
  $region7: #{latent_array_transformer.28} parent=0 // pred_check_branch
    %10 = sbr.rel (0) target = $region9
  $region8: #{latent_array_transformer.28} parent=0 // pred_region
    _
  $region9: #{latent_array_transformer.28} parent=0 // pred_fallthru
    _
  %v12 = vld [vmem:[%s0] sm:$0xff]
  %v13 = vld [vmem:[%s0 + $0x8] sm:$0xf]
  %v14 = vpack.c.bf16 %v13, %v12
  %v15 = vld [vmem:[%s1] sm:$0xf]
  %v16 = vld [vmem:[%s1 + $0x4] sm:$0xf]
  %v17 = vld [vmem:[%s1 + $0x8] sm:$0xf]
  %v18 = vld [vmem:[%s1 + $0xc] sm:$0xf]
  %v23 = vunpack.c.l.b16 %v15
  %v24 = vunpack.c.l.b16 %v16
  %v25 = vunpack.c.l.b16 %v17
  %v26 = vunpack.c.l.b16 %v18
  %v27 = vpack.c.b16 %v24, %v23
  %v28 = vpack.c.b16 %v26, %v25
  %vm31 = vcmask 261120
  %v33 = vsel %vm31, %v14, 0
  %35 = vmatpush.bf16.msra.mxu0 0
  %36 = vmatpush.bf16.msra.mxu0 0
  %37 = vmatpush.bf16.msra.mxu0 0
  %38 = vmatpush.bf16.msra.mxu0 0
  %39 = vmatpush.bf16.msra.mxu0 0
  %40 = vmatpush.bf16.msra.mxu0 0
  %41 = vmatpush.bf16.msra.mxu0 %v28
  %42 = vmatpush.bf16.msra.mxu0 %v27
  %43 = vmatmul.bf16.gmra.mxu0 %v33
  %v44 = vpop.f32.mrf.mxu0
  %v45 = vadd.f32 0.0, %v44
  %v46 = vpop.f32.mrf.mxu0
  %v47 = vadd.f32 0.0, %v46
  %48 = vdwg.mxu0
  %v49 = vpack.c.bf16 %v45, %v45
  %v50 = vpack.c.bf16 %v47, %v47
  %51 = vst [vmem:[%s2] sm:$0xf] %v49
  %52 = vst [vmem:[%s2 + $0x4] sm:$0x3] %v50
  // Predicated region
  $region10: #{latent_array_transformer.28} parent=0 // pred_check
    _
  $region11: #{latent_array_transformer.28} parent=0 // pred_check_branch
    %54 = sbr.rel (0) target = $region13
  $region12: #{latent_array_transformer.28} parent=0 // pred_region
    _
  $region13: #{latent_array_transformer.28} parent=0 // pred_fallthru
    _
  // Predicated region
  $region14: #{latent_array_transformer.28} parent=0 // pred_check
    _
  $region15: #{latent_array_transformer.28} parent=0 // pred_check_branch
    %56 = sbr.rel (0) target = $region17
  $region16: #{latent_array_transformer.28} parent=0 // pred_region
    _
  $region17: #{latent_array_transformer.28} parent=0 // pred_fallthru
    _

// kernel: latent_array_transformer.25
$region0: #{latent_array_transformer.25}
  #allocation0 [shape = 'u32[]', space=smem, size = 0x4, offset = 0x4, fixed_abs, tag = 'smem constant byte address 0x4 - core index']
  #allocation1 [shape = 'u32[72,128]{1,0:T(1,128)}', space=vmem, size = 0x9000, scoped, tag = 'internal scratch']
  %s0 = inlined_call_operand.vmem [shape: f32[2,8,64], index: 0, kind: input, shape index: {}]
  %s1 = inlined_call_operand.vmem [shape: f32[2,1,64], index: 1, kind: input, shape index: {}]
  %s2 = inlined_call_operand.vmem [shape: f32[2,1,64], index: 2, kind: input, shape index: {}]
  %s3 = inlined_call_operand.hbm [shape: bf16[64,192], index: 3, kind: input, shape index: {}]
  %s4 = inlined_call_operand.vmem [shape: bf16[2,8,192], index: 4, kind: output, shape index: {}]
  %s5 = sld [smem:[#allocation0]]
  $region53: #{latent_array_transformer.25} parent=0
    _
  %s7 = ssub.s32 1, %s5
  %s8 = scalar_select 0, %s7, %s5
  $region1: #{latent_array_transformer.25} parent=0
    #allocation2 [shape = 'u8[32768]{0}', space=vmem, size = 0x8000, scoped, tag = 'input window, operand 3, single buffered']
    #allocation3 [shape = 's32[2]{0}', space=sflag, size = 0x8, scoped, tag = 'scoped memory for latent_array_transformer.25']
    %9 = vsyncpa [#allocation3], 0
    loop: start=0, step=1, limit=4
    $region2: #{latent_array_transformer.25} parent=1 // loop_pre_header
      _
    $region3: #{latent_array_transformer.25} parent=1 // loop_header
      %s11 = sphi 0, %s15
      %p12 = scmp.ge.s32.totalorder %s11, 4
      %s18 = sphi 0, %s30
      %s19 = sphi 0, %s26
      %s20 = sphi 0, %s18
      %s21 = sphi 0, %s19
      %s22 = sphi 0, %s20
      %s23 = sphi 0, %s21
      %s35 = sphi 0, %s37
      %s38 = sphi 0, %s35
      %s39 = sphi 0, %s38
      %s55 = sphi 0, %s39
      %s61 = sphi 0, %s63
      %s64 = sphi 0, %s61
      %s65 = sphi 0, %s64
      %s81 = sphi 0, %s65
      %s87 = sphi 0, %s89
      %s90 = sphi 0, %s87
      %s91 = sphi 0, %s90
      %s107 = sphi 0, %s91
      %s111 = sphi 0, %s111
      %s113 = sphi 0, %s111
      %s114 = sphi 0, %s113
      %s128 = sphi 0, %s114
      %s136 = sphi 0, %s138
      %s139 = sphi 0, %s136
      %s140 = sphi 0, %s139
      %s156 = sphi 0, %s140
    $region4: #{latent_array_transformer.25} parent=1 // loop_header_branch
      %14 = sbr.rel (%p12) target = $region8
    $region5: #{latent_array_transformer.25} parent=1 // loop_body
      %s16 = ssub.s32 %s11, 1
      %s17 = ssub.s32 %s11, 2
      %s24 = sadd.s32 1, %s19
      %p25 = scmp.ge.s32.totalorder %s24, 1
      %s26 = scalar_select %p25, 0, %s24
      %s27 = sadd.s32 1, %s18
      %s28 = scalar_select %p25, %s27, %s18
      %p29 = scmp.ge.s32.totalorder %s28, 2
      %s30 = scalar_select %p29, 0, %s28
      %s31 = ssub.s32 %s18, %s30
      %s32 = ssub.s32 %s19, %s26
      %s33 = sor.u32 %s31, %s32
      %p34 = scmp.eq.s32.totalorder %s33, 0
      %s36 = sadd.s32 %s35, 1
      %s37 = scalar_select %p34, %s35, %s36
      %p40 = pneg %p34
      %p41 = scmp.eq.s32.totalorder %s11, 1
      %p42 = por %p40, %p41
      %p43 = scmp.ne.s32.totalorder %s35, %s38
      %p44 = scmp.eq.s32.totalorder %s11, 0
      %p45 = por %p43, %p44
      %p46 = scmp.ne.s32.totalorder %s35, %s38
      %p47 = scmp.eq.s32.totalorder %s16, 1
      %p48 = por %p46, %p47
      %p49 = scmp.ne.s32.totalorder %s38, %s39
      %p50 = scmp.eq.s32.totalorder %s16, 0
      %p51 = por %p49, %p50
      %p52 = scmp.ne.s32.totalorder %s38, %s39
      %p53 = scmp.eq.s32.totalorder %s17, 1
      %p54 = por %p52, %p53
      %p56 = scmp.ne.s32.totalorder %s39, %s55
      %p57 = scmp.eq.s32.totalorder %s17, 0
      %p58 = por %p56, %p57
      %s59 = ssub.s32 %s18, %s30
      %p60 = scmp.eq.s32.totalorder %s59, 0
      %s62 = sadd.s32 %s61, 1
      %s63 = scalar_select %p60, %s61, %s62
      %p66 = pneg %p60
      %p67 = scmp.eq.s32.totalorder %s11, 1
      %p68 = por %p66, %p67
      %p69 = scmp.ne.s32.totalorder %s61, %s64
      %p70 = scmp.eq.s32.totalorder %s11, 0
      %p71 = por %p69, %p70
      %p72 = scmp.ne.s32.totalorder %s61, %s64
      %p73 = scmp.eq.s32.totalorder %s16, 1
      %p74 = por %p72, %p73
      %p75 = scmp.ne.s32.totalorder %s64, %s65
      %p76 = scmp.eq.s32.totalorder %s16, 0
      %p77 = por %p75, %p76
      %p78 = scmp.ne.s32.totalorder %s64, %s65
      %p79 = scmp.eq.s32.totalorder %s17, 1
      %p80 = por %p78, %p79
      %p82 = scmp.ne.s32.totalorder %s65, %s81
      %p83 = scmp.eq.s32.totalorder %s17, 0
      %p84 = por %p82, %p83
      %s85 = ssub.s32 %s18, %s30
      %p86 = scmp.eq.s32.totalorder %s85, 0
      %s88 = sadd.s32 %s87, 1
      %s89 = scalar_select %p86, %s87, %s88
      %p92 = pneg %p86
      %p93 = scmp.eq.s32.totalorder %s11, 1
      %p94 = por %p92, %p93
      %p95 = scmp.ne.s32.totalorder %s87, %s90
      %p96 = scmp.eq.s32.totalorder %s11, 0
      %p97 = por %p95, %p96
      %p98 = scmp.ne.s32.totalorder %s87, %s90
      %p99 = scmp.eq.s32.totalorder %s16, 1
      %p100 = por %p98, %p99
      %p101 = scmp.ne.s32.totalorder %s90, %s91
      %p102 = scmp.eq.s32.totalorder %s16, 0
      %p103 = por %p101, %p102
      %p104 = scmp.ne.s32.totalorder %s90, %s91
      %p105 = scmp.eq.s32.totalorder %s17, 1
      %p106 = por %p104, %p105
      %p108 = scmp.ne.s32.totalorder %s91, %s107
      %p109 = scmp.eq.s32.totalorder %s17, 0
      %p110 = por %p108, %p109
      %s112 = sadd.s32 %s111, 1
      %p115 = scmp.eq.s32.totalorder %s11, 1
      %p116 = scmp.ne.s32.totalorder %s111, %s113
      %p117 = scmp.eq.s32.totalorder %s11, 0
      %p118 = por %p116, %p117
      %p119 = scmp.ne.s32.totalorder %s111, %s113
      %p120 = scmp.eq.s32.totalorder %s16, 1
      %p121 = por %p119, %p120
      %p122 = scmp.ne.s32.totalorder %s113, %s114
      %p123 = scmp.eq.s32.totalorder %s16, 0
      %p124 = por %p122, %p123
      %p125 = scmp.ne.s32.totalorder %s113, %s114
      %p126 = scmp.eq.s32.totalorder %s17, 1
      %p127 = por %p125, %p126
      %p129 = scmp.ne.s32.totalorder %s114, %s128
      %p130 = scmp.eq.s32.totalorder %s17, 0
      %p131 = por %p129, %p130
      %s132 = ssub.s32 %s18, %s30
      %s133 = ssub.s32 %s19, %s26
      %s134 = sor.u32 %s132, %s133
      %p135 = scmp.eq.s32.totalorder %s134, 0
      %s137 = sadd.s32 %s136, 1
      %s138 = scalar_select %p135, %s136, %s137
      %p141 = pneg %p135
      %p142 = scmp.eq.s32.totalorder %s11, 1
      %p143 = por %p141, %p142
      %p144 = scmp.ne.s32.totalorder %s136, %s139
      %p145 = scmp.eq.s32.totalorder %s11, 0
      %p146 = por %p144, %p145
      %p147 = scmp.ne.s32.totalorder %s136, %s139
      %p148 = scmp.eq.s32.totalorder %s16, 1
      %p149 = por %p147, %p148
      %p150 = scmp.ne.s32.totalorder %s139, %s140
      %p151 = scmp.eq.s32.totalorder %s16, 0
      %p152 = por %p150, %p151
      %p153 = scmp.ne.s32.totalorder %s139, %s140
      %p154 = scmp.eq.s32.totalorder %s17, 1
      %p155 = por %p153, %p154
      %p157 = scmp.ne.s32.totalorder %s140, %s156
      %p158 = scmp.eq.s32.totalorder %s17, 0
      %p159 = por %p157, %p158
      %p160 = scmp.le.s32.totalorder 1, %s11
      %p161 = scmp.lt.s32.totalorder %s11, 3
      %p162 = pnand %p160, %p161
      %p163 = pneg %p162
      // Predicated region
      $region9: #{latent_array_transformer.25} parent=5 // pred_check
        _
      $region10: #{latent_array_transformer.25} parent=5 // pred_check_branch
        %165 = sbr.rel (%p162) target = $region12
      $region11: #{latent_array_transformer.25} parent=5 // pred_region
        %s166 = ssub.s32 %s11, 1
        // Predicated region
        $region13: #{latent_array_transformer.25} parent=11 // pred_check
          %p167 = pneg %p124
        $region14: #{latent_array_transformer.25} parent=11 // pred_check_branch
          %169 = sbr.rel (%p167) target = $region16
        $region15: #{latent_array_transformer.25} parent=11 // pred_region
          %171 = vsyncadd [#allocation3], 0
          %s172 = sshll.u32 %s3, 4
          %s173 = int_to_ptr.hbm [resolvable:$true] %s172
          %s174 = sshll.u32 [#allocation2], 4
          %s175 = int_to_ptr.vmem [resolvable:$true] %s174
          %180 = dma.hbm_to_vmem [thread:$0]  %s173, 1024, %s175, [#allocation3], 128, 128, 8
        $region16: #{latent_array_transformer.25} parent=11 // pred_fallthru
          _
      $region12: #{latent_array_transformer.25} parent=5 // pred_fallthru
        _
      %p181 = scmp.lt.s32.totalorder %s11, 2
      // Predicated region
      $region17: #{latent_array_transformer.25} parent=5 // pred_check
        %p182 = pneg %p181
      $region18: #{latent_array_transformer.25} parent=5 // pred_check_branch
        %184 = sbr.rel (%p182) target = $region20
      $region19: #{latent_array_transformer.25} parent=5 // pred_region
        // Predicated region
        $region21: #{latent_array_transformer.25} parent=19 // pred_check
          %p185 = pneg %p45
        $region22: #{latent_array_transformer.25} parent=19 // pred_check_branch
          %187 = sbr.rel (%p185) target = $region24
        $region23: #{latent_array_transformer.25} parent=19 // pred_region
          %p188 = scmp.lt.s32.totalorder %s18, 1
          %s189 = scalar_select %p188, %s18, 1
          %p190 = scmp.lt.s32.totalorder %s19, 0
          %s191 = scalar_select %p190, %s19, 0
          %s192 = sadd.s32 %s191, %s189
          %s193 = smul.addr %s192, 8
          %s194 = scalar_lea.vmem %s0, %s193
        $region24: #{latent_array_transformer.25} parent=19 // pred_fallthru
          _
        // Predicated region
        $region25: #{latent_array_transformer.25} parent=19 // pred_check
          %p195 = pneg %p71
        $region26: #{latent_array_transformer.25} parent=19 // pred_check_branch
          %197 = sbr.rel (%p195) target = $region28
        $region27: #{latent_array_transformer.25} parent=19 // pred_region
          %p198 = scmp.lt.s32.totalorder %s18, 1
          %s199 = scalar_select %p198, %s18, 1
          %s200 = scalar_lea.vmem %s1, %s199
        $region28: #{latent_array_transformer.25} parent=19 // pred_fallthru
          _
        // Predicated region
        $region29: #{latent_array_transformer.25} parent=19 // pred_check
          %p201 = pneg %p97
        $region30: #{latent_array_transformer.25} parent=19 // pred_check_branch
          %203 = sbr.rel (%p201) target = $region32
        $region31: #{latent_array_transformer.25} parent=19 // pred_region
          %p204 = scmp.lt.s32.totalorder %s18, 1
          %s205 = scalar_select %p204, %s18, 1
          %s206 = scalar_lea.vmem %s2, %s205
        $region32: #{latent_array_transformer.25} parent=19 // pred_fallthru
          _
      $region20: #{latent_array_transformer.25} parent=5 // pred_fallthru
        _
      %p207 = scmp.le.s32.totalorder 1, %s11
      %p208 = scmp.lt.s32.totalorder %s11, 3
      %p209 = pnand %p207, %p208
      %p210 = pneg %p209
      // Predicated region
      $region33: #{latent_array_transformer.25} parent=5 // pred_check
        _
      $region34: #{latent_array_transformer.25} parent=5 // pred_check_branch
        %212 = sbr.rel (%p209) target = $region36
      $region35: #{latent_array_transformer.25} parent=5 // pred_region
        %s213 = ssub.s32 %s11, 1
        // Predicated region
        $region37: #{latent_array_transformer.25} parent=35 // pred_check
          %p214 = pneg %p124
        $region38: #{latent_array_transformer.25} parent=35 // pred_check_branch
          %216 = sbr.rel (%p214) target = $region40
        $region39: #{latent_array_transformer.25} parent=35 // pred_region
          %218 = dma.done [#allocation3], 1024
        $region40: #{latent_array_transformer.25} parent=35 // pred_fallthru
          _
        %p219 = scmp.lt.s32.totalorder %s20, 1
        %s220 = scalar_select %p219, %s20, 1
        %p221 = scmp.lt.s32.totalorder %s21, 0
        %s222 = scalar_select %p221, %s21, 0
        %s223 = sadd.s32 %s222, %s220
        %s224 = smul.addr %s223, 8
        %s225 = scalar_lea.vmem %s0, %s224
        %p226 = pneg %p51
        %p227 = pneg %p48
        %p228 = scmp.lt.s32.totalorder %s20, 1
        %s229 = scalar_select %p228, %s20, 1
        %s230 = scalar_lea.vmem %s1, %s229
        %p231 = pneg %p77
        %p232 = pneg %p74
        %p233 = scmp.lt.s32.totalorder %s20, 1
        %s234 = scalar_select %p233, %s20, 1
        %s235 = scalar_lea.vmem %s2, %s234
        %p236 = pneg %p103
        %p237 = pneg %p100
        %p238 = pneg %p124
        %p239 = pneg %p121
        %p240 = pneg %p152
        %p241 = pneg %p149
        %p242 = scmp.lt.s32.totalorder %s20, 1
        %s243 = scalar_select %p242, %s20, 1
        %p244 = scmp.lt.s32.totalorder %s21, 0
        %s245 = scalar_select %p244, %s21, 0
        %s246 = smul.addr %s245, 2
        %s247 = smul.addr %s243, 2
        %s248 = sadd.s32 %s246, %s247
        %s249 = smul.addr %s248, 4
        %s250 = scalar_lea.vmem %s4, %s249
        %p251 = scmp.lt.s32.totalorder %s20, 1
        %s252 = scalar_select %p251, %s20, 1
        %p253 = scmp.lt.s32.totalorder %s21, 0
        %s254 = scalar_select %p253, %s21, 0
        %s255 = sadd.s32 %s254, %s252
        %s256 = smul.addr %s255, 8
        %s257 = scalar_lea.vmem %s0, %s256
        %p258 = scmp.lt.s32.totalorder %s20, 1
        %s259 = scalar_select %p258, %s20, 1
        %s260 = scalar_lea.vmem %s1, %s259
        %p261 = scmp.lt.s32.totalorder %s20, 1
        %s262 = scalar_select %p261, %s20, 1
        %s263 = scalar_lea.vmem %s2, %s262
        %p264 = scmp.lt.s32.totalorder %s20, 1
        %s265 = scalar_select %p264, %s20, 1
        %p266 = scmp.lt.s32.totalorder %s21, 0
        %s267 = scalar_select %p266, %s21, 0
        %s268 = smul.addr %s267, 2
        %s269 = smul.addr %s265, 2
        %s270 = sadd.s32 %s268, %s269
        %s271 = smul.addr %s270, 4
        %s272 = scalar_lea.vmem %s4, %s271
        %v274 = vld [vmem:[%s257] sm:$0xff]
        %vm275 = vcmask 523264
        %v276 = vsel %vm275, %v274, 0.0
        %277 = vadd.xlane.f32.xlu0 %v276
        %v278 = vpop.xlane.xlu0 %277
        %v279 = vrcp.pop 64.0
        %v280 = vmul.f32 64.0, %v279
        %v281 = vsub.f32 1.0, %v280
        %v282 = vmul.f32 %v279, %v281
        %v283 = vadd.f32 %v279, %v282
        %vm284 = vweird.f32 %v279
        %v285 = vsel %vm284, %v279, %v283
        %v286 = vmul.f32 %v278, %v285
        %v287 = vsub.f32 %v274, %v286
        %v288 = vmul.f32 %v287, %v287
        %v289 = vsel %vm275, %v288, 0.0
        %290 = vadd.xlane.f32.xlu0 %v289
        %v291 = vpop.xlane.xlu0 %290
        %v292 = vmul.f32 %v291, %v285
        %v293 = vadd.f32 %v292, 1e-05
        %v294 = vrsqrt.pop %v293
        %v295 = vmul.f32 %v294, %v293
        %v296 = vmul.f32 %v295, %v294
        %v297 = vmul.f32 0.5, %v296
        %v298 = vsub.f32 1.5, %v297
        %v299 = vmul.f32 %v294, %v298
        %vm300 = vweird.f32 %v293
        %vm301 = vweird.f32 %v294
        %vm302 = vmor %vm300, %vm301
        %v303 = vsel %vm302, %v294, %v299
        %v304 = vmul.f32 %v287, %v303
        %v305 = vld [vmem:[%s260] sm:$0x1]
        %v306 = vadd.f32 %v305, 1.0
        %v308 = vperm.slane %v306, 0
        %v310 = vmul.f32 %v304, %v308
        %v311 = vld [vmem:[%s263] sm:$0x1]
        %v313 = vperm.slane %v311, 0
        %v315 = vadd.f32 %v310, %v313
        %v316 = vpack.c.bf16 %v315, %v315
        %v317 = vld [vmem:[#allocation2] sm:$0xff]
        %v318 = vld [vmem:[#allocation2 + $0x8] sm:$0xff]
        %v319 = vld [vmem:[#allocation2 + $0x10] sm:$0xff]
        %v320 = vld [vmem:[#allocation2 + $0x18] sm:$0xff]
        %v321 = vld [vmem:[#allocation2 + $0x20] sm:$0xff]
        %v322 = vld [vmem:[#allocation2 + $0x28] sm:$0xff]
        %v323 = vld [vmem:[#allocation2 + $0x30] sm:$0xff]
        %v324 = vld [vmem:[#allocation2 + $0x38] sm:$0xff]
        %v333 = vunpack.c.l.b16 %v317
        %v334 = vunpack.c.h.b16 %v317
        %v335 = vunpack.c.l.b16 %v318
        %v336 = vunpack.c.h.b16 %v318
        %v337 = vunpack.c.l.b16 %v319
        %v338 = vunpack.c.h.b16 %v319
        %v339 = vunpack.c.l.b16 %v320
        %v340 = vunpack.c.h.b16 %v320
        %v341 = vunpack.c.l.b16 %v321
        %v342 = vunpack.c.h.b16 %v321
        %v343 = vunpack.c.l.b16 %v322
        %v344 = vunpack.c.h.b16 %v322
        %v345 = vunpack.c.l.b16 %v323
        %v346 = vunpack.c.h.b16 %v323
        %v347 = vunpack.c.l.b16 %v324
        %v348 = vunpack.c.h.b16 %v324
        %v349 = vpack.c.b16 %v335, %v333
        %v350 = vpack.c.b16 %v336, %v334
        %v351 = vpack.c.b16 %v339, %v337
        %v352 = vpack.c.b16 %v340, %v338
        %v353 = vpack.c.b16 %v343, %v341
        %v354 = vpack.c.b16 %v344, %v342
        %v355 = vpack.c.b16 %v347, %v345
        %v356 = vpack.c.b16 %v348, %v346
        %v366 = vsel %vm275, %v316, 0
        %368 = vmatpush.bf16.msra.mxu0 0
        %369 = vmatpush.bf16.msra.mxu0 0
        %370 = vmatpush.bf16.msra.mxu0 0
        %371 = vmatpush.bf16.msra.mxu0 0
        %372 = vmatpush.bf16.msra.mxu0 %v355
        %373 = vmatpush.bf16.msra.mxu0 %v353
        %374 = vmatpush.bf16.msra.mxu0 %v351
        %375 = vmatpush.bf16.msra.mxu0 %v349
        %376 = vmatmul.bf16.gmra.mxu0 %v366
        %v377 = vpop.f32.mrf.mxu0
        %v378 = vadd.f32 0.0, %v377
        %v379 = vpop.f32.mrf.mxu0
        %380 = vdwg.mxu0
        %381 = vmatpush.bf16.msra.mxu0 0
        %382 = vmatpush.bf16.msra.mxu0 0
        %383 = vmatpush.bf16.msra.mxu0 0
        %384 = vmatpush.bf16.msra.mxu0 0
        %385 = vmatpush.bf16.msra.mxu0 %v356
        %386 = vmatpush.bf16.msra.mxu0 %v354
        %387 = vmatpush.bf16.msra.mxu0 %v352
        %388 = vmatpush.bf16.msra.mxu0 %v350
        %389 = vmatmul.bf16.gmra.mxu0 %v366
        %v390 = vpop.f32.mrf.mxu0
        %v391 = vadd.f32 0.0, %v390
        %v392 = vpop.f32.mrf.mxu0
        %393 = vdwg.mxu0
        %v394 = vpack.c.bf16 %v391, %v378
        %vm395 = vcmask 1043456
        %vm396 = vcmask 523268
        %vm397 = vmor %vm396, %vm395
        %398 = vst.msk [vmem:[%s272] sm:$0xff] %vm397, %v394
        %p399 = scmp.lt.s32.totalorder %s20, 1
        %s400 = scalar_select %p399, %s20, 1
        %p401 = scmp.lt.s32.totalorder %s21, 0
        %s402 = scalar_select %p401, %s21, 0
        %s403 = smul.addr %s402, 2
        %s404 = smul.addr %s400, 2
        %s405 = sadd.s32 %s403, %s404
        %s406 = smul.addr %s405, 4
        %s407 = scalar_lea.vmem %s4, %s406
        // Predicated region
        $region41: #{latent_array_transformer.25} parent=35 // pred_check
          %p408 = pneg %p149
        $region42: #{latent_array_transformer.25} parent=35 // pred_check_branch
          %410 = sbr.rel (%p408) target = $region44
        $region43: #{latent_array_transformer.25} parent=35 // pred_region
          _
        $region44: #{latent_array_transformer.25} parent=35 // pred_fallthru
          _
      $region36: #{latent_array_transformer.25} parent=5 // pred_fallthru
        _
      %p411 = scmp.le.s32.totalorder 2, %s11
      // Predicated region
      $region45: #{latent_array_transformer.25} parent=5 // pred_check
        %p412 = pneg %p411
      $region46: #{latent_array_transformer.25} parent=5 // pred_check_branch
        %414 = sbr.rel (%p412) target = $region48
      $region47: #{latent_array_transformer.25} parent=5 // pred_region
        %s415 = ssub.s32 %s11, 2
        // Predicated region
        $region49: #{latent_array_transformer.25} parent=47 // pred_check
          %p416 = pneg %p155
        $region50: #{latent_array_transformer.25} parent=47 // pred_check_branch
          %418 = sbr.rel (%p416) target = $region52
        $region51: #{latent_array_transformer.25} parent=47 // pred_region
          %p419 = scmp.lt.s32.totalorder %s22, 1
          %s420 = scalar_select %p419, %s22, 1
          %p421 = scmp.lt.s32.totalorder %s23, 0
          %s422 = scalar_select %p421, %s23, 0
          %s423 = smul.addr %s422, 2
          %s424 = smul.addr %s420, 2
          %s425 = sadd.s32 %s423, %s424
          %s426 = smul.addr %s425, 4
          %s427 = scalar_lea.vmem %s4, %s426
        $region52: #{latent_array_transformer.25} parent=47 // pred_fallthru
          _
      $region48: #{latent_array_transformer.25} parent=5 // pred_fallthru
        _
    $region6: #{latent_array_transformer.25} parent=1 // loop_footer
      %s15 = sadd.s32 1, %s11
    $region7: #{latent_array_transformer.25} parent=1 // loop_footer_branch
      %10 = sbr.rel target = $region3
    $region8: #{latent_array_transformer.25} parent=1 // loop_exit
      _
    %428 = vsyncpa [#allocation3], 1
    %s429 = scalar_lea.sflag [#allocation3], 1
    %430 = vsyncpa %s429, 1

// kernel: latent_array_transformer.24
$region0: #{latent_array_transformer.24}
  #allocation0 [shape = 'u32[]', space=smem, size = 0x4, offset = 0x4, fixed_abs, tag = 'smem constant byte address 0x4 - core index']
  #allocation1 [shape = 'u32[72,128]{1,0:T(1,128)}', space=vmem, size = 0x9000, scoped, tag = 'internal scratch']
  #allocation2 [shape = 'f32[8,64]{1,0:T(8,128)}', space=vmem, size = 0x1000, scoped, tag = 'scratch operand']
  #allocation3 [shape = 'f32[8,64]{1,0:T(8,128)}', space=vmem, size = 0x1000, scoped, tag = 'scratch operand']
  %s0 = inlined_call_operand.vmem [shape: f32[2,8,64], index: 0, kind: input, shape index: {}]
  %s1 = inlined_call_operand.vmem [shape: f32[2,1,64], index: 1, kind: input, shape index: {}]
  %s2 = inlined_call_operand.vmem [shape: f32[2,1,64], index: 2, kind: input, shape index: {}]
  %s3 = inlined_call_operand.vmem [shape: bf16[64,256], index: 3, kind: input, shape index: {}]
  %s4 = inlined_call_operand.vmem [shape: bf16[64,256], index: 4, kind: input, shape index: {}]
  %s5 = inlined_call_operand.vmem [shape: f32[1,256], index: 5, kind: input, shape index: {}]
  %s6 = inlined_call_operand.vmem [shape: f32[1,256], index: 6, kind: input, shape index: {}]
  %s7 = inlined_call_operand.vmem [shape: bf16[256,64], index: 7, kind: input, shape index: {}]
  %s8 = inlined_call_operand.hbm [shape: f32[1,64], index: 8, kind: input, shape index: {}]
  %s9 = inlined_call_operand.vmem [shape: f32[2,8,64], index: 9, kind: output, shape index: {}]
  %s10 = sld [smem:[#allocation0]]
  $region81: #{latent_array_transformer.24} parent=0
    _
  %s12 = ssub.s32 1, %s10
  %s13 = scalar_select 0, %s12, %s10
  $region1: #{latent_array_transformer.24} parent=0
    #allocation4 [shape = 'u8[512]{0}', space=vmem, size = 0x400, scoped, tag = 'input window, operand 8, single buffered']
    #allocation5 [shape = 's32[2]{0}', space=sflag, size = 0x8, scoped, tag = 'scoped memory for latent_array_transformer.24']
    %14 = vsyncpa [#allocation5], 0
    loop: start=0, step=1, limit=4
    $region2: #{latent_array_transformer.24} parent=1 // loop_pre_header
      _
    $region3: #{latent_array_transformer.24} parent=1 // loop_header
      %s16 = sphi 0, %s20
      %p17 = scmp.ge.s32.totalorder %s16, 4
      %s23 = sphi 0, %s42
      %s24 = sphi 0, %s38
      %s25 = sphi 0, %s34
      %s26 = sphi 0, %s23
      %s27 = sphi 0, %s24
      %s28 = sphi 0, %s25
      %s29 = sphi 0, %s26
      %s30 = sphi 0, %s27
      %s31 = sphi 0, %s28
      %s47 = sphi 0, %s49
      %s50 = sphi 0, %s47
      %s51 = sphi 0, %s50
      %s67 = sphi 0, %s51
      %s73 = sphi 0, %s75
      %s76 = sphi 0, %s73
      %s77 = sphi 0, %s76
      %s93 = sphi 0, %s77
      %s99 = sphi 0, %s101
      %s102 = sphi 0, %s99
      %s103 = sphi 0, %s102
      %s119 = sphi 0, %s103
      %s125 = sphi 0, %s127
      %s128 = sphi 0, %s125
      %s129 = sphi 0, %s128
      %s145 = sphi 0, %s129
      %s151 = sphi 0, %s153
      %s154 = sphi 0, %s151
      %s155 = sphi 0, %s154
      %s171 = sphi 0, %s155
      %s177 = sphi 0, %s179
      %s180 = sphi 0, %s177
      %s181 = sphi 0, %s180
      %s197 = sphi 0, %s181
      %s203 = sphi 0, %s205
      %s206 = sphi 0, %s203
      %s207 = sphi 0, %s206
      %s223 = sphi 0, %s207
      %s229 = sphi 0, %s231
      %s232 = sphi 0, %s229
      %s233 = sphi 0, %s232
      %s249 = sphi 0, %s233
      %s253 = sphi 0, %s253
      %s255 = sphi 0, %s253
      %s256 = sphi 0, %s255
      %s270 = sphi 0, %s256
      %s278 = sphi 0, %s280
      %s281 = sphi 0, %s278
      %s282 = sphi 0, %s281
      %s298 = sphi 0, %s282
    $region4: #{latent_array_transformer.24} parent=1 // loop_header_branch
      %19 = sbr.rel (%p17) target = $region8
    $region5: #{latent_array_transformer.24} parent=1 // loop_body
      %s21 = ssub.s32 %s16, 1
      %s22 = ssub.s32 %s16, 2
      %s32 = sadd.s32 1, %s25
      %p33 = scmp.ge.s32.totalorder %s32, 1
      %s34 = scalar_select %p33, 0, %s32
      %s35 = sadd.s32 1, %s24
      %s36 = scalar_select %p33, %s35, %s24
      %p37 = scmp.ge.s32.totalorder %s36, 1
      %s38 = scalar_select %p37, 0, %s36
      %s39 = sadd.s32 1, %s23
      %s40 = scalar_select %p37, %s39, %s23
      %p41 = scmp.ge.s32.totalorder %s40, 2
      %s42 = scalar_select %p41, 0, %s40
      %s43 = ssub.s32 %s23, %s42
      %s44 = ssub.s32 %s24, %s38
      %s45 = sor.u32 %s43, %s44
      %p46 = scmp.eq.s32.totalorder %s45, 0
      %s48 = sadd.s32 %s47, 1
      %s49 = scalar_select %p46, %s47, %s48
      %p52 = pneg %p46
      %p53 = scmp.eq.s32.totalorder %s16, 1
      %p54 = por %p52, %p53
      %p55 = scmp.ne.s32.totalorder %s47, %s50
      %p56 = scmp.eq.s32.totalorder %s16, 0
      %p57 = por %p55, %p56
      %p58 = scmp.ne.s32.totalorder %s47, %s50
      %p59 = scmp.eq.s32.totalorder %s21, 1
      %p60 = por %p58, %p59
      %p61 = scmp.ne.s32.totalorder %s50, %s51
      %p62 = scmp.eq.s32.totalorder %s21, 0
      %p63 = por %p61, %p62
      %p64 = scmp.ne.s32.totalorder %s50, %s51
      %p65 = scmp.eq.s32.totalorder %s22, 1
      %p66 = por %p64, %p65
      %p68 = scmp.ne.s32.totalorder %s51, %s67
      %p69 = scmp.eq.s32.totalorder %s22, 0
      %p70 = por %p68, %p69
      %s71 = ssub.s32 %s23, %s42
      %p72 = scmp.eq.s32.totalorder %s71, 0
      %s74 = sadd.s32 %s73, 1
      %s75 = scalar_select %p72, %s73, %s74
      %p78 = pneg %p72
      %p79 = scmp.eq.s32.totalorder %s16, 1
      %p80 = por %p78, %p79
      %p81 = scmp.ne.s32.totalorder %s73, %s76
      %p82 = scmp.eq.s32.totalorder %s16, 0
      %p83 = por %p81, %p82
      %p84 = scmp.ne.s32.totalorder %s73, %s76
      %p85 = scmp.eq.s32.totalorder %s21, 1
      %p86 = por %p84, %p85
      %p87 = scmp.ne.s32.totalorder %s76, %s77
      %p88 = scmp.eq.s32.totalorder %s21, 0
      %p89 = por %p87, %p88
      %p90 = scmp.ne.s32.totalorder %s76, %s77
      %p91 = scmp.eq.s32.totalorder %s22, 1
      %p92 = por %p90, %p91
      %p94 = scmp.ne.s32.totalorder %s77, %s93
      %p95 = scmp.eq.s32.totalorder %s22, 0
      %p96 = por %p94, %p95
      %s97 = ssub.s32 %s23, %s42
      %p98 = scmp.eq.s32.totalorder %s97, 0
      %s100 = sadd.s32 %s99, 1
      %s101 = scalar_select %p98, %s99, %s100
      %p104 = pneg %p98
      %p105 = scmp.eq.s32.totalorder %s16, 1
      %p106 = por %p104, %p105
      %p107 = scmp.ne.s32.totalorder %s99, %s102
      %p108 = scmp.eq.s32.totalorder %s16, 0
      %p109 = por %p107, %p108
      %p110 = scmp.ne.s32.totalorder %s99, %s102
      %p111 = scmp.eq.s32.totalorder %s21, 1
      %p112 = por %p110, %p111
      %p113 = scmp.ne.s32.totalorder %s102, %s103
      %p114 = scmp.eq.s32.totalorder %s21, 0
      %p115 = por %p113, %p114
      %p116 = scmp.ne.s32.totalorder %s102, %s103
      %p117 = scmp.eq.s32.totalorder %s22, 1
      %p118 = por %p116, %p117
      %p120 = scmp.ne.s32.totalorder %s103, %s119
      %p121 = scmp.eq.s32.totalorder %s22, 0
      %p122 = por %p120, %p121
      %s123 = ssub.s32 %s25, %s34
      %p124 = scmp.eq.s32.totalorder %s123, 0
      %s126 = sadd.s32 %s125, 1
      %s127 = scalar_select %p124, %s125, %s126
      %p130 = pneg %p124
      %p131 = scmp.eq.s32.totalorder %s16, 1
      %p132 = por %p130, %p131
      %p133 = scmp.ne.s32.totalorder %s125, %s128
      %p134 = scmp.eq.s32.totalorder %s16, 0
      %p135 = por %p133, %p134
      %p136 = scmp.ne.s32.totalorder %s125, %s128
      %p137 = scmp.eq.s32.totalorder %s21, 1
      %p138 = por %p136, %p137
      %p139 = scmp.ne.s32.totalorder %s128, %s129
      %p140 = scmp.eq.s32.totalorder %s21, 0
      %p141 = por %p139, %p140
      %p142 = scmp.ne.s32.totalorder %s128, %s129
      %p143 = scmp.eq.s32.totalorder %s22, 1
      %p144 = por %p142, %p143
      %p146 = scmp.ne.s32.totalorder %s129, %s145
      %p147 = scmp.eq.s32.totalorder %s22, 0
      %p148 = por %p146, %p147
      %s149 = ssub.s32 %s25, %s34
      %p150 = scmp.eq.s32.totalorder %s149, 0
      %s152 = sadd.s32 %s151, 1
      %s153 = scalar_select %p150, %s151, %s152
      %p156 = pneg %p150
      %p157 = scmp.eq.s32.totalorder %s16, 1
      %p158 = por %p156, %p157
      %p159 = scmp.ne.s32.totalorder %s151, %s154
      %p160 = scmp.eq.s32.totalorder %s16, 0
      %p161 = por %p159, %p160
      %p162 = scmp.ne.s32.totalorder %s151, %s154
      %p163 = scmp.eq.s32.totalorder %s21, 1
      %p164 = por %p162, %p163
      %p165 = scmp.ne.s32.totalorder %s154, %s155
      %p166 = scmp.eq.s32.totalorder %s21, 0
      %p167 = por %p165, %p166
      %p168 = scmp.ne.s32.totalorder %s154, %s155
      %p169 = scmp.eq.s32.totalorder %s22, 1
      %p170 = por %p168, %p169
      %p172 = scmp.ne.s32.totalorder %s155, %s171
      %p173 = scmp.eq.s32.totalorder %s22, 0
      %p174 = por %p172, %p173
      %s175 = ssub.s32 %s25, %s34
      %p176 = scmp.eq.s32.totalorder %s175, 0
      %s178 = sadd.s32 %s177, 1
      %s179 = scalar_select %p176, %s177, %s178
      %p182 = pneg %p176
      %p183 = scmp.eq.s32.totalorder %s16, 1
      %p184 = por %p182, %p183
      %p185 = scmp.ne.s32.totalorder %s177, %s180
      %p186 = scmp.eq.s32.totalorder %s16, 0
      %p187 = por %p185, %p186
      %p188 = scmp.ne.s32.totalorder %s177, %s180
      %p189 = scmp.eq.s32.totalorder %s21, 1
      %p190 = por %p188, %p189
      %p191 = scmp.ne.s32.totalorder %s180, %s181
      %p192 = scmp.eq.s32.totalorder %s21, 0
      %p193 = por %p191, %p192
      %p194 = scmp.ne.s32.totalorder %s180, %s181
      %p195 = scmp.eq.s32.totalorder %s22, 1
      %p196 = por %p194, %p195
      %p198 = scmp.ne.s32.totalorder %s181, %s197
      %p199 = scmp.eq.s32.totalorder %s22, 0
      %p200 = por %p198, %p199
      %s201 = ssub.s32 %s25, %s34
      %p202 = scmp.eq.s32.totalorder %s201, 0
      %s204 = sadd.s32 %s203, 1
      %s205 = scalar_select %p202, %s203, %s204
      %p208 = pneg %p202
      %p209 = scmp.eq.s32.totalorder %s16, 1
      %p210 = por %p208, %p209
      %p211 = scmp.ne.s32.totalorder %s203, %s206
      %p212 = scmp.eq.s32.totalorder %s16, 0
      %p213 = por %p211, %p212
      %p214 = scmp.ne.s32.totalorder %s203, %s206
      %p215 = scmp.eq.s32.totalorder %s21, 1
      %p216 = por %p214, %p215
      %p217 = scmp.ne.s32.totalorder %s206, %s207
      %p218 = scmp.eq.s32.totalorder %s21, 0
      %p219 = por %p217, %p218
      %p220 = scmp.ne.s32.totalorder %s206, %s207
      %p221 = scmp.eq.s32.totalorder %s22, 1
      %p222 = por %p220, %p221
      %p224 = scmp.ne.s32.totalorder %s207, %s223
      %p225 = scmp.eq.s32.totalorder %s22, 0
      %p226 = por %p224, %p225
      %s227 = ssub.s32 %s25, %s34
      %p228 = scmp.eq.s32.totalorder %s227, 0
      %s230 = sadd.s32 %s229, 1
      %s231 = scalar_select %p228, %s229, %s230
      %p234 = pneg %p228
      %p235 = scmp.eq.s32.totalorder %s16, 1
      %p236 = por %p234, %p235
      %p237 = scmp.ne.s32.totalorder %s229, %s232
      %p238 = scmp.eq.s32.totalorder %s16, 0
      %p239 = por %p237, %p238
      %p240 = scmp.ne.s32.totalorder %s229, %s232
      %p241 = scmp.eq.s32.totalorder %s21, 1
      %p242 = por %p240, %p241
      %p243 = scmp.ne.s32.totalorder %s232, %s233
      %p244 = scmp.eq.s32.totalorder %s21, 0
      %p245 = por %p243, %p244
      %p246 = scmp.ne.s32.totalorder %s232, %s233
      %p247 = scmp.eq.s32.totalorder %s22, 1
      %p248 = por %p246, %p247
      %p250 = scmp.ne.s32.totalorder %s233, %s249
      %p251 = scmp.eq.s32.totalorder %s22, 0
      %p252 = por %p250, %p251
      %s254 = sadd.s32 %s253, 1
      %p257 = scmp.eq.s32.totalorder %s16, 1
      %p258 = scmp.ne.s32.totalorder %s253, %s255
      %p259 = scmp.eq.s32.totalorder %s16, 0
      %p260 = por %p258, %p259
      %p261 = scmp.ne.s32.totalorder %s253, %s255
      %p262 = scmp.eq.s32.totalorder %s21, 1
      %p263 = por %p261, %p262
      %p264 = scmp.ne.s32.totalorder %s255, %s256
      %p265 = scmp.eq.s32.totalorder %s21, 0
      %p266 = por %p264, %p265
      %p267 = scmp.ne.s32.totalorder %s255, %s256
      %p268 = scmp.eq.s32.totalorder %s22, 1
      %p269 = por %p267, %p268
      %p271 = scmp.ne.s32.totalorder %s256, %s270
      %p272 = scmp.eq.s32.totalorder %s22, 0
      %p273 = por %p271, %p272
      %s274 = ssub.s32 %s23, %s42
      %s275 = ssub.s32 %s24, %s38
      %s276 = sor.u32 %s274, %s275
      %p277 = scmp.eq.s32.totalorder %s276, 0
      %s279 = sadd.s32 %s278, 1
      %s280 = scalar_select %p277, %s278, %s279
      %p283 = pneg %p277
      %p284 = scmp.eq.s32.totalorder %s16, 1
      %p285 = por %p283, %p284
      %p286 = scmp.ne.s32.totalorder %s278, %s281
      %p287 = scmp.eq.s32.totalorder %s16, 0
      %p288 = por %p286, %p287
      %p289 = scmp.ne.s32.totalorder %s278, %s281
      %p290 = scmp.eq.s32.totalorder %s21, 1
      %p291 = por %p289, %p290
      %p292 = scmp.ne.s32.totalorder %s281, %s282
      %p293 = scmp.eq.s32.totalorder %s21, 0
      %p294 = por %p292, %p293
      %p295 = scmp.ne.s32.totalorder %s281, %s282
      %p296 = scmp.eq.s32.totalorder %s22, 1
      %p297 = por %p295, %p296
      %p299 = scmp.ne.s32.totalorder %s282, %s298
      %p300 = scmp.eq.s32.totalorder %s22, 0
      %p301 = por %p299, %p300
      %p302 = scmp.le.s32.totalorder 1, %s16
      %p303 = scmp.lt.s32.totalorder %s16, 3
      %p304 = pnand %p302, %p303
      %p305 = pneg %p304
      // Predicated region
      $region9: #{latent_array_transformer.24} parent=5 // pred_check
        _
      $region10: #{latent_array_transformer.24} parent=5 // pred_check_branch
        %307 = sbr.rel (%p304) target = $region12
      $region11: #{latent_array_transformer.24} parent=5 // pred_region
        %s308 = ssub.s32 %s16, 1
        // Predicated region
        $region13: #{latent_array_transformer.24} parent=11 // pred_check
          %p309 = pneg %p141
        $region14: #{latent_array_transformer.24} parent=11 // pred_check_branch
          %311 = sbr.rel (%p309) target = $region16
        $region15: #{latent_array_transformer.24} parent=11 // pred_region
          %s312 = smul.u32 2, %s28
          %p313 = scmp.lt.s32.totalorder %s312, 1
          %s314 = scalar_select %p313, %s312, 1
          %s315 = smul.addr %s314, 4
          %s316 = scalar_lea.vmem %s3, %s315
          %s317 = smul.u32 2, %s28
        $region16: #{latent_array_transformer.24} parent=11 // pred_fallthru
          _
        // Predicated region
        $region17: #{latent_array_transformer.24} parent=11 // pred_check
          %p318 = pneg %p167
        $region18: #{latent_array_transformer.24} parent=11 // pred_check_branch
          %320 = sbr.rel (%p318) target = $region20
        $region19: #{latent_array_transformer.24} parent=11 // pred_region
          %s321 = smul.u32 2, %s28
          %p322 = scmp.lt.s32.totalorder %s321, 1
          %s323 = scalar_select %p322, %s321, 1
          %s324 = smul.addr %s323, 4
          %s325 = scalar_lea.vmem %s4, %s324
          %s326 = smul.u32 2, %s28
        $region20: #{latent_array_transformer.24} parent=11 // pred_fallthru
          _
        // Predicated region
        $region21: #{latent_array_transformer.24} parent=11 // pred_check
          %p327 = pneg %p193
        $region22: #{latent_array_transformer.24} parent=11 // pred_check_branch
          %329 = sbr.rel (%p327) target = $region24
        $region23: #{latent_array_transformer.24} parent=11 // pred_region
          %s330 = smul.u32 2, %s28
          %p331 = scmp.lt.s32.totalorder %s330, 1
          %s332 = scalar_select %p331, %s330, 1
          %s333 = scalar_lea.vmem %s5, %s332
          %s334 = smul.u32 2, %s28
        $region24: #{latent_array_transformer.24} parent=11 // pred_fallthru
          _
        // Predicated region
        $region25: #{latent_array_transformer.24} parent=11 // pred_check
          %p335 = pneg %p219
        $region26: #{latent_array_transformer.24} parent=11 // pred_check_branch
          %337 = sbr.rel (%p335) target = $region28
        $region27: #{latent_array_transformer.24} parent=11 // pred_region
          %s338 = smul.u32 2, %s28
          %p339 = scmp.lt.s32.totalorder %s338, 1
          %s340 = scalar_select %p339, %s338, 1
          %s341 = scalar_lea.vmem %s6, %s340
          %s342 = smul.u32 2, %s28
        $region28: #{latent_array_transformer.24} parent=11 // pred_fallthru
          _
        // Predicated region
        $region29: #{latent_array_transformer.24} parent=11 // pred_check
          %p343 = pneg %p245
        $region30: #{latent_array_transformer.24} parent=11 // pred_check_branch
          %345 = sbr.rel (%p343) target = $region32
        $region31: #{latent_array_transformer.24} parent=11 // pred_region
          %s346 = smul.u32 32, %s28
          %p347 = scmp.lt.s32.totalorder %s346, 31
          %s348 = scalar_select %p347, %s346, 31
          %s349 = smul.addr %s348, 4
          %s350 = scalar_lea.vmem %s7, %s349
          %s351 = smul.u32 32, %s28
        $region32: #{latent_array_transformer.24} parent=11 // pred_fallthru
          _
        // Predicated region
        $region33: #{latent_array_transformer.24} parent=11 // pred_check
          %p352 = pneg %p266
        $region34: #{latent_array_transformer.24} parent=11 // pred_check_branch
          %354 = sbr.rel (%p352) target = $region36
        $region35: #{latent_array_transformer.24} parent=11 // pred_region
          %356 = vsyncadd [#allocation5], 0
          %s358 = sshll.u32 %s8, 4
          %s359 = int_to_ptr.hbm [resolvable:$true] %s358
          %s360 = sshll.u32 [#allocation4], 4
          %s361 = int_to_ptr.vmem [resolvable:$true] %s360
          %363 = dma.hbm_to_vmem [thread:$0]  %s359, 16, %s361, [#allocation5]
        $region36: #{latent_array_transformer.24} parent=11 // pred_fallthru
          _
      $region12: #{latent_array_transformer.24} parent=5 // pred_fallthru
        _
      %p364 = scmp.lt.s32.totalorder %s16, 2
      // Predicated region
      $region37: #{latent_array_transformer.24} parent=5 // pred_check
        %p365 = pneg %p364
      $region38: #{latent_array_transformer.24} parent=5 // pred_check_branch
        %367 = sbr.rel (%p365) target = $region40
      $region39: #{latent_array_transformer.24} parent=5 // pred_region
        // Predicated region
        $region41: #{latent_array_transformer.24} parent=39 // pred_check
          %p368 = pneg %p57
        $region42: #{latent_array_transformer.24} parent=39 // pred_check_branch
          %370 = sbr.rel (%p368) target = $region44
        $region43: #{latent_array_transformer.24} parent=39 // pred_region
          %p371 = scmp.lt.s32.totalorder %s23, 1
          %s372 = scalar_select %p371, %s23, 1
          %p373 = scmp.lt.s32.totalorder %s24, 0
          %s374 = scalar_select %p373, %s24, 0
          %s375 = sadd.s32 %s374, %s372
          %s376 = smul.addr %s375, 8
          %s377 = scalar_lea.vmem %s0, %s376
        $region44: #{latent_array_transformer.24} parent=39 // pred_fallthru
          _
        // Predicated region
        $region45: #{latent_array_transformer.24} parent=39 // pred_check
          %p378 = pneg %p83
        $region46: #{latent_array_transformer.24} parent=39 // pred_check_branch
          %380 = sbr.rel (%p378) target = $region48
        $region47: #{latent_array_transformer.24} parent=39 // pred_region
          %p381 = scmp.lt.s32.totalorder %s23, 1
          %s382 = scalar_select %p381, %s23, 1
          %s383 = scalar_lea.vmem %s1, %s382
        $region48: #{latent_array_transformer.24} parent=39 // pred_fallthru
          _
        // Predicated region
        $region49: #{latent_array_transformer.24} parent=39 // pred_check
          %p384 = pneg %p109
        $region50: #{latent_array_transformer.24} parent=39 // pred_check_branch
          %386 = sbr.rel (%p384) target = $region52
        $region51: #{latent_array_transformer.24} parent=39 // pred_region
          %p387 = scmp.lt.s32.totalorder %s23, 1
          %s388 = scalar_select %p387, %s23, 1
          %s389 = scalar_lea.vmem %s2, %s388
        $region52: #{latent_array_transformer.24} parent=39 // pred_fallthru
          _
      $region40: #{latent_array_transformer.24} parent=5 // pred_fallthru
        _
      %p390 = scmp.le.s32.totalorder 1, %s16
      %p391 = scmp.lt.s32.totalorder %s16, 3
      %p392 = pnand %p390, %p391
      %p393 = pneg %p392
      // Predicated region
      $region53: #{latent_array_transformer.24} parent=5 // pred_check
        _
      $region54: #{latent_array_transformer.24} parent=5 // pred_check_branch
        %395 = sbr.rel (%p392) target = $region56
      $region55: #{latent_array_transformer.24} parent=5 // pred_region
        %s396 = ssub.s32 %s16, 1
        // Predicated region
        $region57: #{latent_array_transformer.24} parent=55 // pred_check
          %p397 = pneg %p266
        $region58: #{latent_array_transformer.24} parent=55 // pred_check_branch
          %399 = sbr.rel (%p397) target = $region60
        $region59: #{latent_array_transformer.24} parent=55 // pred_region
          %401 = dma.done [#allocation5], 16
        $region60: #{latent_array_transformer.24} parent=55 // pred_fallthru
          _
        %p402 = scmp.lt.s32.totalorder %s26, 1
        %s403 = scalar_select %p402, %s26, 1
        %p404 = scmp.lt.s32.totalorder %s27, 0
        %s405 = scalar_select %p404, %s27, 0
        %s406 = sadd.s32 %s405, %s403
        %s407 = smul.addr %s406, 8
        %s408 = scalar_lea.vmem %s0, %s407
        %p409 = pneg %p63
        %p410 = pneg %p60
        %p411 = scmp.lt.s32.totalorder %s26, 1
        %s412 = scalar_select %p411, %s26, 1
        %s413 = scalar_lea.vmem %s1, %s412
        %p414 = pneg %p89
        %p415 = pneg %p86
        %p416 = scmp.lt.s32.totalorder %s26, 1
        %s417 = scalar_select %p416, %s26, 1
        %s418 = scalar_lea.vmem %s2, %s417
        %p419 = pneg %p115
        %p420 = pneg %p112
        %s421 = smul.u32 2, %s28
        %p422 = scmp.lt.s32.totalorder %s421, 1
        %s423 = scalar_select %p422, %s421, 1
        %s424 = smul.addr %s423, 4
        %s425 = scalar_lea.vmem %s3, %s424
        %p426 = pneg %p141
        %p427 = pneg %p138
        %s428 = smul.u32 2, %s28
        %p429 = scmp.lt.s32.totalorder %s428, 1
        %s430 = scalar_select %p429, %s428, 1
        %s431 = smul.addr %s430, 4
        %s432 = scalar_lea.vmem %s4, %s431
        %p433 = pneg %p167
        %p434 = pneg %p164
        %s435 = smul.u32 2, %s28
        %p436 = scmp.lt.s32.totalorder %s435, 1
        %s437 = scalar_select %p436, %s435, 1
        %s438 = scalar_lea.vmem %s5, %s437
        %p439 = pneg %p193
        %p440 = pneg %p190
        %s441 = smul.u32 2, %s28
        %p442 = scmp.lt.s32.totalorder %s441, 1
        %s443 = scalar_select %p442, %s441, 1
        %s444 = scalar_lea.vmem %s6, %s443
        %p445 = pneg %p219
        %p446 = pneg %p216
        %s447 = smul.u32 32, %s28
        %p448 = scmp.lt.s32.totalorder %s447, 31
        %s449 = scalar_select %p448, %s447, 31
        %s450 = smul.addr %s449, 4
        %s451 = scalar_lea.vmem %s7, %s450
        %p452 = pneg %p245
        %p453 = pneg %p242
        %p454 = pneg %p266
        %p455 = pneg %p263
        %p456 = pneg %p294
        %p457 = pneg %p291
        %p458 = scmp.lt.s32.totalorder %s26, 1
        %s459 = scalar_select %p458, %s26, 1
        %p460 = scmp.lt.s32.totalorder %s27, 0
        %s461 = scalar_select %p460, %s27, 0
        %s462 = sadd.s32 %s461, %s459
        %s463 = smul.addr %s462, 8
        %s464 = scalar_lea.vmem %s9, %s463
        %p465 = scmp.lt.s32.totalorder %s26, 1
        %s466 = scalar_select %p465, %s26, 1
        %p467 = scmp.lt.s32.totalorder %s27, 0
        %s468 = scalar_select %p467, %s27, 0
        %s469 = sadd.s32 %s468, %s466
        %s470 = smul.addr %s469, 8
        %s471 = scalar_lea.vmem %s0, %s470
        %p472 = scmp.lt.s32.totalorder %s26, 1
        %s473 = scalar_select %p472, %s26, 1
        %s474 = scalar_lea.vmem %s1, %s473
        %p475 = scmp.lt.s32.totalorder %s26, 1
        %s476 = scalar_select %p475, %s26, 1
        %s477 = scalar_lea.vmem %s2, %s476
        %s478 = smul.u32 2, %s28
        %p479 = scmp.lt.s32.totalorder %s478, 1
        %s480 = scalar_select %p479, %s478, 1
        %s481 = smul.addr %s480, 4
        %s482 = scalar_lea.vmem %s3, %s481
        %s483 = smul.u32 2, %s28
        %s484 = smul.u32 2, %s28
        %p485 = scmp.lt.s32.totalorder %s484, 1
        %s486 = scalar_select %p485, %s484, 1
        %s487 = smul.addr %s486, 4
        %s488 = scalar_lea.vmem %s4, %s487
        %s489 = smul.u32 2, %s28
        %s490 = smul.u32 2, %s28
        %p491 = scmp.lt.s32.totalorder %s490, 1
        %s492 = scalar_select %p491, %s490, 1
        %s493 = scalar_lea.vmem %s5, %s492
        %s494 = smul.u32 2, %s28
        %s495 = smul.u32 2, %s28
        %p496 = scmp.lt.s32.totalorder %s495, 1
        %s497 = scalar_select %p496, %s495, 1
        %s498 = scalar_lea.vmem %s6, %s497
        %s499 = smul.u32 2, %s28
        %s500 = smul.u32 32, %s28
        %p501 = scmp.lt.s32.totalorder %s500, 31
        %s502 = scalar_select %p501, %s500, 31
        %s503 = smul.addr %s502, 4
        %s504 = scalar_lea.vmem %s7, %s503
        %s505 = smul.u32 32, %s28
        %p506 = scmp.lt.s32.totalorder %s26, 1
        %s507 = scalar_select %p506, %s26, 1
        %p508 = scmp.lt.s32.totalorder %s27, 0
        %s509 = scalar_select %p508, %s27, 0
        %s510 = sadd.s32 %s509, %s507
        %s511 = smul.addr %s510, 8
        %s512 = scalar_lea.vmem %s9, %s511
        %p514 = scmp.eq.s32.totalorder %s28, 0
        // Predicated region
        $region61: #{latent_array_transformer.24} parent=55 // pred_check
          %p515 = pneg %p514
        $region62: #{latent_array_transformer.24} parent=55 // pred_check_branch
          %517 = sbr.rel (%p515) target = $region64
        $region63: #{latent_array_transformer.24} parent=55 // pred_region
          %v518 = vld [vmem:[%s471] sm:$0xff]
          %vm519 = vcmask 523264
          %v520 = vsel %vm519, %v518, 0.0
          %521 = vadd.xlane.f32.xlu0 %v520
          %v522 = vpop.xlane.xlu0 %521
          %v523 = vrcp.pop 64.0
          %v524 = vmul.f32 64.0, %v523
          %v525 = vsub.f32 1.0, %v524
          %v526 = vmul.f32 %v523, %v525
          %v527 = vadd.f32 %v523, %v526
          %vm528 = vweird.f32 %v523
          %v529 = vsel %vm528, %v523, %v527
          %v530 = vmul.f32 %v522, %v529
          %v531 = vsub.f32 %v518, %v530
          %v532 = vmul.f32 %v531, %v531
          %v533 = vsel %vm519, %v532, 0.0
          %534 = vadd.xlane.f32.xlu0 %v533
          %v535 = vpop.xlane.xlu0 %534
          %v536 = vmul.f32 %v535, %v529
          %v537 = vadd.f32 %v536, 1e-05
          %v538 = vrsqrt.pop %v537
          %v539 = vmul.f32 %v538, %v537
          %v540 = vmul.f32 %v539, %v538
          %v541 = vmul.f32 0.5, %v540
          %v542 = vsub.f32 1.5, %v541
          %v543 = vmul.f32 %v538, %v542
          %vm544 = vweird.f32 %v537
          %vm545 = vweird.f32 %v538
          %vm546 = vmor %vm544, %vm545
          %v547 = vsel %vm546, %v538, %v543
          %v548 = vmul.f32 %v531, %v547
          %v549 = vld [vmem:[%s474] sm:$0x1]
          %v550 = vadd.f32 %v549, 1.0
          %v552 = vperm.slane %v550, 0
          %v554 = vmul.f32 %v548, %v552
          %v555 = vld [vmem:[%s477] sm:$0x1]
          %v557 = vperm.slane %v555, 0
          %v559 = vadd.f32 %v554, %v557
          %560 = vst.msk [vmem:[#allocation2] sm:$0xff] %vm519, %v559
          %561 = vst.msk [vmem:[#allocation3] sm:$0xff] %vm519, 0.0
        $region64: #{latent_array_transformer.24} parent=55 // pred_fallthru
          _
        %v562 = vld [vmem:[#allocation2] sm:$0xff]
        %v563 = vpack.c.bf16 %v562, %v562
        %v564 = vld [vmem:[%s482] sm:$0xff]
        %v565 = vld [vmem:[%s482 + $0x8] sm:$0xff]
        %v566 = vld [vmem:[%s482 + $0x10] sm:$0xff]
        %v567 = vld [vmem:[%s482 + $0x18] sm:$0xff]
        %v568 = vld [vmem:[%s482 + $0x20] sm:$0xff]
        %v569 = vld [vmem:[%s482 + $0x28] sm:$0xff]
        %v570 = vld [vmem:[%s482 + $0x30] sm:$0xff]
        %v571 = vld [vmem:[%s482 + $0x38] sm:$0xff]
        %v572 = vld [vmem:[%s493] sm:$0x3]
        %v574 = vperm.slane %v572, 0
        %v575 = vperm.slane %v572, 1
        %v586 = vunpack.c.l.b16 %v564
        %v587 = vunpack.c.h.b16 %v564
        %v588 = vunpack.c.l.b16 %v565
        %v589 = vunpack.c.h.b16 %v565
        %v590 = vunpack.c.l.b16 %v566
        %v591 = vunpack.c.h.b16 %v566
        %v592 = vunpack.c.l.b16 %v567
        %v593 = vunpack.c.h.b16 %v567
        %v594 = vunpack.c.l.b16 %v568
        %v595 = vunpack.c.h.b16 %v568
        %v596 = vunpack.c.l.b16 %v569
        %v597 = vunpack.c.h.b16 %v569
        %v598 = vunpack.c.l.b16 %v570
        %v599 = vunpack.c.h.b16 %v570
        %v600 = vunpack.c.l.b16 %v571
        %v601 = vunpack.c.h.b16 %v571
        %v602 = vpack.c.b16 %v588, %v586
        %v603 = vpack.c.b16 %v589, %v587
        %v604 = vpack.c.b16 %v592, %v590
        %v605 = vpack.c.b16 %v593, %v591
        %v606 = vpack.c.b16 %v596, %v594
        %v607 = vpack.c.b16 %v597, %v595
        %v608 = vpack.c.b16 %v600, %v598
        %v609 = vpack.c.b16 %v601, %v599
        %vm618 = vcmask 523264
        %v620 = vsel %vm618, %v563, 0
        %622 = vmatpush.bf16.msra.mxu0 0
        %623 = vmatpush.bf16.msra.mxu0 0
        %624 = vmatpush.bf16.msra.mxu0 0
        %625 = vmatpush.bf16.msra.mxu0 0
        %626 = vmatpush.bf16.msra.mxu0 %v608
        %627 = vmatpush.bf16.msra.mxu0 %v606
        %628 = vmatpush.bf16.msra.mxu0 %v604
        %629 = vmatpush.bf16.msra.mxu0 %v602
        %630 = vmatmul.bf16.gmra.mxu0 %v620
        %v631 = vpop.f32.mrf.mxu0
        %v632 = vadd.f32 %v574, %v631
        %v633 = vpop.f32.mrf.mxu0
        %634 = vdwg.mxu0
        %635 = vmatpush.bf16.msra.mxu0 0
        %636 = vmatpush.bf16.msra.mxu0 0
        %637 = vmatpush.bf16.msra.mxu0 0
        %638 = vmatpush.bf16.msra.mxu0 0
        %639 = vmatpush.bf16.msra.mxu0 %v609
        %640 = vmatpush.bf16.msra.mxu0 %v607
        %641 = vmatpush.bf16.msra.mxu0 %v605
        %642 = vmatpush.bf16.msra.mxu0 %v603
        %643 = vmatmul.bf16.gmra.mxu0 %v620
        %v644 = vpop.f32.mrf.mxu0
        %v645 = vadd.f32 %v575, %v644
        %v646 = vpop.f32.mrf.mxu0
        %647 = vdwg.mxu0
        %v648 = vld [vmem:[%s488] sm:$0xff]
        %v649 = vld [vmem:[%s488 + $0x8] sm:$0xff]
        %v650 = vld [vmem:[%s488 + $0x10] sm:$0xff]
        %v651 = vld [vmem:[%s488 + $0x18] sm:$0xff]
        %v652 = vld [vmem:[%s488 + $0x20] sm:$0xff]
        %v653 = vld [vmem:[%s488 + $0x28] sm:$0xff]
        %v654 = vld [vmem:[%s488 + $0x30] sm:$0xff]
        %v655 = vld [vmem:[%s488 + $0x38] sm:$0xff]
        %v656 = vld [vmem:[%s498] sm:$0x3]
        %v658 = vperm.slane %v656, 0
        %v659 = vperm.slane %v656, 1
        %v670 = vunpack.c.l.b16 %v648
        %v671 = vunpack.c.h.b16 %v648
        %v672 = vunpack.c.l.b16 %v649
        %v673 = vunpack.c.h.b16 %v649
        %v674 = vunpack.c.l.b16 %v650
        %v675 = vunpack.c.h.b16 %v650
        %v676 = vunpack.c.l.b16 %v651
        %v677 = vunpack.c.h.b16 %v651
        %v678 = vunpack.c.l.b16 %v652
        %v679 = vunpack.c.h.b16 %v652
        %v680 = vunpack.c.l.b16 %v653
        %v681 = vunpack.c.h.b16 %v653
        %v682 = vunpack.c.l.b16 %v654
        %v683 = vunpack.c.h.b16 %v654
        %v684 = vunpack.c.l.b16 %v655
        %v685 = vunpack.c.h.b16 %v655
        %v686 = vpack.c.b16 %v672, %v670
        %v687 = vpack.c.b16 %v673, %v671
        %v688 = vpack.c.b16 %v676, %v674
        %v689 = vpack.c.b16 %v677, %v675
        %v690 = vpack.c.b16 %v680, %v678
        %v691 = vpack.c.b16 %v681, %v679
        %v692 = vpack.c.b16 %v684, %v682
        %v693 = vpack.c.b16 %v685, %v683
        %702 = vmatpush.bf16.msra.mxu0 0
        %703 = vmatpush.bf16.msra.mxu0 0
        %704 = vmatpush.bf16.msra.mxu0 0
        %705 = vmatpush.bf16.msra.mxu0 0
        %706 = vmatpush.bf16.msra.mxu0 %v692
        %707 = vmatpush.bf16.msra.mxu0 %v690
        %708 = vmatpush.bf16.msra.mxu0 %v688
        %709 = vmatpush.bf16.msra.mxu0 %v686
        %710 = vmatmul.bf16.gmra.mxu0 %v620
        %v711 = vpop.f32.mrf.mxu0
        %v712 = vadd.f32 %v658, %v711
        %v713 = vpop.f32.mrf.mxu0
        %714 = vdwg.mxu0
        %715 = vmatpush.bf16.msra.mxu0 0
        %716 = vmatpush.bf16.msra.mxu0 0
        %717 = vmatpush.bf16.msra.mxu0 0
        %718 = vmatpush.bf16.msra.mxu0 0
        %719 = vmatpush.bf16.msra.mxu0 %v693
        %720 = vmatpush.bf16.msra.mxu0 %v691
        %721 = vmatpush.bf16.msra.mxu0 %v689
        %722 = vmatpush.bf16.msra.mxu0 %v687
        %723 = vmatmul.bf16.gmra.mxu0 %v620
        %v724 = vpop.f32.mrf.mxu0
        %v725 = vadd.f32 %v659, %v724
        %v726 = vpop.f32.mrf.mxu0
        %727 = vdwg.mxu0
        %v728 = vmul.f32 %v712, %v712
        %v729 = vmul.f32 %v725, %v725
        %v730 = vmul.f32 %v712, %v728
        %v731 = vmul.f32 %v725, %v729
        %v732 = vmul.f32 %v730, 0.044715
        %v733 = vmul.f32 %v731, 0.044715
        %v734 = vadd.f32 %v712, %v732
        %v735 = vadd.f32 %v725, %v733
        %v736 = vmul.f32 %v734, 0.7978846
        %v737 = vmul.f32 %v735, 0.7978846
        %v738 = vtanh.pop %v736
        %v739 = vtanh.pop %v737
        %v740 = vadd.f32 %v738, 1.0
        %v741 = vadd.f32 %v739, 1.0
        %v742 = vmul.f32 %v740, 0.5
        %v743 = vmul.f32 %v741, 0.5
        %v744 = vmul.f32 %v712, %v742
        %v745 = vmul.f32 %v725, %v743
        %v746 = vmul.f32 %v632, %v744
        %v747 = vmul.f32 %v645, %v745
        %v748 = vld [vmem:[#allocation3] sm:$0xff]
        %v749 = vpack.c.bf16 %v746, %v746
        %v750 = vpack.c.bf16 %v747, %v747
        %v751 = vld [vmem:[%s504] sm:$0xf]
        %v752 = vld [vmem:[%s504 + $0x4] sm:$0xf]
        %v753 = vld [vmem:[%s504 + $0x8] sm:$0xf]
        %v754 = vld [vmem:[%s504 + $0xc] sm:$0xf]
        %v755 = vld [vmem:[%s504 + $0x10] sm:$0xf]
        %v756 = vld [vmem:[%s504 + $0x14] sm:$0xf]
        %v757 = vld [vmem:[%s504 + $0x18] sm:$0xf]
        %v758 = vld [vmem:[%s504 + $0x1c] sm:$0xf]
        %v759 = vld [vmem:[%s504 + $0x20] sm:$0xf]
        %v760 = vld [vmem:[%s504 + $0x24] sm:$0xf]
        %v761 = vld [vmem:[%s504 + $0x28] sm:$0xf]
        %v762 = vld [vmem:[%s504 + $0x2c] sm:$0xf]
        %v763 = vld [vmem:[%s504 + $0x30] sm:$0xf]
        %v764 = vld [vmem:[%s504 + $0x34] sm:$0xf]
        %v765 = vld [vmem:[%s504 + $0x38] sm:$0xf]
        %v766 = vld [vmem:[%s504 + $0x3c] sm:$0xf]
        %v767 = vld [vmem:[%s504 + $0x40] sm:$0xf]
        %v768 = vld [vmem:[%s504 + $0x44] sm:$0xf]
        %v769 = vld [vmem:[%s504 + $0x48] sm:$0xf]
        %v770 = vld [vmem:[%s504 + $0x4c] sm:$0xf]
        %v771 = vld [vmem:[%s504 + $0x50] sm:$0xf]
        %v772 = vld [vmem:[%s504 + $0x54] sm:$0xf]
        %v773 = vld [vmem:[%s504 + $0x58] sm:$0xf]
        %v774 = vld [vmem:[%s504 + $0x5c] sm:$0xf]
        %v775 = vld [vmem:[%s504 + $0x60] sm:$0xf]
        %v776 = vld [vmem:[%s504 + $0x64] sm:$0xf]
        %v777 = vld [vmem:[%s504 + $0x68] sm:$0xf]
        %v778 = vld [vmem:[%s504 + $0x6c] sm:$0xf]
        %v779 = vld [vmem:[%s504 + $0x70] sm:$0xf]
        %v780 = vld [vmem:[%s504 + $0x74] sm:$0xf]
        %v781 = vld [vmem:[%s504 + $0x78] sm:$0xf]
        %v782 = vld [vmem:[%s504 + $0x7c] sm:$0xf]
        %v815 = vunpack.c.l.b16 %v751
        %v816 = vunpack.c.l.b16 %v752
        %v817 = vunpack.c.l.b16 %v753
        %v818 = vunpack.c.l.b16 %v754
        %v819 = vunpack.c.l.b16 %v755
        %v820 = vunpack.c.l.b16 %v756
        %v821 = vunpack.c.l.b16 %v757
        %v822 = vunpack.c.l.b16 %v758
        %v823 = vunpack.c.l.b16 %v759
        %v824 = vunpack.c.l.b16 %v760
        %v825 = vunpack.c.l.b16 %v761
        %v826 = vunpack.c.l.b16 %v762
        %v827 = vunpack.c.l.b16 %v763
        %v828 = vunpack.c.l.b16 %v764
        %v829 = vunpack.c.l.b16 %v765
        %v830 = vunpack.c.l.b16 %v766
        %v831 = vunpack.c.l.b16 %v767
        %v832 = vunpack.c.l.b16 %v768
        %v833 = vunpack.c.l.b16 %v769
        %v834 = vunpack.c.l.b16 %v770
        %v835 = vunpack.c.l.b16 %v771
        %v836 = vunpack.c.l.b16 %v772
        %v837 = vunpack.c.l.b16 %v773
        %v838 = vunpack.c.l.b16 %v774
        %v839 = vunpack.c.l.b16 %v775
        %v840 = vunpack.c.l.b16 %v776
        %v841 = vunpack.c.l.b16 %v777
        %v842 = vunpack.c.l.b16 %v778
        %v843 = vunpack.c.l.b16 %v779
        %v844 = vunpack.c.l.b16 %v780
        %v845 = vunpack.c.l.b16 %v781
        %v846 = vunpack.c.l.b16 %v782
        %v847 = vpack.c.b16 %v816, %v815
        %v848 = vpack.c.b16 %v818, %v817
        %v849 = vpack.c.b16 %v820, %v819
        %v850 = vpack.c.b16 %v822, %v821
        %v851 = vpack.c.b16 %v824, %v823
        %v852 = vpack.c.b16 %v826, %v825
        %v853 = vpack.c.b16 %v828, %v827
        %v854 = vpack.c.b16 %v830, %v829
        %v855 = vpack.c.b16 %v832, %v831
        %v856 = vpack.c.b16 %v834, %v833
        %v857 = vpack.c.b16 %v836, %v835
        %v858 = vpack.c.b16 %v838, %v837
        %v859 = vpack.c.b16 %v840, %v839
        %v860 = vpack.c.b16 %v842, %v841
        %v861 = vpack.c.b16 %v844, %v843
        %v862 = vpack.c.b16 %v846, %v845
        %879 = vmatpush.bf16.msra.mxu0 %v854
        %880 = vmatpush.bf16.msra.mxu0 %v853
        %881 = vmatpush.bf16.msra.mxu0 %v852
        %882 = vmatpush.bf16.msra.mxu0 %v851
        %883 = vmatpush.bf16.msra.mxu0 %v850
        %884 = vmatpush.bf16.msra.mxu0 %v849
        %885 = vmatpush.bf16.msra.mxu0 %v848
        %886 = vmatpush.bf16.msra.mxu0 %v847
        %887 = vmatmul.bf16.gmra.mxu0 %v749
        %v888 = vpop.f32.mrf.mxu0
        %v889 = vadd.f32 0.0, %v888
        %v890 = vpop.f32.mrf.mxu0
        %891 = vdwg.mxu0
        %892 = vmatpush.bf16.msra.mxu0 %v862
        %893 = vmatpush.bf16.msra.mxu0 %v861
        %894 = vmatpush.bf16.msra.mxu0 %v860
        %895 = vmatpush.bf16.msra.mxu0 %v859
        %896 = vmatpush.bf16.msra.mxu0 %v858
        %897 = vmatpush.bf16.msra.mxu0 %v857
        %898 = vmatpush.bf16.msra.mxu0 %v856
        %899 = vmatpush.bf16.msra.mxu0 %v855
        %900 = vmatmul.bf16.gmra.mxu0 %v750
        %v901 = vpop.f32.mrf.mxu0
        %v902 = vadd.f32 %v889, %v901
        %v903 = vpop.f32.mrf.mxu0
        %904 = vdwg.mxu0
        %v905 = vadd.f32 %v748, %v902
        %906 = vst.msk [vmem:[#allocation3] sm:$0xff] %vm618, %v905
        // Predicated region
        $region65: #{latent_array_transformer.24} parent=55 // pred_check
          %p907 = pneg %p514
        $region66: #{latent_array_transformer.24} parent=55 // pred_check_branch
          %909 = sbr.rel (%p907) target = $region68
        $region67: #{latent_array_transformer.24} parent=55 // pred_region
          %v910 = vld [vmem:[#allocation3] sm:$0xff]
          %v911 = vld [vmem:[#allocation4] sm:$0x1]
          %v913 = vperm.slane %v911, 0
          %v915 = vadd.f32 %v910, %v913
          %v916 = vld [vmem:[%s471] sm:$0xff]
          %v917 = vadd.f32 %v915, %v916
          %918 = vst.msk [vmem:[%s512] sm:$0xff] %vm618, %v917
        $region68: #{latent_array_transformer.24} parent=55 // pred_fallthru
          _
        %p919 = scmp.lt.s32.totalorder %s26, 1
        %s920 = scalar_select %p919, %s26, 1
        %p921 = scmp.lt.s32.totalorder %s27, 0
        %s922 = scalar_select %p921, %s27, 0
        %s923 = sadd.s32 %s922, %s920
        %s924 = smul.addr %s923, 8
        %s925 = scalar_lea.vmem %s9, %s924
        // Predicated region
        $region69: #{latent_array_transformer.24} parent=55 // pred_check
          %p926 = pneg %p291
        $region70: #{latent_array_transformer.24} parent=55 // pred_check_branch
          %928 = sbr.rel (%p926) target = $region72
        $region71: #{latent_array_transformer.24} parent=55 // pred_region
          _
        $region72: #{latent_array_transformer.24} parent=55 // pred_fallthru
          _
      $region56: #{latent_array_transformer.24} parent=5 // pred_fallthru
        _
      %p929 = scmp.le.s32.totalorder 2, %s16
      // Predicated region
      $region73: #{latent_array_transformer.24} parent=5 // pred_check
        %p930 = pneg %p929
      $region74: #{latent_array_transformer.24} parent=5 // pred_check_branch
        %932 = sbr.rel (%p930) target = $region76
      $region75: #{latent_array_transformer.24} parent=5 // pred_region
        %s933 = ssub.s32 %s16, 2
        // Predicated region
        $region77: #{latent_array_transformer.24} parent=75 // pred_check
          %p934 = pneg %p297
        $region78: #{latent_array_transformer.24} parent=75 // pred_check_branch
          %936 = sbr.rel (%p934) target = $region80
        $region79: #{latent_array_transformer.24} parent=75 // pred_region
          %p937 = scmp.lt.s32.totalorder %s29, 1
          %s938 = scalar_select %p937, %s29, 1
          %p939 = scmp.lt.s32.totalorder %s30, 0
          %s940 = scalar_select %p939, %s30, 0
          %s941 = sadd.s32 %s940, %s938
          %s942 = smul.addr %s941, 8
          %s943 = scalar_lea.vmem %s9, %s942
        $region80: #{latent_array_transformer.24} parent=75 // pred_fallthru
          _
      $region76: #{latent_array_transformer.24} parent=5 // pred_fallthru
        _
    $region6: #{latent_array_transformer.24} parent=1 // loop_footer
      %s20 = sadd.s32 1, %s16
    $region7: #{latent_array_transformer.24} parent=1 // loop_footer_branch
      %15 = sbr.rel target = $region3
    $region8: #{latent_array_transformer.24} parent=1 // loop_exit
      _
    %944 = vsyncpa [#allocation5], 1
    %s945 = scalar_lea.sflag [#allocation5], 1
    %946 = vsyncpa %s945, 1

// kernel: latent_array_transformer.29
$region0: #{latent_array_transformer.29}
  #allocation0 [shape = 'u32[]', space=smem, size = 0x4, offset = 0x4, fixed_abs, tag = 'smem constant byte address 0x4 - core index']
  #allocation1 [shape = 'u32[72,128]{1,0:T(1,128)}', space=vmem, size = 0x9000, scoped, tag = 'internal scratch']
  %s0 = inlined_call_operand.vmem [shape: bf16[2,8,64], index: 0, kind: input, shape index: {}]
  %s1 = inlined_call_operand.vmem [shape: bf16[2,6,128], index: 1, kind: input, shape index: {}]
  %s2 = inlined_call_operand.hbm [shape: bf16[64,64], index: 2, kind: input, shape index: {}]
  %s3 = inlined_call_operand.vmem [shape: f32[1,64], index: 3, kind: input, shape index: {}]
  %s4 = inlined_call_operand.vmem [shape: f32[2,8,64], index: 4, kind: input, shape index: {}]
  %s5 = inlined_call_operand.vmem [shape: f32[2,8,64], index: 5, kind: output, shape index: {}]
  %s6 = sld [smem:[#allocation0]]
  $region57: #{latent_array_transformer.29} parent=0
    _
  %s8 = ssub.s32 1, %s6
  %s9 = scalar_select 0, %s8, %s6
  $region1: #{latent_array_transformer.29} parent=0
    #allocation2 [shape = 'u8[16384]{0}', space=vmem, size = 0x4000, scoped, tag = 'input window, operand 2, single buffered']
    #allocation3 [shape = 's32[2]{0}', space=sflag, size = 0x8, scoped, tag = 'scoped memory for latent_array_transformer.29']
    %10 = vsyncpa [#allocation3], 0
    loop: start=0, step=1, limit=4
    $region2: #{latent_array_transformer.29} parent=1 // loop_pre_header
      _
    $region3: #{latent_array_transformer.29} parent=1 // loop_header
      %s12 = sphi 0, %s16
      %p13 = scmp.ge.s32.totalorder %s12, 4
      %s22 = sphi 0, %s24
      %s25 = sphi 0, %s22
      %s26 = sphi 0, %s25
      %s42 = sphi 0, %s26
      %s48 = sphi 0, %s50
      %s51 = sphi 0, %s48
      %s52 = sphi 0, %s51
      %s68 = sphi 0, %s52
      %s72 = sphi 0, %s72
      %s74 = sphi 0, %s72
      %s75 = sphi 0, %s74
      %s89 = sphi 0, %s75
      %s93 = sphi 0, %s93
      %s95 = sphi 0, %s93
      %s96 = sphi 0, %s95
      %s110 = sphi 0, %s96
      %s116 = sphi 0, %s118
      %s119 = sphi 0, %s116
      %s120 = sphi 0, %s119
      %s136 = sphi 0, %s120
      %s142 = sphi 0, %s144
      %s145 = sphi 0, %s142
      %s146 = sphi 0, %s145
      %s162 = sphi 0, %s146
    $region4: #{latent_array_transformer.29} parent=1 // loop_header_branch
      %15 = sbr.rel (%p13) target = $region8
    $region5: #{latent_array_transformer.29} parent=1 // loop_body
      %s17 = ssub.s32 %s12, 1
      %s18 = ssub.s32 %s12, 2
      %s19 = sadd.s32 %s12, 1
      %s20 = ssub.s32 %s12, %s19
      %p21 = scmp.eq.s32.totalorder %s20, 0
      %s23 = sadd.s32 %s22, 1
      %s24 = scalar_select %p21, %s22, %s23
      %p27 = pneg %p21
      %p28 = scmp.eq.s32.totalorder %s12, 1
      %p29 = por %p27, %p28
      %p30 = scmp.ne.s32.totalorder %s22, %s25
      %p31 = scmp.eq.s32.totalorder %s12, 0
      %p32 = por %p30, %p31
      %p33 = scmp.ne.s32.totalorder %s22, %s25
      %p34 = scmp.eq.s32.totalorder %s17, 1
      %p35 = por %p33, %p34
      %p36 = scmp.ne.s32.totalorder %s25, %s26
      %p37 = scmp.eq.s32.totalorder %s17, 0
      %p38 = por %p36, %p37
      %p39 = scmp.ne.s32.totalorder %s25, %s26
      %p40 = scmp.eq.s32.totalorder %s18, 1
      %p41 = por %p39, %p40
      %p43 = scmp.ne.s32.totalorder %s26, %s42
      %p44 = scmp.eq.s32.totalorder %s18, 0
      %p45 = por %p43, %p44
      %s46 = ssub.s32 %s12, %s19
      %p47 = scmp.eq.s32.totalorder %s46, 0
      %s49 = sadd.s32 %s48, 1
      %s50 = scalar_select %p47, %s48, %s49
      %p53 = pneg %p47
      %p54 = scmp.eq.s32.totalorder %s12, 1
      %p55 = por %p53, %p54
      %p56 = scmp.ne.s32.totalorder %s48, %s51
      %p57 = scmp.eq.s32.totalorder %s12, 0
      %p58 = por %p56, %p57
      %p59 = scmp.ne.s32.totalorder %s48, %s51
      %p60 = scmp.eq.s32.totalorder %s17, 1
      %p61 = por %p59, %p60
      %p62 = scmp.ne.s32.totalorder %s51, %s52
      %p63 = scmp.eq.s32.totalorder %s17, 0
      %p64 = por %p62, %p63
      %p65 = scmp.ne.s32.totalorder %s51, %s52
      %p66 = scmp.eq.s32.totalorder %s18, 1
      %p67 = por %p65, %p66
      %p69 = scmp.ne.s32.totalorder %s52, %s68
      %p70 = scmp.eq.s32.totalorder %s18, 0
      %p71 = por %p69, %p70
      %s73 = sadd.s32 %s72, 1
      %p76 = scmp.eq.s32.totalorder %s12, 1
      %p77 = scmp.ne.s32.totalorder %s72, %s74
      %p78 = scmp.eq.s32.totalorder %s12, 0
      %p79 = por %p77, %p78
      %p80 = scmp.ne.s32.totalorder %s72, %s74
      %p81 = scmp.eq.s32.totalorder %s17, 1
      %p82 = por %p80, %p81
      %p83 = scmp.ne.s32.totalorder %s74, %s75
      %p84 = scmp.eq.s32.totalorder %s17, 0
      %p85 = por %p83, %p84
      %p86 = scmp.ne.s32.totalorder %s74, %s75
      %p87 = scmp.eq.s32.totalorder %s18, 1
      %p88 = por %p86, %p87
      %p90 = scmp.ne.s32.totalorder %s75, %s89
      %p91 = scmp.eq.s32.totalorder %s18, 0
      %p92 = por %p90, %p91
      %s94 = sadd.s32 %s93, 1
      %p97 = scmp.eq.s32.totalorder %s12, 1
      %p98 = scmp.ne.s32.totalorder %s93, %s95
      %p99 = scmp.eq.s32.totalorder %s12, 0
      %p100 = por %p98, %p99
      %p101 = scmp.ne.s32.totalorder %s93, %s95
      %p102 = scmp.eq.s32.totalorder %s17, 1
      %p103 = por %p101, %p102
      %p104 = scmp.ne.s32.totalorder %s95, %s96
      %p105 = scmp.eq.s32.totalorder %s17, 0
      %p106 = por %p104, %p105
      %p107 = scmp.ne.s32.totalorder %s95, %s96
      %p108 = scmp.eq.s32.totalorder %s18, 1
      %p109 = por %p107, %p108
      %p111 = scmp.ne.s32.totalorder %s96, %s110
      %p112 = scmp.eq.s32.totalorder %s18, 0
      %p113 = por %p111, %p112
      %s114 = ssub.s32 %s12, %s19
      %p115 = scmp.eq.s32.totalorder %s114, 0
      %s117 = sadd.s32 %s116, 1
      %s118 = scalar_select %p115, %s116, %s117
      %p121 = pneg %p115
      %p122 = scmp.eq.s32.totalorder %s12, 1
      %p123 = por %p121, %p122
      %p124 = scmp.ne.s32.totalorder %s116, %s119
      %p125 = scmp.eq.s32.totalorder %s12, 0
      %p126 = por %p124, %p125
      %p127 = scmp.ne.s32.totalorder %s116, %s119
      %p128 = scmp.eq.s32.totalorder %s17, 1
      %p129 = por %p127, %p128
      %p130 = scmp.ne.s32.totalorder %s119, %s120
      %p131 = scmp.eq.s32.totalorder %s17, 0
      %p132 = por %p130, %p131
      %p133 = scmp.ne.s32.totalorder %s119, %s120
      %p134 = scmp.eq.s32.totalorder %s18, 1
      %p135 = por %p133, %p134
      %p137 = scmp.ne.s32.totalorder %s120, %s136
      %p138 = scmp.eq.s32.totalorder %s18, 0
      %p139 = por %p137, %p138
      %s140 = ssub.s32 %s12, %s19
      %p141 = scmp.eq.s32.totalorder %s140, 0
      %s143 = sadd.s32 %s142, 1
      %s144 = scalar_select %p141, %s142, %s143
      %p147 = pneg %p141
      %p148 = scmp.eq.s32.totalorder %s12, 1
      %p149 = por %p147, %p148
      %p150 = scmp.ne.s32.totalorder %s142, %s145
      %p151 = scmp.eq.s32.totalorder %s12, 0
      %p152 = por %p150, %p151
      %p153 = scmp.ne.s32.totalorder %s142, %s145
      %p154 = scmp.eq.s32.totalorder %s17, 1
      %p155 = por %p153, %p154
      %p156 = scmp.ne.s32.totalorder %s145, %s146
      %p157 = scmp.eq.s32.totalorder %s17, 0
      %p158 = por %p156, %p157
      %p159 = scmp.ne.s32.totalorder %s145, %s146
      %p160 = scmp.eq.s32.totalorder %s18, 1
      %p161 = por %p159, %p160
      %p163 = scmp.ne.s32.totalorder %s146, %s162
      %p164 = scmp.eq.s32.totalorder %s18, 0
      %p165 = por %p163, %p164
      %p166 = scmp.le.s32.totalorder 1, %s12
      %p167 = scmp.lt.s32.totalorder %s12, 3
      %p168 = pnand %p166, %p167
      %p169 = pneg %p168
      // Predicated region
      $region9: #{latent_array_transformer.29} parent=5 // pred_check
        _
      $region10: #{latent_array_transformer.29} parent=5 // pred_check_branch
        %171 = sbr.rel (%p168) target = $region12
      $region11: #{latent_array_transformer.29} parent=5 // pred_region
        %s172 = ssub.s32 %s12, 1
        // Predicated region
        $region13: #{latent_array_transformer.29} parent=11 // pred_check
          %p173 = pneg %p85
        $region14: #{latent_array_transformer.29} parent=11 // pred_check_branch
          %175 = sbr.rel (%p173) target = $region16
        $region15: #{latent_array_transformer.29} parent=11 // pred_region
          %177 = vsyncadd [#allocation3], 0
          %s178 = sshll.u32 %s2, 4
          %s179 = int_to_ptr.hbm [resolvable:$true] %s178
          %s180 = sshll.u32 [#allocation2], 4
          %s181 = int_to_ptr.vmem [resolvable:$true] %s180
          %186 = dma.hbm_to_vmem [thread:$0]  %s179, 512, %s181, [#allocation3], 64, 64, 4
        $region16: #{latent_array_transformer.29} parent=11 // pred_fallthru
          _
        // Predicated region
        $region17: #{latent_array_transformer.29} parent=11 // pred_check
          %p187 = pneg %p106
        $region18: #{latent_array_transformer.29} parent=11 // pred_check_branch
          %189 = sbr.rel (%p187) target = $region20
        $region19: #{latent_array_transformer.29} parent=11 // pred_region
          _
        $region20: #{latent_array_transformer.29} parent=11 // pred_fallthru
          _
      $region12: #{latent_array_transformer.29} parent=5 // pred_fallthru
        _
      %p190 = scmp.lt.s32.totalorder %s12, 2
      // Predicated region
      $region21: #{latent_array_transformer.29} parent=5 // pred_check
        %p191 = pneg %p190
      $region22: #{latent_array_transformer.29} parent=5 // pred_check_branch
        %193 = sbr.rel (%p191) target = $region24
      $region23: #{latent_array_transformer.29} parent=5 // pred_region
        // Predicated region
        $region25: #{latent_array_transformer.29} parent=23 // pred_check
          %p194 = pneg %p32
        $region26: #{latent_array_transformer.29} parent=23 // pred_check_branch
          %196 = sbr.rel (%p194) target = $region28
        $region27: #{latent_array_transformer.29} parent=23 // pred_region
          %p197 = scmp.lt.s32.totalorder %s12, 1
          %s198 = scalar_select %p197, %s12, 1
          %s199 = smul.addr %s198, 4
          %s200 = scalar_lea.vmem %s0, %s199
        $region28: #{latent_array_transformer.29} parent=23 // pred_fallthru
          _
        // Predicated region
        $region29: #{latent_array_transformer.29} parent=23 // pred_check
          %p201 = pneg %p58
        $region30: #{latent_array_transformer.29} parent=23 // pred_check_branch
          %203 = sbr.rel (%p201) target = $region32
        $region31: #{latent_array_transformer.29} parent=23 // pred_region
          %p204 = scmp.lt.s32.totalorder %s12, 1
          %s205 = scalar_select %p204, %s12, 1
          %s206 = smul.addr %s205, 4
          %s207 = scalar_lea.vmem %s1, %s206
        $region32: #{latent_array_transformer.29} parent=23 // pred_fallthru
          _
        // Predicated region
        $region33: #{latent_array_transformer.29} parent=23 // pred_check
          %p208 = pneg %p126
        $region34: #{latent_array_transformer.29} parent=23 // pred_check_branch
          %210 = sbr.rel (%p208) target = $region36
        $region35: #{latent_array_transformer.29} parent=23 // pred_region
          %p211 = scmp.lt.s32.totalorder %s12, 1
          %s212 = scalar_select %p211, %s12, 1
          %s213 = smul.addr %s212, 8
          %s214 = scalar_lea.vmem %s4, %s213
        $region36: #{latent_array_transformer.29} parent=23 // pred_fallthru
          _
      $region24: #{latent_array_transformer.29} parent=5 // pred_fallthru
        _
      %p215 = scmp.le.s32.totalorder 1, %s12
      %p216 = scmp.lt.s32.totalorder %s12, 3
      %p217 = pnand %p215, %p216
      %p218 = pneg %p217
      // Predicated region
      $region37: #{latent_array_transformer.29} parent=5 // pred_check
        _
      $region38: #{latent_array_transformer.29} parent=5 // pred_check_branch
        %220 = sbr.rel (%p217) target = $region40
      $region39: #{latent_array_transformer.29} parent=5 // pred_region
        %s221 = ssub.s32 %s12, 1
        // Predicated region
        $region41: #{latent_array_transformer.29} parent=39 // pred_check
          %p222 = pneg %p85
        $region42: #{latent_array_transformer.29} parent=39 // pred_check_branch
          %224 = sbr.rel (%p222) target = $region44
        $region43: #{latent_array_transformer.29} parent=39 // pred_region
          %226 = dma.done [#allocation3], 512
        $region44: #{latent_array_transformer.29} parent=39 // pred_fallthru
          _
        %p227 = scmp.lt.s32.totalorder %s17, 1
        %s228 = scalar_select %p227, %s17, 1
        %s229 = smul.addr %s228, 4
        %s230 = scalar_lea.vmem %s0, %s229
        %p231 = pneg %p38
        %p232 = pneg %p35
        %p233 = scmp.lt.s32.totalorder %s17, 1
        %s234 = scalar_select %p233, %s17, 1
        %s235 = smul.addr %s234, 4
        %s236 = scalar_lea.vmem %s1, %s235
        %p237 = pneg %p64
        %p238 = pneg %p61
        %p239 = pneg %p85
        %p240 = pneg %p82
        %p241 = pneg %p106
        %p242 = pneg %p103
        %p243 = scmp.lt.s32.totalorder %s17, 1
        %s244 = scalar_select %p243, %s17, 1
        %s245 = smul.addr %s244, 8
        %s246 = scalar_lea.vmem %s4, %s245
        %p247 = pneg %p132
        %p248 = pneg %p129
        %p249 = pneg %p158
        %p250 = pneg %p155
        %p251 = scmp.lt.s32.totalorder %s17, 1
        %s252 = scalar_select %p251, %s17, 1
        %s253 = smul.addr %s252, 8
        %s254 = scalar_lea.vmem %s5, %s253
        %p255 = scmp.lt.s32.totalorder %s17, 1
        %s256 = scalar_select %p255, %s17, 1
        %s257 = smul.addr %s256, 4
        %s258 = scalar_lea.vmem %s0, %s257
        %p259 = scmp.lt.s32.totalorder %s17, 1
        %s260 = scalar_select %p259, %s17, 1
        %s261 = smul.addr %s260, 4
        %s262 = scalar_lea.vmem %s1, %s261
        %p263 = scmp.lt.s32.totalorder %s17, 1
        %s264 = scalar_select %p263, %s17, 1
        %s265 = smul.addr %s264, 8
        %s266 = scalar_lea.vmem %s4, %s265
        %p267 = scmp.lt.s32.totalorder %s17, 1
        %s268 = scalar_select %p267, %s17, 1
        %s269 = smul.addr %s268, 8
        %s270 = scalar_lea.vmem %s5, %s269
        %v272 = vld [vmem:[%s262] sm:$0x7]
        %v273 = vld [vmem:[#allocation2] sm:$0xf]
        %v274 = vld [vmem:[#allocation2 + $0x4] sm:$0xf]
        %v275 = vld [vmem:[#allocation2 + $0x8] sm:$0xf]
        %v276 = vld [vmem:[#allocation2 + $0xc] sm:$0xf]
        %v277 = vld [vmem:[#allocation2 + $0x10] sm:$0xf]
        %v278 = vld [vmem:[#allocation2 + $0x14] sm:$0xf]
        %v279 = vld [vmem:[#allocation2 + $0x18] sm:$0xf]
        %v280 = vld [vmem:[#allocation2 + $0x1c] sm:$0xf]
        %v281 = vld [vmem:[%s258] sm:$0xf]
        %v282 = vunpack.c.l.bf16 %v281
        %v283 = vmul.f32 %v282, 0.25
        %v284 = vpack.c.bf16 %v283, %v283
        %vm285 = vcmask 130048
        %v287 = vsel %vm285, %v284, 0
        %v290 = vsel %vm285, %v272, 0
        %292 = vmatpush.bf16.xpose.msra.mxu0 0
        %293 = vmatpush.bf16.xpose.msra.mxu0 0
        %294 = vmatpush.bf16.xpose.msra.mxu0 0
        %295 = vmatpush.bf16.xpose.msra.mxu0 0
        %296 = vmatpush.bf16.xpose.msra.mxu0 0
        %297 = vmatpush.bf16.xpose.msra.mxu0 0
        %298 = vmatpush.bf16.xpose.msra.mxu0 0
        %299 = vmatpush.bf16.xpose.msra.mxu0 %v290
        %300 = vmatmul.bf16.gmra.mxu0 %v287
        %v301 = vpop.f32.mrf.mxu0
        %v302 = vadd.f32 0.0, %v301
        %v303 = vpop.f32.mrf.mxu0
        %304 = vdwg.mxu0
        %vm305 = vcmask 48128
        %v306 = vsel %vm305, %v302, -inf
        %307 = vmax.xlane.f32.xlu0 %v306
        %v308 = vpop.xlane.xlu0 %307
        %v309 = vsub.f32 %v302, %v308
        %v310 = vmul.f32 %v309, 1.442695
        %v311 = vpow.pop %v310
        %v312 = vsel %vm305, %v311, 0.0
        %313 = vadd.xlane.f32.xlu0 %v312
        %v314 = vpop.xlane.xlu0 %313
        %v315 = vrcp.pop %v314
        %v316 = vmul.f32 %v311, %v315
        %v317 = vpack.c.bf16 %v316, %v316
        %v319 = vunpack.c.l.b16 %v272
        %v320 = vpack.c.b16 %v319, %v319
        %321 = vrot.lane.b32.xlu0 %v320, 64
        %v322 = vpop.permute.xlu0 %321
        %v324 = vsel %vm305, %v317, 0
        %vm326 = vcmask 1042432
        %v328 = vsel %vm326, %v322, 0
        %330 = vmatpush.bf16.msra.mxu0 0
        %331 = vmatpush.bf16.msra.mxu0 0
        %332 = vmatpush.bf16.msra.mxu0 0
        %333 = vmatpush.bf16.msra.mxu0 0
        %334 = vmatpush.bf16.msra.mxu0 0
        %335 = vmatpush.bf16.msra.mxu0 0
        %336 = vmatpush.bf16.msra.mxu0 0
        %337 = vmatpush.bf16.msra.mxu0 %v328
        %338 = vmatmul.bf16.gmra.mxu0 %v324
        %v339 = vpop.f32.mrf.mxu0
        %v340 = vadd.f32 0.0, %v339
        %v341 = vpop.f32.mrf.mxu0
        %342 = vdwg.mxu0
        %v343 = vpack.c.bf16 %v340, %v340
        %v345 = vunpack.c.l.b16 %v284
        %v346 = vpack.c.b16 %v345, %v345
        %347 = vrot.lane.b32.xlu0 %v346, 112
        %v348 = vpop.permute.xlu0 %347
        %349 = vrot.lane.b32.xlu0 %v320, 112
        %v350 = vpop.permute.xlu0 %349
        %v352 = vsel %vm285, %v348, 0
        %v355 = vsel %vm285, %v350, 0
        %357 = vmatpush.bf16.xpose.msra.mxu0 0
        %358 = vmatpush.bf16.xpose.msra.mxu0 0
        %359 = vmatpush.bf16.xpose.msra.mxu0 0
        %360 = vmatpush.bf16.xpose.msra.mxu0 0
        %361 = vmatpush.bf16.xpose.msra.mxu0 0
        %362 = vmatpush.bf16.xpose.msra.mxu0 0
        %363 = vmatpush.bf16.xpose.msra.mxu0 0
        %364 = vmatpush.bf16.xpose.msra.mxu0 %v355
        %365 = vmatmul.bf16.gmra.mxu0 %v352
        %v366 = vpop.f32.mrf.mxu0
        %v367 = vadd.f32 0.0, %v366
        %v368 = vpop.f32.mrf.mxu0
        %369 = vdwg.mxu0
        %v370 = vsel %vm305, %v367, -inf
        %371 = vmax.xlane.f32.xlu0 %v370
        %v372 = vpop.xlane.xlu0 %371
        %v373 = vsub.f32 %v367, %v372
        %v374 = vmul.f32 %v373, 1.442695
        %v375 = vpow.pop %v374
        %v376 = vsel %vm305, %v375, 0.0
        %377 = vadd.xlane.f32.xlu0 %v376
        %v378 = vpop.xlane.xlu0 %377
        %v379 = vrcp.pop %v378
        %v380 = vmul.f32 %v375, %v379
        %v381 = vpack.c.bf16 %v380, %v380
        %382 = vrot.lane.b32.xlu0 %v320, 48
        %v383 = vpop.permute.xlu0 %382
        %v385 = vsel %vm305, %v381, 0
        %v388 = vsel %vm326, %v383, 0
        %390 = vmatpush.bf16.msra.mxu0 0
        %391 = vmatpush.bf16.msra.mxu0 0
        %392 = vmatpush.bf16.msra.mxu0 0
        %393 = vmatpush.bf16.msra.mxu0 0
        %394 = vmatpush.bf16.msra.mxu0 0
        %395 = vmatpush.bf16.msra.mxu0 0
        %396 = vmatpush.bf16.msra.mxu0 0
        %397 = vmatpush.bf16.msra.mxu0 %v388
        %398 = vmatmul.bf16.gmra.mxu0 %v385
        %v399 = vpop.f32.mrf.mxu0
        %v400 = vadd.f32 0.0, %v399
        %v401 = vpop.f32.mrf.mxu0
        %402 = vdwg.mxu0
        %v403 = vpack.c.bf16 %v400, %v400
        %v406 = vunpack.c.l.b16 %v275
        %v407 = vunpack.c.l.b16 %v276
        %v408 = vpack.c.b16 %v407, %v406
        %v411 = vsel %vm285, %v403, 0
        %413 = vmatpush.bf16.msra.mxu0 0
        %414 = vmatpush.bf16.msra.mxu0 0
        %415 = vmatpush.bf16.msra.mxu0 0
        %416 = vmatpush.bf16.msra.mxu0 0
        %417 = vmatpush.bf16.msra.mxu0 0
        %418 = vmatpush.bf16.msra.mxu0 0
        %419 = vmatpush.bf16.msra.mxu0 0
        %420 = vmatpush.bf16.msra.mxu0 %v408
        %421 = vmatmul.bf16.gmra.mxu0 %v411
        %v422 = vpop.f32.mrf.mxu0
        %v423 = vadd.f32 0.0, %v422
        %v424 = vpop.f32.mrf.mxu0
        %425 = vdwg.mxu0
        %v428 = vunpack.c.l.b16 %v273
        %v429 = vunpack.c.l.b16 %v274
        %v430 = vpack.c.b16 %v429, %v428
        %v433 = vsel %vm285, %v343, 0
        %435 = vmatpush.bf16.msra.mxu0 0
        %436 = vmatpush.bf16.msra.mxu0 0
        %437 = vmatpush.bf16.msra.mxu0 0
        %438 = vmatpush.bf16.msra.mxu0 0
        %439 = vmatpush.bf16.msra.mxu0 0
        %440 = vmatpush.bf16.msra.mxu0 0
        %441 = vmatpush.bf16.msra.mxu0 0
        %442 = vmatpush.bf16.msra.mxu0 %v430
        %443 = vmatmul.bf16.gmra.mxu0 %v433
        %v444 = vpop.f32.mrf.mxu0
        %v445 = vadd.f32 %v423, %v444
        %v446 = vpop.f32.mrf.mxu0
        %447 = vdwg.mxu0
        %448 = vrot.lane.b32.xlu0 %v346, 96
        %v449 = vpop.permute.xlu0 %448
        %450 = vrot.lane.b32.xlu0 %v320, 96
        %v451 = vpop.permute.xlu0 %450
        %v453 = vsel %vm285, %v449, 0
        %v456 = vsel %vm285, %v451, 0
        %458 = vmatpush.bf16.xpose.msra.mxu0 0
        %459 = vmatpush.bf16.xpose.msra.mxu0 0
        %460 = vmatpush.bf16.xpose.msra.mxu0 0
        %461 = vmatpush.bf16.xpose.msra.mxu0 0
        %462 = vmatpush.bf16.xpose.msra.mxu0 0
        %463 = vmatpush.bf16.xpose.msra.mxu0 0
        %464 = vmatpush.bf16.xpose.msra.mxu0 0
        %465 = vmatpush.bf16.xpose.msra.mxu0 %v456
        %466 = vmatmul.bf16.gmra.mxu0 %v453
        %v467 = vpop.f32.mrf.mxu0
        %v468 = vadd.f32 0.0, %v467
        %v469 = vpop.f32.mrf.mxu0
        %470 = vdwg.mxu0
        %v471 = vsel %vm305, %v468, -inf
        %472 = vmax.xlane.f32.xlu0 %v471
        %v473 = vpop.xlane.xlu0 %472
        %v474 = vsub.f32 %v468, %v473
        %v475 = vmul.f32 %v474, 1.442695
        %v476 = vpow.pop %v475
        %v477 = vsel %vm305, %v476, 0.0
        %478 = vadd.xlane.f32.xlu0 %v477
        %v479 = vpop.xlane.xlu0 %478
        %v480 = vrcp.pop %v479
        %v481 = vmul.f32 %v476, %v480
        %v482 = vpack.c.bf16 %v481, %v481
        %483 = vrot.lane.b32.xlu0 %v320, 32
        %v484 = vpop.permute.xlu0 %483
        %v486 = vsel %vm305, %v482, 0
        %v489 = vsel %vm326, %v484, 0
        %491 = vmatpush.bf16.msra.mxu0 0
        %492 = vmatpush.bf16.msra.mxu0 0
        %493 = vmatpush.bf16.msra.mxu0 0
        %494 = vmatpush.bf16.msra.mxu0 0
        %495 = vmatpush.bf16.msra.mxu0 0
        %496 = vmatpush.bf16.msra.mxu0 0
        %497 = vmatpush.bf16.msra.mxu0 0
        %498 = vmatpush.bf16.msra.mxu0 %v489
        %499 = vmatmul.bf16.gmra.mxu0 %v486
        %v500 = vpop.f32.mrf.mxu0
        %v501 = vadd.f32 0.0, %v500
        %v502 = vpop.f32.mrf.mxu0
        %503 = vdwg.mxu0
        %v504 = vpack.c.bf16 %v501, %v501
        %v507 = vunpack.c.l.b16 %v277
        %v508 = vunpack.c.l.b16 %v278
        %v509 = vpack.c.b16 %v508, %v507
        %v512 = vsel %vm285, %v504, 0
        %514 = vmatpush.bf16.msra.mxu0 0
        %515 = vmatpush.bf16.msra.mxu0 0
        %516 = vmatpush.bf16.msra.mxu0 0
        %517 = vmatpush.bf16.msra.mxu0 0
        %518 = vmatpush.bf16.msra.mxu0 0
        %519 = vmatpush.bf16.msra.mxu0 0
        %520 = vmatpush.bf16.msra.mxu0 0
        %521 = vmatpush.bf16.msra.mxu0 %v509
        %522 = vmatmul.bf16.gmra.mxu0 %v512
        %v523 = vpop.f32.mrf.mxu0
        %v524 = vadd.f32 0.0, %v523
        %v525 = vpop.f32.mrf.mxu0
        %526 = vdwg.mxu0
        %v527 = vadd.f32 %v445, %v524
        %528 = vrot.lane.b32.xlu0 %v346, 80
        %v529 = vpop.permute.xlu0 %528
        %530 = vrot.lane.b32.xlu0 %v320, 80
        %v531 = vpop.permute.xlu0 %530
        %v533 = vsel %vm285, %v529, 0
        %v536 = vsel %vm285, %v531, 0
        %538 = vmatpush.bf16.xpose.msra.mxu0 0
        %539 = vmatpush.bf16.xpose.msra.mxu0 0
        %540 = vmatpush.bf16.xpose.msra.mxu0 0
        %541 = vmatpush.bf16.xpose.msra.mxu0 0
        %542 = vmatpush.bf16.xpose.msra.mxu0 0
        %543 = vmatpush.bf16.xpose.msra.mxu0 0
        %544 = vmatpush.bf16.xpose.msra.mxu0 0
        %545 = vmatpush.bf16.xpose.msra.mxu0 %v536
        %546 = vmatmul.bf16.gmra.mxu0 %v533
        %v547 = vpop.f32.mrf.mxu0
        %v548 = vadd.f32 0.0, %v547
        %v549 = vpop.f32.mrf.mxu0
        %550 = vdwg.mxu0
        %v551 = vsel %vm305, %v548, -inf
        %552 = vmax.xlane.f32.xlu0 %v551
        %v553 = vpop.xlane.xlu0 %552
        %v554 = vsub.f32 %v548, %v553
        %v555 = vmul.f32 %v554, 1.442695
        %v556 = vpow.pop %v555
        %v557 = vsel %vm305, %v556, 0.0
        %558 = vadd.xlane.f32.xlu0 %v557
        %v559 = vpop.xlane.xlu0 %558
        %v560 = vrcp.pop %v559
        %v561 = vmul.f32 %v556, %v560
        %v562 = vpack.c.bf16 %v561, %v561
        %563 = vrot.lane.b32.xlu0 %v320, 16
        %v564 = vpop.permute.xlu0 %563
        %v566 = vsel %vm305, %v562, 0
        %v569 = vsel %vm326, %v564, 0
        %571 = vmatpush.bf16.msra.mxu0 0
        %572 = vmatpush.bf16.msra.mxu0 0
        %573 = vmatpush.bf16.msra.mxu0 0
        %574 = vmatpush.bf16.msra.mxu0 0
        %575 = vmatpush.bf16.msra.mxu0 0
        %576 = vmatpush.bf16.msra.mxu0 0
        %577 = vmatpush.bf16.msra.mxu0 0
        %578 = vmatpush.bf16.msra.mxu0 %v569
        %579 = vmatmul.bf16.gmra.mxu0 %v566
        %v580 = vpop.f32.mrf.mxu0
        %v581 = vadd.f32 0.0, %v580
        %v582 = vpop.f32.mrf.mxu0
        %583 = vdwg.mxu0
        %v584 = vpack.c.bf16 %v581, %v581
        %v587 = vunpack.c.l.b16 %v279
        %v588 = vunpack.c.l.b16 %v280
        %v589 = vpack.c.b16 %v588, %v587
        %v592 = vsel %vm285, %v584, 0
        %594 = vmatpush.bf16.msra.mxu0 0
        %595 = vmatpush.bf16.msra.mxu0 0
        %596 = vmatpush.bf16.msra.mxu0 0
        %597 = vmatpush.bf16.msra.mxu0 0
        %598 = vmatpush.bf16.msra.mxu0 0
        %599 = vmatpush.bf16.msra.mxu0 0
        %600 = vmatpush.bf16.msra.mxu0 0
        %601 = vmatpush.bf16.msra.mxu0 %v589
        %602 = vmatmul.bf16.gmra.mxu0 %v592
        %v603 = vpop.f32.mrf.mxu0
        %v604 = vadd.f32 0.0, %v603
        %v605 = vpop.f32.mrf.mxu0
        %606 = vdwg.mxu0
        %v607 = vadd.f32 %v527, %v604
        %v608 = vld [vmem:[%s3] sm:$0x1]
        %v610 = vperm.slane %v608, 0
        %v612 = vadd.f32 %v607, %v610
        %v613 = vld [vmem:[%s266] sm:$0xff]
        %v614 = vadd.f32 %v612, %v613
        %vm615 = vcmask 523264
        %616 = vst.msk [vmem:[%s270] sm:$0xff] %vm615, %v614
        %p617 = scmp.lt.s32.totalorder %s17, 1
        %s618 = scalar_select %p617, %s17, 1
        %s619 = smul.addr %s618, 8
        %s620 = scalar_lea.vmem %s5, %s619
        // Predicated region
        $region45: #{latent_array_transformer.29} parent=39 // pred_check
          %p621 = pneg %p155
        $region46: #{latent_array_transformer.29} parent=39 // pred_check_branch
          %623 = sbr.rel (%p621) target = $region48
        $region47: #{latent_array_transformer.29} parent=39 // pred_region
          _
        $region48: #{latent_array_transformer.29} parent=39 // pred_fallthru
          _
      $region40: #{latent_array_transformer.29} parent=5 // pred_fallthru
        _
      %p624 = scmp.le.s32.totalorder 2, %s12
      // Predicated region
      $region49: #{latent_array_transformer.29} parent=5 // pred_check
        %p625 = pneg %p624
      $region50: #{latent_array_transformer.29} parent=5 // pred_check_branch
        %627 = sbr.rel (%p625) target = $region52
      $region51: #{latent_array_transformer.29} parent=5 // pred_region
        %s628 = ssub.s32 %s12, 2
        // Predicated region
        $region53: #{latent_array_transformer.29} parent=51 // pred_check
          %p629 = pneg %p161
        $region54: #{latent_array_transformer.29} parent=51 // pred_check_branch
          %631 = sbr.rel (%p629) target = $region56
        $region55: #{latent_array_transformer.29} parent=51 // pred_region
          %p632 = scmp.lt.s32.totalorder %s18, 1
          %s633 = scalar_select %p632, %s18, 1
          %s634 = smul.addr %s633, 8
          %s635 = scalar_lea.vmem %s5, %s634
        $region56: #{latent_array_transformer.29} parent=51 // pred_fallthru
          _
      $region52: #{latent_array_transformer.29} parent=5 // pred_fallthru
        _
    $region6: #{latent_array_transformer.29} parent=1 // loop_footer
      %s16 = sadd.s32 1, %s12
    $region7: #{latent_array_transformer.29} parent=1 // loop_footer_branch
      %11 = sbr.rel target = $region3
    $region8: #{latent_array_transformer.29} parent=1 // loop_exit
      _
    %636 = vsyncpa [#allocation3], 1
    %s637 = scalar_lea.sflag [#allocation3], 1
    %638 = vsyncpa %s637, 1

// kernel: latent_array_transformer.30
$region0: #{latent_array_transformer.30}
  #allocation0 [shape = 'u32[]', space=smem, size = 0x4, offset = 0x4, fixed_abs, tag = 'smem constant byte address 0x4 - core index']
  #allocation1 [shape = 'u32[72,128]{1,0:T(1,128)}', space=vmem, size = 0x9000, scoped, tag = 'internal scratch']
  #allocation2 [shape = 'f32[8,64]{1,0:T(8,128)}', space=vmem, size = 0x1000, scoped, tag = 'scratch operand']
  #allocation3 [shape = 'f32[8,64]{1,0:T(8,128)}', space=vmem, size = 0x1000, scoped, tag = 'scratch operand']
  %s0 = inlined_call_operand.vmem [shape: f32[2,8,64], index: 0, kind: input, shape index: {}]
  %s1 = inlined_call_operand.vmem [shape: f32[2,1,64], index: 1, kind: input, shape index: {}]
  %s2 = inlined_call_operand.vmem [shape: f32[2,1,64], index: 2, kind: input, shape index: {}]
  %s3 = inlined_call_operand.vmem [shape: bf16[64,256], index: 3, kind: input, shape index: {}]
  %s4 = inlined_call_operand.vmem [shape: bf16[64,256], index: 4, kind: input, shape index: {}]
  %s5 = inlined_call_operand.vmem [shape: f32[1,256], index: 5, kind: input, shape index: {}]
  %s6 = inlined_call_operand.vmem [shape: f32[1,256], index: 6, kind: input, shape index: {}]
  %s7 = inlined_call_operand.vmem [shape: bf16[256,64], index: 7, kind: input, shape index: {}]
  %s8 = inlined_call_operand.vmem [shape: f32[1,64], index: 8, kind: input, shape index: {}]
  %s9 = inlined_call_operand.vmem [shape: f32[2,8,64], index: 9, kind: output, shape index: {}]
  %s10 = sld [smem:[#allocation0]]
  $region77: #{latent_array_transformer.30} parent=0
    _
  %s12 = ssub.s32 1, %s10
  %s13 = scalar_select 0, %s12, %s10
  loop: start=0, step=1, limit=4
  $region2: #{latent_array_transformer.30} parent=0 // loop_pre_header
    _
  $region3: #{latent_array_transformer.30} parent=0 // loop_header
    %s15 = sphi 0, %s19
    %p16 = scmp.ge.s32.totalorder %s15, 4
    %s22 = sphi 0, %s41
    %s23 = sphi 0, %s37
    %s24 = sphi 0, %s33
    %s25 = sphi 0, %s22
    %s26 = sphi 0, %s23
    %s27 = sphi 0, %s24
    %s28 = sphi 0, %s25
    %s29 = sphi 0, %s26
    %s30 = sphi 0, %s27
    %s46 = sphi 0, %s48
    %s49 = sphi 0, %s46
    %s50 = sphi 0, %s49
    %s66 = sphi 0, %s50
    %s72 = sphi 0, %s74
    %s75 = sphi 0, %s72
    %s76 = sphi 0, %s75
    %s92 = sphi 0, %s76
    %s98 = sphi 0, %s100
    %s101 = sphi 0, %s98
    %s102 = sphi 0, %s101
    %s118 = sphi 0, %s102
    %s124 = sphi 0, %s126
    %s127 = sphi 0, %s124
    %s128 = sphi 0, %s127
    %s144 = sphi 0, %s128
    %s150 = sphi 0, %s152
    %s153 = sphi 0, %s150
    %s154 = sphi 0, %s153
    %s170 = sphi 0, %s154
    %s176 = sphi 0, %s178
    %s179 = sphi 0, %s176
    %s180 = sphi 0, %s179
    %s196 = sphi 0, %s180
    %s202 = sphi 0, %s204
    %s205 = sphi 0, %s202
    %s206 = sphi 0, %s205
    %s222 = sphi 0, %s206
    %s228 = sphi 0, %s230
    %s231 = sphi 0, %s228
    %s232 = sphi 0, %s231
    %s248 = sphi 0, %s232
    %s252 = sphi 0, %s252
    %s254 = sphi 0, %s252
    %s255 = sphi 0, %s254
    %s269 = sphi 0, %s255
    %s277 = sphi 0, %s279
    %s280 = sphi 0, %s277
    %s281 = sphi 0, %s280
    %s297 = sphi 0, %s281
  $region4: #{latent_array_transformer.30} parent=0 // loop_header_branch
    %18 = sbr.rel (%p16) target = $region8
  $region5: #{latent_array_transformer.30} parent=0 // loop_body
    %s20 = ssub.s32 %s15, 1
    %s21 = ssub.s32 %s15, 2
    %s31 = sadd.s32 1, %s24
    %p32 = scmp.ge.s32.totalorder %s31, 1
    %s33 = scalar_select %p32, 0, %s31
    %s34 = sadd.s32 1, %s23
    %s35 = scalar_select %p32, %s34, %s23
    %p36 = scmp.ge.s32.totalorder %s35, 1
    %s37 = scalar_select %p36, 0, %s35
    %s38 = sadd.s32 1, %s22
    %s39 = scalar_select %p36, %s38, %s22
    %p40 = scmp.ge.s32.totalorder %s39, 2
    %s41 = scalar_select %p40, 0, %s39
    %s42 = ssub.s32 %s22, %s41
    %s43 = ssub.s32 %s23, %s37
    %s44 = sor.u32 %s42, %s43
    %p45 = scmp.eq.s32.totalorder %s44, 0
    %s47 = sadd.s32 %s46, 1
    %s48 = scalar_select %p45, %s46, %s47
    %p51 = pneg %p45
    %p52 = scmp.eq.s32.totalorder %s15, 1
    %p53 = por %p51, %p52
    %p54 = scmp.ne.s32.totalorder %s46, %s49
    %p55 = scmp.eq.s32.totalorder %s15, 0
    %p56 = por %p54, %p55
    %p57 = scmp.ne.s32.totalorder %s46, %s49
    %p58 = scmp.eq.s32.totalorder %s20, 1
    %p59 = por %p57, %p58
    %p60 = scmp.ne.s32.totalorder %s49, %s50
    %p61 = scmp.eq.s32.totalorder %s20, 0
    %p62 = por %p60, %p61
    %p63 = scmp.ne.s32.totalorder %s49, %s50
    %p64 = scmp.eq.s32.totalorder %s21, 1
    %p65 = por %p63, %p64
    %p67 = scmp.ne.s32.totalorder %s50, %s66
    %p68 = scmp.eq.s32.totalorder %s21, 0
    %p69 = por %p67, %p68
    %s70 = ssub.s32 %s22, %s41
    %p71 = scmp.eq.s32.totalorder %s70, 0
    %s73 = sadd.s32 %s72, 1
    %s74 = scalar_select %p71, %s72, %s73
    %p77 = pneg %p71
    %p78 = scmp.eq.s32.totalorder %s15, 1
    %p79 = por %p77, %p78
    %p80 = scmp.ne.s32.totalorder %s72, %s75
    %p81 = scmp.eq.s32.totalorder %s15, 0
    %p82 = por %p80, %p81
    %p83 = scmp.ne.s32.totalorder %s72, %s75
    %p84 = scmp.eq.s32.totalorder %s20, 1
    %p85 = por %p83, %p84
    %p86 = scmp.ne.s32.totalorder %s75, %s76
    %p87 = scmp.eq.s32.totalorder %s20, 0
    %p88 = por %p86, %p87
    %p89 = scmp.ne.s32.totalorder %s75, %s76
    %p90 = scmp.eq.s32.totalorder %s21, 1
    %p91 = por %p89, %p90
    %p93 = scmp.ne.s32.totalorder %s76, %s92
    %p94 = scmp.eq.s32.totalorder %s21, 0
    %p95 = por %p93, %p94
    %s96 = ssub.s32 %s22, %s41
    %p97 = scmp.eq.s32.totalorder %s96, 0
    %s99 = sadd.s32 %s98, 1
    %s100 = scalar_select %p97, %s98, %s99
    %p103 = pneg %p97
    %p104 = scmp.eq.s32.totalorder %s15, 1
    %p105 = por %p103, %p104
    %p106 = scmp.ne.s32.totalorder %s98, %s101
    %p107 = scmp.eq.s32.totalorder %s15, 0
    %p108 = por %p106, %p107
    %p109 = scmp.ne.s32.totalorder %s98, %s101
    %p110 = scmp.eq.s32.totalorder %s20, 1
    %p111 = por %p109, %p110
    %p112 = scmp.ne.s32.totalorder %s101, %s102
    %p113 = scmp.eq.s32.totalorder %s20, 0
    %p114 = por %p112, %p113
    %p115 = scmp.ne.s32.totalorder %s101, %s102
    %p116 = scmp.eq.s32.totalorder %s21, 1
    %p117 = por %p115, %p116
    %p119 = scmp.ne.s32.totalorder %s102, %s118
    %p120 = scmp.eq.s32.totalorder %s21, 0
    %p121 = por %p119, %p120
    %s122 = ssub.s32 %s24, %s33
    %p123 = scmp.eq.s32.totalorder %s122, 0
    %s125 = sadd.s32 %s124, 1
    %s126 = scalar_select %p123, %s124, %s125
    %p129 = pneg %p123
    %p130 = scmp.eq.s32.totalorder %s15, 1
    %p131 = por %p129, %p130
    %p132 = scmp.ne.s32.totalorder %s124, %s127
    %p133 = scmp.eq.s32.totalorder %s15, 0
    %p134 = por %p132, %p133
    %p135 = scmp.ne.s32.totalorder %s124, %s127
    %p136 = scmp.eq.s32.totalorder %s20, 1
    %p137 = por %p135, %p136
    %p138 = scmp.ne.s32.totalorder %s127, %s128
    %p139 = scmp.eq.s32.totalorder %s20, 0
    %p140 = por %p138, %p139
    %p141 = scmp.ne.s32.totalorder %s127, %s128
    %p142 = scmp.eq.s32.totalorder %s21, 1
    %p143 = por %p141, %p142
    %p145 = scmp.ne.s32.totalorder %s128, %s144
    %p146 = scmp.eq.s32.totalorder %s21, 0
    %p147 = por %p145, %p146
    %s148 = ssub.s32 %s24, %s33
    %p149 = scmp.eq.s32.totalorder %s148, 0
    %s151 = sadd.s32 %s150, 1
    %s152 = scalar_select %p149, %s150, %s151
    %p155 = pneg %p149
    %p156 = scmp.eq.s32.totalorder %s15, 1
    %p157 = por %p155, %p156
    %p158 = scmp.ne.s32.totalorder %s150, %s153
    %p159 = scmp.eq.s32.totalorder %s15, 0
    %p160 = por %p158, %p159
    %p161 = scmp.ne.s32.totalorder %s150, %s153
    %p162 = scmp.eq.s32.totalorder %s20, 1
    %p163 = por %p161, %p162
    %p164 = scmp.ne.s32.totalorder %s153, %s154
    %p165 = scmp.eq.s32.totalorder %s20, 0
    %p166 = por %p164, %p165
    %p167 = scmp.ne.s32.totalorder %s153, %s154
    %p168 = scmp.eq.s32.totalorder %s21, 1
    %p169 = por %p167, %p168
    %p171 = scmp.ne.s32.totalorder %s154, %s170
    %p172 = scmp.eq.s32.totalorder %s21, 0
    %p173 = por %p171, %p172
    %s174 = ssub.s32 %s24, %s33
    %p175 = scmp.eq.s32.totalorder %s174, 0
    %s177 = sadd.s32 %s176, 1
    %s178 = scalar_select %p175, %s176, %s177
    %p181 = pneg %p175
    %p182 = scmp.eq.s32.totalorder %s15, 1
    %p183 = por %p181, %p182
    %p184 = scmp.ne.s32.totalorder %s176, %s179
    %p185 = scmp.eq.s32.totalorder %s15, 0
    %p186 = por %p184, %p185
    %p187 = scmp.ne.s32.totalorder %s176, %s179
    %p188 = scmp.eq.s32.totalorder %s20, 1
    %p189 = por %p187, %p188
    %p190 = scmp.ne.s32.totalorder %s179, %s180
    %p191 = scmp.eq.s32.totalorder %s20, 0
    %p192 = por %p190, %p191
    %p193 = scmp.ne.s32.totalorder %s179, %s180
    %p194 = scmp.eq.s32.totalorder %s21, 1
    %p195 = por %p193, %p194
    %p197 = scmp.ne.s32.totalorder %s180, %s196
    %p198 = scmp.eq.s32.totalorder %s21, 0
    %p199 = por %p197, %p198
    %s200 = ssub.s32 %s24, %s33
    %p201 = scmp.eq.s32.totalorder %s200, 0
    %s203 = sadd.s32 %s202, 1
    %s204 = scalar_select %p201, %s202, %s203
    %p207 = pneg %p201
    %p208 = scmp.eq.s32.totalorder %s15, 1
    %p209 = por %p207, %p208
    %p210 = scmp.ne.s32.totalorder %s202, %s205
    %p211 = scmp.eq.s32.totalorder %s15, 0
    %p212 = por %p210, %p211
    %p213 = scmp.ne.s32.totalorder %s202, %s205
    %p214 = scmp.eq.s32.totalorder %s20, 1
    %p215 = por %p213, %p214
    %p216 = scmp.ne.s32.totalorder %s205, %s206
    %p217 = scmp.eq.s32.totalorder %s20, 0
    %p218 = por %p216, %p217
    %p219 = scmp.ne.s32.totalorder %s205, %s206
    %p220 = scmp.eq.s32.totalorder %s21, 1
    %p221 = por %p219, %p220
    %p223 = scmp.ne.s32.totalorder %s206, %s222
    %p224 = scmp.eq.s32.totalorder %s21, 0
    %p225 = por %p223, %p224
    %s226 = ssub.s32 %s24, %s33
    %p227 = scmp.eq.s32.totalorder %s226, 0
    %s229 = sadd.s32 %s228, 1
    %s230 = scalar_select %p227, %s228, %s229
    %p233 = pneg %p227
    %p234 = scmp.eq.s32.totalorder %s15, 1
    %p235 = por %p233, %p234
    %p236 = scmp.ne.s32.totalorder %s228, %s231
    %p237 = scmp.eq.s32.totalorder %s15, 0
    %p238 = por %p236, %p237
    %p239 = scmp.ne.s32.totalorder %s228, %s231
    %p240 = scmp.eq.s32.totalorder %s20, 1
    %p241 = por %p239, %p240
    %p242 = scmp.ne.s32.totalorder %s231, %s232
    %p243 = scmp.eq.s32.totalorder %s20, 0
    %p244 = por %p242, %p243
    %p245 = scmp.ne.s32.totalorder %s231, %s232
    %p246 = scmp.eq.s32.totalorder %s21, 1
    %p247 = por %p245, %p246
    %p249 = scmp.ne.s32.totalorder %s232, %s248
    %p250 = scmp.eq.s32.totalorder %s21, 0
    %p251 = por %p249, %p250
    %s253 = sadd.s32 %s252, 1
    %p256 = scmp.eq.s32.totalorder %s15, 1
    %p257 = scmp.ne.s32.totalorder %s252, %s254
    %p258 = scmp.eq.s32.totalorder %s15, 0
    %p259 = por %p257, %p258
    %p260 = scmp.ne.s32.totalorder %s252, %s254
    %p261 = scmp.eq.s32.totalorder %s20, 1
    %p262 = por %p260, %p261
    %p263 = scmp.ne.s32.totalorder %s254, %s255
    %p264 = scmp.eq.s32.totalorder %s20, 0
    %p265 = por %p263, %p264
    %p266 = scmp.ne.s32.totalorder %s254, %s255
    %p267 = scmp.eq.s32.totalorder %s21, 1
    %p268 = por %p266, %p267
    %p270 = scmp.ne.s32.totalorder %s255, %s269
    %p271 = scmp.eq.s32.totalorder %s21, 0
    %p272 = por %p270, %p271
    %s273 = ssub.s32 %s22, %s41
    %s274 = ssub.s32 %s23, %s37
    %s275 = sor.u32 %s273, %s274
    %p276 = scmp.eq.s32.totalorder %s275, 0
    %s278 = sadd.s32 %s277, 1
    %s279 = scalar_select %p276, %s277, %s278
    %p282 = pneg %p276
    %p283 = scmp.eq.s32.totalorder %s15, 1
    %p284 = por %p282, %p283
    %p285 = scmp.ne.s32.totalorder %s277, %s280
    %p286 = scmp.eq.s32.totalorder %s15, 0
    %p287 = por %p285, %p286
    %p288 = scmp.ne.s32.totalorder %s277, %s280
    %p289 = scmp.eq.s32.totalorder %s20, 1
    %p290 = por %p288, %p289
    %p291 = scmp.ne.s32.totalorder %s280, %s281
    %p292 = scmp.eq.s32.totalorder %s20, 0
    %p293 = por %p291, %p292
    %p294 = scmp.ne.s32.totalorder %s280, %s281
    %p295 = scmp.eq.s32.totalorder %s21, 1
    %p296 = por %p294, %p295
    %p298 = scmp.ne.s32.totalorder %s281, %s297
    %p299 = scmp.eq.s32.totalorder %s21, 0
    %p300 = por %p298, %p299
    %p301 = scmp.le.s32.totalorder 1, %s15
    %p302 = scmp.lt.s32.totalorder %s15, 3
    %p303 = pnand %p301, %p302
    %p304 = pneg %p303
    // Predicated region
    $region9: #{latent_array_transformer.30} parent=5 // pred_check
      _
    $region10: #{latent_array_transformer.30} parent=5 // pred_check_branch
      %306 = sbr.rel (%p303) target = $region12
    $region11: #{latent_array_transformer.30} parent=5 // pred_region
      %s307 = ssub.s32 %s15, 1
      // Predicated region
      $region13: #{latent_array_transformer.30} parent=11 // pred_check
        %p308 = pneg %p140
      $region14: #{latent_array_transformer.30} parent=11 // pred_check_branch
        %310 = sbr.rel (%p308) target = $region16
      $region15: #{latent_array_transformer.30} parent=11 // pred_region
        %s311 = smul.u32 2, %s27
        %p312 = scmp.lt.s32.totalorder %s311, 1
        %s313 = scalar_select %p312, %s311, 1
        %s314 = smul.addr %s313, 4
        %s315 = scalar_lea.vmem %s3, %s314
        %s316 = smul.u32 2, %s27
      $region16: #{latent_array_transformer.30} parent=11 // pred_fallthru
        _
      // Predicated region
      $region17: #{latent_array_transformer.30} parent=11 // pred_check
        %p317 = pneg %p166
      $region18: #{latent_array_transformer.30} parent=11 // pred_check_branch
        %319 = sbr.rel (%p317) target = $region20
      $region19: #{latent_array_transformer.30} parent=11 // pred_region
        %s320 = smul.u32 2, %s27
        %p321 = scmp.lt.s32.totalorder %s320, 1
        %s322 = scalar_select %p321, %s320, 1
        %s323 = smul.addr %s322, 4
        %s324 = scalar_lea.vmem %s4, %s323
        %s325 = smul.u32 2, %s27
      $region20: #{latent_array_transformer.30} parent=11 // pred_fallthru
        _
      // Predicated region
      $region21: #{latent_array_transformer.30} parent=11 // pred_check
        %p326 = pneg %p192
      $region22: #{latent_array_transformer.30} parent=11 // pred_check_branch
        %328 = sbr.rel (%p326) target = $region24
      $region23: #{latent_array_transformer.30} parent=11 // pred_region
        %s329 = smul.u32 2, %s27
        %p330 = scmp.lt.s32.totalorder %s329, 1
        %s331 = scalar_select %p330, %s329, 1
        %s332 = scalar_lea.vmem %s5, %s331
        %s333 = smul.u32 2, %s27
      $region24: #{latent_array_transformer.30} parent=11 // pred_fallthru
        _
      // Predicated region
      $region25: #{latent_array_transformer.30} parent=11 // pred_check
        %p334 = pneg %p218
      $region26: #{latent_array_transformer.30} parent=11 // pred_check_branch
        %336 = sbr.rel (%p334) target = $region28
      $region27: #{latent_array_transformer.30} parent=11 // pred_region
        %s337 = smul.u32 2, %s27
        %p338 = scmp.lt.s32.totalorder %s337, 1
        %s339 = scalar_select %p338, %s337, 1
        %s340 = scalar_lea.vmem %s6, %s339
        %s341 = smul.u32 2, %s27
      $region28: #{latent_array_transformer.30} parent=11 // pred_fallthru
        _
      // Predicated region
      $region29: #{latent_array_transformer.30} parent=11 // pred_check
        %p342 = pneg %p244
      $region30: #{latent_array_transformer.30} parent=11 // pred_check_branch
        %344 = sbr.rel (%p342) target = $region32
      $region31: #{latent_array_transformer.30} parent=11 // pred_region
        %s345 = smul.u32 32, %s27
        %p346 = scmp.lt.s32.totalorder %s345, 31
        %s347 = scalar_select %p346, %s345, 31
        %s348 = smul.addr %s347, 4
        %s349 = scalar_lea.vmem %s7, %s348
        %s350 = smul.u32 32, %s27
      $region32: #{latent_array_transformer.30} parent=11 // pred_fallthru
        _
      // Predicated region
      $region33: #{latent_array_transformer.30} parent=11 // pred_check
        %p351 = pneg %p265
      $region34: #{latent_array_transformer.30} parent=11 // pred_check_branch
        %353 = sbr.rel (%p351) target = $region36
      $region35: #{latent_array_transformer.30} parent=11 // pred_region
        _
      $region36: #{latent_array_transformer.30} parent=11 // pred_fallthru
        _
    $region12: #{latent_array_transformer.30} parent=5 // pred_fallthru
      _
    %p354 = scmp.lt.s32.totalorder %s15, 2
    // Predicated region
    $region37: #{latent_array_transformer.30} parent=5 // pred_check
      %p355 = pneg %p354
    $region38: #{latent_array_transformer.30} parent=5 // pred_check_branch
      %357 = sbr.rel (%p355) target = $region40
    $region39: #{latent_array_transformer.30} parent=5 // pred_region
      // Predicated region
      $region41: #{latent_array_transformer.30} parent=39 // pred_check
        %p358 = pneg %p56
      $region42: #{latent_array_transformer.30} parent=39 // pred_check_branch
        %360 = sbr.rel (%p358) target = $region44
      $region43: #{latent_array_transformer.30} parent=39 // pred_region
        %p361 = scmp.lt.s32.totalorder %s22, 1
        %s362 = scalar_select %p361, %s22, 1
        %p363 = scmp.lt.s32.totalorder %s23, 0
        %s364 = scalar_select %p363, %s23, 0
        %s365 = sadd.s32 %s364, %s362
        %s366 = smul.addr %s365, 8
        %s367 = scalar_lea.vmem %s0, %s366
      $region44: #{latent_array_transformer.30} parent=39 // pred_fallthru
        _
      // Predicated region
      $region45: #{latent_array_transformer.30} parent=39 // pred_check
        %p368 = pneg %p82
      $region46: #{latent_array_transformer.30} parent=39 // pred_check_branch
        %370 = sbr.rel (%p368) target = $region48
      $region47: #{latent_array_transformer.30} parent=39 // pred_region
        %p371 = scmp.lt.s32.totalorder %s22, 1
        %s372 = scalar_select %p371, %s22, 1
        %s373 = scalar_lea.vmem %s1, %s372
      $region48: #{latent_array_transformer.30} parent=39 // pred_fallthru
        _
      // Predicated region
      $region49: #{latent_array_transformer.30} parent=39 // pred_check
        %p374 = pneg %p108
      $region50: #{latent_array_transformer.30} parent=39 // pred_check_branch
        %376 = sbr.rel (%p374) target = $region52
      $region51: #{latent_array_transformer.30} parent=39 // pred_region
        %p377 = scmp.lt.s32.totalorder %s22, 1
        %s378 = scalar_select %p377, %s22, 1
        %s379 = scalar_lea.vmem %s2, %s378
      $region52: #{latent_array_transformer.30} parent=39 // pred_fallthru
        _
    $region40: #{latent_array_transformer.30} parent=5 // pred_fallthru
      _
    %p380 = scmp.le.s32.totalorder 1, %s15
    %p381 = scmp.lt.s32.totalorder %s15, 3
    %p382 = pnand %p380, %p381
    %p383 = pneg %p382
    // Predicated region
    $region53: #{latent_array_transformer.30} parent=5 // pred_check
      _
    $region54: #{latent_array_transformer.30} parent=5 // pred_check_branch
      %385 = sbr.rel (%p382) target = $region56
    $region55: #{latent_array_transformer.30} parent=5 // pred_region
      %s386 = ssub.s32 %s15, 1
      %p387 = scmp.lt.s32.totalorder %s25, 1
      %s388 = scalar_select %p387, %s25, 1
      %p389 = scmp.lt.s32.totalorder %s26, 0
      %s390 = scalar_select %p389, %s26, 0
      %s391 = sadd.s32 %s390, %s388
      %s392 = smul.addr %s391, 8
      %s393 = scalar_lea.vmem %s0, %s392
      %p394 = pneg %p62
      %p395 = pneg %p59
      %p396 = scmp.lt.s32.totalorder %s25, 1
      %s397 = scalar_select %p396, %s25, 1
      %s398 = scalar_lea.vmem %s1, %s397
      %p399 = pneg %p88
      %p400 = pneg %p85
      %p401 = scmp.lt.s32.totalorder %s25, 1
      %s402 = scalar_select %p401, %s25, 1
      %s403 = scalar_lea.vmem %s2, %s402
      %p404 = pneg %p114
      %p405 = pneg %p111
      %s406 = smul.u32 2, %s27
      %p407 = scmp.lt.s32.totalorder %s406, 1
      %s408 = scalar_select %p407, %s406, 1
      %s409 = smul.addr %s408, 4
      %s410 = scalar_lea.vmem %s3, %s409
      %p411 = pneg %p140
      %p412 = pneg %p137
      %s413 = smul.u32 2, %s27
      %p414 = scmp.lt.s32.totalorder %s413, 1
      %s415 = scalar_select %p414, %s413, 1
      %s416 = smul.addr %s415, 4
      %s417 = scalar_lea.vmem %s4, %s416
      %p418 = pneg %p166
      %p419 = pneg %p163
      %s420 = smul.u32 2, %s27
      %p421 = scmp.lt.s32.totalorder %s420, 1
      %s422 = scalar_select %p421, %s420, 1
      %s423 = scalar_lea.vmem %s5, %s422
      %p424 = pneg %p192
      %p425 = pneg %p189
      %s426 = smul.u32 2, %s27
      %p427 = scmp.lt.s32.totalorder %s426, 1
      %s428 = scalar_select %p427, %s426, 1
      %s429 = scalar_lea.vmem %s6, %s428
      %p430 = pneg %p218
      %p431 = pneg %p215
      %s432 = smul.u32 32, %s27
      %p433 = scmp.lt.s32.totalorder %s432, 31
      %s434 = scalar_select %p433, %s432, 31
      %s435 = smul.addr %s434, 4
      %s436 = scalar_lea.vmem %s7, %s435
      %p437 = pneg %p244
      %p438 = pneg %p241
      %p439 = pneg %p265
      %p440 = pneg %p262
      %p441 = pneg %p293
      %p442 = pneg %p290
      %p443 = scmp.lt.s32.totalorder %s25, 1
      %s444 = scalar_select %p443, %s25, 1
      %p445 = scmp.lt.s32.totalorder %s26, 0
      %s446 = scalar_select %p445, %s26, 0
      %s447 = sadd.s32 %s446, %s444
      %s448 = smul.addr %s447, 8
      %s449 = scalar_lea.vmem %s9, %s448
      %p450 = scmp.lt.s32.totalorder %s25, 1
      %s451 = scalar_select %p450, %s25, 1
      %p452 = scmp.lt.s32.totalorder %s26, 0
      %s453 = scalar_select %p452, %s26, 0
      %s454 = sadd.s32 %s453, %s451
      %s455 = smul.addr %s454, 8
      %s456 = scalar_lea.vmem %s0, %s455
      %p457 = scmp.lt.s32.totalorder %s25, 1
      %s458 = scalar_select %p457, %s25, 1
      %s459 = scalar_lea.vmem %s1, %s458
      %p460 = scmp.lt.s32.totalorder %s25, 1
      %s461 = scalar_select %p460, %s25, 1
      %s462 = scalar_lea.vmem %s2, %s461
      %s463 = smul.u32 2, %s27
      %p464 = scmp.lt.s32.totalorder %s463, 1
      %s465 = scalar_select %p464, %s463, 1
      %s466 = smul.addr %s465, 4
      %s467 = scalar_lea.vmem %s3, %s466
      %s468 = smul.u32 2, %s27
      %s469 = smul.u32 2, %s27
      %p470 = scmp.lt.s32.totalorder %s469, 1
      %s471 = scalar_select %p470, %s469, 1
      %s472 = smul.addr %s471, 4
      %s473 = scalar_lea.vmem %s4, %s472
      %s474 = smul.u32 2, %s27
      %s475 = smul.u32 2, %s27
      %p476 = scmp.lt.s32.totalorder %s475, 1
      %s477 = scalar_select %p476, %s475, 1
      %s478 = scalar_lea.vmem %s5, %s477
      %s479 = smul.u32 2, %s27
      %s480 = smul.u32 2, %s27
      %p481 = scmp.lt.s32.totalorder %s480, 1
      %s482 = scalar_select %p481, %s480, 1
      %s483 = scalar_lea.vmem %s6, %s482
      %s484 = smul.u32 2, %s27
      %s485 = smul.u32 32, %s27
      %p486 = scmp.lt.s32.totalorder %s485, 31
      %s487 = scalar_select %p486, %s485, 31
      %s488 = smul.addr %s487, 4
      %s489 = scalar_lea.vmem %s7, %s488
      %s490 = smul.u32 32, %s27
      %p491 = scmp.lt.s32.totalorder %s25, 1
      %s492 = scalar_select %p491, %s25, 1
      %p493 = scmp.lt.s32.totalorder %s26, 0
      %s494 = scalar_select %p493, %s26, 0
      %s495 = sadd.s32 %s494, %s492
      %s496 = smul.addr %s495, 8
      %s497 = scalar_lea.vmem %s9, %s496
      %p499 = scmp.eq.s32.totalorder %s27, 0
      // Predicated region
      $region57: #{latent_array_transformer.30} parent=55 // pred_check
        %p500 = pneg %p499
      $region58: #{latent_array_transformer.30} parent=55 // pred_check_branch
        %502 = sbr.rel (%p500) target = $region60
      $region59: #{latent_array_transformer.30} parent=55 // pred_region
        %v503 = vld [vmem:[%s456] sm:$0xff]
        %vm504 = vcmask 523264
        %v505 = vsel %vm504, %v503, 0.0
        %506 = vadd.xlane.f32.xlu0 %v505
        %v507 = vpop.xlane.xlu0 %506
        %v508 = vrcp.pop 64.0
        %v509 = vmul.f32 64.0, %v508
        %v510 = vsub.f32 1.0, %v509
        %v511 = vmul.f32 %v508, %v510
        %v512 = vadd.f32 %v508, %v511
        %vm513 = vweird.f32 %v508
        %v514 = vsel %vm513, %v508, %v512
        %v515 = vmul.f32 %v507, %v514
        %v516 = vsub.f32 %v503, %v515
        %v517 = vmul.f32 %v516, %v516
        %v518 = vsel %vm504, %v517, 0.0
        %519 = vadd.xlane.f32.xlu0 %v518
        %v520 = vpop.xlane.xlu0 %519
        %v521 = vmul.f32 %v520, %v514
        %v522 = vadd.f32 %v521, 1e-05
        %v523 = vrsqrt.pop %v522
        %v524 = vmul.f32 %v523, %v522
        %v525 = vmul.f32 %v524, %v523
        %v526 = vmul.f32 0.5, %v525
        %v527 = vsub.f32 1.5, %v526
        %v528 = vmul.f32 %v523, %v527
        %vm529 = vweird.f32 %v522
        %vm530 = vweird.f32 %v523
        %vm531 = vmor %vm529, %vm530
        %v532 = vsel %vm531, %v523, %v528
        %v533 = vmul.f32 %v516, %v532
        %v534 = vld [vmem:[%s459] sm:$0x1]
        %v535 = vadd.f32 %v534, 1.0
        %v537 = vperm.slane %v535, 0
        %v539 = vmul.f32 %v533, %v537
        %v540 = vld [vmem:[%s462] sm:$0x1]
        %v542 = vperm.slane %v540, 0
        %v544 = vadd.f32 %v539, %v542
        %545 = vst.msk [vmem:[#allocation2] sm:$0xff] %vm504, %v544
        %546 = vst.msk [vmem:[#allocation3] sm:$0xff] %vm504, 0.0
      $region60: #{latent_array_transformer.30} parent=55 // pred_fallthru
        _
      %v547 = vld [vmem:[#allocation2] sm:$0xff]
      %v548 = vpack.c.bf16 %v547, %v547
      %v549 = vld [vmem:[%s467] sm:$0xff]
      %v550 = vld [vmem:[%s467 + $0x8] sm:$0xff]
      %v551 = vld [vmem:[%s467 + $0x10] sm:$0xff]
      %v552 = vld [vmem:[%s467 + $0x18] sm:$0xff]
      %v553 = vld [vmem:[%s467 + $0x20] sm:$0xff]
      %v554 = vld [vmem:[%s467 + $0x28] sm:$0xff]
      %v555 = vld [vmem:[%s467 + $0x30] sm:$0xff]
      %v556 = vld [vmem:[%s467 + $0x38] sm:$0xff]
      %v557 = vld [vmem:[%s478] sm:$0x3]
      %v559 = vperm.slane %v557, 0
      %v560 = vperm.slane %v557, 1
      %v571 = vunpack.c.l.b16 %v549
      %v572 = vunpack.c.h.b16 %v549
      %v573 = vunpack.c.l.b16 %v550
      %v574 = vunpack.c.h.b16 %v550
      %v575 = vunpack.c.l.b16 %v551
      %v576 = vunpack.c.h.b16 %v551
      %v577 = vunpack.c.l.b16 %v552
      %v578 = vunpack.c.h.b16 %v552
      %v579 = vunpack.c.l.b16 %v553
      %v580 = vunpack.c.h.b16 %v553
      %v581 = vunpack.c.l.b16 %v554
      %v582 = vunpack.c.h.b16 %v554
      %v583 = vunpack.c.l.b16 %v555
      %v584 = vunpack.c.h.b16 %v555
      %v585 = vunpack.c.l.b16 %v556
      %v586 = vunpack.c.h.b16 %v556
      %v587 = vpack.c.b16 %v573, %v571
      %v588 = vpack.c.b16 %v574, %v572
      %v589 = vpack.c.b16 %v577, %v575
      %v590 = vpack.c.b16 %v578, %v576
      %v591 = vpack.c.b16 %v581, %v579
      %v592 = vpack.c.b16 %v582, %v580
      %v593 = vpack.c.b16 %v585, %v583
      %v594 = vpack.c.b16 %v586, %v584
      %vm603 = vcmask 523264
      %v605 = vsel %vm603, %v548, 0
      %607 = vmatpush.bf16.msra.mxu0 0
      %608 = vmatpush.bf16.msra.mxu0 0
      %609 = vmatpush.bf16.msra.mxu0 0
      %610 = vmatpush.bf16.msra.mxu0 0
      %611 = vmatpush.bf16.msra.mxu0 %v593
      %612 = vmatpush.bf16.msra.mxu0 %v591
      %613 = vmatpush.bf16.msra.mxu0 %v589
      %614 = vmatpush.bf16.msra.mxu0 %v587
      %615 = vmatmul.bf16.gmra.mxu0 %v605
      %v616 = vpop.f32.mrf.mxu0
      %v617 = vadd.f32 %v559, %v616
      %v618 = vpop.f32.mrf.mxu0
      %619 = vdwg.mxu0
      %620 = vmatpush.bf16.msra.mxu0 0
      %621 = vmatpush.bf16.msra.mxu0 0
      %622 = vmatpush.bf16.msra.mxu0 0
      %623 = vmatpush.bf16.msra.mxu0 0
      %624 = vmatpush.bf16.msra.mxu0 %v594
      %625 = vmatpush.bf16.msra.mxu0 %v592
      %626 = vmatpush.bf16.msra.mxu0 %v590
      %627 = vmatpush.bf16.msra.mxu0 %v588
      %628 = vmatmul.bf16.gmra.mxu0 %v605
      %v629 = vpop.f32.mrf.mxu0
      %v630 = vadd.f32 %v560, %v629
      %v631 = vpop.f32.mrf.mxu0
      %632 = vdwg.mxu0
      %v633 = vld [vmem:[%s473] sm:$0xff]
      %v634 = vld [vmem:[%s473 + $0x8] sm:$0xff]
      %v635 = vld [vmem:[%s473 + $0x10] sm:$0xff]
      %v636 = vld [vmem:[%s473 + $0x18] sm:$0xff]
      %v637 = vld [vmem:[%s473 + $0x20] sm:$0xff]
      %v638 = vld [vmem:[%s473 + $0x28] sm:$0xff]
      %v639 = vld [vmem:[%s473 + $0x30] sm:$0xff]
      %v640 = vld [vmem:[%s473 + $0x38] sm:$0xff]
      %v641 = vld [vmem:[%s483] sm:$0x3]
      %v643 = vperm.slane %v641, 0
      %v644 = vperm.slane %v641, 1
      %v655 = vunpack.c.l.b16 %v633
      %v656 = vunpack.c.h.b16 %v633
      %v657 = vunpack.c.l.b16 %v634
      %v658 = vunpack.c.h.b16 %v634
      %v659 = vunpack.c.l.b16 %v635
      %v660 = vunpack.c.h.b16 %v635
      %v661 = vunpack.c.l.b16 %v636
      %v662 = vunpack.c.h.b16 %v636
      %v663 = vunpack.c.l.b16 %v637
      %v664 = vunpack.c.h.b16 %v637
      %v665 = vunpack.c.l.b16 %v638
      %v666 = vunpack.c.h.b16 %v638
      %v667 = vunpack.c.l.b16 %v639
      %v668 = vunpack.c.h.b16 %v639
      %v669 = vunpack.c.l.b16 %v640
      %v670 = vunpack.c.h.b16 %v640
      %v671 = vpack.c.b16 %v657, %v655
      %v672 = vpack.c.b16 %v658, %v656
      %v673 = vpack.c.b16 %v661, %v659
      %v674 = vpack.c.b16 %v662, %v660
      %v675 = vpack.c.b16 %v665, %v663
      %v676 = vpack.c.b16 %v666, %v664
      %v677 = vpack.c.b16 %v669, %v667
      %v678 = vpack.c.b16 %v670, %v668
      %687 = vmatpush.bf16.msra.mxu0 0
      %688 = vmatpush.bf16.msra.mxu0 0
      %689 = vmatpush.bf16.msra.mxu0 0
      %690 = vmatpush.bf16.msra.mxu0 0
      %691 = vmatpush.bf16.msra.mxu0 %v677
      %692 = vmatpush.bf16.msra.mxu0 %v675
      %693 = vmatpush.bf16.msra.mxu0 %v673
      %694 = vmatpush.bf16.msra.mxu0 %v671
      %695 = vmatmul.bf16.gmra.mxu0 %v605
      %v696 = vpop.f32.mrf.mxu0
      %v697 = vadd.f32 %v643, %v696
      %v698 = vpop.f32.mrf.mxu0
      %699 = vdwg.mxu0
      %700 = vmatpush.bf16.msra.mxu0 0
      %701 = vmatpush.bf16.msra.mxu0 0
      %702 = vmatpush.bf16.msra.mxu0 0
      %703 = vmatpush.bf16.msra.mxu0 0
      %704 = vmatpush.bf16.msra.mxu0 %v678
      %705 = vmatpush.bf16.msra.mxu0 %v676
      %706 = vmatpush.bf16.msra.mxu0 %v674
      %707 = vmatpush.bf16.msra.mxu0 %v672
      %708 = vmatmul.bf16.gmra.mxu0 %v605
      %v709 = vpop.f32.mrf.mxu0
      %v710 = vadd.f32 %v644, %v709
      %v711 = vpop.f32.mrf.mxu0
      %712 = vdwg.mxu0
      %v713 = vmul.f32 %v697, %v697
      %v714 = vmul.f32 %v710, %v710
      %v715 = vmul.f32 %v697, %v713
      %v716 = vmul.f32 %v710, %v714
      %v717 = vmul.f32 %v715, 0.044715
      %v718 = vmul.f32 %v716, 0.044715
      %v719 = vadd.f32 %v697, %v717
      %v720 = vadd.f32 %v710, %v718
      %v721 = vmul.f32 %v719, 0.7978846
      %v722 = vmul.f32 %v720, 0.7978846
      %v723 = vtanh.pop %v721
      %v724 = vtanh.pop %v722
      %v725 = vadd.f32 %v723, 1.0
      %v726 = vadd.f32 %v724, 1.0
      %v727 = vmul.f32 %v725, 0.5
      %v728 = vmul.f32 %v726, 0.5
      %v729 = vmul.f32 %v697, %v727
      %v730 = vmul.f32 %v710, %v728
      %v731 = vmul.f32 %v617, %v729
      %v732 = vmul.f32 %v630, %v730
      %v733 = vld [vmem:[#allocation3] sm:$0xff]
      %v734 = vpack.c.bf16 %v731, %v731
      %v735 = vpack.c.bf16 %v732, %v732
      %v736 = vld [vmem:[%s489] sm:$0xf]
      %v737 = vld [vmem:[%s489 + $0x4] sm:$0xf]
      %v738 = vld [vmem:[%s489 + $0x8] sm:$0xf]
      %v739 = vld [vmem:[%s489 + $0xc] sm:$0xf]
      %v740 = vld [vmem:[%s489 + $0x10] sm:$0xf]
      %v741 = vld [vmem:[%s489 + $0x14] sm:$0xf]
      %v742 = vld [vmem:[%s489 + $0x18] sm:$0xf]
      %v743 = vld [vmem:[%s489 + $0x1c] sm:$0xf]
      %v744 = vld [vmem:[%s489 + $0x20] sm:$0xf]
      %v745 = vld [vmem:[%s489 + $0x24] sm:$0xf]
      %v746 = vld [vmem:[%s489 + $0x28] sm:$0xf]
      %v747 = vld [vmem:[%s489 + $0x2c] sm:$0xf]
      %v748 = vld [vmem:[%s489 + $0x30] sm:$0xf]
      %v749 = vld [vmem:[%s489 + $0x34] sm:$0xf]
      %v750 = vld [vmem:[%s489 + $0x38] sm:$0xf]
      %v751 = vld [vmem:[%s489 + $0x3c] sm:$0xf]
      %v752 = vld [vmem:[%s489 + $0x40] sm:$0xf]
      %v753 = vld [vmem:[%s489 + $0x44] sm:$0xf]
      %v754 = vld [vmem:[%s489 + $0x48] sm:$0xf]
      %v755 = vld [vmem:[%s489 + $0x4c] sm:$0xf]
      %v756 = vld [vmem:[%s489 + $0x50] sm:$0xf]
      %v757 = vld [vmem:[%s489 + $0x54] sm:$0xf]
      %v758 = vld [vmem:[%s489 + $0x58] sm:$0xf]
      %v759 = vld [vmem:[%s489 + $0x5c] sm:$0xf]
      %v760 = vld [vmem:[%s489 + $0x60] sm:$0xf]
      %v761 = vld [vmem:[%s489 + $0x64] sm:$0xf]
      %v762 = vld [vmem:[%s489 + $0x68] sm:$0xf]
      %v763 = vld [vmem:[%s489 + $0x6c] sm:$0xf]
      %v764 = vld [vmem:[%s489 + $0x70] sm:$0xf]
      %v765 = vld [vmem:[%s489 + $0x74] sm:$0xf]
      %v766 = vld [vmem:[%s489 + $0x78] sm:$0xf]
      %v767 = vld [vmem:[%s489 + $0x7c] sm:$0xf]
      %v800 = vunpack.c.l.b16 %v736
      %v801 = vunpack.c.l.b16 %v737
      %v802 = vunpack.c.l.b16 %v738
      %v803 = vunpack.c.l.b16 %v739
      %v804 = vunpack.c.l.b16 %v740
      %v805 = vunpack.c.l.b16 %v741
      %v806 = vunpack.c.l.b16 %v742
      %v807 = vunpack.c.l.b16 %v743
      %v808 = vunpack.c.l.b16 %v744
      %v809 = vunpack.c.l.b16 %v745
      %v810 = vunpack.c.l.b16 %v746
      %v811 = vunpack.c.l.b16 %v747
      %v812 = vunpack.c.l.b16 %v748
      %v813 = vunpack.c.l.b16 %v749
      %v814 = vunpack.c.l.b16 %v750
      %v815 = vunpack.c.l.b16 %v751
      %v816 = vunpack.c.l.b16 %v752
      %v817 = vunpack.c.l.b16 %v753
      %v818 = vunpack.c.l.b16 %v754
      %v819 = vunpack.c.l.b16 %v755
      %v820 = vunpack.c.l.b16 %v756
      %v821 = vunpack.c.l.b16 %v757
      %v822 = vunpack.c.l.b16 %v758
      %v823 = vunpack.c.l.b16 %v759
      %v824 = vunpack.c.l.b16 %v760
      %v825 = vunpack.c.l.b16 %v761
      %v826 = vunpack.c.l.b16 %v762
      %v827 = vunpack.c.l.b16 %v763
      %v828 = vunpack.c.l.b16 %v764
      %v829 = vunpack.c.l.b16 %v765
      %v830 = vunpack.c.l.b16 %v766
      %v831 = vunpack.c.l.b16 %v767
      %v832 = vpack.c.b16 %v801, %v800
      %v833 = vpack.c.b16 %v803, %v802
      %v834 = vpack.c.b16 %v805, %v804
      %v835 = vpack.c.b16 %v807, %v806
      %v836 = vpack.c.b16 %v809, %v808
      %v837 = vpack.c.b16 %v811, %v810
      %v838 = vpack.c.b16 %v813, %v812
      %v839 = vpack.c.b16 %v815, %v814
      %v840 = vpack.c.b16 %v817, %v816
      %v841 = vpack.c.b16 %v819, %v818
      %v842 = vpack.c.b16 %v821, %v820
      %v843 = vpack.c.b16 %v823, %v822
      %v844 = vpack.c.b16 %v825, %v824
      %v845 = vpack.c.b16 %v827, %v826
      %v846 = vpack.c.b16 %v829, %v828
      %v847 = vpack.c.b16 %v831, %v830
      %864 = vmatpush.bf16.msra.mxu0 %v839
      %865 = vmatpush.bf16.msra.mxu0 %v838
      %866 = vmatpush.bf16.msra.mxu0 %v837
      %867 = vmatpush.bf16.msra.mxu0 %v836
      %868 = vmatpush.bf16.msra.mxu0 %v835
      %869 = vmatpush.bf16.msra.mxu0 %v834
      %870 = vmatpush.bf16.msra.mxu0 %v833
      %871 = vmatpush.bf16.msra.mxu0 %v832
      %872 = vmatmul.bf16.gmra.mxu0 %v734
      %v873 = vpop.f32.mrf.mxu0
      %v874 = vadd.f32 0.0, %v873
      %v875 = vpop.f32.mrf.mxu0
      %876 = vdwg.mxu0
      %877 = vmatpush.bf16.msra.mxu0 %v847
      %878 = vmatpush.bf16.msra.mxu0 %v846
      %879 = vmatpush.bf16.msra.mxu0 %v845
      %880 = vmatpush.bf16.msra.mxu0 %v844
      %881 = vmatpush.bf16.msra.mxu0 %v843
      %882 = vmatpush.bf16.msra.mxu0 %v842
      %883 = vmatpush.bf16.msra.mxu0 %v841
      %884 = vmatpush.bf16.msra.mxu0 %v840
      %885 = vmatmul.bf16.gmra.mxu0 %v735
      %v886 = vpop.f32.mrf.mxu0
      %v887 = vadd.f32 %v874, %v886
      %v888 = vpop.f32.mrf.mxu0
      %889 = vdwg.mxu0
      %v890 = vadd.f32 %v733, %v887
      %891 = vst.msk [vmem:[#allocation3] sm:$0xff] %vm603, %v890
      // Predicated region
      $region61: #{latent_array_transformer.30} parent=55 // pred_check
        %p892 = pneg %p499
      $region62: #{latent_array_transformer.30} parent=55 // pred_check_branch
        %894 = sbr.rel (%p892) target = $region64
      $region63: #{latent_array_transformer.30} parent=55 // pred_region
        %v895 = vld [vmem:[#allocation3] sm:$0xff]
        %v896 = vld [vmem:[%s8] sm:$0x1]
        %v898 = vperm.slane %v896, 0
        %v900 = vadd.f32 %v895, %v898
        %v901 = vld [vmem:[%s456] sm:$0xff]
        %v902 = vadd.f32 %v900, %v901
        %903 = vst.msk [vmem:[%s497] sm:$0xff] %vm603, %v902
      $region64: #{latent_array_transformer.30} parent=55 // pred_fallthru
        _
      %p904 = scmp.lt.s32.totalorder %s25, 1
      %s905 = scalar_select %p904, %s25, 1
      %p906 = scmp.lt.s32.totalorder %s26, 0
      %s907 = scalar_select %p906, %s26, 0
      %s908 = sadd.s32 %s907, %s905
      %s909 = smul.addr %s908, 8
      %s910 = scalar_lea.vmem %s9, %s909
      // Predicated region
      $region65: #{latent_array_transformer.30} parent=55 // pred_check
        %p911 = pneg %p290
      $region66: #{latent_array_transformer.30} parent=55 // pred_check_branch
        %913 = sbr.rel (%p911) target = $region68
      $region67: #{latent_array_transformer.30} parent=55 // pred_region
        _
      $region68: #{latent_array_transformer.30} parent=55 // pred_fallthru
        _
    $region56: #{latent_array_transformer.30} parent=5 // pred_fallthru
      _
    %p914 = scmp.le.s32.totalorder 2, %s15
    // Predicated region
    $region69: #{latent_array_transformer.30} parent=5 // pred_check
      %p915 = pneg %p914
    $region70: #{latent_array_transformer.30} parent=5 // pred_check_branch
      %917 = sbr.rel (%p915) target = $region72
    $region71: #{latent_array_transformer.30} parent=5 // pred_region
      %s918 = ssub.s32 %s15, 2
      // Predicated region
      $region73: #{latent_array_transformer.30} parent=71 // pred_check
        %p919 = pneg %p296
      $region74: #{latent_array_transformer.30} parent=71 // pred_check_branch
        %921 = sbr.rel (%p919) target = $region76
      $region75: #{latent_array_transformer.30} parent=71 // pred_region
        %p922 = scmp.lt.s32.totalorder %s28, 1
        %s923 = scalar_select %p922, %s28, 1
        %p924 = scmp.lt.s32.totalorder %s29, 0
        %s925 = scalar_select %p924, %s29, 0
        %s926 = sadd.s32 %s925, %s923
        %s927 = smul.addr %s926, 8
        %s928 = scalar_lea.vmem %s9, %s927
      $region76: #{latent_array_transformer.30} parent=71 // pred_fallthru
        _
    $region72: #{latent_array_transformer.30} parent=5 // pred_fallthru
      _
  $region6: #{latent_array_transformer.30} parent=0 // loop_footer
    %s19 = sadd.s32 1, %s15
  $region7: #{latent_array_transformer.30} parent=0 // loop_footer_branch
    %14 = sbr.rel target = $region3
  $region8: #{latent_array_transformer.30} parent=0 // loop_exit
    _

// kernel: latent_array_transformer.31
$region0: #{latent_array_transformer.31}
  #allocation0 [shape = 'u32[]', space=smem, size = 0x4, offset = 0x4, fixed_abs, tag = 'smem constant byte address 0x4 - core index']
  #allocation1 [shape = 'u32[72,128]{1,0:T(1,128)}', space=vmem, size = 0x9000, scoped, tag = 'internal scratch']
  %s0 = inlined_call_operand.vmem [shape: f32[16,64], index: 0, kind: input, shape index: {}]
  %s1 = inlined_call_operand.vmem [shape: f32[1,64], index: 1, kind: input, shape index: {}]
  %s2 = inlined_call_operand.vmem [shape: f32[1,64], index: 2, kind: input, shape index: {}]
  %s3 = inlined_call_operand.vmem [shape: bf16[64,16], index: 3, kind: input, shape index: {}]
  %s4 = inlined_call_operand.hbm [shape: f32[16,16], index: 4, kind: output, shape index: {}]
  %s5 = sld [smem:[#allocation0]]
  $region26: #{latent_array_transformer.31} parent=0
    _
  %s7 = ssub.s32 1, %s5
  %s8 = scalar_select 0, %s7, %s5
  $region1: #{latent_array_transformer.31} parent=0
    #allocation2 [shape = 'u8[8192]{0}', space=vmem, size = 0x2000, scoped, tag = 'output window, operand 0, single buffered']
    #allocation3 [shape = 's32[1]{0}', space=sflag, size = 0x4, scoped, tag = 'scoped memory for latent_array_transformer.31']
    %9 = vsyncpa [#allocation3], 0
    // Predicated region
    $region2: #{latent_array_transformer.31} parent=1 // pred_check
      _
    $region3: #{latent_array_transformer.31} parent=1 // pred_check_branch
      %11 = sbr.rel (0) target = $region5
    $region4: #{latent_array_transformer.31} parent=1 // pred_region
      _
    $region5: #{latent_array_transformer.31} parent=1 // pred_fallthru
      _
    // Predicated region
    $region6: #{latent_array_transformer.31} parent=1 // pred_check
      _
    $region7: #{latent_array_transformer.31} parent=1 // pred_check_branch
      %13 = sbr.rel (0) target = $region9
    $region8: #{latent_array_transformer.31} parent=1 // pred_region
      _
    $region9: #{latent_array_transformer.31} parent=1 // pred_fallthru
      _
    // Predicated region
    $region10: #{latent_array_transformer.31} parent=1 // pred_check
      _
    $region11: #{latent_array_transformer.31} parent=1 // pred_check_branch
      %15 = sbr.rel (0) target = $region13
    $region12: #{latent_array_transformer.31} parent=1 // pred_region
      _
    $region13: #{latent_array_transformer.31} parent=1 // pred_fallthru
      _
    // Predicated region
    $region14: #{latent_array_transformer.31} parent=1 // pred_check
      _
    $region15: #{latent_array_transformer.31} parent=1 // pred_check_branch
      %17 = sbr.rel (0) target = $region17
    $region16: #{latent_array_transformer.31} parent=1 // pred_region
      _
    $region17: #{latent_array_transformer.31} parent=1 // pred_fallthru
      _
    %v19 = vld [vmem:[%s0] sm:$0xff]
    %v20 = vld [vmem:[%s0 + $0x8] sm:$0xff]
    %vm21 = vcmask 523264
    %v22 = vsel %vm21, %v19, 0.0
    %23 = vadd.xlane.f32.xlu0 %v22
    %v24 = vpop.xlane.xlu0 %23
    %v25 = vsel %vm21, %v20, 0.0
    %26 = vadd.xlane.f32.xlu0 %v25
    %v27 = vpop.xlane.xlu0 %26
    %v28 = vrcp.pop 64.0
    %v29 = vmul.f32 64.0, %v28
    %v30 = vsub.f32 1.0, %v29
    %v31 = vmul.f32 %v28, %v30
    %v32 = vadd.f32 %v28, %v31
    %vm33 = vweird.f32 %v28
    %v34 = vsel %vm33, %v28, %v32
    %v35 = vmul.f32 %v24, %v34
    %v36 = vmul.f32 %v27, %v34
    %v37 = vsub.f32 %v19, %v35
    %v38 = vsub.f32 %v20, %v36
    %v39 = vmul.f32 %v37, %v37
    %v40 = vmul.f32 %v38, %v38
    %v41 = vsel %vm21, %v39, 0.0
    %42 = vadd.xlane.f32.xlu0 %v41
    %v43 = vpop.xlane.xlu0 %42
    %v44 = vsel %vm21, %v40, 0.0
    %45 = vadd.xlane.f32.xlu0 %v44
    %v46 = vpop.xlane.xlu0 %45
    %v47 = vmul.f32 %v43, %v34
    %v48 = vmul.f32 %v46, %v34
    %v49 = vadd.f32 %v47, 1e-05
    %v50 = vadd.f32 %v48, 1e-05
    %v51 = vrsqrt.pop %v49
    %v52 = vmul.f32 %v51, %v49
    %v53 = vmul.f32 %v52, %v51
    %v54 = vmul.f32 0.5, %v53
    %v55 = vsub.f32 1.5, %v54
    %v56 = vmul.f32 %v51, %v55
    %vm57 = vweird.f32 %v49
    %vm58 = vweird.f32 %v51
    %vm59 = vmor %vm57, %vm58
    %v60 = vsel %vm59, %v51, %v56
    %v61 = vrsqrt.pop %v50
    %v62 = vmul.f32 %v61, %v50
    %v63 = vmul.f32 %v62, %v61
    %v64 = vmul.f32 0.5, %v63
    %v65 = vsub.f32 1.5, %v64
    %v66 = vmul.f32 %v61, %v65
    %vm67 = vweird.f32 %v50
    %vm68 = vweird.f32 %v61
    %vm69 = vmor %vm67, %vm68
    %v70 = vsel %vm69, %v61, %v66
    %v71 = vmul.f32 %v37, %v60
    %v72 = vmul.f32 %v38, %v70
    %v73 = vld [vmem:[%s1] sm:$0x1]
    %v75 = vperm.slane %v73, 0
    %v77 = vmul.f32 %v71, %v75
    %v78 = vmul.f32 %v72, %v75
    %v79 = vld [vmem:[%s2] sm:$0x1]
    %v81 = vperm.slane %v79, 0
    %v83 = vadd.f32 %v77, %v81
    %v84 = vadd.f32 %v78, %v81
    %v85 = vpack.c.bf16 %v84, %v83
    %v86 = vld [vmem:[%s3] sm:$0xf]
    %v87 = vld [vmem:[%s3 + $0x4] sm:$0xf]
    %v88 = vld [vmem:[%s3 + $0x8] sm:$0xf]
    %v89 = vld [vmem:[%s3 + $0xc] sm:$0xf]
    %v90 = vld [vmem:[%s3 + $0x10] sm:$0xf]
    %v91 = vld [vmem:[%s3 + $0x14] sm:$0xf]
    %v92 = vld [vmem:[%s3 + $0x18] sm:$0xf]
    %v93 = vld [vmem:[%s3 + $0x1c] sm:$0xf]
    %v102 = vunpack.c.l.b16 %v86
    %v103 = vunpack.c.l.b16 %v87
    %v104 = vunpack.c.l.b16 %v88
    %v105 = vunpack.c.l.b16 %v89
    %v106 = vunpack.c.l.b16 %v90
    %v107 = vunpack.c.l.b16 %v91
    %v108 = vunpack.c.l.b16 %v92
    %v109 = vunpack.c.l.b16 %v93
    %v110 = vpack.c.b16 %v103, %v102
    %v111 = vpack.c.b16 %v105, %v104
    %v112 = vpack.c.b16 %v107, %v106
    %v113 = vpack.c.b16 %v109, %v108
    %v119 = vsel %vm21, %v85, 0
    %121 = vmatpush.bf16.msra.mxu0 0
    %122 = vmatpush.bf16.msra.mxu0 0
    %123 = vmatpush.bf16.msra.mxu0 0
    %124 = vmatpush.bf16.msra.mxu0 0
    %125 = vmatpush.bf16.msra.mxu0 %v113
    %126 = vmatpush.bf16.msra.mxu0 %v112
    %127 = vmatpush.bf16.msra.mxu0 %v111
    %128 = vmatpush.bf16.msra.mxu0 %v110
    %129 = vmatmul.bf16.gmra.mxu0 %v119
    %v130 = vpop.f32.mrf.mxu0
    %v131 = vadd.f32 0.0, %v130
    %v132 = vpop.f32.mrf.mxu0
    %v133 = vadd.f32 0.0, %v132
    %134 = vdwg.mxu0
    %vm135 = vcmask 130048
    %136 = vst.msk [vmem:[#allocation2] sm:$0xff] %vm135, %v131
    %137 = vst.msk [vmem:[#allocation2 + $0x8] sm:$0xff] %vm135, %v133
    // Predicated region
    $region18: #{latent_array_transformer.31} parent=1 // pred_check
      _
    $region19: #{latent_array_transformer.31} parent=1 // pred_check_branch
      %139 = sbr.rel (0) target = $region21
    $region20: #{latent_array_transformer.31} parent=1 // pred_region
      %141 = vsyncadd [#allocation3], 0
      %s142 = sshll.u32 [#allocation2], 4
      %s143 = int_to_ptr.vmem [resolvable:$true] %s142
      %s144 = sshll.u32 %s4, 4
      %s145 = int_to_ptr.hbm [resolvable:$true] %s144
      %150 = dma.vmem_to_hbm [thread:$0]  %s143, 256, %s145, [#allocation3], 128, 128, 8
    $region21: #{latent_array_transformer.31} parent=1 // pred_fallthru
      _
    // Predicated region
    $region22: #{latent_array_transformer.31} parent=1 // pred_check
      _
    $region23: #{latent_array_transformer.31} parent=1 // pred_check_branch
      %152 = sbr.rel (0) target = $region25
    $region24: #{latent_array_transformer.31} parent=1 // pred_region
      %154 = dma.done [#allocation3], 256
    $region25: #{latent_array_transformer.31} parent=1 // pred_fallthru
      _
    %155 = vsyncpa [#allocation3], 1

</llo_original>
